<compile_context>
chip_gen: v7x
topology: tpu7x:2x2x1
jax: 0.10.0
libtpu: 0.0.40
codegen_flags: <defaults>
</compile_context>

<pallas_src>
import functools

import jax
import jax.numpy as jnp
from jax.experimental import pallas as pl
from jax.experimental.pallas import tpu as pltpu


def _round_up(x, m):
    return (x + m - 1) // m * m


# ----------------------------- fused Pallas kernel -----------------------------

def _fused_gnn_kernel(*refs, tn, K):
    (x0_ref, nrm_ref,
     l1_w1, l1_b1, l1_w2, l1_b2,
     g1_we, g1_wn, g1_b1, g1_w2, g1_b2,
     l2_we, l2_wn, l2_b1, l2_w2, l2_b2,
     g2_w1, g2_b1, g2_w2, g2_b2,
     l3_we, l3_wn, l3_b1, l3_w2, l3_b2,
     g3_w1, g3_b1, g3_w2, g3_b2,
     l4_we, l4_wn, l4_wr, l4_b1, l4_w2bd, l4_b2,
     out_ref) = refs

    f32 = jnp.float32
    inv_k = 1.0 / K

    def mm(w, x):
        return jnp.dot(w, x, preferred_element_type=f32)

    nrm = nrm_ref[...]                                   # (3, tn)

    # Edge features, edges-on-lanes: lane block k of x0_e holds neighbor k of
    # every node in the tile.  x0_ref is (K*8, tn) with row k*8 + c; the sublane
    # slices are aligned, the concat is K aligned lane-block copies.
    x0_e = jnp.concatenate(
        [x0_ref[8 * k:8 * (k + 1), :] for k in range(K)], axis=1)   # (8, te)

    def mean_over_k(y):                                  # (C, te) -> (C, tn)
        acc = y[:, 0:tn]
        for k in range(1, K):
            acc = acc + y[:, k * tn:(k + 1) * tn]
        return acc * inv_k

    def node_mlp(x_n, w1, b1, w2, b2):                   # (Cin, tn) -> (Cout, tn)
        h = jnp.maximum(mm(w1[...], x_n) + b1[...], 0.0)
        return mm(w2[...], h) + b2[...]

    def edge_mlp(x_e, w_e, nb, w2, b2):
        # nb is the hoisted per-node term (node matmul + bias), (H, tn); it is
        # added once per K lane-block, relu fuses per block, and the concat is
        # aligned lane-block copies.
        h = mm(w_e[...], x_e)                            # (H, te)
        h = jnp.concatenate(
            [jnp.maximum(h[:, k * tn:(k + 1) * tn] + nb, 0.0) for k in range(K)],
            axis=1)
        return mm(w2[...], h) + b2[...]                  # (Cout, te)

    # ---- layer1 (bias only; broadcasts over lanes)
    h1 = jnp.maximum(mm(l1_w1[...], x0_e) + l1_b1[...], 0.0)
    e1 = mm(l1_w2[...], h1) + l1_b2[...]                 # (16, te)

    # ---- layerg on [mean_k(e1); normals]  (first Linear split row-wise)
    hg = jnp.maximum(mm(g1_we[...], mean_over_k(e1)) + mm(g1_wn[...], nrm)
                     + g1_b1[...], 0.0)
    xg1 = mm(g1_w2[...], hg) + g1_b2[...]                # (8, tn)

    # ---- layer2 on [e1; xg1[rows]] + layerg2
    nb2 = mm(l2_wn[...], xg1) + l2_b1[...]               # (32, tn)
    e2 = edge_mlp(e1, l2_we, nb2, l2_w2, l2_b2)          # (16, te)
    xg2 = node_mlp(mean_over_k(e2), g2_w1, g2_b1, g2_w2, g2_b2)    # (8, tn)

    # ---- layer3 on [e2; xg2[rows]] + layerg3
    nb3 = mm(l3_wn[...], xg2) + l3_b1[...]
    e3 = edge_mlp(e2, l3_we, nb3, l3_w2, l3_b2)          # (16, te)
    xg3 = node_mlp(mean_over_k(e3), g3_w1, g3_b1, g3_w2, g3_b2)    # (12, tn)

    # ---- quaternion head
    # TODO(synk): QuatToMat is a custom autograd op in the source; the standard
    # (w, x, y, z) quaternion -> rotation matrix formula is used for the forward.
    qw, qx, qy, qz = xg3[0:1, :], xg3[1:2, :], xg3[2:3, :], xg3[3:4, :]
    inv_qn = 1.0 / (jnp.sqrt(qw * qw + qx * qx + qy * qy + qz * qz) + 1e-8)
    qw, qx, qy, qz = qw * inv_qn, qx * inv_qn, qy * inv_qn, qz * inv_qn
    m00 = 1.0 - 2.0 * (qy * qy + qz * qz)
    m01 = 2.0 * (qx * qy - qz * qw)
    m02 = 2.0 * (qx * qz + qy * qw)
    m10 = 2.0 * (qx * qy + qz * qw)
    m11 = 1.0 - 2.0 * (qx * qx + qz * qz)
    m12 = 2.0 * (qy * qz - qx * qw)
    m20 = 2.0 * (qx * qz - qy * qw)
    m21 = 2.0 * (qy * qz + qx * qw)
    m22 = 1.0 - 2.0 * (qx * qx + qy * qy)
    rest = xg3[4:12, :]                                  # (8, tn)

    # ---- layer4 on [e3; rest[rows]; rot_cart]:  rot_cart @ W4r folded into
    # per-node vectors A_j[:, n] = sum_i mat[n, i, j] * W4r[:, i]  (64, tn).
    wr = l4_wr[...]                                      # (64, 3)
    a0 = wr[:, 0:1] * m00 + wr[:, 1:2] * m10 + wr[:, 2:3] * m20
    a1 = wr[:, 0:1] * m01 + wr[:, 1:2] * m11 + wr[:, 2:3] * m21
    a2 = wr[:, 0:1] * m02 + wr[:, 1:2] * m12 + wr[:, 2:3] * m22

    h_e = mm(l4_we[...], e3)                             # (64, te)
    nb4 = mm(l4_wn[...], rest) + l4_b1[...]              # (64, tn), hoisted

    h4_blocks = []
    for k in range(K):
        lo = k * tn
        cx = x0_ref[8 * k + 0:8 * k + 1, :]              # scaled cart, (1, tn)
        cy = x0_ref[8 * k + 1:8 * k + 2, :]
        cz = x0_ref[8 * k + 2:8 * k + 3, :]
        h4 = h_e[:, lo:lo + tn] + nb4 + cx * a0 + cy * a1 + cz * a2
        h4_blocks.append(jnp.maximum(h4, 0.0))           # (64, tn)
    h4_all = jnp.concatenate(h4_blocks, axis=0)          # (K*64, tn), aligned

    # Block-diagonal last Linear: logits land directly as a dense (K, tn) tile.
    lg = mm(l4_w2bd[...], h4_all) + l4_b2[...]           # (K, tn)

    # ---- dense softmax over the K edges of each node + single full-block store
    mx = jnp.max(lg, axis=0, keepdims=True)              # (1, tn)
    ex = jnp.exp(lg - mx)
    den = jnp.sum(ex, axis=0, keepdims=True)
    out_ref[...] = (ex * (1.0 / den)).astype(out_ref.dtype)


# ----------------------------- pallas_call wrapper -----------------------------

def _flatten_params(params, K):
    """Transpose all weights to (C_out, C_in) / biases to (C_out, 1) and split
    the first Linear of layerg/layer2/layer3/layer4 row-wise so the kernel never
    materializes the concatenated edge inputs.  layer4's second Linear is
    expanded to a (K, K*64) block-diagonal so the logits come out as (K, tn)."""
    l1w1, l1b1, l1w2, l1b2 = params["layer1"]
    gw1, gb1, gw2, gb2 = params["layerg"]
    l2w1, l2b1, l2w2, l2b2 = params["layer2"]
    g2w1, g2b1, g2w2, g2b2 = params["layerg2"]
    l3w1, l3b1, l3w2, l3b2 = params["layer3"]
    g3w1, g3b1, g3w2, g3b2 = params["layerg3"]
    l4w1, l4b1, l4w2, l4b2 = params["layer4"]

    def wt(w):  # (Cin, Cout) -> (Cout, Cin)
        return jnp.asarray(w, jnp.float32).T

    def bt(b):  # (1, Cout) -> (Cout, 1)
        return jnp.asarray(b, jnp.float32).reshape(1, -1).T

    l4w2bd = jnp.kron(jnp.eye(K, dtype=jnp.float32), wt(l4w2))   # (K, K*64)

    return (
        wt(l1w1), bt(l1b1), wt(l1w2), bt(l1b2),
        wt(gw1[:16]), wt(gw1[16:19]), bt(gb1), wt(gw2), bt(gb2),
        wt(l2w1[:16]), wt(l2w1[16:24]), bt(l2b1), wt(l2w2), bt(l2b2),
        wt(g2w1), bt(g2b1), wt(g2w2), bt(g2b2),
        wt(l3w1[:16]), wt(l3w1[16:24]), bt(l3b1), wt(l3w2), bt(l3b2),
        wt(g3w1), bt(g3b1), wt(g3w2), bt(g3b2),
        wt(l4w1[:16]), wt(l4w1[16:24]), wt(l4w1[24:27]), bt(l4b1),
        l4w2bd, bt(l4b2),
    )


def fused_gnn_call(x0_fm, normals_fm, flat_params, *, n_pad, K, tn):
    kernel = functools.partial(_fused_gnn_kernel, tn=tn, K=K)
    weight_specs = [pl.BlockSpec(p.shape, lambda i: (0, 0)) for p in flat_params]
    return pl.pallas_call(
        kernel,
        out_shape=jax.ShapeDtypeStruct((K, n_pad), jnp.float32),
        grid=(n_pad // tn,),
        in_specs=[pl.BlockSpec((K * 8, tn), lambda i: (0, i)),
                  pl.BlockSpec((3, tn), lambda i: (0, i))] + weight_specs,
        out_specs=pl.BlockSpec((K, tn), lambda i: (0, i)),
        compiler_params=pltpu.CompilerParams(
            dimension_semantics=("parallel",),
            vmem_limit_bytes=48 * 1024 * 1024),
    )(x0_fm, normals_fm, *flat_params)


# ----------------------------- JAX glue (geometry) -----------------------------

def compute_prf(pos, normals, rows, cols, scale):
    # TODO(synk): compute_prf is not shown in the source module; implemented as
    # standard point-pair features (||d||, angle(n_i,d), angle(n_j,d),
    # angle(n_i,n_j)) on the scaled relative vector (4 features, matching
    # Linear(8, 32) = cart(3) + old_weights(1) + ppf(4)).
    d = (pos[cols] - pos[rows]) * scale
    nr, nc = normals[rows], normals[cols]

    def angle(v1, v2):
        cross = jnp.cross(v1, v2)
        return jnp.arctan2(jnp.linalg.norm(cross, axis=-1),
                           jnp.sum(v1 * v2, axis=-1))

    return jnp.stack([jnp.linalg.norm(d, axis=-1),
                      angle(nr, d), angle(nc, d), angle(nr, nc)], axis=-1)


def quat_to_mat(q):
    # TODO(synk): QuatToMat is a custom autograd op in the source; forward uses
    # the standard (w, x, y, z) quaternion -> rotation matrix formula.
    w, x, y, z = q[:, 0], q[:, 1], q[:, 2], q[:, 3]
    return jnp.stack([
        1 - 2 * (y * y + z * z), 2 * (x * y - z * w), 2 * (x * z + y * w),
        2 * (x * y + z * w), 1 - 2 * (x * x + z * z), 2 * (y * z - x * w),
        2 * (x * z - y * w), 2 * (y * z + x * w), 1 - 2 * (x * x + y * y),
    ], axis=-1).reshape(-1, 3, 3)


# ----------------------------- forward pass -----------------------------

def gnn_fixed_k_forward(params, pos, old_weights, normals, edge_index,
                        dense_l, stddev, f=None):
    if f is not None:
        # TODO(synk): the f branch feeds a 51-dim vector into Linear(19, 32) and
        # cannot run in the reference module either; only f=None is implemented.
        raise NotImplementedError("GNNFixedK Pallas port only supports f=None")

    N = pos.shape[0]
    K = dense_l.shape[1]
    E = edge_index.shape[1]
    assert E == N * K, "edge set must contain exactly K node-major edges per node"

    scale = 0.2 / stddev
    rows = edge_index[0].reshape(N, K).T                            # (K, N)
    cols = edge_index[1].reshape(N, K).T                            # (K, N)

    # Build the edge features directly in the kernel layout (K-major rows,
    # feature-major within each K group, nodes on the lane axis): one pass,
    # no extra (E, 8) transpose round trip through HBM.
    cart = (pos[cols] - pos[rows]) * scale                          # (K, N, 3)
    ppf = compute_prf(pos, normals, rows, cols, scale)              # (K, N, 4)
    w_old = old_weights.reshape(N, K).T[..., None]                  # (K, N, 1)
    x0 = jnp.concatenate([cart, w_old, ppf], axis=-1)               # (K, N, 8)
    x0_fm = x0.transpose(0, 2, 1).reshape(K * 8, N).astype(jnp.float32)
    nrm_fm = normals.astype(jnp.float32).T                          # (3, N)

    # Node-tile size: multiple of 128 (lane-dense), target ~1024 nodes
    # (~8K edge rows) per tile, and >=2 grid steps when there is enough work so
    # v7x's two TensorCores both get tiles.
    n128 = _round_up(N, 128)
    tn = min(1024, n128)
    if tn == n128 and n128 >= 256:
        tn = _round_up(n128 // 2, 128)
    n_pad = _round_up(N, tn)

    if n_pad != N:
        pad = n_pad - N
        x0_fm = jnp.pad(x0_fm, ((0, 0), (0, pad)))
        nrm_fm = jnp.pad(nrm_fm, ((0, 0), (0, pad)))

    out = fused_gnn_call(x0_fm, nrm_fm, _flatten_params(params, K),
                         n_pad=n_pad, K=K, tn=tn)                   # (K, n_pad)
    return out[:, :N].T                                             # (N, K)


# ----------------------------- pure-JAX reference -----------------------------

def gnn_fixed_k_reference(params, pos, old_weights, normals, edge_index,
                          dense_l, stddev, f=None):
    """Direct port of the PyTorch forward, for verification."""
    N = pos.shape[0]
    K = dense_l.shape[1]
    rows, cols = edge_index[0], edge_index[1]
    scale = 0.2 / stddev
    cart = (pos[cols] - pos[rows]) * scale
    ppf = compute_prf(pos, normals, rows, cols, scale)
    x = jnp.concatenate([cart, old_weights.reshape(-1, 1), ppf], axis=-1)

    def mlp(v, p):
        w1, b1, w2, b2 = p
        return jnp.maximum(v @ w1 + b1, 0.0) @ w2 + b2

    x = mlp(x, params["layer1"])
    gx = jnp.concatenate([x.reshape(N, K, -1).mean(1), normals], axis=-1)
    xg = mlp(gx, params["layerg"])
    x = mlp(jnp.concatenate([x, xg[rows]], axis=1), params["layer2"])
    xg = mlp(x.reshape(N, K, -1).mean(1), params["layerg2"])
    x = mlp(jnp.concatenate([x, xg[rows]], axis=1), params["layer3"])
    xg = mlp(x.reshape(N, K, -1).mean(1), params["layerg3"])
    quat = xg[:, :4]
    quat = quat / (jnp.linalg.norm(quat, axis=-1, keepdims=True) + 1e-8)
    mat = quat_to_mat(quat)
    xg = xg[:, 4:]
    rot_cart = jnp.einsum("eij,ej->ei", mat[rows], cart)
    x = mlp(jnp.concatenate([x, xg[rows], rot_cart], axis=1), params["layer4"])
    return jax.nn.softmax(x.reshape(N, K), axis=1)


# ----------------------------- parameters -----------------------------

def linear_params(key, fan_in, fan_out):
    """PyTorch-style init U(-1/sqrt(fan_in), 1/sqrt(fan_in)); weight stored as
    (fan_in, fan_out) so the reference computes x @ W + b."""
    k1, k2 = jax.random.split(key)
    bound = 1.0 / jnp.sqrt(jnp.float32(fan_in))
    w = jax.random.uniform(k1, (fan_in, fan_out), jnp.float32, -bound, bound)
    b = jax.random.uniform(k2, (1, fan_out), jnp.float32, -bound, bound)
    return w, b


def make_params(key):
    sizes = {
        "layer1": (8, 32, 16),
        "layerg": (19, 32, 8),
        "layer2": (24, 32, 16),
        "layerg2": (16, 32, 8),
        "layer3": (24, 32, 16),
        "layerg3": (16, 32, 12),
        "layer4": (27, 64, 1),
    }
    params = {}
    for name, (cin, h, cout) in sizes.items():
        key, k1, k2 = jax.random.split(key, 3)
        w1, b1 = linear_params(k1, cin, h)
        w2, b2 = linear_params(k2, h, cout)
        params[name] = (w1, b1, w2, b2)
    return params


# ----------------------------- main -----------------------------

if __name__ == "__main__":
    N, K = 200, 8          # small; exercises node padding and a 2-step grid
    E = N * K

    root = jax.random.PRNGKey(0)
    kp, k1, k2, k3, k4, k5 = jax.random.split(root, 6)

    params = make_params(kp)

    pos = jax.random.normal(k1, (N, 3), jnp.float32)
    normals = jax.random.normal(k2, (N, 3), jnp.float32)
    normals = normals / (jnp.linalg.norm(normals, axis=-1, keepdims=True) + 1e-8)
    old_weights = jax.random.uniform(k3, (E,), jnp.float32)
    rows = jnp.repeat(jnp.arange(N, dtype=jnp.int32), K)             # node-major
    cols = jax.random.randint(k4, (E,), 0, N, dtype=jnp.int32)
    edge_index = jnp.stack([rows, cols], axis=0)                      # (2, E)
    dense_l = jax.random.uniform(k5, (N, K), jnp.float32)             # only K used
    stddev = jnp.float32(0.5)

    fwd = jax.jit(gnn_fixed_k_forward)
    weights = fwd(params, pos, old_weights, normals, edge_index, dense_l, stddev)
    weights = jax.block_until_ready(weights)

    with jax.default_matmul_precision("float32"):
        ref = gnn_fixed_k_reference(params, pos, old_weights, normals,
                                    edge_index, dense_l, stddev)
    ref = jax.block_until_ready(ref)

    assert weights.shape == (N, K)
    assert bool(jnp.all(jnp.isfinite(weights)))
    assert bool(jnp.allclose(jnp.sum(weights, axis=1), 1.0, atol=1e-5))
    assert bool(jnp.allclose(weights, ref, atol=1e-2))
    print("KERNEL_OK")
</pallas_src>

<mosaic_0001>
module attributes {stable_mosaic.version = 11 : i64} {
  func.func @_fused_gnn_kernel(%arg0: i32, %arg1: memref<64x128xf32, #tpu.memory_space<vmem>>, %arg2: memref<3x128xf32, #tpu.memory_space<vmem>>, %arg3: memref<32x8xf32, #tpu.memory_space<vmem>>, %arg4: memref<32x1xf32, #tpu.memory_space<vmem>>, %arg5: memref<16x32xf32, #tpu.memory_space<vmem>>, %arg6: memref<16x1xf32, #tpu.memory_space<vmem>>, %arg7: memref<32x16xf32, #tpu.memory_space<vmem>>, %arg8: memref<32x3xf32, #tpu.memory_space<vmem>>, %arg9: memref<32x1xf32, #tpu.memory_space<vmem>>, %arg10: memref<8x32xf32, #tpu.memory_space<vmem>>, %arg11: memref<8x1xf32, #tpu.memory_space<vmem>>, %arg12: memref<32x16xf32, #tpu.memory_space<vmem>>, %arg13: memref<32x8xf32, #tpu.memory_space<vmem>>, %arg14: memref<32x1xf32, #tpu.memory_space<vmem>>, %arg15: memref<16x32xf32, #tpu.memory_space<vmem>>, %arg16: memref<16x1xf32, #tpu.memory_space<vmem>>, %arg17: memref<32x16xf32, #tpu.memory_space<vmem>>, %arg18: memref<32x1xf32, #tpu.memory_space<vmem>>, %arg19: memref<8x32xf32, #tpu.memory_space<vmem>>, %arg20: memref<8x1xf32, #tpu.memory_space<vmem>>, %arg21: memref<32x16xf32, #tpu.memory_space<vmem>>, %arg22: memref<32x8xf32, #tpu.memory_space<vmem>>, %arg23: memref<32x1xf32, #tpu.memory_space<vmem>>, %arg24: memref<16x32xf32, #tpu.memory_space<vmem>>, %arg25: memref<16x1xf32, #tpu.memory_space<vmem>>, %arg26: memref<32x16xf32, #tpu.memory_space<vmem>>, %arg27: memref<32x1xf32, #tpu.memory_space<vmem>>, %arg28: memref<12x32xf32, #tpu.memory_space<vmem>>, %arg29: memref<12x1xf32, #tpu.memory_space<vmem>>, %arg30: memref<64x16xf32, #tpu.memory_space<vmem>>, %arg31: memref<64x8xf32, #tpu.memory_space<vmem>>, %arg32: memref<64x3xf32, #tpu.memory_space<vmem>>, %arg33: memref<64x1xf32, #tpu.memory_space<vmem>>, %arg34: memref<8x512xf32, #tpu.memory_space<vmem>>, %arg35: memref<1x1xf32, #tpu.memory_space<vmem>>, %arg36: memref<8x128xf32, #tpu.memory_space<vmem>>) attributes {dimension_semantics = [#tpu.dimension_semantics<parallel>], iteration_bounds = array<i64: 2>, scalar_prefetch = 0 : i64, scratch_operands = 0 : i64, tpu.core_type = #tpu.core_type<tc>, window_params = [{transform_indices = @transform_0, window_bounds = array<i64: 64, 128>}, {transform_indices = @transform_1, window_bounds = array<i64: 3, 128>}, {pipeline_mode = #tpu.pipeline_mode<synchronous>, transform_indices = @transform_2, window_bounds = array<i64: 32, 8>}, {pipeline_mode = #tpu.pipeline_mode<synchronous>, transform_indices = @transform_3, window_bounds = array<i64: 32, 1>}, {pipeline_mode = #tpu.pipeline_mode<synchronous>, transform_indices = @transform_4, window_bounds = array<i64: 16, 32>}, {pipeline_mode = #tpu.pipeline_mode<synchronous>, transform_indices = @transform_5, window_bounds = array<i64: 16, 1>}, {pipeline_mode = #tpu.pipeline_mode<synchronous>, transform_indices = @transform_6, window_bounds = array<i64: 32, 16>}, {pipeline_mode = #tpu.pipeline_mode<synchronous>, transform_indices = @transform_7, window_bounds = array<i64: 32, 3>}, {pipeline_mode = #tpu.pipeline_mode<synchronous>, transform_indices = @transform_8, window_bounds = array<i64: 32, 1>}, {pipeline_mode = #tpu.pipeline_mode<synchronous>, transform_indices = @transform_9, window_bounds = array<i64: 8, 32>}, {pipeline_mode = #tpu.pipeline_mode<synchronous>, transform_indices = @transform_10, window_bounds = array<i64: 8, 1>}, {pipeline_mode = #tpu.pipeline_mode<synchronous>, transform_indices = @transform_11, window_bounds = array<i64: 32, 16>}, {pipeline_mode = #tpu.pipeline_mode<synchronous>, transform_indices = @transform_12, window_bounds = array<i64: 32, 8>}, {pipeline_mode = #tpu.pipeline_mode<synchronous>, transform_indices = @transform_13, window_bounds = array<i64: 32, 1>}, {pipeline_mode = #tpu.pipeline_mode<synchronous>, transform_indices = @transform_14, window_bounds = array<i64: 16, 32>}, {pipeline_mode = #tpu.pipeline_mode<synchronous>, transform_indices = @transform_15, window_bounds = array<i64: 16, 1>}, {pipeline_mode = #tpu.pipeline_mode<synchronous>, transform_indices = @transform_16, window_bounds = array<i64: 32, 16>}, {pipeline_mode = #tpu.pipeline_mode<synchronous>, transform_indices = @transform_17, window_bounds = array<i64: 32, 1>}, {pipeline_mode = #tpu.pipeline_mode<synchronous>, transform_indices = @transform_18, window_bounds = array<i64: 8, 32>}, {pipeline_mode = #tpu.pipeline_mode<synchronous>, transform_indices = @transform_19, window_bounds = array<i64: 8, 1>}, {pipeline_mode = #tpu.pipeline_mode<synchronous>, transform_indices = @transform_20, window_bounds = array<i64: 32, 16>}, {pipeline_mode = #tpu.pipeline_mode<synchronous>, transform_indices = @transform_21, window_bounds = array<i64: 32, 8>}, {pipeline_mode = #tpu.pipeline_mode<synchronous>, transform_indices = @transform_22, window_bounds = array<i64: 32, 1>}, {pipeline_mode = #tpu.pipeline_mode<synchronous>, transform_indices = @transform_23, window_bounds = array<i64: 16, 32>}, {pipeline_mode = #tpu.pipeline_mode<synchronous>, transform_indices = @transform_24, window_bounds = array<i64: 16, 1>}, {pipeline_mode = #tpu.pipeline_mode<synchronous>, transform_indices = @transform_25, window_bounds = array<i64: 32, 16>}, {pipeline_mode = #tpu.pipeline_mode<synchronous>, transform_indices = @transform_26, window_bounds = array<i64: 32, 1>}, {pipeline_mode = #tpu.pipeline_mode<synchronous>, transform_indices = @transform_27, window_bounds = array<i64: 12, 32>}, {pipeline_mode = #tpu.pipeline_mode<synchronous>, transform_indices = @transform_28, window_bounds = array<i64: 12, 1>}, {pipeline_mode = #tpu.pipeline_mode<synchronous>, transform_indices = @transform_29, window_bounds = array<i64: 64, 16>}, {pipeline_mode = #tpu.pipeline_mode<synchronous>, transform_indices = @transform_30, window_bounds = array<i64: 64, 8>}, {pipeline_mode = #tpu.pipeline_mode<synchronous>, transform_indices = @transform_31, window_bounds = array<i64: 64, 3>}, {pipeline_mode = #tpu.pipeline_mode<synchronous>, transform_indices = @transform_32, window_bounds = array<i64: 64, 1>}, {pipeline_mode = #tpu.pipeline_mode<synchronous>, transform_indices = @transform_33, window_bounds = array<i64: 8, 512>}, {pipeline_mode = #tpu.pipeline_mode<synchronous>, transform_indices = @transform_34, window_bounds = array<i64: 1, 1>}, {transform_indices = @transform_35, window_bounds = array<i64: 8, 128>}]} {
    %c0 = arith.constant 0 : index
    %c0_0 = arith.constant 0 : index
    %0 = vector.load %arg2[%c0, %c0_0] : memref<3x128xf32, #tpu.memory_space<vmem>>, vector<3x128xf32>
    %c0_1 = arith.constant 0 : index
    %c0_2 = arith.constant 0 : index
    %1 = vector.load %arg1[%c0_1, %c0_2] : memref<64x128xf32, #tpu.memory_space<vmem>>, vector<8x128xf32>
    %c8 = arith.constant 8 : index
    %c0_3 = arith.constant 0 : index
    %2 = vector.load %arg1[%c8, %c0_3] : memref<64x128xf32, #tpu.memory_space<vmem>>, vector<8x128xf32>
    %c16 = arith.constant 16 : index
    %c0_4 = arith.constant 0 : index
    %3 = vector.load %arg1[%c16, %c0_4] : memref<64x128xf32, #tpu.memory_space<vmem>>, vector<8x128xf32>
    %c24 = arith.constant 24 : index
    %c0_5 = arith.constant 0 : index
    %4 = vector.load %arg1[%c24, %c0_5] : memref<64x128xf32, #tpu.memory_space<vmem>>, vector<8x128xf32>
    %c32 = arith.constant 32 : index
    %c0_6 = arith.constant 0 : index
    %5 = vector.load %arg1[%c32, %c0_6] : memref<64x128xf32, #tpu.memory_space<vmem>>, vector<8x128xf32>
    %c40 = arith.constant 40 : index
    %c0_7 = arith.constant 0 : index
    %6 = vector.load %arg1[%c40, %c0_7] : memref<64x128xf32, #tpu.memory_space<vmem>>, vector<8x128xf32>
    %c48 = arith.constant 48 : index
    %c0_8 = arith.constant 0 : index
    %7 = vector.load %arg1[%c48, %c0_8] : memref<64x128xf32, #tpu.memory_space<vmem>>, vector<8x128xf32>
    %c56 = arith.constant 56 : index
    %c0_9 = arith.constant 0 : index
    %8 = vector.load %arg1[%c56, %c0_9] : memref<64x128xf32, #tpu.memory_space<vmem>>, vector<8x128xf32>
    %9 = tpu.concatenate %1, %2, %3, %4, %5, %6, %7, %8 in 1 : vector<8x128xf32>, vector<8x128xf32>, vector<8x128xf32>, vector<8x128xf32>, vector<8x128xf32>, vector<8x128xf32>, vector<8x128xf32>, vector<8x128xf32> -> vector<8x1024xf32>
    %c0_10 = arith.constant 0 : index
    %c0_11 = arith.constant 0 : index
    %10 = vector.load %arg3[%c0_10, %c0_11] : memref<32x8xf32, #tpu.memory_space<vmem>>, vector<32x8xf32>
    %cst = arith.constant dense<0.000000e+00> : vector<32x1024xf32>
    %11 = tpu.matmul %10, %9, %cst {dimension_numbers = #tpu.dot_dimension_numbers<[1], [0], [0], [1], [0, 0, 1, 1], [], []>} : vector<32x8xf32>, vector<8x1024xf32>, vector<32x1024xf32> -> vector<32x1024xf32>
    %c0_12 = arith.constant 0 : index
    %c0_13 = arith.constant 0 : index
    %12 = vector.load %arg4[%c0_12, %c0_13] : memref<32x1xf32, #tpu.memory_space<vmem>>, vector<32x1xf32>
    %13 = vector.broadcast %12 : vector<32x1xf32> to vector<32x1024xf32>
    %14 = arith.addf %11, %13 : vector<32x1024xf32>
    %cst_14 = arith.constant 0.000000e+00 : f32
    %15 = vector.broadcast %cst_14 : f32 to vector<32x1024xf32>
    %16 = arith.maximumf %14, %15 : vector<32x1024xf32>
    %c0_15 = arith.constant 0 : index
    %c0_16 = arith.constant 0 : index
    %17 = vector.load %arg5[%c0_15, %c0_16] : memref<16x32xf32, #tpu.memory_space<vmem>>, vector<16x32xf32>
    %cst_17 = arith.constant dense<0.000000e+00> : vector<16x1024xf32>
    %18 = tpu.matmul %17, %16, %cst_17 {dimension_numbers = #tpu.dot_dimension_numbers<[1], [0], [0], [1], [0, 0, 1, 1], [], []>} : vector<16x32xf32>, vector<32x1024xf32>, vector<16x1024xf32> -> vector<16x1024xf32>
    %c0_18 = arith.constant 0 : index
    %c0_19 = arith.constant 0 : index
    %19 = vector.load %arg6[%c0_18, %c0_19] : memref<16x1xf32, #tpu.memory_space<vmem>>, vector<16x1xf32>
    %20 = vector.broadcast %19 : vector<16x1xf32> to vector<16x1024xf32>
    %21 = arith.addf %18, %20 : vector<16x1024xf32>
    %c0_20 = arith.constant 0 : index
    %c0_21 = arith.constant 0 : index
    %22 = vector.load %arg7[%c0_20, %c0_21] : memref<32x16xf32, #tpu.memory_space<vmem>>, vector<32x16xf32>
    %23 = vector.extract_strided_slice %21 {offsets = [0, 0], sizes = [16, 128], strides = [1, 1]} : vector<16x1024xf32> to vector<16x128xf32>
    %24 = vector.extract_strided_slice %21 {offsets = [0, 128], sizes = [16, 128], strides = [1, 1]} : vector<16x1024xf32> to vector<16x128xf32>
    %25 = arith.addf %23, %24 : vector<16x128xf32>
    %26 = vector.extract_strided_slice %21 {offsets = [0, 256], sizes = [16, 128], strides = [1, 1]} : vector<16x1024xf32> to vector<16x128xf32>
    %27 = arith.addf %25, %26 : vector<16x128xf32>
    %28 = vector.extract_strided_slice %21 {offsets = [0, 384], sizes = [16, 128], strides = [1, 1]} : vector<16x1024xf32> to vector<16x128xf32>
    %29 = arith.addf %27, %28 : vector<16x128xf32>
    %30 = vector.extract_strided_slice %21 {offsets = [0, 512], sizes = [16, 128], strides = [1, 1]} : vector<16x1024xf32> to vector<16x128xf32>
    %31 = arith.addf %29, %30 : vector<16x128xf32>
    %32 = vector.extract_strided_slice %21 {offsets = [0, 640], sizes = [16, 128], strides = [1, 1]} : vector<16x1024xf32> to vector<16x128xf32>
    %33 = arith.addf %31, %32 : vector<16x128xf32>
    %34 = vector.extract_strided_slice %21 {offsets = [0, 768], sizes = [16, 128], strides = [1, 1]} : vector<16x1024xf32> to vector<16x128xf32>
    %35 = arith.addf %33, %34 : vector<16x128xf32>
    %36 = vector.extract_strided_slice %21 {offsets = [0, 896], sizes = [16, 128], strides = [1, 1]} : vector<16x1024xf32> to vector<16x128xf32>
    %37 = arith.addf %35, %36 : vector<16x128xf32>
    %cst_22 = arith.constant 1.250000e-01 : f32
    %38 = vector.broadcast %cst_22 : f32 to vector<16x128xf32>
    %39 = arith.mulf %37, %38 : vector<16x128xf32>
    %cst_23 = arith.constant dense<0.000000e+00> : vector<32x128xf32>
    %40 = tpu.matmul %22, %39, %cst_23 {dimension_numbers = #tpu.dot_dimension_numbers<[1], [0], [0], [1], [0, 0, 1, 1], [], []>} : vector<32x16xf32>, vector<16x128xf32>, vector<32x128xf32> -> vector<32x128xf32>
    %c0_24 = arith.constant 0 : index
    %c0_25 = arith.constant 0 : index
    %41 = vector.load %arg8[%c0_24, %c0_25] : memref<32x3xf32, #tpu.memory_space<vmem>>, vector<32x3xf32>
    %cst_26 = arith.constant dense<0.000000e+00> : vector<32x128xf32>
    %42 = tpu.matmul %41, %0, %cst_26 {dimension_numbers = #tpu.dot_dimension_numbers<[1], [0], [0], [1], [0, 0, 1, 1], [], []>} : vector<32x3xf32>, vector<3x128xf32>, vector<32x128xf32> -> vector<32x128xf32>
    %43 = arith.addf %40, %42 : vector<32x128xf32>
    %c0_27 = arith.constant 0 : index
    %c0_28 = arith.constant 0 : index
    %44 = vector.load %arg9[%c0_27, %c0_28] : memref<32x1xf32, #tpu.memory_space<vmem>>, vector<32x1xf32>
    %45 = vector.broadcast %44 : vector<32x1xf32> to vector<32x128xf32>
    %46 = arith.addf %43, %45 : vector<32x128xf32>
    %cst_29 = arith.constant 0.000000e+00 : f32
    %47 = vector.broadcast %cst_29 : f32 to vector<32x128xf32>
    %48 = arith.maximumf %46, %47 : vector<32x128xf32>
    %c0_30 = arith.constant 0 : index
    %c0_31 = arith.constant 0 : index
    %49 = vector.load %arg10[%c0_30, %c0_31] : memref<8x32xf32, #tpu.memory_space<vmem>>, vector<8x32xf32>
    %cst_32 = arith.constant dense<0.000000e+00> : vector<8x128xf32>
    %50 = tpu.matmul %49, %48, %cst_32 {dimension_numbers = #tpu.dot_dimension_numbers<[1], [0], [0], [1], [0, 0, 1, 1], [], []>} : vector<8x32xf32>, vector<32x128xf32>, vector<8x128xf32> -> vector<8x128xf32>
    %c0_33 = arith.constant 0 : index
    %c0_34 = arith.constant 0 : index
    %51 = vector.load %arg11[%c0_33, %c0_34] : memref<8x1xf32, #tpu.memory_space<vmem>>, vector<8x1xf32>
    %52 = vector.broadcast %51 : vector<8x1xf32> to vector<8x128xf32>
    %53 = arith.addf %50, %52 : vector<8x128xf32>
    %c0_35 = arith.constant 0 : index
    %c0_36 = arith.constant 0 : index
    %54 = vector.load %arg13[%c0_35, %c0_36] : memref<32x8xf32, #tpu.memory_space<vmem>>, vector<32x8xf32>
    %cst_37 = arith.constant dense<0.000000e+00> : vector<32x128xf32>
    %55 = tpu.matmul %54, %53, %cst_37 {dimension_numbers = #tpu.dot_dimension_numbers<[1], [0], [0], [1], [0, 0, 1, 1], [], []>} : vector<32x8xf32>, vector<8x128xf32>, vector<32x128xf32> -> vector<32x128xf32>
    %c0_38 = arith.constant 0 : index
    %c0_39 = arith.constant 0 : index
    %56 = vector.load %arg14[%c0_38, %c0_39] : memref<32x1xf32, #tpu.memory_space<vmem>>, vector<32x1xf32>
    %57 = vector.broadcast %56 : vector<32x1xf32> to vector<32x128xf32>
    %58 = arith.addf %55, %57 : vector<32x128xf32>
    %c0_40 = arith.constant 0 : index
    %c0_41 = arith.constant 0 : index
    %59 = vector.load %arg12[%c0_40, %c0_41] : memref<32x16xf32, #tpu.memory_space<vmem>>, vector<32x16xf32>
    %cst_42 = arith.constant dense<0.000000e+00> : vector<32x1024xf32>
    %60 = tpu.matmul %59, %21, %cst_42 {dimension_numbers = #tpu.dot_dimension_numbers<[1], [0], [0], [1], [0, 0, 1, 1], [], []>} : vector<32x16xf32>, vector<16x1024xf32>, vector<32x1024xf32> -> vector<32x1024xf32>
    %61 = vector.extract_strided_slice %60 {offsets = [0, 0], sizes = [32, 128], strides = [1, 1]} : vector<32x1024xf32> to vector<32x128xf32>
    %62 = arith.addf %61, %58 : vector<32x128xf32>
    %cst_43 = arith.constant 0.000000e+00 : f32
    %63 = vector.broadcast %cst_43 : f32 to vector<32x128xf32>
    %64 = arith.maximumf %62, %63 : vector<32x128xf32>
    %65 = vector.extract_strided_slice %60 {offsets = [0, 128], sizes = [32, 128], strides = [1, 1]} : vector<32x1024xf32> to vector<32x128xf32>
    %66 = arith.addf %65, %58 : vector<32x128xf32>
    %cst_44 = arith.constant 0.000000e+00 : f32
    %67 = vector.broadcast %cst_44 : f32 to vector<32x128xf32>
    %68 = arith.maximumf %66, %67 : vector<32x128xf32>
    %69 = vector.extract_strided_slice %60 {offsets = [0, 256], sizes = [32, 128], strides = [1, 1]} : vector<32x1024xf32> to vector<32x128xf32>
    %70 = arith.addf %69, %58 : vector<32x128xf32>
    %cst_45 = arith.constant 0.000000e+00 : f32
    %71 = vector.broadcast %cst_45 : f32 to vector<32x128xf32>
    %72 = arith.maximumf %70, %71 : vector<32x128xf32>
    %73 = vector.extract_strided_slice %60 {offsets = [0, 384], sizes = [32, 128], strides = [1, 1]} : vector<32x1024xf32> to vector<32x128xf32>
    %74 = arith.addf %73, %58 : vector<32x128xf32>
    %cst_46 = arith.constant 0.000000e+00 : f32
    %75 = vector.broadcast %cst_46 : f32 to vector<32x128xf32>
    %76 = arith.maximumf %74, %75 : vector<32x128xf32>
    %77 = vector.extract_strided_slice %60 {offsets = [0, 512], sizes = [32, 128], strides = [1, 1]} : vector<32x1024xf32> to vector<32x128xf32>
    %78 = arith.addf %77, %58 : vector<32x128xf32>
    %cst_47 = arith.constant 0.000000e+00 : f32
    %79 = vector.broadcast %cst_47 : f32 to vector<32x128xf32>
    %80 = arith.maximumf %78, %79 : vector<32x128xf32>
    %81 = vector.extract_strided_slice %60 {offsets = [0, 640], sizes = [32, 128], strides = [1, 1]} : vector<32x1024xf32> to vector<32x128xf32>
    %82 = arith.addf %81, %58 : vector<32x128xf32>
    %cst_48 = arith.constant 0.000000e+00 : f32
    %83 = vector.broadcast %cst_48 : f32 to vector<32x128xf32>
    %84 = arith.maximumf %82, %83 : vector<32x128xf32>
    %85 = vector.extract_strided_slice %60 {offsets = [0, 768], sizes = [32, 128], strides = [1, 1]} : vector<32x1024xf32> to vector<32x128xf32>
    %86 = arith.addf %85, %58 : vector<32x128xf32>
    %cst_49 = arith.constant 0.000000e+00 : f32
    %87 = vector.broadcast %cst_49 : f32 to vector<32x128xf32>
    %88 = arith.maximumf %86, %87 : vector<32x128xf32>
    %89 = vector.extract_strided_slice %60 {offsets = [0, 896], sizes = [32, 128], strides = [1, 1]} : vector<32x1024xf32> to vector<32x128xf32>
    %90 = arith.addf %89, %58 : vector<32x128xf32>
    %cst_50 = arith.constant 0.000000e+00 : f32
    %91 = vector.broadcast %cst_50 : f32 to vector<32x128xf32>
    %92 = arith.maximumf %90, %91 : vector<32x128xf32>
    %93 = tpu.concatenate %64, %68, %72, %76, %80, %84, %88, %92 in 1 : vector<32x128xf32>, vector<32x128xf32>, vector<32x128xf32>, vector<32x128xf32>, vector<32x128xf32>, vector<32x128xf32>, vector<32x128xf32>, vector<32x128xf32> -> vector<32x1024xf32>
    %c0_51 = arith.constant 0 : index
    %c0_52 = arith.constant 0 : index
    %94 = vector.load %arg15[%c0_51, %c0_52] : memref<16x32xf32, #tpu.memory_space<vmem>>, vector<16x32xf32>
    %cst_53 = arith.constant dense<0.000000e+00> : vector<16x1024xf32>
    %95 = tpu.matmul %94, %93, %cst_53 {dimension_numbers = #tpu.dot_dimension_numbers<[1], [0], [0], [1], [0, 0, 1, 1], [], []>} : vector<16x32xf32>, vector<32x1024xf32>, vector<16x1024xf32> -> vector<16x1024xf32>
    %c0_54 = arith.constant 0 : index
    %c0_55 = arith.constant 0 : index
    %96 = vector.load %arg16[%c0_54, %c0_55] : memref<16x1xf32, #tpu.memory_space<vmem>>, vector<16x1xf32>
    %97 = vector.broadcast %96 : vector<16x1xf32> to vector<16x1024xf32>
    %98 = arith.addf %95, %97 : vector<16x1024xf32>
    %99 = vector.extract_strided_slice %98 {offsets = [0, 0], sizes = [16, 128], strides = [1, 1]} : vector<16x1024xf32> to vector<16x128xf32>
    %100 = vector.extract_strided_slice %98 {offsets = [0, 128], sizes = [16, 128], strides = [1, 1]} : vector<16x1024xf32> to vector<16x128xf32>
    %101 = arith.addf %99, %100 : vector<16x128xf32>
    %102 = vector.extract_strided_slice %98 {offsets = [0, 256], sizes = [16, 128], strides = [1, 1]} : vector<16x1024xf32> to vector<16x128xf32>
    %103 = arith.addf %101, %102 : vector<16x128xf32>
    %104 = vector.extract_strided_slice %98 {offsets = [0, 384], sizes = [16, 128], strides = [1, 1]} : vector<16x1024xf32> to vector<16x128xf32>
    %105 = arith.addf %103, %104 : vector<16x128xf32>
    %106 = vector.extract_strided_slice %98 {offsets = [0, 512], sizes = [16, 128], strides = [1, 1]} : vector<16x1024xf32> to vector<16x128xf32>
    %107 = arith.addf %105, %106 : vector<16x128xf32>
    %108 = vector.extract_strided_slice %98 {offsets = [0, 640], sizes = [16, 128], strides = [1, 1]} : vector<16x1024xf32> to vector<16x128xf32>
    %109 = arith.addf %107, %108 : vector<16x128xf32>
    %110 = vector.extract_strided_slice %98 {offsets = [0, 768], sizes = [16, 128], strides = [1, 1]} : vector<16x1024xf32> to vector<16x128xf32>
    %111 = arith.addf %109, %110 : vector<16x128xf32>
    %112 = vector.extract_strided_slice %98 {offsets = [0, 896], sizes = [16, 128], strides = [1, 1]} : vector<16x1024xf32> to vector<16x128xf32>
    %113 = arith.addf %111, %112 : vector<16x128xf32>
    %cst_56 = arith.constant 1.250000e-01 : f32
    %114 = vector.broadcast %cst_56 : f32 to vector<16x128xf32>
    %115 = arith.mulf %113, %114 : vector<16x128xf32>
    %c0_57 = arith.constant 0 : index
    %c0_58 = arith.constant 0 : index
    %116 = vector.load %arg17[%c0_57, %c0_58] : memref<32x16xf32, #tpu.memory_space<vmem>>, vector<32x16xf32>
    %cst_59 = arith.constant dense<0.000000e+00> : vector<32x128xf32>
    %117 = tpu.matmul %116, %115, %cst_59 {dimension_numbers = #tpu.dot_dimension_numbers<[1], [0], [0], [1], [0, 0, 1, 1], [], []>} : vector<32x16xf32>, vector<16x128xf32>, vector<32x128xf32> -> vector<32x128xf32>
    %c0_60 = arith.constant 0 : index
    %c0_61 = arith.constant 0 : index
    %118 = vector.load %arg18[%c0_60, %c0_61] : memref<32x1xf32, #tpu.memory_space<vmem>>, vector<32x1xf32>
    %119 = vector.broadcast %118 : vector<32x1xf32> to vector<32x128xf32>
    %120 = arith.addf %117, %119 : vector<32x128xf32>
    %cst_62 = arith.constant 0.000000e+00 : f32
    %121 = vector.broadcast %cst_62 : f32 to vector<32x128xf32>
    %122 = arith.maximumf %120, %121 : vector<32x128xf32>
    %c0_63 = arith.constant 0 : index
    %c0_64 = arith.constant 0 : index
    %123 = vector.load %arg19[%c0_63, %c0_64] : memref<8x32xf32, #tpu.memory_space<vmem>>, vector<8x32xf32>
    %cst_65 = arith.constant dense<0.000000e+00> : vector<8x128xf32>
    %124 = tpu.matmul %123, %122, %cst_65 {dimension_numbers = #tpu.dot_dimension_numbers<[1], [0], [0], [1], [0, 0, 1, 1], [], []>} : vector<8x32xf32>, vector<32x128xf32>, vector<8x128xf32> -> vector<8x128xf32>
    %c0_66 = arith.constant 0 : index
    %c0_67 = arith.constant 0 : index
    %125 = vector.load %arg20[%c0_66, %c0_67] : memref<8x1xf32, #tpu.memory_space<vmem>>, vector<8x1xf32>
    %126 = vector.broadcast %125 : vector<8x1xf32> to vector<8x128xf32>
    %127 = arith.addf %124, %126 : vector<8x128xf32>
    %c0_68 = arith.constant 0 : index
    %c0_69 = arith.constant 0 : index
    %128 = vector.load %arg22[%c0_68, %c0_69] : memref<32x8xf32, #tpu.memory_space<vmem>>, vector<32x8xf32>
    %cst_70 = arith.constant dense<0.000000e+00> : vector<32x128xf32>
    %129 = tpu.matmul %128, %127, %cst_70 {dimension_numbers = #tpu.dot_dimension_numbers<[1], [0], [0], [1], [0, 0, 1, 1], [], []>} : vector<32x8xf32>, vector<8x128xf32>, vector<32x128xf32> -> vector<32x128xf32>
    %c0_71 = arith.constant 0 : index
    %c0_72 = arith.constant 0 : index
    %130 = vector.load %arg23[%c0_71, %c0_72] : memref<32x1xf32, #tpu.memory_space<vmem>>, vector<32x1xf32>
    %131 = vector.broadcast %130 : vector<32x1xf32> to vector<32x128xf32>
    %132 = arith.addf %129, %131 : vector<32x128xf32>
    %c0_73 = arith.constant 0 : index
    %c0_74 = arith.constant 0 : index
    %133 = vector.load %arg21[%c0_73, %c0_74] : memref<32x16xf32, #tpu.memory_space<vmem>>, vector<32x16xf32>
    %cst_75 = arith.constant dense<0.000000e+00> : vector<32x1024xf32>
    %134 = tpu.matmul %133, %98, %cst_75 {dimension_numbers = #tpu.dot_dimension_numbers<[1], [0], [0], [1], [0, 0, 1, 1], [], []>} : vector<32x16xf32>, vector<16x1024xf32>, vector<32x1024xf32> -> vector<32x1024xf32>
    %135 = vector.extract_strided_slice %134 {offsets = [0, 0], sizes = [32, 128], strides = [1, 1]} : vector<32x1024xf32> to vector<32x128xf32>
    %136 = arith.addf %135, %132 : vector<32x128xf32>
    %cst_76 = arith.constant 0.000000e+00 : f32
    %137 = vector.broadcast %cst_76 : f32 to vector<32x128xf32>
    %138 = arith.maximumf %136, %137 : vector<32x128xf32>
    %139 = vector.extract_strided_slice %134 {offsets = [0, 128], sizes = [32, 128], strides = [1, 1]} : vector<32x1024xf32> to vector<32x128xf32>
    %140 = arith.addf %139, %132 : vector<32x128xf32>
    %cst_77 = arith.constant 0.000000e+00 : f32
    %141 = vector.broadcast %cst_77 : f32 to vector<32x128xf32>
    %142 = arith.maximumf %140, %141 : vector<32x128xf32>
    %143 = vector.extract_strided_slice %134 {offsets = [0, 256], sizes = [32, 128], strides = [1, 1]} : vector<32x1024xf32> to vector<32x128xf32>
    %144 = arith.addf %143, %132 : vector<32x128xf32>
    %cst_78 = arith.constant 0.000000e+00 : f32
    %145 = vector.broadcast %cst_78 : f32 to vector<32x128xf32>
    %146 = arith.maximumf %144, %145 : vector<32x128xf32>
    %147 = vector.extract_strided_slice %134 {offsets = [0, 384], sizes = [32, 128], strides = [1, 1]} : vector<32x1024xf32> to vector<32x128xf32>
    %148 = arith.addf %147, %132 : vector<32x128xf32>
    %cst_79 = arith.constant 0.000000e+00 : f32
    %149 = vector.broadcast %cst_79 : f32 to vector<32x128xf32>
    %150 = arith.maximumf %148, %149 : vector<32x128xf32>
    %151 = vector.extract_strided_slice %134 {offsets = [0, 512], sizes = [32, 128], strides = [1, 1]} : vector<32x1024xf32> to vector<32x128xf32>
    %152 = arith.addf %151, %132 : vector<32x128xf32>
    %cst_80 = arith.constant 0.000000e+00 : f32
    %153 = vector.broadcast %cst_80 : f32 to vector<32x128xf32>
    %154 = arith.maximumf %152, %153 : vector<32x128xf32>
    %155 = vector.extract_strided_slice %134 {offsets = [0, 640], sizes = [32, 128], strides = [1, 1]} : vector<32x1024xf32> to vector<32x128xf32>
    %156 = arith.addf %155, %132 : vector<32x128xf32>
    %cst_81 = arith.constant 0.000000e+00 : f32
    %157 = vector.broadcast %cst_81 : f32 to vector<32x128xf32>
    %158 = arith.maximumf %156, %157 : vector<32x128xf32>
    %159 = vector.extract_strided_slice %134 {offsets = [0, 768], sizes = [32, 128], strides = [1, 1]} : vector<32x1024xf32> to vector<32x128xf32>
    %160 = arith.addf %159, %132 : vector<32x128xf32>
    %cst_82 = arith.constant 0.000000e+00 : f32
    %161 = vector.broadcast %cst_82 : f32 to vector<32x128xf32>
    %162 = arith.maximumf %160, %161 : vector<32x128xf32>
    %163 = vector.extract_strided_slice %134 {offsets = [0, 896], sizes = [32, 128], strides = [1, 1]} : vector<32x1024xf32> to vector<32x128xf32>
    %164 = arith.addf %163, %132 : vector<32x128xf32>
    %cst_83 = arith.constant 0.000000e+00 : f32
    %165 = vector.broadcast %cst_83 : f32 to vector<32x128xf32>
    %166 = arith.maximumf %164, %165 : vector<32x128xf32>
    %167 = tpu.concatenate %138, %142, %146, %150, %154, %158, %162, %166 in 1 : vector<32x128xf32>, vector<32x128xf32>, vector<32x128xf32>, vector<32x128xf32>, vector<32x128xf32>, vector<32x128xf32>, vector<32x128xf32>, vector<32x128xf32> -> vector<32x1024xf32>
    %c0_84 = arith.constant 0 : index
    %c0_85 = arith.constant 0 : index
    %168 = vector.load %arg24[%c0_84, %c0_85] : memref<16x32xf32, #tpu.memory_space<vmem>>, vector<16x32xf32>
    %cst_86 = arith.constant dense<0.000000e+00> : vector<16x1024xf32>
    %169 = tpu.matmul %168, %167, %cst_86 {dimension_numbers = #tpu.dot_dimension_numbers<[1], [0], [0], [1], [0, 0, 1, 1], [], []>} : vector<16x32xf32>, vector<32x1024xf32>, vector<16x1024xf32> -> vector<16x1024xf32>
    %c0_87 = arith.constant 0 : index
    %c0_88 = arith.constant 0 : index
    %170 = vector.load %arg25[%c0_87, %c0_88] : memref<16x1xf32, #tpu.memory_space<vmem>>, vector<16x1xf32>
    %171 = vector.broadcast %170 : vector<16x1xf32> to vector<16x1024xf32>
    %172 = arith.addf %169, %171 : vector<16x1024xf32>
    %173 = vector.extract_strided_slice %172 {offsets = [0, 0], sizes = [16, 128], strides = [1, 1]} : vector<16x1024xf32> to vector<16x128xf32>
    %174 = vector.extract_strided_slice %172 {offsets = [0, 128], sizes = [16, 128], strides = [1, 1]} : vector<16x1024xf32> to vector<16x128xf32>
    %175 = arith.addf %173, %174 : vector<16x128xf32>
    %176 = vector.extract_strided_slice %172 {offsets = [0, 256], sizes = [16, 128], strides = [1, 1]} : vector<16x1024xf32> to vector<16x128xf32>
    %177 = arith.addf %175, %176 : vector<16x128xf32>
    %178 = vector.extract_strided_slice %172 {offsets = [0, 384], sizes = [16, 128], strides = [1, 1]} : vector<16x1024xf32> to vector<16x128xf32>
    %179 = arith.addf %177, %178 : vector<16x128xf32>
    %180 = vector.extract_strided_slice %172 {offsets = [0, 512], sizes = [16, 128], strides = [1, 1]} : vector<16x1024xf32> to vector<16x128xf32>
    %181 = arith.addf %179, %180 : vector<16x128xf32>
    %182 = vector.extract_strided_slice %172 {offsets = [0, 640], sizes = [16, 128], strides = [1, 1]} : vector<16x1024xf32> to vector<16x128xf32>
    %183 = arith.addf %181, %182 : vector<16x128xf32>
    %184 = vector.extract_strided_slice %172 {offsets = [0, 768], sizes = [16, 128], strides = [1, 1]} : vector<16x1024xf32> to vector<16x128xf32>
    %185 = arith.addf %183, %184 : vector<16x128xf32>
    %186 = vector.extract_strided_slice %172 {offsets = [0, 896], sizes = [16, 128], strides = [1, 1]} : vector<16x1024xf32> to vector<16x128xf32>
    %187 = arith.addf %185, %186 : vector<16x128xf32>
    %cst_89 = arith.constant 1.250000e-01 : f32
    %188 = vector.broadcast %cst_89 : f32 to vector<16x128xf32>
    %189 = arith.mulf %187, %188 : vector<16x128xf32>
    %c0_90 = arith.constant 0 : index
    %c0_91 = arith.constant 0 : index
    %190 = vector.load %arg26[%c0_90, %c0_91] : memref<32x16xf32, #tpu.memory_space<vmem>>, vector<32x16xf32>
    %cst_92 = arith.constant dense<0.000000e+00> : vector<32x128xf32>
    %191 = tpu.matmul %190, %189, %cst_92 {dimension_numbers = #tpu.dot_dimension_numbers<[1], [0], [0], [1], [0, 0, 1, 1], [], []>} : vector<32x16xf32>, vector<16x128xf32>, vector<32x128xf32> -> vector<32x128xf32>
    %c0_93 = arith.constant 0 : index
    %c0_94 = arith.constant 0 : index
    %192 = vector.load %arg27[%c0_93, %c0_94] : memref<32x1xf32, #tpu.memory_space<vmem>>, vector<32x1xf32>
    %193 = vector.broadcast %192 : vector<32x1xf32> to vector<32x128xf32>
    %194 = arith.addf %191, %193 : vector<32x128xf32>
    %cst_95 = arith.constant 0.000000e+00 : f32
    %195 = vector.broadcast %cst_95 : f32 to vector<32x128xf32>
    %196 = arith.maximumf %194, %195 : vector<32x128xf32>
    %c0_96 = arith.constant 0 : index
    %c0_97 = arith.constant 0 : index
    %197 = vector.load %arg28[%c0_96, %c0_97] : memref<12x32xf32, #tpu.memory_space<vmem>>, vector<12x32xf32>
    %cst_98 = arith.constant dense<0.000000e+00> : vector<12x128xf32>
    %198 = tpu.matmul %197, %196, %cst_98 {dimension_numbers = #tpu.dot_dimension_numbers<[1], [0], [0], [1], [0, 0, 1, 1], [], []>} : vector<12x32xf32>, vector<32x128xf32>, vector<12x128xf32> -> vector<12x128xf32>
    %c0_99 = arith.constant 0 : index
    %c0_100 = arith.constant 0 : index
    %199 = vector.load %arg29[%c0_99, %c0_100] : memref<12x1xf32, #tpu.memory_space<vmem>>, vector<12x1xf32>
    %200 = vector.broadcast %199 : vector<12x1xf32> to vector<12x128xf32>
    %201 = arith.addf %198, %200 : vector<12x128xf32>
    %202 = vector.extract_strided_slice %201 {offsets = [0, 0], sizes = [1, 128], strides = [1, 1]} : vector<12x128xf32> to vector<1x128xf32>
    %203 = vector.extract_strided_slice %201 {offsets = [1, 0], sizes = [1, 128], strides = [1, 1]} : vector<12x128xf32> to vector<1x128xf32>
    %204 = vector.extract_strided_slice %201 {offsets = [2, 0], sizes = [1, 128], strides = [1, 1]} : vector<12x128xf32> to vector<1x128xf32>
    %205 = vector.extract_strided_slice %201 {offsets = [3, 0], sizes = [1, 128], strides = [1, 1]} : vector<12x128xf32> to vector<1x128xf32>
    %206 = arith.mulf %202, %202 : vector<1x128xf32>
    %207 = arith.mulf %203, %203 : vector<1x128xf32>
    %208 = arith.addf %206, %207 : vector<1x128xf32>
    %209 = arith.mulf %204, %204 : vector<1x128xf32>
    %210 = arith.addf %208, %209 : vector<1x128xf32>
    %211 = arith.mulf %205, %205 : vector<1x128xf32>
    %212 = arith.addf %210, %211 : vector<1x128xf32>
    %213 = math.sqrt %212 : vector<1x128xf32>
    %cst_101 = arith.constant 9.99999993E-9 : f32
    %214 = vector.broadcast %cst_101 : f32 to vector<1x128xf32>
    %215 = arith.addf %213, %214 : vector<1x128xf32>
    %cst_102 = arith.constant 1.000000e+00 : f32
    %216 = vector.broadcast %cst_102 : f32 to vector<1x128xf32>
    %217 = arith.divf %216, %215 : vector<1x128xf32>
    %218 = arith.mulf %202, %217 : vector<1x128xf32>
    %219 = arith.mulf %203, %217 : vector<1x128xf32>
    %220 = arith.mulf %204, %217 : vector<1x128xf32>
    %221 = arith.mulf %205, %217 : vector<1x128xf32>
    %222 = arith.mulf %220, %220 : vector<1x128xf32>
    %223 = arith.mulf %221, %221 : vector<1x128xf32>
    %224 = arith.addf %222, %223 : vector<1x128xf32>
    %cst_103 = arith.constant 2.000000e+00 : f32
    %225 = vector.broadcast %cst_103 : f32 to vector<1x128xf32>
    %226 = arith.mulf %225, %224 : vector<1x128xf32>
    %cst_104 = arith.constant 1.000000e+00 : f32
    %227 = vector.broadcast %cst_104 : f32 to vector<1x128xf32>
    %228 = arith.subf %227, %226 : vector<1x128xf32>
    %229 = arith.mulf %219, %220 : vector<1x128xf32>
    %230 = arith.mulf %221, %218 : vector<1x128xf32>
    %231 = arith.subf %229, %230 : vector<1x128xf32>
    %cst_105 = arith.constant 2.000000e+00 : f32
    %232 = vector.broadcast %cst_105 : f32 to vector<1x128xf32>
    %233 = arith.mulf %232, %231 : vector<1x128xf32>
    %234 = arith.mulf %219, %221 : vector<1x128xf32>
    %235 = arith.mulf %220, %218 : vector<1x128xf32>
    %236 = arith.addf %234, %235 : vector<1x128xf32>
    %cst_106 = arith.constant 2.000000e+00 : f32
    %237 = vector.broadcast %cst_106 : f32 to vector<1x128xf32>
    %238 = arith.mulf %237, %236 : vector<1x128xf32>
    %239 = arith.mulf %219, %220 : vector<1x128xf32>
    %240 = arith.mulf %221, %218 : vector<1x128xf32>
    %241 = arith.addf %239, %240 : vector<1x128xf32>
    %cst_107 = arith.constant 2.000000e+00 : f32
    %242 = vector.broadcast %cst_107 : f32 to vector<1x128xf32>
    %243 = arith.mulf %242, %241 : vector<1x128xf32>
    %244 = arith.mulf %219, %219 : vector<1x128xf32>
    %245 = arith.mulf %221, %221 : vector<1x128xf32>
    %246 = arith.addf %244, %245 : vector<1x128xf32>
    %cst_108 = arith.constant 2.000000e+00 : f32
    %247 = vector.broadcast %cst_108 : f32 to vector<1x128xf32>
    %248 = arith.mulf %247, %246 : vector<1x128xf32>
    %cst_109 = arith.constant 1.000000e+00 : f32
    %249 = vector.broadcast %cst_109 : f32 to vector<1x128xf32>
    %250 = arith.subf %249, %248 : vector<1x128xf32>
    %251 = arith.mulf %220, %221 : vector<1x128xf32>
    %252 = arith.mulf %219, %218 : vector<1x128xf32>
    %253 = arith.subf %251, %252 : vector<1x128xf32>
    %cst_110 = arith.constant 2.000000e+00 : f32
    %254 = vector.broadcast %cst_110 : f32 to vector<1x128xf32>
    %255 = arith.mulf %254, %253 : vector<1x128xf32>
    %256 = arith.mulf %219, %221 : vector<1x128xf32>
    %257 = arith.mulf %220, %218 : vector<1x128xf32>
    %258 = arith.subf %256, %257 : vector<1x128xf32>
    %cst_111 = arith.constant 2.000000e+00 : f32
    %259 = vector.broadcast %cst_111 : f32 to vector<1x128xf32>
    %260 = arith.mulf %259, %258 : vector<1x128xf32>
    %261 = arith.mulf %220, %221 : vector<1x128xf32>
    %262 = arith.mulf %219, %218 : vector<1x128xf32>
    %263 = arith.addf %261, %262 : vector<1x128xf32>
    %cst_112 = arith.constant 2.000000e+00 : f32
    %264 = vector.broadcast %cst_112 : f32 to vector<1x128xf32>
    %265 = arith.mulf %264, %263 : vector<1x128xf32>
    %266 = arith.mulf %219, %219 : vector<1x128xf32>
    %267 = arith.mulf %220, %220 : vector<1x128xf32>
    %268 = arith.addf %266, %267 : vector<1x128xf32>
    %cst_113 = arith.constant 2.000000e+00 : f32
    %269 = vector.broadcast %cst_113 : f32 to vector<1x128xf32>
    %270 = arith.mulf %269, %268 : vector<1x128xf32>
    %cst_114 = arith.constant 1.000000e+00 : f32
    %271 = vector.broadcast %cst_114 : f32 to vector<1x128xf32>
    %272 = arith.subf %271, %270 : vector<1x128xf32>
    %273 = vector.extract_strided_slice %201 {offsets = [4, 0], sizes = [8, 128], strides = [1, 1]} : vector<12x128xf32> to vector<8x128xf32>
    %c0_115 = arith.constant 0 : index
    %c0_116 = arith.constant 0 : index
    %274 = vector.load %arg32[%c0_115, %c0_116] : memref<64x3xf32, #tpu.memory_space<vmem>>, vector<64x3xf32>
    %275 = vector.extract_strided_slice %274 {offsets = [0, 0], sizes = [64, 1], strides = [1, 1]} : vector<64x3xf32> to vector<64x1xf32>
    %276 = vector.broadcast %275 : vector<64x1xf32> to vector<64x128xf32>
    %277 = vector.broadcast %228 : vector<1x128xf32> to vector<64x128xf32>
    %278 = arith.mulf %276, %277 : vector<64x128xf32>
    %279 = vector.extract_strided_slice %274 {offsets = [0, 1], sizes = [64, 1], strides = [1, 1]} : vector<64x3xf32> to vector<64x1xf32>
    %280 = vector.broadcast %279 : vector<64x1xf32> to vector<64x128xf32>
    %281 = vector.broadcast %243 : vector<1x128xf32> to vector<64x128xf32>
    %282 = arith.mulf %280, %281 : vector<64x128xf32>
    %283 = arith.addf %278, %282 : vector<64x128xf32>
    %284 = vector.extract_strided_slice %274 {offsets = [0, 2], sizes = [64, 1], strides = [1, 1]} : vector<64x3xf32> to vector<64x1xf32>
    %285 = vector.broadcast %284 : vector<64x1xf32> to vector<64x128xf32>
    %286 = vector.broadcast %260 : vector<1x128xf32> to vector<64x128xf32>
    %287 = arith.mulf %285, %286 : vector<64x128xf32>
    %288 = arith.addf %283, %287 : vector<64x128xf32>
    %289 = vector.extract_strided_slice %274 {offsets = [0, 0], sizes = [64, 1], strides = [1, 1]} : vector<64x3xf32> to vector<64x1xf32>
    %290 = vector.broadcast %289 : vector<64x1xf32> to vector<64x128xf32>
    %291 = vector.broadcast %233 : vector<1x128xf32> to vector<64x128xf32>
    %292 = arith.mulf %290, %291 : vector<64x128xf32>
    %293 = vector.extract_strided_slice %274 {offsets = [0, 1], sizes = [64, 1], strides = [1, 1]} : vector<64x3xf32> to vector<64x1xf32>
    %294 = vector.broadcast %293 : vector<64x1xf32> to vector<64x128xf32>
    %295 = vector.broadcast %250 : vector<1x128xf32> to vector<64x128xf32>
    %296 = arith.mulf %294, %295 : vector<64x128xf32>
    %297 = arith.addf %292, %296 : vector<64x128xf32>
    %298 = vector.extract_strided_slice %274 {offsets = [0, 2], sizes = [64, 1], strides = [1, 1]} : vector<64x3xf32> to vector<64x1xf32>
    %299 = vector.broadcast %298 : vector<64x1xf32> to vector<64x128xf32>
    %300 = vector.broadcast %265 : vector<1x128xf32> to vector<64x128xf32>
    %301 = arith.mulf %299, %300 : vector<64x128xf32>
    %302 = arith.addf %297, %301 : vector<64x128xf32>
    %303 = vector.extract_strided_slice %274 {offsets = [0, 0], sizes = [64, 1], strides = [1, 1]} : vector<64x3xf32> to vector<64x1xf32>
    %304 = vector.broadcast %303 : vector<64x1xf32> to vector<64x128xf32>
    %305 = vector.broadcast %238 : vector<1x128xf32> to vector<64x128xf32>
    %306 = arith.mulf %304, %305 : vector<64x128xf32>
    %307 = vector.extract_strided_slice %274 {offsets = [0, 1], sizes = [64, 1], strides = [1, 1]} : vector<64x3xf32> to vector<64x1xf32>
    %308 = vector.broadcast %307 : vector<64x1xf32> to vector<64x128xf32>
    %309 = vector.broadcast %255 : vector<1x128xf32> to vector<64x128xf32>
    %310 = arith.mulf %308, %309 : vector<64x128xf32>
    %311 = arith.addf %306, %310 : vector<64x128xf32>
    %312 = vector.extract_strided_slice %274 {offsets = [0, 2], sizes = [64, 1], strides = [1, 1]} : vector<64x3xf32> to vector<64x1xf32>
    %313 = vector.broadcast %312 : vector<64x1xf32> to vector<64x128xf32>
    %314 = vector.broadcast %272 : vector<1x128xf32> to vector<64x128xf32>
    %315 = arith.mulf %313, %314 : vector<64x128xf32>
    %316 = arith.addf %311, %315 : vector<64x128xf32>
    %c0_117 = arith.constant 0 : index
    %c0_118 = arith.constant 0 : index
    %317 = vector.load %arg30[%c0_117, %c0_118] : memref<64x16xf32, #tpu.memory_space<vmem>>, vector<64x16xf32>
    %cst_119 = arith.constant dense<0.000000e+00> : vector<64x1024xf32>
    %318 = tpu.matmul %317, %172, %cst_119 {dimension_numbers = #tpu.dot_dimension_numbers<[1], [0], [0], [1], [0, 0, 1, 1], [], []>} : vector<64x16xf32>, vector<16x1024xf32>, vector<64x1024xf32> -> vector<64x1024xf32>
    %c0_120 = arith.constant 0 : index
    %c0_121 = arith.constant 0 : index
    %319 = vector.load %arg31[%c0_120, %c0_121] : memref<64x8xf32, #tpu.memory_space<vmem>>, vector<64x8xf32>
    %cst_122 = arith.constant dense<0.000000e+00> : vector<64x128xf32>
    %320 = tpu.matmul %319, %273, %cst_122 {dimension_numbers = #tpu.dot_dimension_numbers<[1], [0], [0], [1], [0, 0, 1, 1], [], []>} : vector<64x8xf32>, vector<8x128xf32>, vector<64x128xf32> -> vector<64x128xf32>
    %c0_123 = arith.constant 0 : index
    %c0_124 = arith.constant 0 : index
    %321 = vector.load %arg33[%c0_123, %c0_124] : memref<64x1xf32, #tpu.memory_space<vmem>>, vector<64x1xf32>
    %322 = vector.broadcast %321 : vector<64x1xf32> to vector<64x128xf32>
    %323 = arith.addf %320, %322 : vector<64x128xf32>
    %c0_125 = arith.constant 0 : index
    %c0_126 = arith.constant 0 : index
    %324 = vector.load %arg1[%c0_125, %c0_126] : memref<64x128xf32, #tpu.memory_space<vmem>>, vector<1x128xf32>
    %c1 = arith.constant 1 : index
    %c0_127 = arith.constant 0 : index
    %325 = vector.load %arg1[%c1, %c0_127] : memref<64x128xf32, #tpu.memory_space<vmem>>, vector<1x128xf32>
    %c2 = arith.constant 2 : index
    %c0_128 = arith.constant 0 : index
    %326 = vector.load %arg1[%c2, %c0_128] : memref<64x128xf32, #tpu.memory_space<vmem>>, vector<1x128xf32>
    %327 = vector.extract_strided_slice %318 {offsets = [0, 0], sizes = [64, 128], strides = [1, 1]} : vector<64x1024xf32> to vector<64x128xf32>
    %328 = arith.addf %327, %323 : vector<64x128xf32>
    %329 = vector.broadcast %324 : vector<1x128xf32> to vector<64x128xf32>
    %330 = arith.mulf %329, %288 : vector<64x128xf32>
    %331 = arith.addf %328, %330 : vector<64x128xf32>
    %332 = vector.broadcast %325 : vector<1x128xf32> to vector<64x128xf32>
    %333 = arith.mulf %332, %302 : vector<64x128xf32>
    %334 = arith.addf %331, %333 : vector<64x128xf32>
    %335 = vector.broadcast %326 : vector<1x128xf32> to vector<64x128xf32>
    %336 = arith.mulf %335, %316 : vector<64x128xf32>
    %337 = arith.addf %334, %336 : vector<64x128xf32>
    %cst_129 = arith.constant 0.000000e+00 : f32
    %338 = vector.broadcast %cst_129 : f32 to vector<64x128xf32>
    %339 = arith.maximumf %337, %338 : vector<64x128xf32>
    %c8_130 = arith.constant 8 : index
    %c0_131 = arith.constant 0 : index
    %340 = vector.load %arg1[%c8_130, %c0_131] : memref<64x128xf32, #tpu.memory_space<vmem>>, vector<1x128xf32>
    %c9 = arith.constant 9 : index
    %c0_132 = arith.constant 0 : index
    %341 = vector.load %arg1[%c9, %c0_132] : memref<64x128xf32, #tpu.memory_space<vmem>>, vector<1x128xf32>
    %c10 = arith.constant 10 : index
    %c0_133 = arith.constant 0 : index
    %342 = vector.load %arg1[%c10, %c0_133] : memref<64x128xf32, #tpu.memory_space<vmem>>, vector<1x128xf32>
    %343 = vector.extract_strided_slice %318 {offsets = [0, 128], sizes = [64, 128], strides = [1, 1]} : vector<64x1024xf32> to vector<64x128xf32>
    %344 = arith.addf %343, %323 : vector<64x128xf32>
    %345 = vector.broadcast %340 : vector<1x128xf32> to vector<64x128xf32>
    %346 = arith.mulf %345, %288 : vector<64x128xf32>
    %347 = arith.addf %344, %346 : vector<64x128xf32>
    %348 = vector.broadcast %341 : vector<1x128xf32> to vector<64x128xf32>
    %349 = arith.mulf %348, %302 : vector<64x128xf32>
    %350 = arith.addf %347, %349 : vector<64x128xf32>
    %351 = vector.broadcast %342 : vector<1x128xf32> to vector<64x128xf32>
    %352 = arith.mulf %351, %316 : vector<64x128xf32>
    %353 = arith.addf %350, %352 : vector<64x128xf32>
    %cst_134 = arith.constant 0.000000e+00 : f32
    %354 = vector.broadcast %cst_134 : f32 to vector<64x128xf32>
    %355 = arith.maximumf %353, %354 : vector<64x128xf32>
    %c16_135 = arith.constant 16 : index
    %c0_136 = arith.constant 0 : index
    %356 = vector.load %arg1[%c16_135, %c0_136] : memref<64x128xf32, #tpu.memory_space<vmem>>, vector<1x128xf32>
    %c17 = arith.constant 17 : index
    %c0_137 = arith.constant 0 : index
    %357 = vector.load %arg1[%c17, %c0_137] : memref<64x128xf32, #tpu.memory_space<vmem>>, vector<1x128xf32>
    %c18 = arith.constant 18 : index
    %c0_138 = arith.constant 0 : index
    %358 = vector.load %arg1[%c18, %c0_138] : memref<64x128xf32, #tpu.memory_space<vmem>>, vector<1x128xf32>
    %359 = vector.extract_strided_slice %318 {offsets = [0, 256], sizes = [64, 128], strides = [1, 1]} : vector<64x1024xf32> to vector<64x128xf32>
    %360 = arith.addf %359, %323 : vector<64x128xf32>
    %361 = vector.broadcast %356 : vector<1x128xf32> to vector<64x128xf32>
    %362 = arith.mulf %361, %288 : vector<64x128xf32>
    %363 = arith.addf %360, %362 : vector<64x128xf32>
    %364 = vector.broadcast %357 : vector<1x128xf32> to vector<64x128xf32>
    %365 = arith.mulf %364, %302 : vector<64x128xf32>
    %366 = arith.addf %363, %365 : vector<64x128xf32>
    %367 = vector.broadcast %358 : vector<1x128xf32> to vector<64x128xf32>
    %368 = arith.mulf %367, %316 : vector<64x128xf32>
    %369 = arith.addf %366, %368 : vector<64x128xf32>
    %cst_139 = arith.constant 0.000000e+00 : f32
    %370 = vector.broadcast %cst_139 : f32 to vector<64x128xf32>
    %371 = arith.maximumf %369, %370 : vector<64x128xf32>
    %c24_140 = arith.constant 24 : index
    %c0_141 = arith.constant 0 : index
    %372 = vector.load %arg1[%c24_140, %c0_141] : memref<64x128xf32, #tpu.memory_space<vmem>>, vector<1x128xf32>
    %c25 = arith.constant 25 : index
    %c0_142 = arith.constant 0 : index
    %373 = vector.load %arg1[%c25, %c0_142] : memref<64x128xf32, #tpu.memory_space<vmem>>, vector<1x128xf32>
    %c26 = arith.constant 26 : index
    %c0_143 = arith.constant 0 : index
    %374 = vector.load %arg1[%c26, %c0_143] : memref<64x128xf32, #tpu.memory_space<vmem>>, vector<1x128xf32>
    %375 = vector.extract_strided_slice %318 {offsets = [0, 384], sizes = [64, 128], strides = [1, 1]} : vector<64x1024xf32> to vector<64x128xf32>
    %376 = arith.addf %375, %323 : vector<64x128xf32>
    %377 = vector.broadcast %372 : vector<1x128xf32> to vector<64x128xf32>
    %378 = arith.mulf %377, %288 : vector<64x128xf32>
    %379 = arith.addf %376, %378 : vector<64x128xf32>
    %380 = vector.broadcast %373 : vector<1x128xf32> to vector<64x128xf32>
    %381 = arith.mulf %380, %302 : vector<64x128xf32>
    %382 = arith.addf %379, %381 : vector<64x128xf32>
    %383 = vector.broadcast %374 : vector<1x128xf32> to vector<64x128xf32>
    %384 = arith.mulf %383, %316 : vector<64x128xf32>
    %385 = arith.addf %382, %384 : vector<64x128xf32>
    %cst_144 = arith.constant 0.000000e+00 : f32
    %386 = vector.broadcast %cst_144 : f32 to vector<64x128xf32>
    %387 = arith.maximumf %385, %386 : vector<64x128xf32>
    %c32_145 = arith.constant 32 : index
    %c0_146 = arith.constant 0 : index
    %388 = vector.load %arg1[%c32_145, %c0_146] : memref<64x128xf32, #tpu.memory_space<vmem>>, vector<1x128xf32>
    %c33 = arith.constant 33 : index
    %c0_147 = arith.constant 0 : index
    %389 = vector.load %arg1[%c33, %c0_147] : memref<64x128xf32, #tpu.memory_space<vmem>>, vector<1x128xf32>
    %c34 = arith.constant 34 : index
    %c0_148 = arith.constant 0 : index
    %390 = vector.load %arg1[%c34, %c0_148] : memref<64x128xf32, #tpu.memory_space<vmem>>, vector<1x128xf32>
    %391 = vector.extract_strided_slice %318 {offsets = [0, 512], sizes = [64, 128], strides = [1, 1]} : vector<64x1024xf32> to vector<64x128xf32>
    %392 = arith.addf %391, %323 : vector<64x128xf32>
    %393 = vector.broadcast %388 : vector<1x128xf32> to vector<64x128xf32>
    %394 = arith.mulf %393, %288 : vector<64x128xf32>
    %395 = arith.addf %392, %394 : vector<64x128xf32>
    %396 = vector.broadcast %389 : vector<1x128xf32> to vector<64x128xf32>
    %397 = arith.mulf %396, %302 : vector<64x128xf32>
    %398 = arith.addf %395, %397 : vector<64x128xf32>
    %399 = vector.broadcast %390 : vector<1x128xf32> to vector<64x128xf32>
    %400 = arith.mulf %399, %316 : vector<64x128xf32>
    %401 = arith.addf %398, %400 : vector<64x128xf32>
    %cst_149 = arith.constant 0.000000e+00 : f32
    %402 = vector.broadcast %cst_149 : f32 to vector<64x128xf32>
    %403 = arith.maximumf %401, %402 : vector<64x128xf32>
    %c40_150 = arith.constant 40 : index
    %c0_151 = arith.constant 0 : index
    %404 = vector.load %arg1[%c40_150, %c0_151] : memref<64x128xf32, #tpu.memory_space<vmem>>, vector<1x128xf32>
    %c41 = arith.constant 41 : index
    %c0_152 = arith.constant 0 : index
    %405 = vector.load %arg1[%c41, %c0_152] : memref<64x128xf32, #tpu.memory_space<vmem>>, vector<1x128xf32>
    %c42 = arith.constant 42 : index
    %c0_153 = arith.constant 0 : index
    %406 = vector.load %arg1[%c42, %c0_153] : memref<64x128xf32, #tpu.memory_space<vmem>>, vector<1x128xf32>
    %407 = vector.extract_strided_slice %318 {offsets = [0, 640], sizes = [64, 128], strides = [1, 1]} : vector<64x1024xf32> to vector<64x128xf32>
    %408 = arith.addf %407, %323 : vector<64x128xf32>
    %409 = vector.broadcast %404 : vector<1x128xf32> to vector<64x128xf32>
    %410 = arith.mulf %409, %288 : vector<64x128xf32>
    %411 = arith.addf %408, %410 : vector<64x128xf32>
    %412 = vector.broadcast %405 : vector<1x128xf32> to vector<64x128xf32>
    %413 = arith.mulf %412, %302 : vector<64x128xf32>
    %414 = arith.addf %411, %413 : vector<64x128xf32>
    %415 = vector.broadcast %406 : vector<1x128xf32> to vector<64x128xf32>
    %416 = arith.mulf %415, %316 : vector<64x128xf32>
    %417 = arith.addf %414, %416 : vector<64x128xf32>
    %cst_154 = arith.constant 0.000000e+00 : f32
    %418 = vector.broadcast %cst_154 : f32 to vector<64x128xf32>
    %419 = arith.maximumf %417, %418 : vector<64x128xf32>
    %c48_155 = arith.constant 48 : index
    %c0_156 = arith.constant 0 : index
    %420 = vector.load %arg1[%c48_155, %c0_156] : memref<64x128xf32, #tpu.memory_space<vmem>>, vector<1x128xf32>
    %c49 = arith.constant 49 : index
    %c0_157 = arith.constant 0 : index
    %421 = vector.load %arg1[%c49, %c0_157] : memref<64x128xf32, #tpu.memory_space<vmem>>, vector<1x128xf32>
    %c50 = arith.constant 50 : index
    %c0_158 = arith.constant 0 : index
    %422 = vector.load %arg1[%c50, %c0_158] : memref<64x128xf32, #tpu.memory_space<vmem>>, vector<1x128xf32>
    %423 = vector.extract_strided_slice %318 {offsets = [0, 768], sizes = [64, 128], strides = [1, 1]} : vector<64x1024xf32> to vector<64x128xf32>
    %424 = arith.addf %423, %323 : vector<64x128xf32>
    %425 = vector.broadcast %420 : vector<1x128xf32> to vector<64x128xf32>
    %426 = arith.mulf %425, %288 : vector<64x128xf32>
    %427 = arith.addf %424, %426 : vector<64x128xf32>
    %428 = vector.broadcast %421 : vector<1x128xf32> to vector<64x128xf32>
    %429 = arith.mulf %428, %302 : vector<64x128xf32>
    %430 = arith.addf %427, %429 : vector<64x128xf32>
    %431 = vector.broadcast %422 : vector<1x128xf32> to vector<64x128xf32>
    %432 = arith.mulf %431, %316 : vector<64x128xf32>
    %433 = arith.addf %430, %432 : vector<64x128xf32>
    %cst_159 = arith.constant 0.000000e+00 : f32
    %434 = vector.broadcast %cst_159 : f32 to vector<64x128xf32>
    %435 = arith.maximumf %433, %434 : vector<64x128xf32>
    %c56_160 = arith.constant 56 : index
    %c0_161 = arith.constant 0 : index
    %436 = vector.load %arg1[%c56_160, %c0_161] : memref<64x128xf32, #tpu.memory_space<vmem>>, vector<1x128xf32>
    %c57 = arith.constant 57 : index
    %c0_162 = arith.constant 0 : index
    %437 = vector.load %arg1[%c57, %c0_162] : memref<64x128xf32, #tpu.memory_space<vmem>>, vector<1x128xf32>
    %c58 = arith.constant 58 : index
    %c0_163 = arith.constant 0 : index
    %438 = vector.load %arg1[%c58, %c0_163] : memref<64x128xf32, #tpu.memory_space<vmem>>, vector<1x128xf32>
    %439 = vector.extract_strided_slice %318 {offsets = [0, 896], sizes = [64, 128], strides = [1, 1]} : vector<64x1024xf32> to vector<64x128xf32>
    %440 = arith.addf %439, %323 : vector<64x128xf32>
    %441 = vector.broadcast %436 : vector<1x128xf32> to vector<64x128xf32>
    %442 = arith.mulf %441, %288 : vector<64x128xf32>
    %443 = arith.addf %440, %442 : vector<64x128xf32>
    %444 = vector.broadcast %437 : vector<1x128xf32> to vector<64x128xf32>
    %445 = arith.mulf %444, %302 : vector<64x128xf32>
    %446 = arith.addf %443, %445 : vector<64x128xf32>
    %447 = vector.broadcast %438 : vector<1x128xf32> to vector<64x128xf32>
    %448 = arith.mulf %447, %316 : vector<64x128xf32>
    %449 = arith.addf %446, %448 : vector<64x128xf32>
    %cst_164 = arith.constant 0.000000e+00 : f32
    %450 = vector.broadcast %cst_164 : f32 to vector<64x128xf32>
    %451 = arith.maximumf %449, %450 : vector<64x128xf32>
    %452 = tpu.concatenate %339, %355, %371, %387, %403, %419, %435, %451 in 0 : vector<64x128xf32>, vector<64x128xf32>, vector<64x128xf32>, vector<64x128xf32>, vector<64x128xf32>, vector<64x128xf32>, vector<64x128xf32>, vector<64x128xf32> -> vector<512x128xf32>
    %c0_165 = arith.constant 0 : index
    %c0_166 = arith.constant 0 : index
    %453 = vector.load %arg34[%c0_165, %c0_166] : memref<8x512xf32, #tpu.memory_space<vmem>>, vector<8x512xf32>
    %cst_167 = arith.constant dense<0.000000e+00> : vector<8x128xf32>
    %454 = tpu.matmul %453, %452, %cst_167 {dimension_numbers = #tpu.dot_dimension_numbers<[1], [0], [0], [1], [0, 0, 1, 1], [], []>} : vector<8x512xf32>, vector<512x128xf32>, vector<8x128xf32> -> vector<8x128xf32>
    %c0_168 = arith.constant 0 : index
    %c0_169 = arith.constant 0 : index
    %455 = vector.load %arg35[%c0_168, %c0_169] : memref<1x1xf32, #tpu.memory_space<vmem>>, vector<1x1xf32>
    %456 = vector.broadcast %455 : vector<1x1xf32> to vector<8x128xf32>
    %457 = arith.addf %454, %456 : vector<8x128xf32>
    %cst_170 = arith.constant dense<0xFF800000> : vector<128xf32>
    %458 = vector.multi_reduction <maximumf>, %457, %cst_170 [0] : vector<8x128xf32> to vector<128xf32>
    %459 = vector.shape_cast %458 : vector<128xf32> to vector<1x128xf32>
    %460 = vector.broadcast %459 : vector<1x128xf32> to vector<8x128xf32>
    %461 = arith.subf %457, %460 : vector<8x128xf32>
    %462 = math.exp %461 : vector<8x128xf32>
    %cst_171 = arith.constant dense<0.000000e+00> : vector<128xf32>
    %463 = vector.multi_reduction <add>, %462, %cst_171 [0] : vector<8x128xf32> to vector<128xf32>
    %464 = vector.shape_cast %463 : vector<128xf32> to vector<1x128xf32>
    %cst_172 = arith.constant 1.000000e+00 : f32
    %465 = vector.broadcast %cst_172 : f32 to vector<1x128xf32>
    %466 = arith.divf %465, %464 : vector<1x128xf32>
    %467 = vector.broadcast %466 : vector<1x128xf32> to vector<8x128xf32>
    %468 = arith.mulf %462, %467 : vector<8x128xf32>
    %c0_173 = arith.constant 0 : index
    %c0_174 = arith.constant 0 : index
    %469 = vector.load %arg36[%c0_173, %c0_174] : memref<8x128xf32, #tpu.memory_space<vmem>>, vector<8x128xf32>
    tpu.vector_store %arg36[%c0_173, %c0_174], %468 {strides = array<i32>} : memref<8x128xf32, #tpu.memory_space<vmem>>, vector<8x128xf32>,
    return
  }
  func.func @transform_0(%arg0: i32) -> (i32, i32) {
    %c0_i32 = arith.constant 0 : i32
    %c0_i32_0 = arith.constant 0 : i32
    return %c0_i32, %arg0 : i32, i32
  }
  func.func @transform_1(%arg0: i32) -> (i32, i32) {
    %c0_i32 = arith.constant 0 : i32
    %c0_i32_0 = arith.constant 0 : i32
    return %c0_i32, %arg0 : i32, i32
  }
  func.func @transform_2(%arg0: i32) -> (i32, i32) {
    %c0_i32 = arith.constant 0 : i32
    %c0_i32_0 = arith.constant 0 : i32
    %c0_i32_1 = arith.constant 0 : i32
    return %c0_i32, %c0_i32_0 : i32, i32
  }
  func.func @transform_3(%arg0: i32) -> (i32, i32) {
    %c0_i32 = arith.constant 0 : i32
    %c0_i32_0 = arith.constant 0 : i32
    %c0_i32_1 = arith.constant 0 : i32
    return %c0_i32, %c0_i32_0 : i32, i32
  }
  func.func @transform_4(%arg0: i32) -> (i32, i32) {
    %c0_i32 = arith.constant 0 : i32
    %c0_i32_0 = arith.constant 0 : i32
    %c0_i32_1 = arith.constant 0 : i32
    return %c0_i32, %c0_i32_0 : i32, i32
  }
  func.func @transform_5(%arg0: i32) -> (i32, i32) {
    %c0_i32 = arith.constant 0 : i32
    %c0_i32_0 = arith.constant 0 : i32
    %c0_i32_1 = arith.constant 0 : i32
    return %c0_i32, %c0_i32_0 : i32, i32
  }
  func.func @transform_6(%arg0: i32) -> (i32, i32) {
    %c0_i32 = arith.constant 0 : i32
    %c0_i32_0 = arith.constant 0 : i32
    %c0_i32_1 = arith.constant 0 : i32
    return %c0_i32, %c0_i32_0 : i32, i32
  }
  func.func @transform_7(%arg0: i32) -> (i32, i32) {
    %c0_i32 = arith.constant 0 : i32
    %c0_i32_0 = arith.constant 0 : i32
    %c0_i32_1 = arith.constant 0 : i32
    return %c0_i32, %c0_i32_0 : i32, i32
  }
  func.func @transform_8(%arg0: i32) -> (i32, i32) {
    %c0_i32 = arith.constant 0 : i32
    %c0_i32_0 = arith.constant 0 : i32
    %c0_i32_1 = arith.constant 0 : i32
    return %c0_i32, %c0_i32_0 : i32, i32
  }
  func.func @transform_9(%arg0: i32) -> (i32, i32) {
    %c0_i32 = arith.constant 0 : i32
    %c0_i32_0 = arith.constant 0 : i32
    %c0_i32_1 = arith.constant 0 : i32
    return %c0_i32, %c0_i32_0 : i32, i32
  }
  func.func @transform_10(%arg0: i32) -> (i32, i32) {
    %c0_i32 = arith.constant 0 : i32
    %c0_i32_0 = arith.constant 0 : i32
    %c0_i32_1 = arith.constant 0 : i32
    return %c0_i32, %c0_i32_0 : i32, i32
  }
  func.func @transform_11(%arg0: i32) -> (i32, i32) {
    %c0_i32 = arith.constant 0 : i32
    %c0_i32_0 = arith.constant 0 : i32
    %c0_i32_1 = arith.constant 0 : i32
    return %c0_i32, %c0_i32_0 : i32, i32
  }
  func.func @transform_12(%arg0: i32) -> (i32, i32) {
    %c0_i32 = arith.constant 0 : i32
    %c0_i32_0 = arith.constant 0 : i32
    %c0_i32_1 = arith.constant 0 : i32
    return %c0_i32, %c0_i32_0 : i32, i32
  }
  func.func @transform_13(%arg0: i32) -> (i32, i32) {
    %c0_i32 = arith.constant 0 : i32
    %c0_i32_0 = arith.constant 0 : i32
    %c0_i32_1 = arith.constant 0 : i32
    return %c0_i32, %c0_i32_0 : i32, i32
  }
  func.func @transform_14(%arg0: i32) -> (i32, i32) {
    %c0_i32 = arith.constant 0 : i32
    %c0_i32_0 = arith.constant 0 : i32
    %c0_i32_1 = arith.constant 0 : i32
    return %c0_i32, %c0_i32_0 : i32, i32
  }
  func.func @transform_15(%arg0: i32) -> (i32, i32) {
    %c0_i32 = arith.constant 0 : i32
    %c0_i32_0 = arith.constant 0 : i32
    %c0_i32_1 = arith.constant 0 : i32
    return %c0_i32, %c0_i32_0 : i32, i32
  }
  func.func @transform_16(%arg0: i32) -> (i32, i32) {
    %c0_i32 = arith.constant 0 : i32
    %c0_i32_0 = arith.constant 0 : i32
    %c0_i32_1 = arith.constant 0 : i32
    return %c0_i32, %c0_i32_0 : i32, i32
  }
  func.func @transform_17(%arg0: i32) -> (i32, i32) {
    %c0_i32 = arith.constant 0 : i32
    %c0_i32_0 = arith.constant 0 : i32
    %c0_i32_1 = arith.constant 0 : i32
    return %c0_i32, %c0_i32_0 : i32, i32
  }
  func.func @transform_18(%arg0: i32) -> (i32, i32) {
    %c0_i32 = arith.constant 0 : i32
    %c0_i32_0 = arith.constant 0 : i32
    %c0_i32_1 = arith.constant 0 : i32
    return %c0_i32, %c0_i32_0 : i32, i32
  }
  func.func @transform_19(%arg0: i32) -> (i32, i32) {
    %c0_i32 = arith.constant 0 : i32
    %c0_i32_0 = arith.constant 0 : i32
    %c0_i32_1 = arith.constant 0 : i32
    return %c0_i32, %c0_i32_0 : i32, i32
  }
  func.func @transform_20(%arg0: i32) -> (i32, i32) {
    %c0_i32 = arith.constant 0 : i32
    %c0_i32_0 = arith.constant 0 : i32
    %c0_i32_1 = arith.constant 0 : i32
    return %c0_i32, %c0_i32_0 : i32, i32
  }
  func.func @transform_21(%arg0: i32) -> (i32, i32) {
    %c0_i32 = arith.constant 0 : i32
    %c0_i32_0 = arith.constant 0 : i32
    %c0_i32_1 = arith.constant 0 : i32
    return %c0_i32, %c0_i32_0 : i32, i32
  }
  func.func @transform_22(%arg0: i32) -> (i32, i32) {
    %c0_i32 = arith.constant 0 : i32
    %c0_i32_0 = arith.constant 0 : i32
    %c0_i32_1 = arith.constant 0 : i32
    return %c0_i32, %c0_i32_0 : i32, i32
  }
  func.func @transform_23(%arg0: i32) -> (i32, i32) {
    %c0_i32 = arith.constant 0 : i32
    %c0_i32_0 = arith.constant 0 : i32
    %c0_i32_1 = arith.constant 0 : i32
    return %c0_i32, %c0_i32_0 : i32, i32
  }
  func.func @transform_24(%arg0: i32) -> (i32, i32) {
    %c0_i32 = arith.constant 0 : i32
    %c0_i32_0 = arith.constant 0 : i32
    %c0_i32_1 = arith.constant 0 : i32
    return %c0_i32, %c0_i32_0 : i32, i32
  }
  func.func @transform_25(%arg0: i32) -> (i32, i32) {
    %c0_i32 = arith.constant 0 : i32
    %c0_i32_0 = arith.constant 0 : i32
    %c0_i32_1 = arith.constant 0 : i32
    return %c0_i32, %c0_i32_0 : i32, i32
  }
  func.func @transform_26(%arg0: i32) -> (i32, i32) {
    %c0_i32 = arith.constant 0 : i32
    %c0_i32_0 = arith.constant 0 : i32
    %c0_i32_1 = arith.constant 0 : i32
    return %c0_i32, %c0_i32_0 : i32, i32
  }
  func.func @transform_27(%arg0: i32) -> (i32, i32) {
    %c0_i32 = arith.constant 0 : i32
    %c0_i32_0 = arith.constant 0 : i32
    %c0_i32_1 = arith.constant 0 : i32
    return %c0_i32, %c0_i32_0 : i32, i32
  }
  func.func @transform_28(%arg0: i32) -> (i32, i32) {
    %c0_i32 = arith.constant 0 : i32
    %c0_i32_0 = arith.constant 0 : i32
    %c0_i32_1 = arith.constant 0 : i32
    return %c0_i32, %c0_i32_0 : i32, i32
  }
  func.func @transform_29(%arg0: i32) -> (i32, i32) {
    %c0_i32 = arith.constant 0 : i32
    %c0_i32_0 = arith.constant 0 : i32
    %c0_i32_1 = arith.constant 0 : i32
    return %c0_i32, %c0_i32_0 : i32, i32
  }
  func.func @transform_30(%arg0: i32) -> (i32, i32) {
    %c0_i32 = arith.constant 0 : i32
    %c0_i32_0 = arith.constant 0 : i32
    %c0_i32_1 = arith.constant 0 : i32
    return %c0_i32, %c0_i32_0 : i32, i32
  }
  func.func @transform_31(%arg0: i32) -> (i32, i32) {
    %c0_i32 = arith.constant 0 : i32
    %c0_i32_0 = arith.constant 0 : i32
    %c0_i32_1 = arith.constant 0 : i32
    return %c0_i32, %c0_i32_0 : i32, i32
  }
  func.func @transform_32(%arg0: i32) -> (i32, i32) {
    %c0_i32 = arith.constant 0 : i32
    %c0_i32_0 = arith.constant 0 : i32
    %c0_i32_1 = arith.constant 0 : i32
    return %c0_i32, %c0_i32_0 : i32, i32
  }
  func.func @transform_33(%arg0: i32) -> (i32, i32) {
    %c0_i32 = arith.constant 0 : i32
    %c0_i32_0 = arith.constant 0 : i32
    %c0_i32_1 = arith.constant 0 : i32
    return %c0_i32, %c0_i32_0 : i32, i32
  }
  func.func @transform_34(%arg0: i32) -> (i32, i32) {
    %c0_i32 = arith.constant 0 : i32
    %c0_i32_0 = arith.constant 0 : i32
    %c0_i32_1 = arith.constant 0 : i32
    return %c0_i32, %c0_i32_0 : i32, i32
  }
  func.func @transform_35(%arg0: i32) -> (i32, i32) {
    %c0_i32 = arith.constant 0 : i32
    %c0_i32_0 = arith.constant 0 : i32
    return %c0_i32, %arg0 : i32, i32
  }
}

</mosaic_0001>

<llo_original>
// kernel: squeeze.15
$region0: #{squeeze.15}
  %s0 = inlined_call_operand.vmem [shape: s32[1600], index: 0, kind: input, shape index: {}]
  %s1 = inlined_call_operand.vmem [shape: s32[200,8], index: 1, kind: output, shape index: {}]
  %v2 = vld [vmem:[%s0] sm:$0xff]
  %vm3 = vcmask 64512
  %4 = vst.msk [vmem:[%s1] ss:$16 sm:$0x3] %vm3, %v2
  %5 = vst.msk [vmem:[%s1] ss:$16 sm:$0xc] %vm3, %v2
  %6 = vst.msk [vmem:[%s1] ss:$16 sm:$0x30] %vm3, %v2
  %7 = vst.msk [vmem:[%s1] ss:$16 sm:$0xc0] %vm3, %v2
  %s8 = scalar_lea.vmem %s0, 8
  %v9 = vld [vmem:[%s8] sm:$0x1f]
  %vm10 = vcmask 64512
  %s11 = scalar_lea.vmem %s1, 128
  %12 = vst.msk [vmem:[%s11] ss:$16 sm:$0x3] %vm10, %v9
  %s13 = scalar_lea.vmem %s1, 128
  %14 = vst.msk [vmem:[%s13] ss:$16 sm:$0xc] %vm10, %v9
  %s15 = scalar_lea.vmem %s1, 188
  %16 = vst.msk [vmem:[%s15] sm:$0x10] %vm10, %v9
  %v17 = vld [vmem:[%s0] sm:$0xff]
  %18 = vrot.lane.b32.xlu0 %v17, 120
  %v19 = vpop.permute.xlu0 %18
  %vm20 = vcmask 64512
  %s21 = scalar_lea.vmem %s1, 1
  %22 = vst.msk [vmem:[%s21] ss:$16 sm:$0x3] %vm20, %v19
  %s23 = scalar_lea.vmem %s1, 1
  %24 = vst.msk [vmem:[%s23] ss:$16 sm:$0xc] %vm20, %v19
  %s25 = scalar_lea.vmem %s1, 1
  %26 = vst.msk [vmem:[%s25] ss:$16 sm:$0x30] %vm20, %v19
  %s27 = scalar_lea.vmem %s1, 1
  %28 = vst.msk [vmem:[%s27] ss:$16 sm:$0xc0] %vm20, %v19
  %s29 = scalar_lea.vmem %s0, 8
  %v30 = vld [vmem:[%s29] sm:$0x1f]
  %31 = vrot.lane.b32.xlu0 %v30, 120
  %v32 = vpop.permute.xlu0 %31
  %vm33 = vcmask 64512
  %s34 = scalar_lea.vmem %s1, 129
  %35 = vst.msk [vmem:[%s34] ss:$16 sm:$0x3] %vm33, %v32
  %s36 = scalar_lea.vmem %s1, 129
  %37 = vst.msk [vmem:[%s36] ss:$16 sm:$0xc] %vm33, %v32
  %s38 = scalar_lea.vmem %s1, 189
  %39 = vst.msk [vmem:[%s38] sm:$0x10] %vm33, %v32
  %v40 = vld [vmem:[%s0] sm:$0xff]
  %41 = vrot.lane.b32.xlu0 %v40, 112
  %v42 = vpop.permute.xlu0 %41
  %vm43 = vcmask 64512
  %s44 = scalar_lea.vmem %s1, 2
  %45 = vst.msk [vmem:[%s44] ss:$16 sm:$0x3] %vm43, %v42
  %s46 = scalar_lea.vmem %s1, 2
  %47 = vst.msk [vmem:[%s46] ss:$16 sm:$0xc] %vm43, %v42
  %s48 = scalar_lea.vmem %s1, 2
  %49 = vst.msk [vmem:[%s48] ss:$16 sm:$0x30] %vm43, %v42
  %s50 = scalar_lea.vmem %s1, 2
  %51 = vst.msk [vmem:[%s50] ss:$16 sm:$0xc0] %vm43, %v42
  %s52 = scalar_lea.vmem %s0, 8
  %v53 = vld [vmem:[%s52] sm:$0x1f]
  %54 = vrot.lane.b32.xlu0 %v53, 112
  %v55 = vpop.permute.xlu0 %54
  %vm56 = vcmask 64512
  %s57 = scalar_lea.vmem %s1, 130
  %58 = vst.msk [vmem:[%s57] ss:$16 sm:$0x3] %vm56, %v55
  %s59 = scalar_lea.vmem %s1, 130
  %60 = vst.msk [vmem:[%s59] ss:$16 sm:$0xc] %vm56, %v55
  %s61 = scalar_lea.vmem %s1, 190
  %62 = vst.msk [vmem:[%s61] sm:$0x10] %vm56, %v55
  %v63 = vld [vmem:[%s0] sm:$0xff]
  %64 = vrot.lane.b32.xlu0 %v63, 104
  %v65 = vpop.permute.xlu0 %64
  %vm66 = vcmask 64512
  %s67 = scalar_lea.vmem %s1, 3
  %68 = vst.msk [vmem:[%s67] ss:$16 sm:$0x3] %vm66, %v65
  %s69 = scalar_lea.vmem %s1, 3
  %70 = vst.msk [vmem:[%s69] ss:$16 sm:$0xc] %vm66, %v65
  %s71 = scalar_lea.vmem %s1, 3
  %72 = vst.msk [vmem:[%s71] ss:$16 sm:$0x30] %vm66, %v65
  %s73 = scalar_lea.vmem %s1, 3
  %74 = vst.msk [vmem:[%s73] ss:$16 sm:$0xc0] %vm66, %v65
  %s75 = scalar_lea.vmem %s0, 8
  %v76 = vld [vmem:[%s75] sm:$0x1f]
  %77 = vrot.lane.b32.xlu0 %v76, 104
  %v78 = vpop.permute.xlu0 %77
  %vm79 = vcmask 64512
  %s80 = scalar_lea.vmem %s1, 131
  %81 = vst.msk [vmem:[%s80] ss:$16 sm:$0x3] %vm79, %v78
  %s82 = scalar_lea.vmem %s1, 131
  %83 = vst.msk [vmem:[%s82] ss:$16 sm:$0xc] %vm79, %v78
  %s84 = scalar_lea.vmem %s1, 191
  %85 = vst.msk [vmem:[%s84] sm:$0x10] %vm79, %v78
  %v86 = vld [vmem:[%s0] sm:$0xff]
  %87 = vrot.lane.b32.xlu0 %v86, 96
  %v88 = vpop.permute.xlu0 %87
  %vm89 = vcmask 64512
  %s90 = scalar_lea.vmem %s1, 4
  %91 = vst.msk [vmem:[%s90] ss:$16 sm:$0x3] %vm89, %v88
  %s92 = scalar_lea.vmem %s1, 4
  %93 = vst.msk [vmem:[%s92] ss:$16 sm:$0xc] %vm89, %v88
  %s94 = scalar_lea.vmem %s1, 4
  %95 = vst.msk [vmem:[%s94] ss:$16 sm:$0x30] %vm89, %v88
  %s96 = scalar_lea.vmem %s1, 4
  %97 = vst.msk [vmem:[%s96] ss:$16 sm:$0xc0] %vm89, %v88
  %s98 = scalar_lea.vmem %s0, 8
  %v99 = vld [vmem:[%s98] sm:$0x1f]
  %100 = vrot.lane.b32.xlu0 %v99, 96
  %v101 = vpop.permute.xlu0 %100
  %vm102 = vcmask 64512
  %s103 = scalar_lea.vmem %s1, 132
  %104 = vst.msk [vmem:[%s103] ss:$16 sm:$0x3] %vm102, %v101
  %s105 = scalar_lea.vmem %s1, 132
  %106 = vst.msk [vmem:[%s105] ss:$16 sm:$0xc] %vm102, %v101
  %s107 = scalar_lea.vmem %s1, 192
  %108 = vst.msk [vmem:[%s107] sm:$0x10] %vm102, %v101
  %v109 = vld [vmem:[%s0] sm:$0xff]
  %110 = vrot.lane.b32.xlu0 %v109, 88
  %v111 = vpop.permute.xlu0 %110
  %vm112 = vcmask 64512
  %s113 = scalar_lea.vmem %s1, 5
  %114 = vst.msk [vmem:[%s113] ss:$16 sm:$0x3] %vm112, %v111
  %s115 = scalar_lea.vmem %s1, 5
  %116 = vst.msk [vmem:[%s115] ss:$16 sm:$0xc] %vm112, %v111
  %s117 = scalar_lea.vmem %s1, 5
  %118 = vst.msk [vmem:[%s117] ss:$16 sm:$0x30] %vm112, %v111
  %s119 = scalar_lea.vmem %s1, 5
  %120 = vst.msk [vmem:[%s119] ss:$16 sm:$0xc0] %vm112, %v111
  %s121 = scalar_lea.vmem %s0, 8
  %v122 = vld [vmem:[%s121] sm:$0x1f]
  %123 = vrot.lane.b32.xlu0 %v122, 88
  %v124 = vpop.permute.xlu0 %123
  %vm125 = vcmask 64512
  %s126 = scalar_lea.vmem %s1, 133
  %127 = vst.msk [vmem:[%s126] ss:$16 sm:$0x3] %vm125, %v124
  %s128 = scalar_lea.vmem %s1, 133
  %129 = vst.msk [vmem:[%s128] ss:$16 sm:$0xc] %vm125, %v124
  %s130 = scalar_lea.vmem %s1, 193
  %131 = vst.msk [vmem:[%s130] sm:$0x10] %vm125, %v124
  %v132 = vld [vmem:[%s0] sm:$0xff]
  %133 = vrot.lane.b32.xlu0 %v132, 80
  %v134 = vpop.permute.xlu0 %133
  %vm135 = vcmask 64512
  %s136 = scalar_lea.vmem %s1, 6
  %137 = vst.msk [vmem:[%s136] ss:$16 sm:$0x3] %vm135, %v134
  %s138 = scalar_lea.vmem %s1, 6
  %139 = vst.msk [vmem:[%s138] ss:$16 sm:$0xc] %vm135, %v134
  %s140 = scalar_lea.vmem %s1, 6
  %141 = vst.msk [vmem:[%s140] ss:$16 sm:$0x30] %vm135, %v134
  %s142 = scalar_lea.vmem %s1, 6
  %143 = vst.msk [vmem:[%s142] ss:$16 sm:$0xc0] %vm135, %v134
  %s144 = scalar_lea.vmem %s0, 8
  %v145 = vld [vmem:[%s144] sm:$0x1f]
  %146 = vrot.lane.b32.xlu0 %v145, 80
  %v147 = vpop.permute.xlu0 %146
  %vm148 = vcmask 64512
  %s149 = scalar_lea.vmem %s1, 134
  %150 = vst.msk [vmem:[%s149] ss:$16 sm:$0x3] %vm148, %v147
  %s151 = scalar_lea.vmem %s1, 134
  %152 = vst.msk [vmem:[%s151] ss:$16 sm:$0xc] %vm148, %v147
  %s153 = scalar_lea.vmem %s1, 194
  %154 = vst.msk [vmem:[%s153] sm:$0x10] %vm148, %v147
  %v155 = vld [vmem:[%s0] sm:$0xff]
  %156 = vrot.lane.b32.xlu0 %v155, 72
  %v157 = vpop.permute.xlu0 %156
  %vm158 = vcmask 64512
  %s159 = scalar_lea.vmem %s1, 7
  %160 = vst.msk [vmem:[%s159] ss:$16 sm:$0x3] %vm158, %v157
  %s161 = scalar_lea.vmem %s1, 7
  %162 = vst.msk [vmem:[%s161] ss:$16 sm:$0xc] %vm158, %v157
  %s163 = scalar_lea.vmem %s1, 7
  %164 = vst.msk [vmem:[%s163] ss:$16 sm:$0x30] %vm158, %v157
  %s165 = scalar_lea.vmem %s1, 7
  %166 = vst.msk [vmem:[%s165] ss:$16 sm:$0xc0] %vm158, %v157
  %s167 = scalar_lea.vmem %s0, 8
  %v168 = vld [vmem:[%s167] sm:$0x1f]
  %169 = vrot.lane.b32.xlu0 %v168, 72
  %v170 = vpop.permute.xlu0 %169
  %vm171 = vcmask 64512
  %s172 = scalar_lea.vmem %s1, 135
  %173 = vst.msk [vmem:[%s172] ss:$16 sm:$0x3] %vm171, %v170
  %s174 = scalar_lea.vmem %s1, 135
  %175 = vst.msk [vmem:[%s174] ss:$16 sm:$0xc] %vm171, %v170
  %s176 = scalar_lea.vmem %s1, 195
  %177 = vst.msk [vmem:[%s176] sm:$0x10] %vm171, %v170
  %v178 = vld [vmem:[%s0] sm:$0xff]
  %179 = vrot.lane.b32.xlu0 %v178, 64
  %v180 = vpop.permute.xlu0 %179
  %vm181 = vcmask 64512
  %s182 = scalar_lea.vmem %s1, 8
  %183 = vst.msk [vmem:[%s182] ss:$16 sm:$0x3] %vm181, %v180
  %s184 = scalar_lea.vmem %s1, 8
  %185 = vst.msk [vmem:[%s184] ss:$16 sm:$0xc] %vm181, %v180
  %s186 = scalar_lea.vmem %s1, 8
  %187 = vst.msk [vmem:[%s186] ss:$16 sm:$0x30] %vm181, %v180
  %s188 = scalar_lea.vmem %s1, 8
  %189 = vst.msk [vmem:[%s188] ss:$16 sm:$0xc0] %vm181, %v180
  %s190 = scalar_lea.vmem %s0, 8
  %v191 = vld [vmem:[%s190] sm:$0xf]
  %192 = vrot.lane.b32.xlu0 %v191, 64
  %v193 = vpop.permute.xlu0 %192
  %vm194 = vcmask 64512
  %s195 = scalar_lea.vmem %s1, 136
  %196 = vst.msk [vmem:[%s195] ss:$16 sm:$0x3] %vm194, %v193
  %s197 = scalar_lea.vmem %s1, 136
  %198 = vst.msk [vmem:[%s197] ss:$16 sm:$0xc] %vm194, %v193
  %v199 = vld [vmem:[%s0] sm:$0xff]
  %200 = vrot.lane.b32.xlu0 %v199, 56
  %v201 = vpop.permute.xlu0 %200
  %vm202 = vcmask 64512
  %s203 = scalar_lea.vmem %s1, 9
  %204 = vst.msk [vmem:[%s203] ss:$16 sm:$0x3] %vm202, %v201
  %s205 = scalar_lea.vmem %s1, 9
  %206 = vst.msk [vmem:[%s205] ss:$16 sm:$0xc] %vm202, %v201
  %s207 = scalar_lea.vmem %s1, 9
  %208 = vst.msk [vmem:[%s207] ss:$16 sm:$0x30] %vm202, %v201
  %s209 = scalar_lea.vmem %s1, 9
  %210 = vst.msk [vmem:[%s209] ss:$16 sm:$0xc0] %vm202, %v201
  %s211 = scalar_lea.vmem %s0, 8
  %v212 = vld [vmem:[%s211] sm:$0xf]
  %213 = vrot.lane.b32.xlu0 %v212, 56
  %v214 = vpop.permute.xlu0 %213
  %vm215 = vcmask 64512
  %s216 = scalar_lea.vmem %s1, 137
  %217 = vst.msk [vmem:[%s216] ss:$16 sm:$0x3] %vm215, %v214
  %s218 = scalar_lea.vmem %s1, 137
  %219 = vst.msk [vmem:[%s218] ss:$16 sm:$0xc] %vm215, %v214
  %v220 = vld [vmem:[%s0] sm:$0xff]
  %221 = vrot.lane.b32.xlu0 %v220, 48
  %v222 = vpop.permute.xlu0 %221
  %vm223 = vcmask 64512
  %s224 = scalar_lea.vmem %s1, 10
  %225 = vst.msk [vmem:[%s224] ss:$16 sm:$0x3] %vm223, %v222
  %s226 = scalar_lea.vmem %s1, 10
  %227 = vst.msk [vmem:[%s226] ss:$16 sm:$0xc] %vm223, %v222
  %s228 = scalar_lea.vmem %s1, 10
  %229 = vst.msk [vmem:[%s228] ss:$16 sm:$0x30] %vm223, %v222
  %s230 = scalar_lea.vmem %s1, 10
  %231 = vst.msk [vmem:[%s230] ss:$16 sm:$0xc0] %vm223, %v222
  %s232 = scalar_lea.vmem %s0, 8
  %v233 = vld [vmem:[%s232] sm:$0xf]
  %234 = vrot.lane.b32.xlu0 %v233, 48
  %v235 = vpop.permute.xlu0 %234
  %vm236 = vcmask 64512
  %s237 = scalar_lea.vmem %s1, 138
  %238 = vst.msk [vmem:[%s237] ss:$16 sm:$0x3] %vm236, %v235
  %s239 = scalar_lea.vmem %s1, 138
  %240 = vst.msk [vmem:[%s239] ss:$16 sm:$0xc] %vm236, %v235
  %v241 = vld [vmem:[%s0] sm:$0xff]
  %242 = vrot.lane.b32.xlu0 %v241, 40
  %v243 = vpop.permute.xlu0 %242
  %vm244 = vcmask 64512
  %s245 = scalar_lea.vmem %s1, 11
  %246 = vst.msk [vmem:[%s245] ss:$16 sm:$0x3] %vm244, %v243
  %s247 = scalar_lea.vmem %s1, 11
  %248 = vst.msk [vmem:[%s247] ss:$16 sm:$0xc] %vm244, %v243
  %s249 = scalar_lea.vmem %s1, 11
  %250 = vst.msk [vmem:[%s249] ss:$16 sm:$0x30] %vm244, %v243
  %s251 = scalar_lea.vmem %s1, 11
  %252 = vst.msk [vmem:[%s251] ss:$16 sm:$0xc0] %vm244, %v243
  %s253 = scalar_lea.vmem %s0, 8
  %v254 = vld [vmem:[%s253] sm:$0xf]
  %255 = vrot.lane.b32.xlu0 %v254, 40
  %v256 = vpop.permute.xlu0 %255
  %vm257 = vcmask 64512
  %s258 = scalar_lea.vmem %s1, 139
  %259 = vst.msk [vmem:[%s258] ss:$16 sm:$0x3] %vm257, %v256
  %s260 = scalar_lea.vmem %s1, 139
  %261 = vst.msk [vmem:[%s260] ss:$16 sm:$0xc] %vm257, %v256
  %v262 = vld [vmem:[%s0] sm:$0xff]
  %263 = vrot.lane.b32.xlu0 %v262, 32
  %v264 = vpop.permute.xlu0 %263
  %vm265 = vcmask 64512
  %s266 = scalar_lea.vmem %s1, 12
  %267 = vst.msk [vmem:[%s266] ss:$16 sm:$0x3] %vm265, %v264
  %s268 = scalar_lea.vmem %s1, 12
  %269 = vst.msk [vmem:[%s268] ss:$16 sm:$0xc] %vm265, %v264
  %s270 = scalar_lea.vmem %s1, 12
  %271 = vst.msk [vmem:[%s270] ss:$16 sm:$0x30] %vm265, %v264
  %s272 = scalar_lea.vmem %s1, 12
  %273 = vst.msk [vmem:[%s272] ss:$16 sm:$0xc0] %vm265, %v264
  %s274 = scalar_lea.vmem %s0, 8
  %v275 = vld [vmem:[%s274] sm:$0xf]
  %276 = vrot.lane.b32.xlu0 %v275, 32
  %v277 = vpop.permute.xlu0 %276
  %vm278 = vcmask 64512
  %s279 = scalar_lea.vmem %s1, 140
  %280 = vst.msk [vmem:[%s279] ss:$16 sm:$0x3] %vm278, %v277
  %s281 = scalar_lea.vmem %s1, 140
  %282 = vst.msk [vmem:[%s281] ss:$16 sm:$0xc] %vm278, %v277
  %v283 = vld [vmem:[%s0] sm:$0xff]
  %284 = vrot.lane.b32.xlu0 %v283, 24
  %v285 = vpop.permute.xlu0 %284
  %vm286 = vcmask 64512
  %s287 = scalar_lea.vmem %s1, 13
  %288 = vst.msk [vmem:[%s287] ss:$16 sm:$0x3] %vm286, %v285
  %s289 = scalar_lea.vmem %s1, 13
  %290 = vst.msk [vmem:[%s289] ss:$16 sm:$0xc] %vm286, %v285
  %s291 = scalar_lea.vmem %s1, 13
  %292 = vst.msk [vmem:[%s291] ss:$16 sm:$0x30] %vm286, %v285
  %s293 = scalar_lea.vmem %s1, 13
  %294 = vst.msk [vmem:[%s293] ss:$16 sm:$0xc0] %vm286, %v285
  %s295 = scalar_lea.vmem %s0, 8
  %v296 = vld [vmem:[%s295] sm:$0xf]
  %297 = vrot.lane.b32.xlu0 %v296, 24
  %v298 = vpop.permute.xlu0 %297
  %vm299 = vcmask 64512
  %s300 = scalar_lea.vmem %s1, 141
  %301 = vst.msk [vmem:[%s300] ss:$16 sm:$0x3] %vm299, %v298
  %s302 = scalar_lea.vmem %s1, 141
  %303 = vst.msk [vmem:[%s302] ss:$16 sm:$0xc] %vm299, %v298
  %v304 = vld [vmem:[%s0] sm:$0xff]
  %305 = vrot.lane.b32.xlu0 %v304, 16
  %v306 = vpop.permute.xlu0 %305
  %vm307 = vcmask 64512
  %s308 = scalar_lea.vmem %s1, 14
  %309 = vst.msk [vmem:[%s308] ss:$16 sm:$0x3] %vm307, %v306
  %s310 = scalar_lea.vmem %s1, 14
  %311 = vst.msk [vmem:[%s310] ss:$16 sm:$0xc] %vm307, %v306
  %s312 = scalar_lea.vmem %s1, 14
  %313 = vst.msk [vmem:[%s312] ss:$16 sm:$0x30] %vm307, %v306
  %s314 = scalar_lea.vmem %s1, 14
  %315 = vst.msk [vmem:[%s314] ss:$16 sm:$0xc0] %vm307, %v306
  %s316 = scalar_lea.vmem %s0, 8
  %v317 = vld [vmem:[%s316] sm:$0xf]
  %318 = vrot.lane.b32.xlu0 %v317, 16
  %v319 = vpop.permute.xlu0 %318
  %vm320 = vcmask 64512
  %s321 = scalar_lea.vmem %s1, 142
  %322 = vst.msk [vmem:[%s321] ss:$16 sm:$0x3] %vm320, %v319
  %s323 = scalar_lea.vmem %s1, 142
  %324 = vst.msk [vmem:[%s323] ss:$16 sm:$0xc] %vm320, %v319
  %v325 = vld [vmem:[%s0] sm:$0xff]
  %326 = vrot.lane.b32.xlu0 %v325, 8
  %v327 = vpop.permute.xlu0 %326
  %vm328 = vcmask 64512
  %s329 = scalar_lea.vmem %s1, 15
  %330 = vst.msk [vmem:[%s329] ss:$16 sm:$0x3] %vm328, %v327
  %s331 = scalar_lea.vmem %s1, 15
  %332 = vst.msk [vmem:[%s331] ss:$16 sm:$0xc] %vm328, %v327
  %s333 = scalar_lea.vmem %s1, 15
  %334 = vst.msk [vmem:[%s333] ss:$16 sm:$0x30] %vm328, %v327
  %s335 = scalar_lea.vmem %s1, 15
  %336 = vst.msk [vmem:[%s335] ss:$16 sm:$0xc0] %vm328, %v327
  %s337 = scalar_lea.vmem %s0, 8
  %v338 = vld [vmem:[%s337] sm:$0xf]
  %339 = vrot.lane.b32.xlu0 %v338, 8
  %v340 = vpop.permute.xlu0 %339
  %vm341 = vcmask 64512
  %s342 = scalar_lea.vmem %s1, 143
  %343 = vst.msk [vmem:[%s342] ss:$16 sm:$0x3] %vm341, %v340
  %s344 = scalar_lea.vmem %s1, 143
  %345 = vst.msk [vmem:[%s344] ss:$16 sm:$0xc] %vm341, %v340

// kernel: gnn_fixed_k_forward.1
$region0: #{gnn_fixed_k_forward.1}
  #allocation0 [shape = 'u32[]', space=smem, size = 0x4, offset = 0x4, fixed_abs, tag = 'smem constant byte address 0x4 - core index']
  #allocation1 [shape = 'u32[144,128]{1,0:T(1,128)}', space=vmem, size = 0x12000, scoped, tag = 'internal scratch']
  #allocation2 [shape = 'f32[1,1]{1,0:T(1,128)S(1)}', space=vmem, size = 0x200, scoped, tag = 'scoped memory for gnn_fixed_k_forward.1']
  %s0 = inlined_call_operand.smem [shape: u32[36], index: -1, kind: input, shape index: {}]
  %s1 = sld [smem:[%s0]]
  %s2 = scalar_lea.smem %s0, 1
  %s3 = sld [smem:[%s2]]
  %s4 = scalar_lea.smem %s0, 2
  %s5 = sld [smem:[%s4]]
  %s6 = scalar_lea.smem %s0, 3
  %s7 = sld [smem:[%s6]]
  %s8 = scalar_lea.smem %s0, 4
  %s9 = sld [smem:[%s8]]
  %s10 = scalar_lea.smem %s0, 5
  %s11 = sld [smem:[%s10]]
  %s12 = scalar_lea.smem %s0, 6
  %s13 = sld [smem:[%s12]]
  %s14 = scalar_lea.smem %s0, 7
  %s15 = sld [smem:[%s14]]
  %s16 = scalar_lea.smem %s0, 8
  %s17 = sld [smem:[%s16]]
  %s18 = scalar_lea.smem %s0, 9
  %s19 = sld [smem:[%s18]]
  %s20 = scalar_lea.smem %s0, 10
  %s21 = sld [smem:[%s20]]
  %s22 = scalar_lea.smem %s0, 11
  %s23 = sld [smem:[%s22]]
  %s24 = scalar_lea.smem %s0, 12
  %s25 = sld [smem:[%s24]]
  %s26 = scalar_lea.smem %s0, 13
  %s27 = sld [smem:[%s26]]
  %s28 = scalar_lea.smem %s0, 14
  %s29 = sld [smem:[%s28]]
  %s30 = scalar_lea.smem %s0, 15
  %s31 = sld [smem:[%s30]]
  %s32 = scalar_lea.smem %s0, 16
  %s33 = sld [smem:[%s32]]
  %s34 = scalar_lea.smem %s0, 17
  %s35 = sld [smem:[%s34]]
  %s36 = scalar_lea.smem %s0, 18
  %s37 = sld [smem:[%s36]]
  %s38 = scalar_lea.smem %s0, 19
  %s39 = sld [smem:[%s38]]
  %s40 = scalar_lea.smem %s0, 20
  %s41 = sld [smem:[%s40]]
  %s42 = scalar_lea.smem %s0, 21
  %s43 = sld [smem:[%s42]]
  %s44 = scalar_lea.smem %s0, 22
  %s45 = sld [smem:[%s44]]
  %s46 = scalar_lea.smem %s0, 23
  %s47 = sld [smem:[%s46]]
  %s48 = scalar_lea.smem %s0, 24
  %s49 = sld [smem:[%s48]]
  %s50 = scalar_lea.smem %s0, 25
  %s51 = sld [smem:[%s50]]
  %s52 = scalar_lea.smem %s0, 26
  %s53 = sld [smem:[%s52]]
  %s54 = scalar_lea.smem %s0, 27
  %s55 = sld [smem:[%s54]]
  %s56 = scalar_lea.smem %s0, 28
  %s57 = sld [smem:[%s56]]
  %s58 = scalar_lea.smem %s0, 29
  %s59 = sld [smem:[%s58]]
  %s60 = scalar_lea.smem %s0, 30
  %s61 = sld [smem:[%s60]]
  %s62 = scalar_lea.smem %s0, 31
  %s63 = sld [smem:[%s62]]
  %s64 = scalar_lea.smem %s0, 32
  %s65 = sld [smem:[%s64]]
  %s66 = scalar_lea.smem %s0, 33
  %s67 = sld [smem:[%s66]]
  %s68 = scalar_lea.smem %s0, 34
  %s69 = sld [smem:[%s68]]
  %s70 = scalar_lea.smem %s0, 35
  %s71 = sld [smem:[%s70]]
  %s72 = sld [smem:[#allocation0]]
  $region211: #{gnn_fixed_k_forward.1} parent=0
    _
  %s74 = ssub.s32 1, %s72
  %s75 = scalar_select 0, %s74, %s72
  %v76 = vstv %s69
  %77 = vst [vmem:[#allocation2] sm:$0x1] %v76
  $region1: #{gnn_fixed_k_forward.1} parent=0
    #allocation3 [shape = 'u8[65536]{0}', space=vmem, size = 0x10000, scoped, tag = 'input window, operand 0']
    loop: start=0, step=1, limit=4
    $region2: #{gnn_fixed_k_forward.1} parent=1 // loop_pre_header
      _
    $region3: #{gnn_fixed_k_forward.1} parent=1 // loop_header
      %s79 = sphi 0, %s83
      %p80 = scmp.ge.s32.totalorder %s79, 4
      %s89 = sphi 0, %s91
      %s92 = sphi 0, %s89
      %s93 = sphi 0, %s92
      %s109 = sphi 0, %s93
      %s115 = sphi 0, %s117
      %s118 = sphi 0, %s115
      %s119 = sphi 0, %s118
      %s135 = sphi 0, %s119
      %s139 = sphi 0, %s139
      %s141 = sphi 0, %s139
      %s142 = sphi 0, %s141
      %s156 = sphi 0, %s142
      %s160 = sphi 0, %s160
      %s162 = sphi 0, %s160
      %s163 = sphi 0, %s162
      %s177 = sphi 0, %s163
      %s181 = sphi 0, %s181
      %s183 = sphi 0, %s181
      %s184 = sphi 0, %s183
      %s198 = sphi 0, %s184
      %s202 = sphi 0, %s202
      %s204 = sphi 0, %s202
      %s205 = sphi 0, %s204
      %s219 = sphi 0, %s205
      %s223 = sphi 0, %s223
      %s225 = sphi 0, %s223
      %s226 = sphi 0, %s225
      %s240 = sphi 0, %s226
      %s244 = sphi 0, %s244
      %s246 = sphi 0, %s244
      %s247 = sphi 0, %s246
      %s261 = sphi 0, %s247
      %s265 = sphi 0, %s265
      %s267 = sphi 0, %s265
      %s268 = sphi 0, %s267
      %s282 = sphi 0, %s268
      %s286 = sphi 0, %s286
      %s288 = sphi 0, %s286
      %s289 = sphi 0, %s288
      %s303 = sphi 0, %s289
      %s307 = sphi 0, %s307
      %s309 = sphi 0, %s307
      %s310 = sphi 0, %s309
      %s324 = sphi 0, %s310
      %s328 = sphi 0, %s328
      %s330 = sphi 0, %s328
      %s331 = sphi 0, %s330
      %s345 = sphi 0, %s331
      %s349 = sphi 0, %s349
      %s351 = sphi 0, %s349
      %s352 = sphi 0, %s351
      %s366 = sphi 0, %s352
      %s370 = sphi 0, %s370
      %s372 = sphi 0, %s370
      %s373 = sphi 0, %s372
      %s387 = sphi 0, %s373
      %s391 = sphi 0, %s391
      %s393 = sphi 0, %s391
      %s394 = sphi 0, %s393
      %s408 = sphi 0, %s394
      %s412 = sphi 0, %s412
      %s414 = sphi 0, %s412
      %s415 = sphi 0, %s414
      %s429 = sphi 0, %s415
      %s433 = sphi 0, %s433
      %s435 = sphi 0, %s433
      %s436 = sphi 0, %s435
      %s450 = sphi 0, %s436
      %s454 = sphi 0, %s454
      %s456 = sphi 0, %s454
      %s457 = sphi 0, %s456
      %s471 = sphi 0, %s457
      %s475 = sphi 0, %s475
      %s477 = sphi 0, %s475
      %s478 = sphi 0, %s477
      %s492 = sphi 0, %s478
      %s496 = sphi 0, %s496
      %s498 = sphi 0, %s496
      %s499 = sphi 0, %s498
      %s513 = sphi 0, %s499
      %s517 = sphi 0, %s517
      %s519 = sphi 0, %s517
      %s520 = sphi 0, %s519
      %s534 = sphi 0, %s520
      %s538 = sphi 0, %s538
      %s540 = sphi 0, %s538
      %s541 = sphi 0, %s540
      %s555 = sphi 0, %s541
      %s559 = sphi 0, %s559
      %s561 = sphi 0, %s559
      %s562 = sphi 0, %s561
      %s576 = sphi 0, %s562
      %s580 = sphi 0, %s580
      %s582 = sphi 0, %s580
      %s583 = sphi 0, %s582
      %s597 = sphi 0, %s583
      %s601 = sphi 0, %s601
      %s603 = sphi 0, %s601
      %s604 = sphi 0, %s603
      %s618 = sphi 0, %s604
      %s622 = sphi 0, %s622
      %s624 = sphi 0, %s622
      %s625 = sphi 0, %s624
      %s639 = sphi 0, %s625
      %s643 = sphi 0, %s643
      %s645 = sphi 0, %s643
      %s646 = sphi 0, %s645
      %s660 = sphi 0, %s646
      %s664 = sphi 0, %s664
      %s666 = sphi 0, %s664
      %s667 = sphi 0, %s666
      %s681 = sphi 0, %s667
      %s685 = sphi 0, %s685
      %s687 = sphi 0, %s685
      %s688 = sphi 0, %s687
      %s702 = sphi 0, %s688
      %s706 = sphi 0, %s706
      %s708 = sphi 0, %s706
      %s709 = sphi 0, %s708
      %s723 = sphi 0, %s709
      %s727 = sphi 0, %s727
      %s729 = sphi 0, %s727
      %s730 = sphi 0, %s729
      %s744 = sphi 0, %s730
      %s748 = sphi 0, %s748
      %s750 = sphi 0, %s748
      %s751 = sphi 0, %s750
      %s765 = sphi 0, %s751
      %s769 = sphi 0, %s769
      %s771 = sphi 0, %s769
      %s772 = sphi 0, %s771
      %s786 = sphi 0, %s772
      %s790 = sphi 0, %s790
      %s792 = sphi 0, %s790
      %s793 = sphi 0, %s792
      %s807 = sphi 0, %s793
      %s811 = sphi 0, %s811
      %s813 = sphi 0, %s811
      %s814 = sphi 0, %s813
      %s828 = sphi 0, %s814
      %s834 = sphi 0, %s836
      %s837 = sphi 0, %s834
      %s838 = sphi 0, %s837
      %s854 = sphi 0, %s838
    $region4: #{gnn_fixed_k_forward.1} parent=1 // loop_header_branch
      %82 = sbr.rel (%p80) target = $region8
    $region5: #{gnn_fixed_k_forward.1} parent=1 // loop_body
      %s84 = ssub.s32 %s79, 1
      %s85 = ssub.s32 %s79, 2
      %s86 = sadd.s32 %s79, 1
      %s87 = ssub.s32 %s79, %s86
      %p88 = scmp.eq.s32.totalorder %s87, 0
      %s90 = sadd.s32 %s89, 1
      %s91 = scalar_select %p88, %s89, %s90
      %p94 = pneg %p88
      %p95 = scmp.eq.s32.totalorder %s79, 1
      %p96 = por %p94, %p95
      %p97 = scmp.ne.s32.totalorder %s89, %s92
      %p98 = scmp.eq.s32.totalorder %s79, 0
      %p99 = por %p97, %p98
      %p100 = scmp.ne.s32.totalorder %s89, %s92
      %p101 = scmp.eq.s32.totalorder %s84, 1
      %p102 = por %p100, %p101
      %p103 = scmp.ne.s32.totalorder %s92, %s93
      %p104 = scmp.eq.s32.totalorder %s84, 0
      %p105 = por %p103, %p104
      %p106 = scmp.ne.s32.totalorder %s92, %s93
      %p107 = scmp.eq.s32.totalorder %s85, 1
      %p108 = por %p106, %p107
      %p110 = scmp.ne.s32.totalorder %s93, %s109
      %p111 = scmp.eq.s32.totalorder %s85, 0
      %p112 = por %p110, %p111
      %s113 = ssub.s32 %s79, %s86
      %p114 = scmp.eq.s32.totalorder %s113, 0
      %s116 = sadd.s32 %s115, 1
      %s117 = scalar_select %p114, %s115, %s116
      %p120 = pneg %p114
      %p121 = scmp.eq.s32.totalorder %s79, 1
      %p122 = por %p120, %p121
      %p123 = scmp.ne.s32.totalorder %s115, %s118
      %p124 = scmp.eq.s32.totalorder %s79, 0
      %p125 = por %p123, %p124
      %p126 = scmp.ne.s32.totalorder %s115, %s118
      %p127 = scmp.eq.s32.totalorder %s84, 1
      %p128 = por %p126, %p127
      %p129 = scmp.ne.s32.totalorder %s118, %s119
      %p130 = scmp.eq.s32.totalorder %s84, 0
      %p131 = por %p129, %p130
      %p132 = scmp.ne.s32.totalorder %s118, %s119
      %p133 = scmp.eq.s32.totalorder %s85, 1
      %p134 = por %p132, %p133
      %p136 = scmp.ne.s32.totalorder %s119, %s135
      %p137 = scmp.eq.s32.totalorder %s85, 0
      %p138 = por %p136, %p137
      %s140 = sadd.s32 %s139, 1
      %p143 = scmp.eq.s32.totalorder %s79, 1
      %p144 = scmp.ne.s32.totalorder %s139, %s141
      %p145 = scmp.eq.s32.totalorder %s79, 0
      %p146 = por %p144, %p145
      %p147 = scmp.ne.s32.totalorder %s139, %s141
      %p148 = scmp.eq.s32.totalorder %s84, 1
      %p149 = por %p147, %p148
      %p150 = scmp.ne.s32.totalorder %s141, %s142
      %p151 = scmp.eq.s32.totalorder %s84, 0
      %p152 = por %p150, %p151
      %p153 = scmp.ne.s32.totalorder %s141, %s142
      %p154 = scmp.eq.s32.totalorder %s85, 1
      %p155 = por %p153, %p154
      %p157 = scmp.ne.s32.totalorder %s142, %s156
      %p158 = scmp.eq.s32.totalorder %s85, 0
      %p159 = por %p157, %p158
      %s161 = sadd.s32 %s160, 1
      %p164 = scmp.eq.s32.totalorder %s79, 1
      %p165 = scmp.ne.s32.totalorder %s160, %s162
      %p166 = scmp.eq.s32.totalorder %s79, 0
      %p167 = por %p165, %p166
      %p168 = scmp.ne.s32.totalorder %s160, %s162
      %p169 = scmp.eq.s32.totalorder %s84, 1
      %p170 = por %p168, %p169
      %p171 = scmp.ne.s32.totalorder %s162, %s163
      %p172 = scmp.eq.s32.totalorder %s84, 0
      %p173 = por %p171, %p172
      %p174 = scmp.ne.s32.totalorder %s162, %s163
      %p175 = scmp.eq.s32.totalorder %s85, 1
      %p176 = por %p174, %p175
      %p178 = scmp.ne.s32.totalorder %s163, %s177
      %p179 = scmp.eq.s32.totalorder %s85, 0
      %p180 = por %p178, %p179
      %s182 = sadd.s32 %s181, 1
      %p185 = scmp.eq.s32.totalorder %s79, 1
      %p186 = scmp.ne.s32.totalorder %s181, %s183
      %p187 = scmp.eq.s32.totalorder %s79, 0
      %p188 = por %p186, %p187
      %p189 = scmp.ne.s32.totalorder %s181, %s183
      %p190 = scmp.eq.s32.totalorder %s84, 1
      %p191 = por %p189, %p190
      %p192 = scmp.ne.s32.totalorder %s183, %s184
      %p193 = scmp.eq.s32.totalorder %s84, 0
      %p194 = por %p192, %p193
      %p195 = scmp.ne.s32.totalorder %s183, %s184
      %p196 = scmp.eq.s32.totalorder %s85, 1
      %p197 = por %p195, %p196
      %p199 = scmp.ne.s32.totalorder %s184, %s198
      %p200 = scmp.eq.s32.totalorder %s85, 0
      %p201 = por %p199, %p200
      %s203 = sadd.s32 %s202, 1
      %p206 = scmp.eq.s32.totalorder %s79, 1
      %p207 = scmp.ne.s32.totalorder %s202, %s204
      %p208 = scmp.eq.s32.totalorder %s79, 0
      %p209 = por %p207, %p208
      %p210 = scmp.ne.s32.totalorder %s202, %s204
      %p211 = scmp.eq.s32.totalorder %s84, 1
      %p212 = por %p210, %p211
      %p213 = scmp.ne.s32.totalorder %s204, %s205
      %p214 = scmp.eq.s32.totalorder %s84, 0
      %p215 = por %p213, %p214
      %p216 = scmp.ne.s32.totalorder %s204, %s205
      %p217 = scmp.eq.s32.totalorder %s85, 1
      %p218 = por %p216, %p217
      %p220 = scmp.ne.s32.totalorder %s205, %s219
      %p221 = scmp.eq.s32.totalorder %s85, 0
      %p222 = por %p220, %p221
      %s224 = sadd.s32 %s223, 1
      %p227 = scmp.eq.s32.totalorder %s79, 1
      %p228 = scmp.ne.s32.totalorder %s223, %s225
      %p229 = scmp.eq.s32.totalorder %s79, 0
      %p230 = por %p228, %p229
      %p231 = scmp.ne.s32.totalorder %s223, %s225
      %p232 = scmp.eq.s32.totalorder %s84, 1
      %p233 = por %p231, %p232
      %p234 = scmp.ne.s32.totalorder %s225, %s226
      %p235 = scmp.eq.s32.totalorder %s84, 0
      %p236 = por %p234, %p235
      %p237 = scmp.ne.s32.totalorder %s225, %s226
      %p238 = scmp.eq.s32.totalorder %s85, 1
      %p239 = por %p237, %p238
      %p241 = scmp.ne.s32.totalorder %s226, %s240
      %p242 = scmp.eq.s32.totalorder %s85, 0
      %p243 = por %p241, %p242
      %s245 = sadd.s32 %s244, 1
      %p248 = scmp.eq.s32.totalorder %s79, 1
      %p249 = scmp.ne.s32.totalorder %s244, %s246
      %p250 = scmp.eq.s32.totalorder %s79, 0
      %p251 = por %p249, %p250
      %p252 = scmp.ne.s32.totalorder %s244, %s246
      %p253 = scmp.eq.s32.totalorder %s84, 1
      %p254 = por %p252, %p253
      %p255 = scmp.ne.s32.totalorder %s246, %s247
      %p256 = scmp.eq.s32.totalorder %s84, 0
      %p257 = por %p255, %p256
      %p258 = scmp.ne.s32.totalorder %s246, %s247
      %p259 = scmp.eq.s32.totalorder %s85, 1
      %p260 = por %p258, %p259
      %p262 = scmp.ne.s32.totalorder %s247, %s261
      %p263 = scmp.eq.s32.totalorder %s85, 0
      %p264 = por %p262, %p263
      %s266 = sadd.s32 %s265, 1
      %p269 = scmp.eq.s32.totalorder %s79, 1
      %p270 = scmp.ne.s32.totalorder %s265, %s267
      %p271 = scmp.eq.s32.totalorder %s79, 0
      %p272 = por %p270, %p271
      %p273 = scmp.ne.s32.totalorder %s265, %s267
      %p274 = scmp.eq.s32.totalorder %s84, 1
      %p275 = por %p273, %p274
      %p276 = scmp.ne.s32.totalorder %s267, %s268
      %p277 = scmp.eq.s32.totalorder %s84, 0
      %p278 = por %p276, %p277
      %p279 = scmp.ne.s32.totalorder %s267, %s268
      %p280 = scmp.eq.s32.totalorder %s85, 1
      %p281 = por %p279, %p280
      %p283 = scmp.ne.s32.totalorder %s268, %s282
      %p284 = scmp.eq.s32.totalorder %s85, 0
      %p285 = por %p283, %p284
      %s287 = sadd.s32 %s286, 1
      %p290 = scmp.eq.s32.totalorder %s79, 1
      %p291 = scmp.ne.s32.totalorder %s286, %s288
      %p292 = scmp.eq.s32.totalorder %s79, 0
      %p293 = por %p291, %p292
      %p294 = scmp.ne.s32.totalorder %s286, %s288
      %p295 = scmp.eq.s32.totalorder %s84, 1
      %p296 = por %p294, %p295
      %p297 = scmp.ne.s32.totalorder %s288, %s289
      %p298 = scmp.eq.s32.totalorder %s84, 0
      %p299 = por %p297, %p298
      %p300 = scmp.ne.s32.totalorder %s288, %s289
      %p301 = scmp.eq.s32.totalorder %s85, 1
      %p302 = por %p300, %p301
      %p304 = scmp.ne.s32.totalorder %s289, %s303
      %p305 = scmp.eq.s32.totalorder %s85, 0
      %p306 = por %p304, %p305
      %s308 = sadd.s32 %s307, 1
      %p311 = scmp.eq.s32.totalorder %s79, 1
      %p312 = scmp.ne.s32.totalorder %s307, %s309
      %p313 = scmp.eq.s32.totalorder %s79, 0
      %p314 = por %p312, %p313
      %p315 = scmp.ne.s32.totalorder %s307, %s309
      %p316 = scmp.eq.s32.totalorder %s84, 1
      %p317 = por %p315, %p316
      %p318 = scmp.ne.s32.totalorder %s309, %s310
      %p319 = scmp.eq.s32.totalorder %s84, 0
      %p320 = por %p318, %p319
      %p321 = scmp.ne.s32.totalorder %s309, %s310
      %p322 = scmp.eq.s32.totalorder %s85, 1
      %p323 = por %p321, %p322
      %p325 = scmp.ne.s32.totalorder %s310, %s324
      %p326 = scmp.eq.s32.totalorder %s85, 0
      %p327 = por %p325, %p326
      %s329 = sadd.s32 %s328, 1
      %p332 = scmp.eq.s32.totalorder %s79, 1
      %p333 = scmp.ne.s32.totalorder %s328, %s330
      %p334 = scmp.eq.s32.totalorder %s79, 0
      %p335 = por %p333, %p334
      %p336 = scmp.ne.s32.totalorder %s328, %s330
      %p337 = scmp.eq.s32.totalorder %s84, 1
      %p338 = por %p336, %p337
      %p339 = scmp.ne.s32.totalorder %s330, %s331
      %p340 = scmp.eq.s32.totalorder %s84, 0
      %p341 = por %p339, %p340
      %p342 = scmp.ne.s32.totalorder %s330, %s331
      %p343 = scmp.eq.s32.totalorder %s85, 1
      %p344 = por %p342, %p343
      %p346 = scmp.ne.s32.totalorder %s331, %s345
      %p347 = scmp.eq.s32.totalorder %s85, 0
      %p348 = por %p346, %p347
      %s350 = sadd.s32 %s349, 1
      %p353 = scmp.eq.s32.totalorder %s79, 1
      %p354 = scmp.ne.s32.totalorder %s349, %s351
      %p355 = scmp.eq.s32.totalorder %s79, 0
      %p356 = por %p354, %p355
      %p357 = scmp.ne.s32.totalorder %s349, %s351
      %p358 = scmp.eq.s32.totalorder %s84, 1
      %p359 = por %p357, %p358
      %p360 = scmp.ne.s32.totalorder %s351, %s352
      %p361 = scmp.eq.s32.totalorder %s84, 0
      %p362 = por %p360, %p361
      %p363 = scmp.ne.s32.totalorder %s351, %s352
      %p364 = scmp.eq.s32.totalorder %s85, 1
      %p365 = por %p363, %p364
      %p367 = scmp.ne.s32.totalorder %s352, %s366
      %p368 = scmp.eq.s32.totalorder %s85, 0
      %p369 = por %p367, %p368
      %s371 = sadd.s32 %s370, 1
      %p374 = scmp.eq.s32.totalorder %s79, 1
      %p375 = scmp.ne.s32.totalorder %s370, %s372
      %p376 = scmp.eq.s32.totalorder %s79, 0
      %p377 = por %p375, %p376
      %p378 = scmp.ne.s32.totalorder %s370, %s372
      %p379 = scmp.eq.s32.totalorder %s84, 1
      %p380 = por %p378, %p379
      %p381 = scmp.ne.s32.totalorder %s372, %s373
      %p382 = scmp.eq.s32.totalorder %s84, 0
      %p383 = por %p381, %p382
      %p384 = scmp.ne.s32.totalorder %s372, %s373
      %p385 = scmp.eq.s32.totalorder %s85, 1
      %p386 = por %p384, %p385
      %p388 = scmp.ne.s32.totalorder %s373, %s387
      %p389 = scmp.eq.s32.totalorder %s85, 0
      %p390 = por %p388, %p389
      %s392 = sadd.s32 %s391, 1
      %p395 = scmp.eq.s32.totalorder %s79, 1
      %p396 = scmp.ne.s32.totalorder %s391, %s393
      %p397 = scmp.eq.s32.totalorder %s79, 0
      %p398 = por %p396, %p397
      %p399 = scmp.ne.s32.totalorder %s391, %s393
      %p400 = scmp.eq.s32.totalorder %s84, 1
      %p401 = por %p399, %p400
      %p402 = scmp.ne.s32.totalorder %s393, %s394
      %p403 = scmp.eq.s32.totalorder %s84, 0
      %p404 = por %p402, %p403
      %p405 = scmp.ne.s32.totalorder %s393, %s394
      %p406 = scmp.eq.s32.totalorder %s85, 1
      %p407 = por %p405, %p406
      %p409 = scmp.ne.s32.totalorder %s394, %s408
      %p410 = scmp.eq.s32.totalorder %s85, 0
      %p411 = por %p409, %p410
      %s413 = sadd.s32 %s412, 1
      %p416 = scmp.eq.s32.totalorder %s79, 1
      %p417 = scmp.ne.s32.totalorder %s412, %s414
      %p418 = scmp.eq.s32.totalorder %s79, 0
      %p419 = por %p417, %p418
      %p420 = scmp.ne.s32.totalorder %s412, %s414
      %p421 = scmp.eq.s32.totalorder %s84, 1
      %p422 = por %p420, %p421
      %p423 = scmp.ne.s32.totalorder %s414, %s415
      %p424 = scmp.eq.s32.totalorder %s84, 0
      %p425 = por %p423, %p424
      %p426 = scmp.ne.s32.totalorder %s414, %s415
      %p427 = scmp.eq.s32.totalorder %s85, 1
      %p428 = por %p426, %p427
      %p430 = scmp.ne.s32.totalorder %s415, %s429
      %p431 = scmp.eq.s32.totalorder %s85, 0
      %p432 = por %p430, %p431
      %s434 = sadd.s32 %s433, 1
      %p437 = scmp.eq.s32.totalorder %s79, 1
      %p438 = scmp.ne.s32.totalorder %s433, %s435
      %p439 = scmp.eq.s32.totalorder %s79, 0
      %p440 = por %p438, %p439
      %p441 = scmp.ne.s32.totalorder %s433, %s435
      %p442 = scmp.eq.s32.totalorder %s84, 1
      %p443 = por %p441, %p442
      %p444 = scmp.ne.s32.totalorder %s435, %s436
      %p445 = scmp.eq.s32.totalorder %s84, 0
      %p446 = por %p444, %p445
      %p447 = scmp.ne.s32.totalorder %s435, %s436
      %p448 = scmp.eq.s32.totalorder %s85, 1
      %p449 = por %p447, %p448
      %p451 = scmp.ne.s32.totalorder %s436, %s450
      %p452 = scmp.eq.s32.totalorder %s85, 0
      %p453 = por %p451, %p452
      %s455 = sadd.s32 %s454, 1
      %p458 = scmp.eq.s32.totalorder %s79, 1
      %p459 = scmp.ne.s32.totalorder %s454, %s456
      %p460 = scmp.eq.s32.totalorder %s79, 0
      %p461 = por %p459, %p460
      %p462 = scmp.ne.s32.totalorder %s454, %s456
      %p463 = scmp.eq.s32.totalorder %s84, 1
      %p464 = por %p462, %p463
      %p465 = scmp.ne.s32.totalorder %s456, %s457
      %p466 = scmp.eq.s32.totalorder %s84, 0
      %p467 = por %p465, %p466
      %p468 = scmp.ne.s32.totalorder %s456, %s457
      %p469 = scmp.eq.s32.totalorder %s85, 1
      %p470 = por %p468, %p469
      %p472 = scmp.ne.s32.totalorder %s457, %s471
      %p473 = scmp.eq.s32.totalorder %s85, 0
      %p474 = por %p472, %p473
      %s476 = sadd.s32 %s475, 1
      %p479 = scmp.eq.s32.totalorder %s79, 1
      %p480 = scmp.ne.s32.totalorder %s475, %s477
      %p481 = scmp.eq.s32.totalorder %s79, 0
      %p482 = por %p480, %p481
      %p483 = scmp.ne.s32.totalorder %s475, %s477
      %p484 = scmp.eq.s32.totalorder %s84, 1
      %p485 = por %p483, %p484
      %p486 = scmp.ne.s32.totalorder %s477, %s478
      %p487 = scmp.eq.s32.totalorder %s84, 0
      %p488 = por %p486, %p487
      %p489 = scmp.ne.s32.totalorder %s477, %s478
      %p490 = scmp.eq.s32.totalorder %s85, 1
      %p491 = por %p489, %p490
      %p493 = scmp.ne.s32.totalorder %s478, %s492
      %p494 = scmp.eq.s32.totalorder %s85, 0
      %p495 = por %p493, %p494
      %s497 = sadd.s32 %s496, 1
      %p500 = scmp.eq.s32.totalorder %s79, 1
      %p501 = scmp.ne.s32.totalorder %s496, %s498
      %p502 = scmp.eq.s32.totalorder %s79, 0
      %p503 = por %p501, %p502
      %p504 = scmp.ne.s32.totalorder %s496, %s498
      %p505 = scmp.eq.s32.totalorder %s84, 1
      %p506 = por %p504, %p505
      %p507 = scmp.ne.s32.totalorder %s498, %s499
      %p508 = scmp.eq.s32.totalorder %s84, 0
      %p509 = por %p507, %p508
      %p510 = scmp.ne.s32.totalorder %s498, %s499
      %p511 = scmp.eq.s32.totalorder %s85, 1
      %p512 = por %p510, %p511
      %p514 = scmp.ne.s32.totalorder %s499, %s513
      %p515 = scmp.eq.s32.totalorder %s85, 0
      %p516 = por %p514, %p515
      %s518 = sadd.s32 %s517, 1
      %p521 = scmp.eq.s32.totalorder %s79, 1
      %p522 = scmp.ne.s32.totalorder %s517, %s519
      %p523 = scmp.eq.s32.totalorder %s79, 0
      %p524 = por %p522, %p523
      %p525 = scmp.ne.s32.totalorder %s517, %s519
      %p526 = scmp.eq.s32.totalorder %s84, 1
      %p527 = por %p525, %p526
      %p528 = scmp.ne.s32.totalorder %s519, %s520
      %p529 = scmp.eq.s32.totalorder %s84, 0
      %p530 = por %p528, %p529
      %p531 = scmp.ne.s32.totalorder %s519, %s520
      %p532 = scmp.eq.s32.totalorder %s85, 1
      %p533 = por %p531, %p532
      %p535 = scmp.ne.s32.totalorder %s520, %s534
      %p536 = scmp.eq.s32.totalorder %s85, 0
      %p537 = por %p535, %p536
      %s539 = sadd.s32 %s538, 1
      %p542 = scmp.eq.s32.totalorder %s79, 1
      %p543 = scmp.ne.s32.totalorder %s538, %s540
      %p544 = scmp.eq.s32.totalorder %s79, 0
      %p545 = por %p543, %p544
      %p546 = scmp.ne.s32.totalorder %s538, %s540
      %p547 = scmp.eq.s32.totalorder %s84, 1
      %p548 = por %p546, %p547
      %p549 = scmp.ne.s32.totalorder %s540, %s541
      %p550 = scmp.eq.s32.totalorder %s84, 0
      %p551 = por %p549, %p550
      %p552 = scmp.ne.s32.totalorder %s540, %s541
      %p553 = scmp.eq.s32.totalorder %s85, 1
      %p554 = por %p552, %p553
      %p556 = scmp.ne.s32.totalorder %s541, %s555
      %p557 = scmp.eq.s32.totalorder %s85, 0
      %p558 = por %p556, %p557
      %s560 = sadd.s32 %s559, 1
      %p563 = scmp.eq.s32.totalorder %s79, 1
      %p564 = scmp.ne.s32.totalorder %s559, %s561
      %p565 = scmp.eq.s32.totalorder %s79, 0
      %p566 = por %p564, %p565
      %p567 = scmp.ne.s32.totalorder %s559, %s561
      %p568 = scmp.eq.s32.totalorder %s84, 1
      %p569 = por %p567, %p568
      %p570 = scmp.ne.s32.totalorder %s561, %s562
      %p571 = scmp.eq.s32.totalorder %s84, 0
      %p572 = por %p570, %p571
      %p573 = scmp.ne.s32.totalorder %s561, %s562
      %p574 = scmp.eq.s32.totalorder %s85, 1
      %p575 = por %p573, %p574
      %p577 = scmp.ne.s32.totalorder %s562, %s576
      %p578 = scmp.eq.s32.totalorder %s85, 0
      %p579 = por %p577, %p578
      %s581 = sadd.s32 %s580, 1
      %p584 = scmp.eq.s32.totalorder %s79, 1
      %p585 = scmp.ne.s32.totalorder %s580, %s582
      %p586 = scmp.eq.s32.totalorder %s79, 0
      %p587 = por %p585, %p586
      %p588 = scmp.ne.s32.totalorder %s580, %s582
      %p589 = scmp.eq.s32.totalorder %s84, 1
      %p590 = por %p588, %p589
      %p591 = scmp.ne.s32.totalorder %s582, %s583
      %p592 = scmp.eq.s32.totalorder %s84, 0
      %p593 = por %p591, %p592
      %p594 = scmp.ne.s32.totalorder %s582, %s583
      %p595 = scmp.eq.s32.totalorder %s85, 1
      %p596 = por %p594, %p595
      %p598 = scmp.ne.s32.totalorder %s583, %s597
      %p599 = scmp.eq.s32.totalorder %s85, 0
      %p600 = por %p598, %p599
      %s602 = sadd.s32 %s601, 1
      %p605 = scmp.eq.s32.totalorder %s79, 1
      %p606 = scmp.ne.s32.totalorder %s601, %s603
      %p607 = scmp.eq.s32.totalorder %s79, 0
      %p608 = por %p606, %p607
      %p609 = scmp.ne.s32.totalorder %s601, %s603
      %p610 = scmp.eq.s32.totalorder %s84, 1
      %p611 = por %p609, %p610
      %p612 = scmp.ne.s32.totalorder %s603, %s604
      %p613 = scmp.eq.s32.totalorder %s84, 0
      %p614 = por %p612, %p613
      %p615 = scmp.ne.s32.totalorder %s603, %s604
      %p616 = scmp.eq.s32.totalorder %s85, 1
      %p617 = por %p615, %p616
      %p619 = scmp.ne.s32.totalorder %s604, %s618
      %p620 = scmp.eq.s32.totalorder %s85, 0
      %p621 = por %p619, %p620
      %s623 = sadd.s32 %s622, 1
      %p626 = scmp.eq.s32.totalorder %s79, 1
      %p627 = scmp.ne.s32.totalorder %s622, %s624
      %p628 = scmp.eq.s32.totalorder %s79, 0
      %p629 = por %p627, %p628
      %p630 = scmp.ne.s32.totalorder %s622, %s624
      %p631 = scmp.eq.s32.totalorder %s84, 1
      %p632 = por %p630, %p631
      %p633 = scmp.ne.s32.totalorder %s624, %s625
      %p634 = scmp.eq.s32.totalorder %s84, 0
      %p635 = por %p633, %p634
      %p636 = scmp.ne.s32.totalorder %s624, %s625
      %p637 = scmp.eq.s32.totalorder %s85, 1
      %p638 = por %p636, %p637
      %p640 = scmp.ne.s32.totalorder %s625, %s639
      %p641 = scmp.eq.s32.totalorder %s85, 0
      %p642 = por %p640, %p641
      %s644 = sadd.s32 %s643, 1
      %p647 = scmp.eq.s32.totalorder %s79, 1
      %p648 = scmp.ne.s32.totalorder %s643, %s645
      %p649 = scmp.eq.s32.totalorder %s79, 0
      %p650 = por %p648, %p649
      %p651 = scmp.ne.s32.totalorder %s643, %s645
      %p652 = scmp.eq.s32.totalorder %s84, 1
      %p653 = por %p651, %p652
      %p654 = scmp.ne.s32.totalorder %s645, %s646
      %p655 = scmp.eq.s32.totalorder %s84, 0
      %p656 = por %p654, %p655
      %p657 = scmp.ne.s32.totalorder %s645, %s646
      %p658 = scmp.eq.s32.totalorder %s85, 1
      %p659 = por %p657, %p658
      %p661 = scmp.ne.s32.totalorder %s646, %s660
      %p662 = scmp.eq.s32.totalorder %s85, 0
      %p663 = por %p661, %p662
      %s665 = sadd.s32 %s664, 1
      %p668 = scmp.eq.s32.totalorder %s79, 1
      %p669 = scmp.ne.s32.totalorder %s664, %s666
      %p670 = scmp.eq.s32.totalorder %s79, 0
      %p671 = por %p669, %p670
      %p672 = scmp.ne.s32.totalorder %s664, %s666
      %p673 = scmp.eq.s32.totalorder %s84, 1
      %p674 = por %p672, %p673
      %p675 = scmp.ne.s32.totalorder %s666, %s667
      %p676 = scmp.eq.s32.totalorder %s84, 0
      %p677 = por %p675, %p676
      %p678 = scmp.ne.s32.totalorder %s666, %s667
      %p679 = scmp.eq.s32.totalorder %s85, 1
      %p680 = por %p678, %p679
      %p682 = scmp.ne.s32.totalorder %s667, %s681
      %p683 = scmp.eq.s32.totalorder %s85, 0
      %p684 = por %p682, %p683
      %s686 = sadd.s32 %s685, 1
      %p689 = scmp.eq.s32.totalorder %s79, 1
      %p690 = scmp.ne.s32.totalorder %s685, %s687
      %p691 = scmp.eq.s32.totalorder %s79, 0
      %p692 = por %p690, %p691
      %p693 = scmp.ne.s32.totalorder %s685, %s687
      %p694 = scmp.eq.s32.totalorder %s84, 1
      %p695 = por %p693, %p694
      %p696 = scmp.ne.s32.totalorder %s687, %s688
      %p697 = scmp.eq.s32.totalorder %s84, 0
      %p698 = por %p696, %p697
      %p699 = scmp.ne.s32.totalorder %s687, %s688
      %p700 = scmp.eq.s32.totalorder %s85, 1
      %p701 = por %p699, %p700
      %p703 = scmp.ne.s32.totalorder %s688, %s702
      %p704 = scmp.eq.s32.totalorder %s85, 0
      %p705 = por %p703, %p704
      %s707 = sadd.s32 %s706, 1
      %p710 = scmp.eq.s32.totalorder %s79, 1
      %p711 = scmp.ne.s32.totalorder %s706, %s708
      %p712 = scmp.eq.s32.totalorder %s79, 0
      %p713 = por %p711, %p712
      %p714 = scmp.ne.s32.totalorder %s706, %s708
      %p715 = scmp.eq.s32.totalorder %s84, 1
      %p716 = por %p714, %p715
      %p717 = scmp.ne.s32.totalorder %s708, %s709
      %p718 = scmp.eq.s32.totalorder %s84, 0
      %p719 = por %p717, %p718
      %p720 = scmp.ne.s32.totalorder %s708, %s709
      %p721 = scmp.eq.s32.totalorder %s85, 1
      %p722 = por %p720, %p721
      %p724 = scmp.ne.s32.totalorder %s709, %s723
      %p725 = scmp.eq.s32.totalorder %s85, 0
      %p726 = por %p724, %p725
      %s728 = sadd.s32 %s727, 1
      %p731 = scmp.eq.s32.totalorder %s79, 1
      %p732 = scmp.ne.s32.totalorder %s727, %s729
      %p733 = scmp.eq.s32.totalorder %s79, 0
      %p734 = por %p732, %p733
      %p735 = scmp.ne.s32.totalorder %s727, %s729
      %p736 = scmp.eq.s32.totalorder %s84, 1
      %p737 = por %p735, %p736
      %p738 = scmp.ne.s32.totalorder %s729, %s730
      %p739 = scmp.eq.s32.totalorder %s84, 0
      %p740 = por %p738, %p739
      %p741 = scmp.ne.s32.totalorder %s729, %s730
      %p742 = scmp.eq.s32.totalorder %s85, 1
      %p743 = por %p741, %p742
      %p745 = scmp.ne.s32.totalorder %s730, %s744
      %p746 = scmp.eq.s32.totalorder %s85, 0
      %p747 = por %p745, %p746
      %s749 = sadd.s32 %s748, 1
      %p752 = scmp.eq.s32.totalorder %s79, 1
      %p753 = scmp.ne.s32.totalorder %s748, %s750
      %p754 = scmp.eq.s32.totalorder %s79, 0
      %p755 = por %p753, %p754
      %p756 = scmp.ne.s32.totalorder %s748, %s750
      %p757 = scmp.eq.s32.totalorder %s84, 1
      %p758 = por %p756, %p757
      %p759 = scmp.ne.s32.totalorder %s750, %s751
      %p760 = scmp.eq.s32.totalorder %s84, 0
      %p761 = por %p759, %p760
      %p762 = scmp.ne.s32.totalorder %s750, %s751
      %p763 = scmp.eq.s32.totalorder %s85, 1
      %p764 = por %p762, %p763
      %p766 = scmp.ne.s32.totalorder %s751, %s765
      %p767 = scmp.eq.s32.totalorder %s85, 0
      %p768 = por %p766, %p767
      %s770 = sadd.s32 %s769, 1
      %p773 = scmp.eq.s32.totalorder %s79, 1
      %p774 = scmp.ne.s32.totalorder %s769, %s771
      %p775 = scmp.eq.s32.totalorder %s79, 0
      %p776 = por %p774, %p775
      %p777 = scmp.ne.s32.totalorder %s769, %s771
      %p778 = scmp.eq.s32.totalorder %s84, 1
      %p779 = por %p777, %p778
      %p780 = scmp.ne.s32.totalorder %s771, %s772
      %p781 = scmp.eq.s32.totalorder %s84, 0
      %p782 = por %p780, %p781
      %p783 = scmp.ne.s32.totalorder %s771, %s772
      %p784 = scmp.eq.s32.totalorder %s85, 1
      %p785 = por %p783, %p784
      %p787 = scmp.ne.s32.totalorder %s772, %s786
      %p788 = scmp.eq.s32.totalorder %s85, 0
      %p789 = por %p787, %p788
      %s791 = sadd.s32 %s790, 1
      %p794 = scmp.eq.s32.totalorder %s79, 1
      %p795 = scmp.ne.s32.totalorder %s790, %s792
      %p796 = scmp.eq.s32.totalorder %s79, 0
      %p797 = por %p795, %p796
      %p798 = scmp.ne.s32.totalorder %s790, %s792
      %p799 = scmp.eq.s32.totalorder %s84, 1
      %p800 = por %p798, %p799
      %p801 = scmp.ne.s32.totalorder %s792, %s793
      %p802 = scmp.eq.s32.totalorder %s84, 0
      %p803 = por %p801, %p802
      %p804 = scmp.ne.s32.totalorder %s792, %s793
      %p805 = scmp.eq.s32.totalorder %s85, 1
      %p806 = por %p804, %p805
      %p808 = scmp.ne.s32.totalorder %s793, %s807
      %p809 = scmp.eq.s32.totalorder %s85, 0
      %p810 = por %p808, %p809
      %s812 = sadd.s32 %s811, 1
      %p815 = scmp.eq.s32.totalorder %s79, 1
      %p816 = scmp.ne.s32.totalorder %s811, %s813
      %p817 = scmp.eq.s32.totalorder %s79, 0
      %p818 = por %p816, %p817
      %p819 = scmp.ne.s32.totalorder %s811, %s813
      %p820 = scmp.eq.s32.totalorder %s84, 1
      %p821 = por %p819, %p820
      %p822 = scmp.ne.s32.totalorder %s813, %s814
      %p823 = scmp.eq.s32.totalorder %s84, 0
      %p824 = por %p822, %p823
      %p825 = scmp.ne.s32.totalorder %s813, %s814
      %p826 = scmp.eq.s32.totalorder %s85, 1
      %p827 = por %p825, %p826
      %p829 = scmp.ne.s32.totalorder %s814, %s828
      %p830 = scmp.eq.s32.totalorder %s85, 0
      %p831 = por %p829, %p830
      %s832 = ssub.s32 %s79, %s86
      %p833 = scmp.eq.s32.totalorder %s832, 0
      %s835 = sadd.s32 %s834, 1
      %s836 = scalar_select %p833, %s834, %s835
      %p839 = pneg %p833
      %p840 = scmp.eq.s32.totalorder %s79, 1
      %p841 = por %p839, %p840
      %p842 = scmp.ne.s32.totalorder %s834, %s837
      %p843 = scmp.eq.s32.totalorder %s79, 0
      %p844 = por %p842, %p843
      %p845 = scmp.ne.s32.totalorder %s834, %s837
      %p846 = scmp.eq.s32.totalorder %s84, 1
      %p847 = por %p845, %p846
      %p848 = scmp.ne.s32.totalorder %s837, %s838
      %p849 = scmp.eq.s32.totalorder %s84, 0
      %p850 = por %p848, %p849
      %p851 = scmp.ne.s32.totalorder %s837, %s838
      %p852 = scmp.eq.s32.totalorder %s85, 1
      %p853 = por %p851, %p852
      %p855 = scmp.ne.s32.totalorder %s838, %s854
      %p856 = scmp.eq.s32.totalorder %s85, 0
      %p857 = por %p855, %p856
      %p858 = scmp.le.s32.totalorder 1, %s79
      %p859 = scmp.lt.s32.totalorder %s79, 3
      %p860 = pnand %p858, %p859
      %p861 = pneg %p860
      // Predicated region
      $region9: #{gnn_fixed_k_forward.1} parent=5 // pred_check
        _
      $region10: #{gnn_fixed_k_forward.1} parent=5 // pred_check_branch
        %863 = sbr.rel (%p860) target = $region12
      $region11: #{gnn_fixed_k_forward.1} parent=5 // pred_region
        %s864 = ssub.s32 %s79, 1
        // Predicated region
        $region13: #{gnn_fixed_k_forward.1} parent=11 // pred_check
          %p865 = pneg %p152
        $region14: #{gnn_fixed_k_forward.1} parent=11 // pred_check_branch
          %867 = sbr.rel (%p865) target = $region16
        $region15: #{gnn_fixed_k_forward.1} parent=11 // pred_region
          _
        $region16: #{gnn_fixed_k_forward.1} parent=11 // pred_fallthru
          _
        // Predicated region
        $region17: #{gnn_fixed_k_forward.1} parent=11 // pred_check
          %p868 = pneg %p173
        $region18: #{gnn_fixed_k_forward.1} parent=11 // pred_check_branch
          %870 = sbr.rel (%p868) target = $region20
        $region19: #{gnn_fixed_k_forward.1} parent=11 // pred_region
          _
        $region20: #{gnn_fixed_k_forward.1} parent=11 // pred_fallthru
          _
        // Predicated region
        $region21: #{gnn_fixed_k_forward.1} parent=11 // pred_check
          %p871 = pneg %p194
        $region22: #{gnn_fixed_k_forward.1} parent=11 // pred_check_branch
          %873 = sbr.rel (%p871) target = $region24
        $region23: #{gnn_fixed_k_forward.1} parent=11 // pred_region
          _
        $region24: #{gnn_fixed_k_forward.1} parent=11 // pred_fallthru
          _
        // Predicated region
        $region25: #{gnn_fixed_k_forward.1} parent=11 // pred_check
          %p874 = pneg %p215
        $region26: #{gnn_fixed_k_forward.1} parent=11 // pred_check_branch
          %876 = sbr.rel (%p874) target = $region28
        $region27: #{gnn_fixed_k_forward.1} parent=11 // pred_region
          _
        $region28: #{gnn_fixed_k_forward.1} parent=11 // pred_fallthru
          _
        // Predicated region
        $region29: #{gnn_fixed_k_forward.1} parent=11 // pred_check
          %p877 = pneg %p236
        $region30: #{gnn_fixed_k_forward.1} parent=11 // pred_check_branch
          %879 = sbr.rel (%p877) target = $region32
        $region31: #{gnn_fixed_k_forward.1} parent=11 // pred_region
          _
        $region32: #{gnn_fixed_k_forward.1} parent=11 // pred_fallthru
          _
        // Predicated region
        $region33: #{gnn_fixed_k_forward.1} parent=11 // pred_check
          %p880 = pneg %p257
        $region34: #{gnn_fixed_k_forward.1} parent=11 // pred_check_branch
          %882 = sbr.rel (%p880) target = $region36
        $region35: #{gnn_fixed_k_forward.1} parent=11 // pred_region
          _
        $region36: #{gnn_fixed_k_forward.1} parent=11 // pred_fallthru
          _
        // Predicated region
        $region37: #{gnn_fixed_k_forward.1} parent=11 // pred_check
          %p883 = pneg %p278
        $region38: #{gnn_fixed_k_forward.1} parent=11 // pred_check_branch
          %885 = sbr.rel (%p883) target = $region40
        $region39: #{gnn_fixed_k_forward.1} parent=11 // pred_region
          _
        $region40: #{gnn_fixed_k_forward.1} parent=11 // pred_fallthru
          _
        // Predicated region
        $region41: #{gnn_fixed_k_forward.1} parent=11 // pred_check
          %p886 = pneg %p299
        $region42: #{gnn_fixed_k_forward.1} parent=11 // pred_check_branch
          %888 = sbr.rel (%p886) target = $region44
        $region43: #{gnn_fixed_k_forward.1} parent=11 // pred_region
          _
        $region44: #{gnn_fixed_k_forward.1} parent=11 // pred_fallthru
          _
        // Predicated region
        $region45: #{gnn_fixed_k_forward.1} parent=11 // pred_check
          %p889 = pneg %p320
        $region46: #{gnn_fixed_k_forward.1} parent=11 // pred_check_branch
          %891 = sbr.rel (%p889) target = $region48
        $region47: #{gnn_fixed_k_forward.1} parent=11 // pred_region
          _
        $region48: #{gnn_fixed_k_forward.1} parent=11 // pred_fallthru
          _
        // Predicated region
        $region49: #{gnn_fixed_k_forward.1} parent=11 // pred_check
          %p892 = pneg %p341
        $region50: #{gnn_fixed_k_forward.1} parent=11 // pred_check_branch
          %894 = sbr.rel (%p892) target = $region52
        $region51: #{gnn_fixed_k_forward.1} parent=11 // pred_region
          _
        $region52: #{gnn_fixed_k_forward.1} parent=11 // pred_fallthru
          _
        // Predicated region
        $region53: #{gnn_fixed_k_forward.1} parent=11 // pred_check
          %p895 = pneg %p362
        $region54: #{gnn_fixed_k_forward.1} parent=11 // pred_check_branch
          %897 = sbr.rel (%p895) target = $region56
        $region55: #{gnn_fixed_k_forward.1} parent=11 // pred_region
          _
        $region56: #{gnn_fixed_k_forward.1} parent=11 // pred_fallthru
          _
        // Predicated region
        $region57: #{gnn_fixed_k_forward.1} parent=11 // pred_check
          %p898 = pneg %p383
        $region58: #{gnn_fixed_k_forward.1} parent=11 // pred_check_branch
          %900 = sbr.rel (%p898) target = $region60
        $region59: #{gnn_fixed_k_forward.1} parent=11 // pred_region
          _
        $region60: #{gnn_fixed_k_forward.1} parent=11 // pred_fallthru
          _
        // Predicated region
        $region61: #{gnn_fixed_k_forward.1} parent=11 // pred_check
          %p901 = pneg %p404
        $region62: #{gnn_fixed_k_forward.1} parent=11 // pred_check_branch
          %903 = sbr.rel (%p901) target = $region64
        $region63: #{gnn_fixed_k_forward.1} parent=11 // pred_region
          _
        $region64: #{gnn_fixed_k_forward.1} parent=11 // pred_fallthru
          _
        // Predicated region
        $region65: #{gnn_fixed_k_forward.1} parent=11 // pred_check
          %p904 = pneg %p425
        $region66: #{gnn_fixed_k_forward.1} parent=11 // pred_check_branch
          %906 = sbr.rel (%p904) target = $region68
        $region67: #{gnn_fixed_k_forward.1} parent=11 // pred_region
          _
        $region68: #{gnn_fixed_k_forward.1} parent=11 // pred_fallthru
          _
        // Predicated region
        $region69: #{gnn_fixed_k_forward.1} parent=11 // pred_check
          %p907 = pneg %p446
        $region70: #{gnn_fixed_k_forward.1} parent=11 // pred_check_branch
          %909 = sbr.rel (%p907) target = $region72
        $region71: #{gnn_fixed_k_forward.1} parent=11 // pred_region
          _
        $region72: #{gnn_fixed_k_forward.1} parent=11 // pred_fallthru
          _
        // Predicated region
        $region73: #{gnn_fixed_k_forward.1} parent=11 // pred_check
          %p910 = pneg %p467
        $region74: #{gnn_fixed_k_forward.1} parent=11 // pred_check_branch
          %912 = sbr.rel (%p910) target = $region76
        $region75: #{gnn_fixed_k_forward.1} parent=11 // pred_region
          _
        $region76: #{gnn_fixed_k_forward.1} parent=11 // pred_fallthru
          _
        // Predicated region
        $region77: #{gnn_fixed_k_forward.1} parent=11 // pred_check
          %p913 = pneg %p488
        $region78: #{gnn_fixed_k_forward.1} parent=11 // pred_check_branch
          %915 = sbr.rel (%p913) target = $region80
        $region79: #{gnn_fixed_k_forward.1} parent=11 // pred_region
          _
        $region80: #{gnn_fixed_k_forward.1} parent=11 // pred_fallthru
          _
        // Predicated region
        $region81: #{gnn_fixed_k_forward.1} parent=11 // pred_check
          %p916 = pneg %p509
        $region82: #{gnn_fixed_k_forward.1} parent=11 // pred_check_branch
          %918 = sbr.rel (%p916) target = $region84
        $region83: #{gnn_fixed_k_forward.1} parent=11 // pred_region
          _
        $region84: #{gnn_fixed_k_forward.1} parent=11 // pred_fallthru
          _
        // Predicated region
        $region85: #{gnn_fixed_k_forward.1} parent=11 // pred_check
          %p919 = pneg %p530
        $region86: #{gnn_fixed_k_forward.1} parent=11 // pred_check_branch
          %921 = sbr.rel (%p919) target = $region88
        $region87: #{gnn_fixed_k_forward.1} parent=11 // pred_region
          _
        $region88: #{gnn_fixed_k_forward.1} parent=11 // pred_fallthru
          _
        // Predicated region
        $region89: #{gnn_fixed_k_forward.1} parent=11 // pred_check
          %p922 = pneg %p551
        $region90: #{gnn_fixed_k_forward.1} parent=11 // pred_check_branch
          %924 = sbr.rel (%p922) target = $region92
        $region91: #{gnn_fixed_k_forward.1} parent=11 // pred_region
          _
        $region92: #{gnn_fixed_k_forward.1} parent=11 // pred_fallthru
          _
        // Predicated region
        $region93: #{gnn_fixed_k_forward.1} parent=11 // pred_check
          %p925 = pneg %p572
        $region94: #{gnn_fixed_k_forward.1} parent=11 // pred_check_branch
          %927 = sbr.rel (%p925) target = $region96
        $region95: #{gnn_fixed_k_forward.1} parent=11 // pred_region
          _
        $region96: #{gnn_fixed_k_forward.1} parent=11 // pred_fallthru
          _
        // Predicated region
        $region97: #{gnn_fixed_k_forward.1} parent=11 // pred_check
          %p928 = pneg %p593
        $region98: #{gnn_fixed_k_forward.1} parent=11 // pred_check_branch
          %930 = sbr.rel (%p928) target = $region100
        $region99: #{gnn_fixed_k_forward.1} parent=11 // pred_region
          _
        $region100: #{gnn_fixed_k_forward.1} parent=11 // pred_fallthru
          _
        // Predicated region
        $region101: #{gnn_fixed_k_forward.1} parent=11 // pred_check
          %p931 = pneg %p614
        $region102: #{gnn_fixed_k_forward.1} parent=11 // pred_check_branch
          %933 = sbr.rel (%p931) target = $region104
        $region103: #{gnn_fixed_k_forward.1} parent=11 // pred_region
          _
        $region104: #{gnn_fixed_k_forward.1} parent=11 // pred_fallthru
          _
        // Predicated region
        $region105: #{gnn_fixed_k_forward.1} parent=11 // pred_check
          %p934 = pneg %p635
        $region106: #{gnn_fixed_k_forward.1} parent=11 // pred_check_branch
          %936 = sbr.rel (%p934) target = $region108
        $region107: #{gnn_fixed_k_forward.1} parent=11 // pred_region
          _
        $region108: #{gnn_fixed_k_forward.1} parent=11 // pred_fallthru
          _
        // Predicated region
        $region109: #{gnn_fixed_k_forward.1} parent=11 // pred_check
          %p937 = pneg %p656
        $region110: #{gnn_fixed_k_forward.1} parent=11 // pred_check_branch
          %939 = sbr.rel (%p937) target = $region112
        $region111: #{gnn_fixed_k_forward.1} parent=11 // pred_region
          _
        $region112: #{gnn_fixed_k_forward.1} parent=11 // pred_fallthru
          _
        // Predicated region
        $region113: #{gnn_fixed_k_forward.1} parent=11 // pred_check
          %p940 = pneg %p677
        $region114: #{gnn_fixed_k_forward.1} parent=11 // pred_check_branch
          %942 = sbr.rel (%p940) target = $region116
        $region115: #{gnn_fixed_k_forward.1} parent=11 // pred_region
          _
        $region116: #{gnn_fixed_k_forward.1} parent=11 // pred_fallthru
          _
        // Predicated region
        $region117: #{gnn_fixed_k_forward.1} parent=11 // pred_check
          %p943 = pneg %p698
        $region118: #{gnn_fixed_k_forward.1} parent=11 // pred_check_branch
          %945 = sbr.rel (%p943) target = $region120
        $region119: #{gnn_fixed_k_forward.1} parent=11 // pred_region
          _
        $region120: #{gnn_fixed_k_forward.1} parent=11 // pred_fallthru
          _
        // Predicated region
        $region121: #{gnn_fixed_k_forward.1} parent=11 // pred_check
          %p946 = pneg %p719
        $region122: #{gnn_fixed_k_forward.1} parent=11 // pred_check_branch
          %948 = sbr.rel (%p946) target = $region124
        $region123: #{gnn_fixed_k_forward.1} parent=11 // pred_region
          _
        $region124: #{gnn_fixed_k_forward.1} parent=11 // pred_fallthru
          _
        // Predicated region
        $region125: #{gnn_fixed_k_forward.1} parent=11 // pred_check
          %p949 = pneg %p740
        $region126: #{gnn_fixed_k_forward.1} parent=11 // pred_check_branch
          %951 = sbr.rel (%p949) target = $region128
        $region127: #{gnn_fixed_k_forward.1} parent=11 // pred_region
          _
        $region128: #{gnn_fixed_k_forward.1} parent=11 // pred_fallthru
          _
        // Predicated region
        $region129: #{gnn_fixed_k_forward.1} parent=11 // pred_check
          %p952 = pneg %p761
        $region130: #{gnn_fixed_k_forward.1} parent=11 // pred_check_branch
          %954 = sbr.rel (%p952) target = $region132
        $region131: #{gnn_fixed_k_forward.1} parent=11 // pred_region
          _
        $region132: #{gnn_fixed_k_forward.1} parent=11 // pred_fallthru
          _
        // Predicated region
        $region133: #{gnn_fixed_k_forward.1} parent=11 // pred_check
          %p955 = pneg %p782
        $region134: #{gnn_fixed_k_forward.1} parent=11 // pred_check_branch
          %957 = sbr.rel (%p955) target = $region136
        $region135: #{gnn_fixed_k_forward.1} parent=11 // pred_region
          _
        $region136: #{gnn_fixed_k_forward.1} parent=11 // pred_fallthru
          _
        // Predicated region
        $region137: #{gnn_fixed_k_forward.1} parent=11 // pred_check
          %p958 = pneg %p803
        $region138: #{gnn_fixed_k_forward.1} parent=11 // pred_check_branch
          %960 = sbr.rel (%p958) target = $region140
        $region139: #{gnn_fixed_k_forward.1} parent=11 // pred_region
          _
        $region140: #{gnn_fixed_k_forward.1} parent=11 // pred_fallthru
          _
        // Predicated region
        $region141: #{gnn_fixed_k_forward.1} parent=11 // pred_check
          %p961 = pneg %p824
        $region142: #{gnn_fixed_k_forward.1} parent=11 // pred_check_branch
          %963 = sbr.rel (%p961) target = $region144
        $region143: #{gnn_fixed_k_forward.1} parent=11 // pred_region
          _
        $region144: #{gnn_fixed_k_forward.1} parent=11 // pred_fallthru
          _
      $region12: #{gnn_fixed_k_forward.1} parent=5 // pred_fallthru
        _
      %p964 = scmp.lt.s32.totalorder %s79, 2
      // Predicated region
      $region145: #{gnn_fixed_k_forward.1} parent=5 // pred_check
        %p965 = pneg %p964
      $region146: #{gnn_fixed_k_forward.1} parent=5 // pred_check_branch
        %967 = sbr.rel (%p965) target = $region148
      $region147: #{gnn_fixed_k_forward.1} parent=5 // pred_region
        // Predicated region
        $region149: #{gnn_fixed_k_forward.1} parent=147 // pred_check
          %p968 = pneg %p99
        $region150: #{gnn_fixed_k_forward.1} parent=147 // pred_check_branch
          %970 = sbr.rel (%p968) target = $region152
        $region151: #{gnn_fixed_k_forward.1} parent=147 // pred_region
          %s971 = sand.u32 %s89, 1
          %s972 = sand.u32 %s89, 1
          %s973 = smul.addr %s972, 64
          %s974 = scalar_lea.vmem [#allocation3], %s973
          %s975 = smul.addr %s79, 8
          %s976 = scalar_lea.vmem %s1, %s975
          // Predicated region
          $region153: #{gnn_fixed_k_forward.1} parent=151 // pred_check
            _
          $region154: #{gnn_fixed_k_forward.1} parent=151 // pred_check_branch
            %978 = sbr.rel (0) target = $region156
          $region155: #{gnn_fixed_k_forward.1} parent=151 // pred_region
            // Predicated region
            $region157: #{gnn_fixed_k_forward.1} parent=155 // pred_check
              _
            $region158: #{gnn_fixed_k_forward.1} parent=155 // pred_check_branch
              %980 = sbr.rel (0) target = $region160
            $region159: #{gnn_fixed_k_forward.1} parent=155 // pred_region
              // Predicated region
              $region172: #{gnn_fixed_k_forward.1} parent=159 // pred_check
                _
              $region173: #{gnn_fixed_k_forward.1} parent=159 // pred_check_branch
                %1009 = sbr.rel (0) target = $region175
              $region174: #{gnn_fixed_k_forward.1} parent=159 // pred_region
                loop: start=0, step=1, limit=1
                $region176: #{gnn_fixed_k_forward.1} parent=174 // loop_pre_header
                  _
                $region177: #{gnn_fixed_k_forward.1} parent=174 // loop_header
                  %s1011 = sphi 0, %s1015
                  %p1012 = scmp.ge.s32.totalorder %s1011, 1
                  %s1016 = sphi %s976, %s976
                  %s1017 = sphi %s974, %s974
                $region178: #{gnn_fixed_k_forward.1} parent=174 // loop_header_branch
                  %1014 = sbr.rel (%p1012) target = $region182
                $region179: #{gnn_fixed_k_forward.1} parent=174 // loop_body
                  %v1018 = vld [vmem:[%s1016] sm:$0xff]
                  %1019 = vst [vmem:[%s1017] sm:$0xff] %v1018
                  %v1020 = vld [vmem:[%s1016 + $0x10] sm:$0xff]
                  %1021 = vst [vmem:[%s1017 + $0x8] sm:$0xff] %v1020
                  %v1022 = vld [vmem:[%s1016 + $0x20] sm:$0xff]
                  %1023 = vst [vmem:[%s1017 + $0x10] sm:$0xff] %v1022
                  %v1024 = vld [vmem:[%s1016 + $0x30] sm:$0xff]
                  %1025 = vst [vmem:[%s1017 + $0x18] sm:$0xff] %v1024
                  %v1026 = vld [vmem:[%s1016 + $0x40] sm:$0xff]
                  %1027 = vst [vmem:[%s1017 + $0x20] sm:$0xff] %v1026
                  %v1028 = vld [vmem:[%s1016 + $0x50] sm:$0xff]
                  %1029 = vst [vmem:[%s1017 + $0x28] sm:$0xff] %v1028
                  %v1030 = vld [vmem:[%s1016 + $0x60] sm:$0xff]
                  %1031 = vst [vmem:[%s1017 + $0x30] sm:$0xff] %v1030
                  %v1032 = vld [vmem:[%s1016 + $0x70] sm:$0xff]
                  %1033 = vst [vmem:[%s1017 + $0x38] sm:$0xff] %v1032
                $region180: #{gnn_fixed_k_forward.1} parent=174 // loop_footer
                  %s1015 = sadd.s32 1, %s1011
                $region181: #{gnn_fixed_k_forward.1} parent=174 // loop_footer_branch
                  %1010 = sbr.rel target = $region177
                $region182: #{gnn_fixed_k_forward.1} parent=174 // loop_exit
                  _
              $region175: #{gnn_fixed_k_forward.1} parent=159 // pred_fallthru
                _
              // Predicated region
              $region183: #{gnn_fixed_k_forward.1} parent=159 // pred_check
                _
              $region184: #{gnn_fixed_k_forward.1} parent=159 // pred_check_branch
                %1035 = sbr.rel target = $region186
              $region185: #{gnn_fixed_k_forward.1} parent=159 // pred_region
                _
              $region186: #{gnn_fixed_k_forward.1} parent=159 // pred_fallthru
                _
            $region160: #{gnn_fixed_k_forward.1} parent=155 // pred_fallthru
              _
            // Predicated region
            $region161: #{gnn_fixed_k_forward.1} parent=155 // pred_check
              _
            $region162: #{gnn_fixed_k_forward.1} parent=155 // pred_check_branch
              %982 = sbr.rel target = $region164
            $region163: #{gnn_fixed_k_forward.1} parent=155 // pred_region
              loop: start=0, step=1, limit=1
              $region165: #{gnn_fixed_k_forward.1} parent=163 // loop_pre_header
                _
              $region166: #{gnn_fixed_k_forward.1} parent=163 // loop_header
                %s985 = sphi 0, %s989
                %p986 = scmp.ge.s32.totalorder %s985, 1
                %s990 = sphi %s976, %s976
                %s991 = sphi %s974, %s974
              $region167: #{gnn_fixed_k_forward.1} parent=163 // loop_header_branch
                %988 = sbr.rel (%p986) target = $region171
              $region168: #{gnn_fixed_k_forward.1} parent=163 // loop_body
                %v992 = vld [vmem:[%s990] sm:$0xff]
                %993 = vst [vmem:[%s991] sm:$0xff] %v992
                %v994 = vld [vmem:[%s990 + $0x10] sm:$0xff]
                %995 = vst [vmem:[%s991 + $0x8] sm:$0xff] %v994
                %v996 = vld [vmem:[%s990 + $0x20] sm:$0xff]
                %997 = vst [vmem:[%s991 + $0x10] sm:$0xff] %v996
                %v998 = vld [vmem:[%s990 + $0x30] sm:$0xff]
                %999 = vst [vmem:[%s991 + $0x18] sm:$0xff] %v998
                %v1000 = vld [vmem:[%s990 + $0x40] sm:$0xff]
                %1001 = vst [vmem:[%s991 + $0x20] sm:$0xff] %v1000
                %v1002 = vld [vmem:[%s990 + $0x50] sm:$0xff]
                %1003 = vst [vmem:[%s991 + $0x28] sm:$0xff] %v1002
                %v1004 = vld [vmem:[%s990 + $0x60] sm:$0xff]
                %1005 = vst [vmem:[%s991 + $0x30] sm:$0xff] %v1004
                %v1006 = vld [vmem:[%s990 + $0x70] sm:$0xff]
                %1007 = vst [vmem:[%s991 + $0x38] sm:$0xff] %v1006
              $region169: #{gnn_fixed_k_forward.1} parent=163 // loop_footer
                %s989 = sadd.s32 1, %s985
              $region170: #{gnn_fixed_k_forward.1} parent=163 // loop_footer_branch
                %984 = sbr.rel target = $region166
              $region171: #{gnn_fixed_k_forward.1} parent=163 // loop_exit
                _
            $region164: #{gnn_fixed_k_forward.1} parent=155 // pred_fallthru
              _
          $region156: #{gnn_fixed_k_forward.1} parent=151 // pred_fallthru
            _
          %1036 = vnop
        $region152: #{gnn_fixed_k_forward.1} parent=147 // pred_fallthru
          _
        // Predicated region
        $region187: #{gnn_fixed_k_forward.1} parent=147 // pred_check
          %p1037 = pneg %p125
        $region188: #{gnn_fixed_k_forward.1} parent=147 // pred_check_branch
          %1039 = sbr.rel (%p1037) target = $region190
        $region189: #{gnn_fixed_k_forward.1} parent=147 // pred_region
          %p1040 = scmp.lt.s32.totalorder %s79, 1
          %s1041 = scalar_select %p1040, %s79, 1
          %s1042 = smul.addr %s1041, 4
          %s1043 = scalar_lea.vmem %s3, %s1042
        $region190: #{gnn_fixed_k_forward.1} parent=147 // pred_fallthru
          _
      $region148: #{gnn_fixed_k_forward.1} parent=5 // pred_fallthru
        _
      %p1044 = scmp.le.s32.totalorder 1, %s79
      %p1045 = scmp.lt.s32.totalorder %s79, 3
      %p1046 = pnand %p1044, %p1045
      %p1047 = pneg %p1046
      // Predicated region
      $region191: #{gnn_fixed_k_forward.1} parent=5 // pred_check
        _
      $region192: #{gnn_fixed_k_forward.1} parent=5 // pred_check_branch
        %1049 = sbr.rel (%p1046) target = $region194
      $region193: #{gnn_fixed_k_forward.1} parent=5 // pred_region
        %s1050 = ssub.s32 %s79, 1
        %s1051 = sand.u32 %s92, 1
        %s1052 = sand.u32 %s92, 1
        %s1053 = smul.addr %s1052, 64
        %s1054 = scalar_lea.vmem [#allocation3], %s1053
        // Predicated region
        $region195: #{gnn_fixed_k_forward.1} parent=193 // pred_check
          %p1055 = pneg %p105
        $region196: #{gnn_fixed_k_forward.1} parent=193 // pred_check_branch
          %1057 = sbr.rel (%p1055) target = $region198
        $region197: #{gnn_fixed_k_forward.1} parent=193 // pred_region
          _
        $region198: #{gnn_fixed_k_forward.1} parent=193 // pred_fallthru
          _
        %s1058 = sand.u32 %s92, 1
        %s1059 = sand.u32 %s92, 1
        %s1060 = smul.addr %s1059, 64
        %s1061 = scalar_lea.vmem [#allocation3], %s1060
        %p1062 = pneg %p105
        %p1063 = pneg %p102
        %p1064 = scmp.lt.s32.totalorder %s84, 1
        %s1065 = scalar_select %p1064, %s84, 1
        %s1066 = smul.addr %s1065, 4
        %s1067 = scalar_lea.vmem %s3, %s1066
        %p1068 = pneg %p131
        %p1069 = pneg %p128
        %p1070 = pneg %p152
        %p1071 = pneg %p149
        %p1072 = pneg %p173
        %p1073 = pneg %p170
        %p1074 = pneg %p194
        %p1075 = pneg %p191
        %p1076 = pneg %p215
        %p1077 = pneg %p212
        %p1078 = pneg %p236
        %p1079 = pneg %p233
        %p1080 = pneg %p257
        %p1081 = pneg %p254
        %p1082 = pneg %p278
        %p1083 = pneg %p275
        %p1084 = pneg %p299
        %p1085 = pneg %p296
        %p1086 = pneg %p320
        %p1087 = pneg %p317
        %p1088 = pneg %p341
        %p1089 = pneg %p338
        %p1090 = pneg %p362
        %p1091 = pneg %p359
        %p1092 = pneg %p383
        %p1093 = pneg %p380
        %p1094 = pneg %p404
        %p1095 = pneg %p401
        %p1096 = pneg %p425
        %p1097 = pneg %p422
        %p1098 = pneg %p446
        %p1099 = pneg %p443
        %p1100 = pneg %p467
        %p1101 = pneg %p464
        %p1102 = pneg %p488
        %p1103 = pneg %p485
        %p1104 = pneg %p509
        %p1105 = pneg %p506
        %p1106 = pneg %p530
        %p1107 = pneg %p527
        %p1108 = pneg %p551
        %p1109 = pneg %p548
        %p1110 = pneg %p572
        %p1111 = pneg %p569
        %p1112 = pneg %p593
        %p1113 = pneg %p590
        %p1114 = pneg %p614
        %p1115 = pneg %p611
        %p1116 = pneg %p635
        %p1117 = pneg %p632
        %p1118 = pneg %p656
        %p1119 = pneg %p653
        %p1120 = pneg %p677
        %p1121 = pneg %p674
        %p1122 = pneg %p698
        %p1123 = pneg %p695
        %p1124 = pneg %p719
        %p1125 = pneg %p716
        %p1126 = pneg %p740
        %p1127 = pneg %p737
        %p1128 = pneg %p761
        %p1129 = pneg %p758
        %p1130 = pneg %p782
        %p1131 = pneg %p779
        %p1132 = pneg %p803
        %p1133 = pneg %p800
        %p1134 = pneg %p824
        %p1135 = pneg %p821
        %p1136 = pneg %p850
        %p1137 = pneg %p847
        %p1138 = scmp.lt.s32.totalorder %s84, 1
        %s1139 = scalar_select %p1138, %s84, 1
        %s1140 = smul.addr %s1139, 8
        %s1141 = scalar_lea.vmem %s71, %s1140
        %p1142 = scmp.lt.s32.totalorder %s84, 1
        %s1143 = scalar_select %p1142, %s84, 1
        %s1144 = smul.addr %s1143, 4
        %s1145 = scalar_lea.vmem %s3, %s1144
        %p1146 = scmp.lt.s32.totalorder %s84, 1
        %s1147 = scalar_select %p1146, %s84, 1
        %s1148 = smul.addr %s1147, 8
        %s1149 = scalar_lea.vmem %s71, %s1148
        %v1150 = vld [vmem:[%s1145] sm:$0x7]
        %v1151 = vld [vmem:[%s1054] sm:$0xff]
        %v1152 = vld [vmem:[%s1054 + $0x8] sm:$0xff]
        %v1153 = vld [vmem:[%s1054 + $0x10] sm:$0xff]
        %v1154 = vld [vmem:[%s1054 + $0x18] sm:$0xff]
        %v1155 = vld [vmem:[%s1054 + $0x20] sm:$0xff]
        %v1156 = vld [vmem:[%s1054 + $0x28] sm:$0xff]
        %v1157 = vld [vmem:[%s1054 + $0x30] sm:$0xff]
        %v1158 = vld [vmem:[%s1054 + $0x38] sm:$0xff]
        %v1159 = vld [vmem:[%s5] sm:$0xff]
        %v1160 = vld [vmem:[%s5 + $0x8] sm:$0xff]
        %v1161 = vld [vmem:[%s5 + $0x10] sm:$0xff]
        %v1162 = vld [vmem:[%s5 + $0x18] sm:$0xff]
        %v1163 = vld [vmem:[%s7] sm:$0xff]
        %v1164 = vld [vmem:[%s7 + $0x8] sm:$0xff]
        %v1165 = vld [vmem:[%s7 + $0x10] sm:$0xff]
        %v1166 = vld [vmem:[%s7 + $0x18] sm:$0xff]
        %1168 = vset.pattern.permute.xlu0 0
        %1169 = vperm.xlu0 %1168, %v1163
        %v1170 = vpop.permute.xlu0 %1169
        %1173 = vset.pattern.permute.xlu0 0
        %1174 = vperm.xlu0 %1173, %v1164
        %v1175 = vpop.permute.xlu0 %1174
        %1178 = vset.pattern.permute.xlu0 0
        %1179 = vperm.xlu0 %1178, %v1165
        %v1180 = vpop.permute.xlu0 %1179
        %1183 = vset.pattern.permute.xlu0 0
        %1184 = vperm.xlu0 %1183, %v1166
        %v1185 = vpop.permute.xlu0 %1184
        %vm1187 = vcmask 64512
        %v1189 = vsel %vm1187, %v1159, 0
        %v1192 = vsel %vm1187, %v1160, 0
        %v1195 = vsel %vm1187, %v1161, 0
        %v1198 = vsel %vm1187, %v1162, 0
        %1200 = vmatprep.subr.mxu0 %v1152
        %1201 = vmatpush1.msra.mxu0 %v1151
        %1202 = vmatprep.subr.mxu0 0.0
        %1203 = vmatpush1.msra.mxu0 0.0
        %1204 = vmatprep.subr.mxu0 0.0
        %1205 = vmatpush1.msra.mxu0 0.0
        %1206 = vmatprep.subr.mxu0 0.0
        %1207 = vmatpush1.msra.mxu0 0.0
        %1208 = vmatprep.subr.mxu0 0.0
        %1209 = vmatpush1.msra.mxu0 0.0
        %1210 = vmatprep.subr.mxu0 0.0
        %1211 = vmatpush1.msra.mxu0 0.0
        %1212 = vmatprep.subr.mxu0 0.0
        %1213 = vmatpush1.msra.mxu0 0.0
        %1214 = vmatprep.subr.mxu0 0.0
        %1215 = vmatpush1.msra.mxu0 0.0
        %1216 = vmatprep.subr.mxu0 0.0
        %1217 = vmatpush1.msra.mxu0 0.0
        %1218 = vmatprep.subr.mxu0 0.0
        %1219 = vmatpush1.msra.mxu0 0.0
        %1220 = vmatprep.subr.mxu0 0.0
        %1221 = vmatpush1.msra.mxu0 0.0
        %1222 = vmatprep.subr.mxu0 0.0
        %1223 = vmatpush1.msra.mxu0 0.0
        %1224 = vmatprep.subr.mxu0 0.0
        %1225 = vmatpush1.msra.mxu0 0.0
        %1226 = vmatprep.subr.mxu0 0.0
        %1227 = vmatpush1.msra.mxu0 0.0
        %1228 = vmatprep.subr.mxu0 0.0
        %1229 = vmatpush1.msra.mxu0 0.0
        %1230 = vmatprep.subr.mxu0 0.0
        %1231 = vmatpush1.msra.mxu0 0.0
        %1232 = vmatprep.subr.mxu0 0.0
        %1233 = vmatpush1.msra.mxu0 0.0
        %1234 = vmatprep.subr.mxu0 0.0
        %1235 = vmatpush1.msra.mxu0 0.0
        %1236 = vmatprep.subr.mxu0 0.0
        %1237 = vmatpush1.msra.mxu0 0.0
        %1238 = vmatprep.subr.mxu0 0.0
        %1239 = vmatpush1.msra.mxu0 0.0
        %1240 = vmatprep.subr.mxu0 0.0
        %1241 = vmatpush1.msra.mxu0 0.0
        %1242 = vmatprep.subr.mxu0 0.0
        %1243 = vmatpush1.msra.mxu0 0.0
        %1244 = vmatprep.subr.mxu0 0.0
        %1245 = vmatpush1.msra.mxu0 0.0
        %1246 = vmatprep.subr.mxu0 0.0
        %1247 = vmatpush1.msra.mxu0 0.0
        %1248 = vmatprep.subr.mxu0 0.0
        %1249 = vmatpush1.msra.mxu0 0.0
        %1250 = vmatprep.subr.mxu0 0.0
        %1251 = vmatpush1.msra.mxu0 0.0
        %1252 = vmatprep.subr.mxu0 0.0
        %1253 = vmatpush1.msra.mxu0 0.0
        %1254 = vmatprep.subr.mxu0 0.0
        %1255 = vmatpush1.msra.mxu0 0.0
        %1256 = vmatprep.subr.mxu0 0.0
        %1257 = vmatpush1.msra.mxu0 0.0
        %1258 = vmatprep.subr.mxu0 0.0
        %1259 = vmatpush1.msra.mxu0 0.0
        %1260 = vmatprep.subr.mxu0 0.0
        %1261 = vmatpush1.msra.mxu0 0.0
        %1262 = vmatprep.subr.mxu0 0.0
        %1263 = vmatpush1.msra.mxu0 0.0
        %1264 = vmatprep.mubr.f32.mxu0 0.0
        %1265 = vmatmul.mubr.f32.gmra.mrb[0].mxu0 %v1189
        %v1266 = vpop.f32.mrb[0].mxu0
        %v1267 = vadd.f32 %v1170, %v1266
        %v1268 = vpop.f32.mrb[0].mxu0
        %v1269 = vadd.f32 %v1170, %v1268
        %1270 = vmatprep.mubr.f32.mxu0 0.0
        %1271 = vmatmul.mubr.f32.gmra.mrb[0].mxu0 %v1192
        %v1272 = vpop.f32.mrb[0].mxu0
        %v1273 = vadd.f32 %v1175, %v1272
        %v1274 = vpop.f32.mrb[0].mxu0
        %v1275 = vadd.f32 %v1175, %v1274
        %1276 = vmatprep.mubr.f32.mxu0 0.0
        %1277 = vmatmul.mubr.f32.gmra.mrb[0].mxu0 %v1195
        %v1278 = vpop.f32.mrb[0].mxu0
        %v1279 = vadd.f32 %v1180, %v1278
        %v1280 = vpop.f32.mrb[0].mxu0
        %v1281 = vadd.f32 %v1180, %v1280
        %1282 = vmatprep.mubr.f32.mxu0 0.0
        %1283 = vmatmul.mubr.f32.gmra.mrb[0].mxu0 %v1198
        %v1284 = vpop.f32.mrb[0].mxu0
        %v1285 = vadd.f32 %v1185, %v1284
        %v1286 = vpop.f32.mrb[0].mxu0
        %v1287 = vadd.f32 %v1185, %v1286
        %1288 = vdwg.mxu0
        %1289 = vmatprep.subr.mxu0 %v1154
        %1290 = vmatpush1.msra.mxu0 %v1153
        %1291 = vmatprep.subr.mxu0 0.0
        %1292 = vmatpush1.msra.mxu0 0.0
        %1293 = vmatprep.subr.mxu0 0.0
        %1294 = vmatpush1.msra.mxu0 0.0
        %1295 = vmatprep.subr.mxu0 0.0
        %1296 = vmatpush1.msra.mxu0 0.0
        %1297 = vmatprep.subr.mxu0 0.0
        %1298 = vmatpush1.msra.mxu0 0.0
        %1299 = vmatprep.subr.mxu0 0.0
        %1300 = vmatpush1.msra.mxu0 0.0
        %1301 = vmatprep.subr.mxu0 0.0
        %1302 = vmatpush1.msra.mxu0 0.0
        %1303 = vmatprep.subr.mxu0 0.0
        %1304 = vmatpush1.msra.mxu0 0.0
        %1305 = vmatprep.subr.mxu0 0.0
        %1306 = vmatpush1.msra.mxu0 0.0
        %1307 = vmatprep.subr.mxu0 0.0
        %1308 = vmatpush1.msra.mxu0 0.0
        %1309 = vmatprep.subr.mxu0 0.0
        %1310 = vmatpush1.msra.mxu0 0.0
        %1311 = vmatprep.subr.mxu0 0.0
        %1312 = vmatpush1.msra.mxu0 0.0
        %1313 = vmatprep.subr.mxu0 0.0
        %1314 = vmatpush1.msra.mxu0 0.0
        %1315 = vmatprep.subr.mxu0 0.0
        %1316 = vmatpush1.msra.mxu0 0.0
        %1317 = vmatprep.subr.mxu0 0.0
        %1318 = vmatpush1.msra.mxu0 0.0
        %1319 = vmatprep.subr.mxu0 0.0
        %1320 = vmatpush1.msra.mxu0 0.0
        %1321 = vmatprep.subr.mxu0 0.0
        %1322 = vmatpush1.msra.mxu0 0.0
        %1323 = vmatprep.subr.mxu0 0.0
        %1324 = vmatpush1.msra.mxu0 0.0
        %1325 = vmatprep.subr.mxu0 0.0
        %1326 = vmatpush1.msra.mxu0 0.0
        %1327 = vmatprep.subr.mxu0 0.0
        %1328 = vmatpush1.msra.mxu0 0.0
        %1329 = vmatprep.subr.mxu0 0.0
        %1330 = vmatpush1.msra.mxu0 0.0
        %1331 = vmatprep.subr.mxu0 0.0
        %1332 = vmatpush1.msra.mxu0 0.0
        %1333 = vmatprep.subr.mxu0 0.0
        %1334 = vmatpush1.msra.mxu0 0.0
        %1335 = vmatprep.subr.mxu0 0.0
        %1336 = vmatpush1.msra.mxu0 0.0
        %1337 = vmatprep.subr.mxu0 0.0
        %1338 = vmatpush1.msra.mxu0 0.0
        %1339 = vmatprep.subr.mxu0 0.0
        %1340 = vmatpush1.msra.mxu0 0.0
        %1341 = vmatprep.subr.mxu0 0.0
        %1342 = vmatpush1.msra.mxu0 0.0
        %1343 = vmatprep.subr.mxu0 0.0
        %1344 = vmatpush1.msra.mxu0 0.0
        %1345 = vmatprep.subr.mxu0 0.0
        %1346 = vmatpush1.msra.mxu0 0.0
        %1347 = vmatprep.subr.mxu0 0.0
        %1348 = vmatpush1.msra.mxu0 0.0
        %1349 = vmatprep.subr.mxu0 0.0
        %1350 = vmatpush1.msra.mxu0 0.0
        %1351 = vmatprep.subr.mxu0 0.0
        %1352 = vmatpush1.msra.mxu0 0.0
        %1353 = vmatprep.mubr.f32.mxu0 0.0
        %1354 = vmatmul.mubr.f32.gmra.mrb[0].mxu0 %v1189
        %v1355 = vpop.f32.mrb[0].mxu0
        %v1356 = vadd.f32 %v1170, %v1355
        %v1357 = vpop.f32.mrb[0].mxu0
        %v1358 = vadd.f32 %v1170, %v1357
        %1359 = vmatprep.mubr.f32.mxu0 0.0
        %1360 = vmatmul.mubr.f32.gmra.mrb[0].mxu0 %v1192
        %v1361 = vpop.f32.mrb[0].mxu0
        %v1362 = vadd.f32 %v1175, %v1361
        %v1363 = vpop.f32.mrb[0].mxu0
        %v1364 = vadd.f32 %v1175, %v1363
        %1365 = vmatprep.mubr.f32.mxu0 0.0
        %1366 = vmatmul.mubr.f32.gmra.mrb[0].mxu0 %v1195
        %v1367 = vpop.f32.mrb[0].mxu0
        %v1368 = vadd.f32 %v1180, %v1367
        %v1369 = vpop.f32.mrb[0].mxu0
        %v1370 = vadd.f32 %v1180, %v1369
        %1371 = vmatprep.mubr.f32.mxu0 0.0
        %1372 = vmatmul.mubr.f32.gmra.mrb[0].mxu0 %v1198
        %v1373 = vpop.f32.mrb[0].mxu0
        %v1374 = vadd.f32 %v1185, %v1373
        %v1375 = vpop.f32.mrb[0].mxu0
        %v1376 = vadd.f32 %v1185, %v1375
        %1377 = vdwg.mxu0
        %1378 = vmatprep.subr.mxu0 %v1156
        %1379 = vmatpush1.msra.mxu0 %v1155
        %1380 = vmatprep.subr.mxu0 0.0
        %1381 = vmatpush1.msra.mxu0 0.0
        %1382 = vmatprep.subr.mxu0 0.0
        %1383 = vmatpush1.msra.mxu0 0.0
        %1384 = vmatprep.subr.mxu0 0.0
        %1385 = vmatpush1.msra.mxu0 0.0
        %1386 = vmatprep.subr.mxu0 0.0
        %1387 = vmatpush1.msra.mxu0 0.0
        %1388 = vmatprep.subr.mxu0 0.0
        %1389 = vmatpush1.msra.mxu0 0.0
        %1390 = vmatprep.subr.mxu0 0.0
        %1391 = vmatpush1.msra.mxu0 0.0
        %1392 = vmatprep.subr.mxu0 0.0
        %1393 = vmatpush1.msra.mxu0 0.0
        %1394 = vmatprep.subr.mxu0 0.0
        %1395 = vmatpush1.msra.mxu0 0.0
        %1396 = vmatprep.subr.mxu0 0.0
        %1397 = vmatpush1.msra.mxu0 0.0
        %1398 = vmatprep.subr.mxu0 0.0
        %1399 = vmatpush1.msra.mxu0 0.0
        %1400 = vmatprep.subr.mxu0 0.0
        %1401 = vmatpush1.msra.mxu0 0.0
        %1402 = vmatprep.subr.mxu0 0.0
        %1403 = vmatpush1.msra.mxu0 0.0
        %1404 = vmatprep.subr.mxu0 0.0
        %1405 = vmatpush1.msra.mxu0 0.0
        %1406 = vmatprep.subr.mxu0 0.0
        %1407 = vmatpush1.msra.mxu0 0.0
        %1408 = vmatprep.subr.mxu0 0.0
        %1409 = vmatpush1.msra.mxu0 0.0
        %1410 = vmatprep.subr.mxu0 0.0
        %1411 = vmatpush1.msra.mxu0 0.0
        %1412 = vmatprep.subr.mxu0 0.0
        %1413 = vmatpush1.msra.mxu0 0.0
        %1414 = vmatprep.subr.mxu0 0.0
        %1415 = vmatpush1.msra.mxu0 0.0
        %1416 = vmatprep.subr.mxu0 0.0
        %1417 = vmatpush1.msra.mxu0 0.0
        %1418 = vmatprep.subr.mxu0 0.0
        %1419 = vmatpush1.msra.mxu0 0.0
        %1420 = vmatprep.subr.mxu0 0.0
        %1421 = vmatpush1.msra.mxu0 0.0
        %1422 = vmatprep.subr.mxu0 0.0
        %1423 = vmatpush1.msra.mxu0 0.0
        %1424 = vmatprep.subr.mxu0 0.0
        %1425 = vmatpush1.msra.mxu0 0.0
        %1426 = vmatprep.subr.mxu0 0.0
        %1427 = vmatpush1.msra.mxu0 0.0
        %1428 = vmatprep.subr.mxu0 0.0
        %1429 = vmatpush1.msra.mxu0 0.0
        %1430 = vmatprep.subr.mxu0 0.0
        %1431 = vmatpush1.msra.mxu0 0.0
        %1432 = vmatprep.subr.mxu0 0.0
        %1433 = vmatpush1.msra.mxu0 0.0
        %1434 = vmatprep.subr.mxu0 0.0
        %1435 = vmatpush1.msra.mxu0 0.0
        %1436 = vmatprep.subr.mxu0 0.0
        %1437 = vmatpush1.msra.mxu0 0.0
        %1438 = vmatprep.subr.mxu0 0.0
        %1439 = vmatpush1.msra.mxu0 0.0
        %1440 = vmatprep.subr.mxu0 0.0
        %1441 = vmatpush1.msra.mxu0 0.0
        %1442 = vmatprep.mubr.f32.mxu0 0.0
        %1443 = vmatmul.mubr.f32.gmra.mrb[0].mxu0 %v1189
        %v1444 = vpop.f32.mrb[0].mxu0
        %v1445 = vadd.f32 %v1170, %v1444
        %v1446 = vpop.f32.mrb[0].mxu0
        %v1447 = vadd.f32 %v1170, %v1446
        %1448 = vmatprep.mubr.f32.mxu0 0.0
        %1449 = vmatmul.mubr.f32.gmra.mrb[0].mxu0 %v1192
        %v1450 = vpop.f32.mrb[0].mxu0
        %v1451 = vadd.f32 %v1175, %v1450
        %v1452 = vpop.f32.mrb[0].mxu0
        %v1453 = vadd.f32 %v1175, %v1452
        %1454 = vmatprep.mubr.f32.mxu0 0.0
        %1455 = vmatmul.mubr.f32.gmra.mrb[0].mxu0 %v1195
        %v1456 = vpop.f32.mrb[0].mxu0
        %v1457 = vadd.f32 %v1180, %v1456
        %v1458 = vpop.f32.mrb[0].mxu0
        %v1459 = vadd.f32 %v1180, %v1458
        %1460 = vmatprep.mubr.f32.mxu0 0.0
        %1461 = vmatmul.mubr.f32.gmra.mrb[0].mxu0 %v1198
        %v1462 = vpop.f32.mrb[0].mxu0
        %v1463 = vadd.f32 %v1185, %v1462
        %v1464 = vpop.f32.mrb[0].mxu0
        %v1465 = vadd.f32 %v1185, %v1464
        %1466 = vdwg.mxu0
        %1467 = vmatprep.subr.mxu0 %v1158
        %1468 = vmatpush1.msra.mxu0 %v1157
        %1469 = vmatprep.subr.mxu0 0.0
        %1470 = vmatpush1.msra.mxu0 0.0
        %1471 = vmatprep.subr.mxu0 0.0
        %1472 = vmatpush1.msra.mxu0 0.0
        %1473 = vmatprep.subr.mxu0 0.0
        %1474 = vmatpush1.msra.mxu0 0.0
        %1475 = vmatprep.subr.mxu0 0.0
        %1476 = vmatpush1.msra.mxu0 0.0
        %1477 = vmatprep.subr.mxu0 0.0
        %1478 = vmatpush1.msra.mxu0 0.0
        %1479 = vmatprep.subr.mxu0 0.0
        %1480 = vmatpush1.msra.mxu0 0.0
        %1481 = vmatprep.subr.mxu0 0.0
        %1482 = vmatpush1.msra.mxu0 0.0
        %1483 = vmatprep.subr.mxu0 0.0
        %1484 = vmatpush1.msra.mxu0 0.0
        %1485 = vmatprep.subr.mxu0 0.0
        %1486 = vmatpush1.msra.mxu0 0.0
        %1487 = vmatprep.subr.mxu0 0.0
        %1488 = vmatpush1.msra.mxu0 0.0
        %1489 = vmatprep.subr.mxu0 0.0
        %1490 = vmatpush1.msra.mxu0 0.0
        %1491 = vmatprep.subr.mxu0 0.0
        %1492 = vmatpush1.msra.mxu0 0.0
        %1493 = vmatprep.subr.mxu0 0.0
        %1494 = vmatpush1.msra.mxu0 0.0
        %1495 = vmatprep.subr.mxu0 0.0
        %1496 = vmatpush1.msra.mxu0 0.0
        %1497 = vmatprep.subr.mxu0 0.0
        %1498 = vmatpush1.msra.mxu0 0.0
        %1499 = vmatprep.subr.mxu0 0.0
        %1500 = vmatpush1.msra.mxu0 0.0
        %1501 = vmatprep.subr.mxu0 0.0
        %1502 = vmatpush1.msra.mxu0 0.0
        %1503 = vmatprep.subr.mxu0 0.0
        %1504 = vmatpush1.msra.mxu0 0.0
        %1505 = vmatprep.subr.mxu0 0.0
        %1506 = vmatpush1.msra.mxu0 0.0
        %1507 = vmatprep.subr.mxu0 0.0
        %1508 = vmatpush1.msra.mxu0 0.0
        %1509 = vmatprep.subr.mxu0 0.0
        %1510 = vmatpush1.msra.mxu0 0.0
        %1511 = vmatprep.subr.mxu0 0.0
        %1512 = vmatpush1.msra.mxu0 0.0
        %1513 = vmatprep.subr.mxu0 0.0
        %1514 = vmatpush1.msra.mxu0 0.0
        %1515 = vmatprep.subr.mxu0 0.0
        %1516 = vmatpush1.msra.mxu0 0.0
        %1517 = vmatprep.subr.mxu0 0.0
        %1518 = vmatpush1.msra.mxu0 0.0
        %1519 = vmatprep.subr.mxu0 0.0
        %1520 = vmatpush1.msra.mxu0 0.0
        %1521 = vmatprep.subr.mxu0 0.0
        %1522 = vmatpush1.msra.mxu0 0.0
        %1523 = vmatprep.subr.mxu0 0.0
        %1524 = vmatpush1.msra.mxu0 0.0
        %1525 = vmatprep.subr.mxu0 0.0
        %1526 = vmatpush1.msra.mxu0 0.0
        %1527 = vmatprep.subr.mxu0 0.0
        %1528 = vmatpush1.msra.mxu0 0.0
        %1529 = vmatprep.subr.mxu0 0.0
        %1530 = vmatpush1.msra.mxu0 0.0
        %1531 = vmatprep.mubr.f32.mxu0 0.0
        %1532 = vmatmul.mubr.f32.gmra.mrb[0].mxu0 %v1189
        %v1533 = vpop.f32.mrb[0].mxu0
        %v1534 = vadd.f32 %v1170, %v1533
        %v1535 = vpop.f32.mrb[0].mxu0
        %v1536 = vadd.f32 %v1170, %v1535
        %1537 = vmatprep.mubr.f32.mxu0 0.0
        %1538 = vmatmul.mubr.f32.gmra.mrb[0].mxu0 %v1192
        %v1539 = vpop.f32.mrb[0].mxu0
        %v1540 = vadd.f32 %v1175, %v1539
        %v1541 = vpop.f32.mrb[0].mxu0
        %v1542 = vadd.f32 %v1175, %v1541
        %1543 = vmatprep.mubr.f32.mxu0 0.0
        %1544 = vmatmul.mubr.f32.gmra.mrb[0].mxu0 %v1195
        %v1545 = vpop.f32.mrb[0].mxu0
        %v1546 = vadd.f32 %v1180, %v1545
        %v1547 = vpop.f32.mrb[0].mxu0
        %v1548 = vadd.f32 %v1180, %v1547
        %1549 = vmatprep.mubr.f32.mxu0 0.0
        %1550 = vmatmul.mubr.f32.gmra.mrb[0].mxu0 %v1198
        %v1551 = vpop.f32.mrb[0].mxu0
        %v1552 = vadd.f32 %v1185, %v1551
        %v1553 = vpop.f32.mrb[0].mxu0
        %v1554 = vadd.f32 %v1185, %v1553
        %1555 = vdwg.mxu0
        %v1556 = vmax.f32 %v1267, 0.0
        %v1557 = vmax.f32 %v1269, 0.0
        %v1558 = vmax.f32 %v1356, 0.0
        %v1559 = vmax.f32 %v1358, 0.0
        %v1560 = vmax.f32 %v1445, 0.0
        %v1561 = vmax.f32 %v1447, 0.0
        %v1562 = vmax.f32 %v1534, 0.0
        %v1563 = vmax.f32 %v1536, 0.0
        %v1564 = vmax.f32 %v1273, 0.0
        %v1565 = vmax.f32 %v1275, 0.0
        %v1566 = vmax.f32 %v1362, 0.0
        %v1567 = vmax.f32 %v1364, 0.0
        %v1568 = vmax.f32 %v1451, 0.0
        %v1569 = vmax.f32 %v1453, 0.0
        %v1570 = vmax.f32 %v1540, 0.0
        %v1571 = vmax.f32 %v1542, 0.0
        %v1572 = vmax.f32 %v1279, 0.0
        %v1573 = vmax.f32 %v1281, 0.0
        %v1574 = vmax.f32 %v1368, 0.0
        %v1575 = vmax.f32 %v1370, 0.0
        %v1576 = vmax.f32 %v1457, 0.0
        %v1577 = vmax.f32 %v1459, 0.0
        %v1578 = vmax.f32 %v1546, 0.0
        %v1579 = vmax.f32 %v1548, 0.0
        %v1580 = vmax.f32 %v1285, 0.0
        %v1581 = vmax.f32 %v1287, 0.0
        %v1582 = vmax.f32 %v1374, 0.0
        %v1583 = vmax.f32 %v1376, 0.0
        %v1584 = vmax.f32 %v1463, 0.0
        %v1585 = vmax.f32 %v1465, 0.0
        %v1586 = vmax.f32 %v1552, 0.0
        %v1587 = vmax.f32 %v1554, 0.0
        %v1588 = vld [vmem:[%s9] sm:$0xff]
        %v1589 = vld [vmem:[%s9 + $0x8] sm:$0xff]
        %v1590 = vld [vmem:[%s11] sm:$0xff]
        %v1591 = vld [vmem:[%s11 + $0x8] sm:$0xff]
        %1593 = vset.pattern.permute.xlu0 0
        %1594 = vperm.xlu0 %1593, %v1590
        %v1595 = vpop.permute.xlu0 %1594
        %1598 = vset.pattern.permute.xlu0 0
        %1599 = vperm.xlu0 %1598, %v1591
        %v1600 = vpop.permute.xlu0 %1599
        %vm1602 = vcmask 261120
        %v1604 = vsel %vm1602, %v1588, 0
        %v1607 = vsel %vm1602, %v1589, 0
        %1609 = vmatprep.subr.mxu0 %v1557
        %1610 = vmatpush1.msra.mxu0 %v1556
        %1611 = vmatprep.subr.mxu0 %v1565
        %1612 = vmatpush1.msra.mxu0 %v1564
        %1613 = vmatprep.subr.mxu0 %v1573
        %1614 = vmatpush1.msra.mxu0 %v1572
        %1615 = vmatprep.subr.mxu0 %v1581
        %1616 = vmatpush1.msra.mxu0 %v1580
        %1617 = vmatprep.subr.mxu0 0.0
        %1618 = vmatpush1.msra.mxu0 0.0
        %1619 = vmatprep.subr.mxu0 0.0
        %1620 = vmatpush1.msra.mxu0 0.0
        %1621 = vmatprep.subr.mxu0 0.0
        %1622 = vmatpush1.msra.mxu0 0.0
        %1623 = vmatprep.subr.mxu0 0.0
        %1624 = vmatpush1.msra.mxu0 0.0
        %1625 = vmatprep.subr.mxu0 0.0
        %1626 = vmatpush1.msra.mxu0 0.0
        %1627 = vmatprep.subr.mxu0 0.0
        %1628 = vmatpush1.msra.mxu0 0.0
        %1629 = vmatprep.subr.mxu0 0.0
        %1630 = vmatpush1.msra.mxu0 0.0
        %1631 = vmatprep.subr.mxu0 0.0
        %1632 = vmatpush1.msra.mxu0 0.0
        %1633 = vmatprep.subr.mxu0 0.0
        %1634 = vmatpush1.msra.mxu0 0.0
        %1635 = vmatprep.subr.mxu0 0.0
        %1636 = vmatpush1.msra.mxu0 0.0
        %1637 = vmatprep.subr.mxu0 0.0
        %1638 = vmatpush1.msra.mxu0 0.0
        %1639 = vmatprep.subr.mxu0 0.0
        %1640 = vmatpush1.msra.mxu0 0.0
        %1641 = vmatprep.subr.mxu0 0.0
        %1642 = vmatpush1.msra.mxu0 0.0
        %1643 = vmatprep.subr.mxu0 0.0
        %1644 = vmatpush1.msra.mxu0 0.0
        %1645 = vmatprep.subr.mxu0 0.0
        %1646 = vmatpush1.msra.mxu0 0.0
        %1647 = vmatprep.subr.mxu0 0.0
        %1648 = vmatpush1.msra.mxu0 0.0
        %1649 = vmatprep.subr.mxu0 0.0
        %1650 = vmatpush1.msra.mxu0 0.0
        %1651 = vmatprep.subr.mxu0 0.0
        %1652 = vmatpush1.msra.mxu0 0.0
        %1653 = vmatprep.subr.mxu0 0.0
        %1654 = vmatpush1.msra.mxu0 0.0
        %1655 = vmatprep.subr.mxu0 0.0
        %1656 = vmatpush1.msra.mxu0 0.0
        %1657 = vmatprep.subr.mxu0 0.0
        %1658 = vmatpush1.msra.mxu0 0.0
        %1659 = vmatprep.subr.mxu0 0.0
        %1660 = vmatpush1.msra.mxu0 0.0
        %1661 = vmatprep.subr.mxu0 0.0
        %1662 = vmatpush1.msra.mxu0 0.0
        %1663 = vmatprep.subr.mxu0 0.0
        %1664 = vmatpush1.msra.mxu0 0.0
        %1665 = vmatprep.subr.mxu0 0.0
        %1666 = vmatpush1.msra.mxu0 0.0
        %1667 = vmatprep.subr.mxu0 0.0
        %1668 = vmatpush1.msra.mxu0 0.0
        %1669 = vmatprep.subr.mxu0 0.0
        %1670 = vmatpush1.msra.mxu0 0.0
        %1671 = vmatprep.subr.mxu0 0.0
        %1672 = vmatpush1.msra.mxu0 0.0
        %1673 = vmatprep.mubr.f32.mxu0 0.0
        %1674 = vmatmul.mubr.f32.gmra.mrb[0].mxu0 %v1604
        %v1675 = vpop.f32.mrb[0].mxu0
        %v1676 = vadd.f32 %v1595, %v1675
        %v1677 = vpop.f32.mrb[0].mxu0
        %v1678 = vadd.f32 %v1595, %v1677
        %1679 = vmatprep.mubr.f32.mxu0 0.0
        %1680 = vmatmul.mubr.f32.gmra.mrb[0].mxu0 %v1607
        %v1681 = vpop.f32.mrb[0].mxu0
        %v1682 = vadd.f32 %v1600, %v1681
        %v1683 = vpop.f32.mrb[0].mxu0
        %v1684 = vadd.f32 %v1600, %v1683
        %1685 = vdwg.mxu0
        %1686 = vmatprep.subr.mxu0 %v1559
        %1687 = vmatpush1.msra.mxu0 %v1558
        %1688 = vmatprep.subr.mxu0 %v1567
        %1689 = vmatpush1.msra.mxu0 %v1566
        %1690 = vmatprep.subr.mxu0 %v1575
        %1691 = vmatpush1.msra.mxu0 %v1574
        %1692 = vmatprep.subr.mxu0 %v1583
        %1693 = vmatpush1.msra.mxu0 %v1582
        %1694 = vmatprep.subr.mxu0 0.0
        %1695 = vmatpush1.msra.mxu0 0.0
        %1696 = vmatprep.subr.mxu0 0.0
        %1697 = vmatpush1.msra.mxu0 0.0
        %1698 = vmatprep.subr.mxu0 0.0
        %1699 = vmatpush1.msra.mxu0 0.0
        %1700 = vmatprep.subr.mxu0 0.0
        %1701 = vmatpush1.msra.mxu0 0.0
        %1702 = vmatprep.subr.mxu0 0.0
        %1703 = vmatpush1.msra.mxu0 0.0
        %1704 = vmatprep.subr.mxu0 0.0
        %1705 = vmatpush1.msra.mxu0 0.0
        %1706 = vmatprep.subr.mxu0 0.0
        %1707 = vmatpush1.msra.mxu0 0.0
        %1708 = vmatprep.subr.mxu0 0.0
        %1709 = vmatpush1.msra.mxu0 0.0
        %1710 = vmatprep.subr.mxu0 0.0
        %1711 = vmatpush1.msra.mxu0 0.0
        %1712 = vmatprep.subr.mxu0 0.0
        %1713 = vmatpush1.msra.mxu0 0.0
        %1714 = vmatprep.subr.mxu0 0.0
        %1715 = vmatpush1.msra.mxu0 0.0
        %1716 = vmatprep.subr.mxu0 0.0
        %1717 = vmatpush1.msra.mxu0 0.0
        %1718 = vmatprep.subr.mxu0 0.0
        %1719 = vmatpush1.msra.mxu0 0.0
        %1720 = vmatprep.subr.mxu0 0.0
        %1721 = vmatpush1.msra.mxu0 0.0
        %1722 = vmatprep.subr.mxu0 0.0
        %1723 = vmatpush1.msra.mxu0 0.0
        %1724 = vmatprep.subr.mxu0 0.0
        %1725 = vmatpush1.msra.mxu0 0.0
        %1726 = vmatprep.subr.mxu0 0.0
        %1727 = vmatpush1.msra.mxu0 0.0
        %1728 = vmatprep.subr.mxu0 0.0
        %1729 = vmatpush1.msra.mxu0 0.0
        %1730 = vmatprep.subr.mxu0 0.0
        %1731 = vmatpush1.msra.mxu0 0.0
        %1732 = vmatprep.subr.mxu0 0.0
        %1733 = vmatpush1.msra.mxu0 0.0
        %1734 = vmatprep.subr.mxu0 0.0
        %1735 = vmatpush1.msra.mxu0 0.0
        %1736 = vmatprep.subr.mxu0 0.0
        %1737 = vmatpush1.msra.mxu0 0.0
        %1738 = vmatprep.subr.mxu0 0.0
        %1739 = vmatpush1.msra.mxu0 0.0
        %1740 = vmatprep.subr.mxu0 0.0
        %1741 = vmatpush1.msra.mxu0 0.0
        %1742 = vmatprep.subr.mxu0 0.0
        %1743 = vmatpush1.msra.mxu0 0.0
        %1744 = vmatprep.subr.mxu0 0.0
        %1745 = vmatpush1.msra.mxu0 0.0
        %1746 = vmatprep.subr.mxu0 0.0
        %1747 = vmatpush1.msra.mxu0 0.0
        %1748 = vmatprep.subr.mxu0 0.0
        %1749 = vmatpush1.msra.mxu0 0.0
        %1750 = vmatprep.mubr.f32.mxu0 0.0
        %1751 = vmatmul.mubr.f32.gmra.mrb[0].mxu0 %v1604
        %v1752 = vpop.f32.mrb[0].mxu0
        %v1753 = vadd.f32 %v1595, %v1752
        %v1754 = vpop.f32.mrb[0].mxu0
        %v1755 = vadd.f32 %v1595, %v1754
        %1756 = vmatprep.mubr.f32.mxu0 0.0
        %1757 = vmatmul.mubr.f32.gmra.mrb[0].mxu0 %v1607
        %v1758 = vpop.f32.mrb[0].mxu0
        %v1759 = vadd.f32 %v1600, %v1758
        %v1760 = vpop.f32.mrb[0].mxu0
        %v1761 = vadd.f32 %v1600, %v1760
        %1762 = vdwg.mxu0
        %1763 = vmatprep.subr.mxu0 %v1561
        %1764 = vmatpush1.msra.mxu0 %v1560
        %1765 = vmatprep.subr.mxu0 %v1569
        %1766 = vmatpush1.msra.mxu0 %v1568
        %1767 = vmatprep.subr.mxu0 %v1577
        %1768 = vmatpush1.msra.mxu0 %v1576
        %1769 = vmatprep.subr.mxu0 %v1585
        %1770 = vmatpush1.msra.mxu0 %v1584
        %1771 = vmatprep.subr.mxu0 0.0
        %1772 = vmatpush1.msra.mxu0 0.0
        %1773 = vmatprep.subr.mxu0 0.0
        %1774 = vmatpush1.msra.mxu0 0.0
        %1775 = vmatprep.subr.mxu0 0.0
        %1776 = vmatpush1.msra.mxu0 0.0
        %1777 = vmatprep.subr.mxu0 0.0
        %1778 = vmatpush1.msra.mxu0 0.0
        %1779 = vmatprep.subr.mxu0 0.0
        %1780 = vmatpush1.msra.mxu0 0.0
        %1781 = vmatprep.subr.mxu0 0.0
        %1782 = vmatpush1.msra.mxu0 0.0
        %1783 = vmatprep.subr.mxu0 0.0
        %1784 = vmatpush1.msra.mxu0 0.0
        %1785 = vmatprep.subr.mxu0 0.0
        %1786 = vmatpush1.msra.mxu0 0.0
        %1787 = vmatprep.subr.mxu0 0.0
        %1788 = vmatpush1.msra.mxu0 0.0
        %1789 = vmatprep.subr.mxu0 0.0
        %1790 = vmatpush1.msra.mxu0 0.0
        %1791 = vmatprep.subr.mxu0 0.0
        %1792 = vmatpush1.msra.mxu0 0.0
        %1793 = vmatprep.subr.mxu0 0.0
        %1794 = vmatpush1.msra.mxu0 0.0
        %1795 = vmatprep.subr.mxu0 0.0
        %1796 = vmatpush1.msra.mxu0 0.0
        %1797 = vmatprep.subr.mxu0 0.0
        %1798 = vmatpush1.msra.mxu0 0.0
        %1799 = vmatprep.subr.mxu0 0.0
        %1800 = vmatpush1.msra.mxu0 0.0
        %1801 = vmatprep.subr.mxu0 0.0
        %1802 = vmatpush1.msra.mxu0 0.0
        %1803 = vmatprep.subr.mxu0 0.0
        %1804 = vmatpush1.msra.mxu0 0.0
        %1805 = vmatprep.subr.mxu0 0.0
        %1806 = vmatpush1.msra.mxu0 0.0
        %1807 = vmatprep.subr.mxu0 0.0
        %1808 = vmatpush1.msra.mxu0 0.0
        %1809 = vmatprep.subr.mxu0 0.0
        %1810 = vmatpush1.msra.mxu0 0.0
        %1811 = vmatprep.subr.mxu0 0.0
        %1812 = vmatpush1.msra.mxu0 0.0
        %1813 = vmatprep.subr.mxu0 0.0
        %1814 = vmatpush1.msra.mxu0 0.0
        %1815 = vmatprep.subr.mxu0 0.0
        %1816 = vmatpush1.msra.mxu0 0.0
        %1817 = vmatprep.subr.mxu0 0.0
        %1818 = vmatpush1.msra.mxu0 0.0
        %1819 = vmatprep.subr.mxu0 0.0
        %1820 = vmatpush1.msra.mxu0 0.0
        %1821 = vmatprep.subr.mxu0 0.0
        %1822 = vmatpush1.msra.mxu0 0.0
        %1823 = vmatprep.subr.mxu0 0.0
        %1824 = vmatpush1.msra.mxu0 0.0
        %1825 = vmatprep.subr.mxu0 0.0
        %1826 = vmatpush1.msra.mxu0 0.0
        %1827 = vmatprep.mubr.f32.mxu0 0.0
        %1828 = vmatmul.mubr.f32.gmra.mrb[0].mxu0 %v1604
        %v1829 = vpop.f32.mrb[0].mxu0
        %v1830 = vadd.f32 %v1595, %v1829
        %v1831 = vpop.f32.mrb[0].mxu0
        %v1832 = vadd.f32 %v1595, %v1831
        %1833 = vmatprep.mubr.f32.mxu0 0.0
        %1834 = vmatmul.mubr.f32.gmra.mrb[0].mxu0 %v1607
        %v1835 = vpop.f32.mrb[0].mxu0
        %v1836 = vadd.f32 %v1600, %v1835
        %v1837 = vpop.f32.mrb[0].mxu0
        %v1838 = vadd.f32 %v1600, %v1837
        %1839 = vdwg.mxu0
        %1840 = vmatprep.subr.mxu0 %v1563
        %1841 = vmatpush1.msra.mxu0 %v1562
        %1842 = vmatprep.subr.mxu0 %v1571
        %1843 = vmatpush1.msra.mxu0 %v1570
        %1844 = vmatprep.subr.mxu0 %v1579
        %1845 = vmatpush1.msra.mxu0 %v1578
        %1846 = vmatprep.subr.mxu0 %v1587
        %1847 = vmatpush1.msra.mxu0 %v1586
        %1848 = vmatprep.subr.mxu0 0.0
        %1849 = vmatpush1.msra.mxu0 0.0
        %1850 = vmatprep.subr.mxu0 0.0
        %1851 = vmatpush1.msra.mxu0 0.0
        %1852 = vmatprep.subr.mxu0 0.0
        %1853 = vmatpush1.msra.mxu0 0.0
        %1854 = vmatprep.subr.mxu0 0.0
        %1855 = vmatpush1.msra.mxu0 0.0
        %1856 = vmatprep.subr.mxu0 0.0
        %1857 = vmatpush1.msra.mxu0 0.0
        %1858 = vmatprep.subr.mxu0 0.0
        %1859 = vmatpush1.msra.mxu0 0.0
        %1860 = vmatprep.subr.mxu0 0.0
        %1861 = vmatpush1.msra.mxu0 0.0
        %1862 = vmatprep.subr.mxu0 0.0
        %1863 = vmatpush1.msra.mxu0 0.0
        %1864 = vmatprep.subr.mxu0 0.0
        %1865 = vmatpush1.msra.mxu0 0.0
        %1866 = vmatprep.subr.mxu0 0.0
        %1867 = vmatpush1.msra.mxu0 0.0
        %1868 = vmatprep.subr.mxu0 0.0
        %1869 = vmatpush1.msra.mxu0 0.0
        %1870 = vmatprep.subr.mxu0 0.0
        %1871 = vmatpush1.msra.mxu0 0.0
        %1872 = vmatprep.subr.mxu0 0.0
        %1873 = vmatpush1.msra.mxu0 0.0
        %1874 = vmatprep.subr.mxu0 0.0
        %1875 = vmatpush1.msra.mxu0 0.0
        %1876 = vmatprep.subr.mxu0 0.0
        %1877 = vmatpush1.msra.mxu0 0.0
        %1878 = vmatprep.subr.mxu0 0.0
        %1879 = vmatpush1.msra.mxu0 0.0
        %1880 = vmatprep.subr.mxu0 0.0
        %1881 = vmatpush1.msra.mxu0 0.0
        %1882 = vmatprep.subr.mxu0 0.0
        %1883 = vmatpush1.msra.mxu0 0.0
        %1884 = vmatprep.subr.mxu0 0.0
        %1885 = vmatpush1.msra.mxu0 0.0
        %1886 = vmatprep.subr.mxu0 0.0
        %1887 = vmatpush1.msra.mxu0 0.0
        %1888 = vmatprep.subr.mxu0 0.0
        %1889 = vmatpush1.msra.mxu0 0.0
        %1890 = vmatprep.subr.mxu0 0.0
        %1891 = vmatpush1.msra.mxu0 0.0
        %1892 = vmatprep.subr.mxu0 0.0
        %1893 = vmatpush1.msra.mxu0 0.0
        %1894 = vmatprep.subr.mxu0 0.0
        %1895 = vmatpush1.msra.mxu0 0.0
        %1896 = vmatprep.subr.mxu0 0.0
        %1897 = vmatpush1.msra.mxu0 0.0
        %1898 = vmatprep.subr.mxu0 0.0
        %1899 = vmatpush1.msra.mxu0 0.0
        %1900 = vmatprep.subr.mxu0 0.0
        %1901 = vmatpush1.msra.mxu0 0.0
        %1902 = vmatprep.subr.mxu0 0.0
        %1903 = vmatpush1.msra.mxu0 0.0
        %1904 = vmatprep.mubr.f32.mxu0 0.0
        %1905 = vmatmul.mubr.f32.gmra.mrb[0].mxu0 %v1604
        %v1906 = vpop.f32.mrb[0].mxu0
        %v1907 = vadd.f32 %v1595, %v1906
        %v1908 = vpop.f32.mrb[0].mxu0
        %v1909 = vadd.f32 %v1595, %v1908
        %1910 = vmatprep.mubr.f32.mxu0 0.0
        %1911 = vmatmul.mubr.f32.gmra.mrb[0].mxu0 %v1607
        %v1912 = vpop.f32.mrb[0].mxu0
        %v1913 = vadd.f32 %v1600, %v1912
        %v1914 = vpop.f32.mrb[0].mxu0
        %v1915 = vadd.f32 %v1600, %v1914
        %1916 = vdwg.mxu0
        %v1917 = vld [vmem:[%s13] sm:$0xff]
        %v1918 = vld [vmem:[%s13 + $0x8] sm:$0xff]
        %v1919 = vld [vmem:[%s13 + $0x10] sm:$0xff]
        %v1920 = vld [vmem:[%s13 + $0x18] sm:$0xff]
        %v1921 = vadd.f32 %v1676, %v1678
        %v1922 = vadd.f32 %v1682, %v1684
        %v1923 = vadd.f32 %v1921, %v1753
        %v1924 = vadd.f32 %v1922, %v1759
        %v1925 = vadd.f32 %v1923, %v1755
        %v1926 = vadd.f32 %v1924, %v1761
        %v1927 = vadd.f32 %v1925, %v1830
        %v1928 = vadd.f32 %v1926, %v1836
        %v1929 = vadd.f32 %v1927, %v1832
        %v1930 = vadd.f32 %v1928, %v1838
        %v1931 = vadd.f32 %v1929, %v1907
        %v1932 = vadd.f32 %v1930, %v1913
        %v1933 = vadd.f32 %v1931, %v1909
        %v1934 = vadd.f32 %v1932, %v1915
        %v1935 = vmul.f32 %v1933, 0.125
        %v1936 = vmul.f32 %v1934, 0.125
        %v1937 = vld [vmem:[%s15] sm:$0xff]
        %v1938 = vld [vmem:[%s15 + $0x8] sm:$0xff]
        %v1939 = vld [vmem:[%s15 + $0x10] sm:$0xff]
        %v1940 = vld [vmem:[%s15 + $0x18] sm:$0xff]
        %vm1941 = vcmask 23552
        %v1943 = vsel %vm1941, %v1937, 0
        %v1946 = vsel %vm1941, %v1938, 0
        %v1949 = vsel %vm1941, %v1939, 0
        %v1952 = vsel %vm1941, %v1940, 0
        %vm1954 = vcmask 1042432
        %v1956 = vsel %vm1954, %v1150, 0
        %1958 = vmatprep.subr.mxu0 0.0
        %1959 = vmatpush1.msra.mxu0 %v1956
        %1960 = vmatprep.subr.mxu0 0.0
        %1961 = vmatpush1.msra.mxu0 0.0
        %1962 = vmatprep.subr.mxu0 0.0
        %1963 = vmatpush1.msra.mxu0 0.0
        %1964 = vmatprep.subr.mxu0 0.0
        %1965 = vmatpush1.msra.mxu0 0.0
        %1966 = vmatprep.subr.mxu0 0.0
        %1967 = vmatpush1.msra.mxu0 0.0
        %1968 = vmatprep.subr.mxu0 0.0
        %1969 = vmatpush1.msra.mxu0 0.0
        %1970 = vmatprep.subr.mxu0 0.0
        %1971 = vmatpush1.msra.mxu0 0.0
        %1972 = vmatprep.subr.mxu0 0.0
        %1973 = vmatpush1.msra.mxu0 0.0
        %1974 = vmatprep.subr.mxu0 0.0
        %1975 = vmatpush1.msra.mxu0 0.0
        %1976 = vmatprep.subr.mxu0 0.0
        %1977 = vmatpush1.msra.mxu0 0.0
        %1978 = vmatprep.subr.mxu0 0.0
        %1979 = vmatpush1.msra.mxu0 0.0
        %1980 = vmatprep.subr.mxu0 0.0
        %1981 = vmatpush1.msra.mxu0 0.0
        %1982 = vmatprep.subr.mxu0 0.0
        %1983 = vmatpush1.msra.mxu0 0.0
        %1984 = vmatprep.subr.mxu0 0.0
        %1985 = vmatpush1.msra.mxu0 0.0
        %1986 = vmatprep.subr.mxu0 0.0
        %1987 = vmatpush1.msra.mxu0 0.0
        %1988 = vmatprep.subr.mxu0 0.0
        %1989 = vmatpush1.msra.mxu0 0.0
        %1990 = vmatprep.subr.mxu0 0.0
        %1991 = vmatpush1.msra.mxu0 0.0
        %1992 = vmatprep.subr.mxu0 0.0
        %1993 = vmatpush1.msra.mxu0 0.0
        %1994 = vmatprep.subr.mxu0 0.0
        %1995 = vmatpush1.msra.mxu0 0.0
        %1996 = vmatprep.subr.mxu0 0.0
        %1997 = vmatpush1.msra.mxu0 0.0
        %1998 = vmatprep.subr.mxu0 0.0
        %1999 = vmatpush1.msra.mxu0 0.0
        %2000 = vmatprep.subr.mxu0 0.0
        %2001 = vmatpush1.msra.mxu0 0.0
        %2002 = vmatprep.subr.mxu0 0.0
        %2003 = vmatpush1.msra.mxu0 0.0
        %2004 = vmatprep.subr.mxu0 0.0
        %2005 = vmatpush1.msra.mxu0 0.0
        %2006 = vmatprep.subr.mxu0 0.0
        %2007 = vmatpush1.msra.mxu0 0.0
        %2008 = vmatprep.subr.mxu0 0.0
        %2009 = vmatpush1.msra.mxu0 0.0
        %2010 = vmatprep.subr.mxu0 0.0
        %2011 = vmatpush1.msra.mxu0 0.0
        %2012 = vmatprep.subr.mxu0 0.0
        %2013 = vmatpush1.msra.mxu0 0.0
        %2014 = vmatprep.subr.mxu0 0.0
        %2015 = vmatpush1.msra.mxu0 0.0
        %2016 = vmatprep.subr.mxu0 0.0
        %2017 = vmatpush1.msra.mxu0 0.0
        %2018 = vmatprep.subr.mxu0 0.0
        %2019 = vmatpush1.msra.mxu0 0.0
        %2020 = vmatprep.subr.mxu0 0.0
        %2021 = vmatpush1.msra.mxu0 0.0
        %2022 = vmatprep.mubr.f32.mxu0 0.0
        %2023 = vmatmul.mubr.f32.gmra.mrb[0].mxu0 %v1943
        %v2024 = vpop.f32.mrb[0].mxu0
        %v2025 = vadd.f32 0.0, %v2024
        %v2026 = vpop.f32.mrb[0].mxu0
        %2027 = vmatprep.mubr.f32.mxu0 0.0
        %2028 = vmatmul.mubr.f32.gmra.mrb[0].mxu0 %v1946
        %v2029 = vpop.f32.mrb[0].mxu0
        %v2030 = vadd.f32 0.0, %v2029
        %v2031 = vpop.f32.mrb[0].mxu0
        %2032 = vmatprep.mubr.f32.mxu0 0.0
        %2033 = vmatmul.mubr.f32.gmra.mrb[0].mxu0 %v1949
        %v2034 = vpop.f32.mrb[0].mxu0
        %v2035 = vadd.f32 0.0, %v2034
        %v2036 = vpop.f32.mrb[0].mxu0
        %2037 = vmatprep.mubr.f32.mxu0 0.0
        %2038 = vmatmul.mubr.f32.gmra.mrb[0].mxu0 %v1952
        %v2039 = vpop.f32.mrb[0].mxu0
        %v2040 = vadd.f32 0.0, %v2039
        %v2041 = vpop.f32.mrb[0].mxu0
        %2042 = vdwg.mxu0
        %vm2043 = vcmask 130048
        %v2045 = vsel %vm2043, %v1917, 0
        %v2048 = vsel %vm2043, %v1918, 0
        %v2051 = vsel %vm2043, %v1919, 0
        %v2054 = vsel %vm2043, %v1920, 0
        %2056 = vmatprep.subr.mxu0 0.0
        %2057 = vmatpush1.msra.mxu0 %v1935
        %2058 = vmatprep.subr.mxu0 0.0
        %2059 = vmatpush1.msra.mxu0 %v1936
        %2060 = vmatprep.subr.mxu0 0.0
        %2061 = vmatpush1.msra.mxu0 0.0
        %2062 = vmatprep.subr.mxu0 0.0
        %2063 = vmatpush1.msra.mxu0 0.0
        %2064 = vmatprep.subr.mxu0 0.0
        %2065 = vmatpush1.msra.mxu0 0.0
        %2066 = vmatprep.subr.mxu0 0.0
        %2067 = vmatpush1.msra.mxu0 0.0
        %2068 = vmatprep.subr.mxu0 0.0
        %2069 = vmatpush1.msra.mxu0 0.0
        %2070 = vmatprep.subr.mxu0 0.0
        %2071 = vmatpush1.msra.mxu0 0.0
        %2072 = vmatprep.subr.mxu0 0.0
        %2073 = vmatpush1.msra.mxu0 0.0
        %2074 = vmatprep.subr.mxu0 0.0
        %2075 = vmatpush1.msra.mxu0 0.0
        %2076 = vmatprep.subr.mxu0 0.0
        %2077 = vmatpush1.msra.mxu0 0.0
        %2078 = vmatprep.subr.mxu0 0.0
        %2079 = vmatpush1.msra.mxu0 0.0
        %2080 = vmatprep.subr.mxu0 0.0
        %2081 = vmatpush1.msra.mxu0 0.0
        %2082 = vmatprep.subr.mxu0 0.0
        %2083 = vmatpush1.msra.mxu0 0.0
        %2084 = vmatprep.subr.mxu0 0.0
        %2085 = vmatpush1.msra.mxu0 0.0
        %2086 = vmatprep.subr.mxu0 0.0
        %2087 = vmatpush1.msra.mxu0 0.0
        %2088 = vmatprep.subr.mxu0 0.0
        %2089 = vmatpush1.msra.mxu0 0.0
        %2090 = vmatprep.subr.mxu0 0.0
        %2091 = vmatpush1.msra.mxu0 0.0
        %2092 = vmatprep.subr.mxu0 0.0
        %2093 = vmatpush1.msra.mxu0 0.0
        %2094 = vmatprep.subr.mxu0 0.0
        %2095 = vmatpush1.msra.mxu0 0.0
        %2096 = vmatprep.subr.mxu0 0.0
        %2097 = vmatpush1.msra.mxu0 0.0
        %2098 = vmatprep.subr.mxu0 0.0
        %2099 = vmatpush1.msra.mxu0 0.0
        %2100 = vmatprep.subr.mxu0 0.0
        %2101 = vmatpush1.msra.mxu0 0.0
        %2102 = vmatprep.subr.mxu0 0.0
        %2103 = vmatpush1.msra.mxu0 0.0
        %2104 = vmatprep.subr.mxu0 0.0
        %2105 = vmatpush1.msra.mxu0 0.0
        %2106 = vmatprep.subr.mxu0 0.0
        %2107 = vmatpush1.msra.mxu0 0.0
        %2108 = vmatprep.subr.mxu0 0.0
        %2109 = vmatpush1.msra.mxu0 0.0
        %2110 = vmatprep.subr.mxu0 0.0
        %2111 = vmatpush1.msra.mxu0 0.0
        %2112 = vmatprep.subr.mxu0 0.0
        %2113 = vmatpush1.msra.mxu0 0.0
        %2114 = vmatprep.subr.mxu0 0.0
        %2115 = vmatpush1.msra.mxu0 0.0
        %2116 = vmatprep.subr.mxu0 0.0
        %2117 = vmatpush1.msra.mxu0 0.0
        %2118 = vmatprep.subr.mxu0 0.0
        %2119 = vmatpush1.msra.mxu0 0.0
        %2120 = vmatprep.mubr.f32.mxu0 0.0
        %2121 = vmatmul.mubr.f32.gmra.mrb[0].mxu0 %v2045
        %v2122 = vpop.f32.mrb[0].mxu0
        %v2123 = vadd.f32 %v2025, %v2122
        %v2124 = vpop.f32.mrb[0].mxu0
        %2125 = vmatprep.mubr.f32.mxu0 0.0
        %2126 = vmatmul.mubr.f32.gmra.mrb[0].mxu0 %v2048
        %v2127 = vpop.f32.mrb[0].mxu0
        %v2128 = vadd.f32 %v2030, %v2127
        %v2129 = vpop.f32.mrb[0].mxu0
        %2130 = vmatprep.mubr.f32.mxu0 0.0
        %2131 = vmatmul.mubr.f32.gmra.mrb[0].mxu0 %v2051
        %v2132 = vpop.f32.mrb[0].mxu0
        %v2133 = vadd.f32 %v2035, %v2132
        %v2134 = vpop.f32.mrb[0].mxu0
        %2135 = vmatprep.mubr.f32.mxu0 0.0
        %2136 = vmatmul.mubr.f32.gmra.mrb[0].mxu0 %v2054
        %v2137 = vpop.f32.mrb[0].mxu0
        %v2138 = vadd.f32 %v2040, %v2137
        %v2139 = vpop.f32.mrb[0].mxu0
        %2140 = vdwg.mxu0
        %v2141 = vld [vmem:[%s17] sm:$0xff]
        %v2142 = vld [vmem:[%s17 + $0x8] sm:$0xff]
        %v2143 = vld [vmem:[%s17 + $0x10] sm:$0xff]
        %v2144 = vld [vmem:[%s17 + $0x18] sm:$0xff]
        %2146 = vset.pattern.permute.xlu0 0
        %2147 = vperm.xlu0 %2146, %v2141
        %v2148 = vpop.permute.xlu0 %2147
        %2151 = vset.pattern.permute.xlu0 0
        %2152 = vperm.xlu0 %2151, %v2142
        %v2153 = vpop.permute.xlu0 %2152
        %2156 = vset.pattern.permute.xlu0 0
        %2157 = vperm.xlu0 %2156, %v2143
        %v2158 = vpop.permute.xlu0 %2157
        %2161 = vset.pattern.permute.xlu0 0
        %2162 = vperm.xlu0 %2161, %v2144
        %v2163 = vpop.permute.xlu0 %2162
        %v2165 = vadd.f32 %v2123, %v2148
        %v2166 = vadd.f32 %v2128, %v2153
        %v2167 = vadd.f32 %v2133, %v2158
        %v2168 = vadd.f32 %v2138, %v2163
        %v2169 = vmax.f32 %v2165, 0.0
        %v2170 = vmax.f32 %v2166, 0.0
        %v2171 = vmax.f32 %v2167, 0.0
        %v2172 = vmax.f32 %v2168, 0.0
        %v2173 = vld [vmem:[%s19] sm:$0xff]
        %v2174 = vld [vmem:[%s21] sm:$0xff]
        %2176 = vset.pattern.permute.xlu0 0
        %2177 = vperm.xlu0 %2176, %v2174
        %v2178 = vpop.permute.xlu0 %2177
        %v2181 = vsel %vm1602, %v2173, 0
        %2183 = vmatprep.subr.mxu0 0.0
        %2184 = vmatpush1.msra.mxu0 %v2169
        %2185 = vmatprep.subr.mxu0 0.0
        %2186 = vmatpush1.msra.mxu0 %v2170
        %2187 = vmatprep.subr.mxu0 0.0
        %2188 = vmatpush1.msra.mxu0 %v2171
        %2189 = vmatprep.subr.mxu0 0.0
        %2190 = vmatpush1.msra.mxu0 %v2172
        %2191 = vmatprep.subr.mxu0 0.0
        %2192 = vmatpush1.msra.mxu0 0.0
        %2193 = vmatprep.subr.mxu0 0.0
        %2194 = vmatpush1.msra.mxu0 0.0
        %2195 = vmatprep.subr.mxu0 0.0
        %2196 = vmatpush1.msra.mxu0 0.0
        %2197 = vmatprep.subr.mxu0 0.0
        %2198 = vmatpush1.msra.mxu0 0.0
        %2199 = vmatprep.subr.mxu0 0.0
        %2200 = vmatpush1.msra.mxu0 0.0
        %2201 = vmatprep.subr.mxu0 0.0
        %2202 = vmatpush1.msra.mxu0 0.0
        %2203 = vmatprep.subr.mxu0 0.0
        %2204 = vmatpush1.msra.mxu0 0.0
        %2205 = vmatprep.subr.mxu0 0.0
        %2206 = vmatpush1.msra.mxu0 0.0
        %2207 = vmatprep.subr.mxu0 0.0
        %2208 = vmatpush1.msra.mxu0 0.0
        %2209 = vmatprep.subr.mxu0 0.0
        %2210 = vmatpush1.msra.mxu0 0.0
        %2211 = vmatprep.subr.mxu0 0.0
        %2212 = vmatpush1.msra.mxu0 0.0
        %2213 = vmatprep.subr.mxu0 0.0
        %2214 = vmatpush1.msra.mxu0 0.0
        %2215 = vmatprep.subr.mxu0 0.0
        %2216 = vmatpush1.msra.mxu0 0.0
        %2217 = vmatprep.subr.mxu0 0.0
        %2218 = vmatpush1.msra.mxu0 0.0
        %2219 = vmatprep.subr.mxu0 0.0
        %2220 = vmatpush1.msra.mxu0 0.0
        %2221 = vmatprep.subr.mxu0 0.0
        %2222 = vmatpush1.msra.mxu0 0.0
        %2223 = vmatprep.subr.mxu0 0.0
        %2224 = vmatpush1.msra.mxu0 0.0
        %2225 = vmatprep.subr.mxu0 0.0
        %2226 = vmatpush1.msra.mxu0 0.0
        %2227 = vmatprep.subr.mxu0 0.0
        %2228 = vmatpush1.msra.mxu0 0.0
        %2229 = vmatprep.subr.mxu0 0.0
        %2230 = vmatpush1.msra.mxu0 0.0
        %2231 = vmatprep.subr.mxu0 0.0
        %2232 = vmatpush1.msra.mxu0 0.0
        %2233 = vmatprep.subr.mxu0 0.0
        %2234 = vmatpush1.msra.mxu0 0.0
        %2235 = vmatprep.subr.mxu0 0.0
        %2236 = vmatpush1.msra.mxu0 0.0
        %2237 = vmatprep.subr.mxu0 0.0
        %2238 = vmatpush1.msra.mxu0 0.0
        %2239 = vmatprep.subr.mxu0 0.0
        %2240 = vmatpush1.msra.mxu0 0.0
        %2241 = vmatprep.subr.mxu0 0.0
        %2242 = vmatpush1.msra.mxu0 0.0
        %2243 = vmatprep.subr.mxu0 0.0
        %2244 = vmatpush1.msra.mxu0 0.0
        %2245 = vmatprep.subr.mxu0 0.0
        %2246 = vmatpush1.msra.mxu0 0.0
        %2247 = vmatprep.mubr.f32.mxu0 0.0
        %2248 = vmatmul.mubr.f32.gmra.mrb[0].mxu0 %v2181
        %v2249 = vpop.f32.mrb[0].mxu0
        %v2250 = vadd.f32 %v2178, %v2249
        %v2251 = vpop.f32.mrb[0].mxu0
        %2252 = vdwg.mxu0
        %v2253 = vld [vmem:[%s25] sm:$0xff]
        %v2254 = vld [vmem:[%s25 + $0x8] sm:$0xff]
        %v2255 = vld [vmem:[%s25 + $0x10] sm:$0xff]
        %v2256 = vld [vmem:[%s25 + $0x18] sm:$0xff]
        %v2257 = vld [vmem:[%s27] sm:$0xff]
        %v2258 = vld [vmem:[%s27 + $0x8] sm:$0xff]
        %v2259 = vld [vmem:[%s27 + $0x10] sm:$0xff]
        %v2260 = vld [vmem:[%s27 + $0x18] sm:$0xff]
        %2262 = vset.pattern.permute.xlu0 0
        %2263 = vperm.xlu0 %2262, %v2257
        %v2264 = vpop.permute.xlu0 %2263
        %2267 = vset.pattern.permute.xlu0 0
        %2268 = vperm.xlu0 %2267, %v2258
        %v2269 = vpop.permute.xlu0 %2268
        %2272 = vset.pattern.permute.xlu0 0
        %2273 = vperm.xlu0 %2272, %v2259
        %v2274 = vpop.permute.xlu0 %2273
        %2277 = vset.pattern.permute.xlu0 0
        %2278 = vperm.xlu0 %2277, %v2260
        %v2279 = vpop.permute.xlu0 %2278
        %v2282 = vsel %vm1187, %v2253, 0
        %v2285 = vsel %vm1187, %v2254, 0
        %v2288 = vsel %vm1187, %v2255, 0
        %v2291 = vsel %vm1187, %v2256, 0
        %2293 = vmatprep.subr.mxu0 0.0
        %2294 = vmatpush1.msra.mxu0 %v2250
        %2295 = vmatprep.subr.mxu0 0.0
        %2296 = vmatpush1.msra.mxu0 0.0
        %2297 = vmatprep.subr.mxu0 0.0
        %2298 = vmatpush1.msra.mxu0 0.0
        %2299 = vmatprep.subr.mxu0 0.0
        %2300 = vmatpush1.msra.mxu0 0.0
        %2301 = vmatprep.subr.mxu0 0.0
        %2302 = vmatpush1.msra.mxu0 0.0
        %2303 = vmatprep.subr.mxu0 0.0
        %2304 = vmatpush1.msra.mxu0 0.0
        %2305 = vmatprep.subr.mxu0 0.0
        %2306 = vmatpush1.msra.mxu0 0.0
        %2307 = vmatprep.subr.mxu0 0.0
        %2308 = vmatpush1.msra.mxu0 0.0
        %2309 = vmatprep.subr.mxu0 0.0
        %2310 = vmatpush1.msra.mxu0 0.0
        %2311 = vmatprep.subr.mxu0 0.0
        %2312 = vmatpush1.msra.mxu0 0.0
        %2313 = vmatprep.subr.mxu0 0.0
        %2314 = vmatpush1.msra.mxu0 0.0
        %2315 = vmatprep.subr.mxu0 0.0
        %2316 = vmatpush1.msra.mxu0 0.0
        %2317 = vmatprep.subr.mxu0 0.0
        %2318 = vmatpush1.msra.mxu0 0.0
        %2319 = vmatprep.subr.mxu0 0.0
        %2320 = vmatpush1.msra.mxu0 0.0
        %2321 = vmatprep.subr.mxu0 0.0
        %2322 = vmatpush1.msra.mxu0 0.0
        %2323 = vmatprep.subr.mxu0 0.0
        %2324 = vmatpush1.msra.mxu0 0.0
        %2325 = vmatprep.subr.mxu0 0.0
        %2326 = vmatpush1.msra.mxu0 0.0
        %2327 = vmatprep.subr.mxu0 0.0
        %2328 = vmatpush1.msra.mxu0 0.0
        %2329 = vmatprep.subr.mxu0 0.0
        %2330 = vmatpush1.msra.mxu0 0.0
        %2331 = vmatprep.subr.mxu0 0.0
        %2332 = vmatpush1.msra.mxu0 0.0
        %2333 = vmatprep.subr.mxu0 0.0
        %2334 = vmatpush1.msra.mxu0 0.0
        %2335 = vmatprep.subr.mxu0 0.0
        %2336 = vmatpush1.msra.mxu0 0.0
        %2337 = vmatprep.subr.mxu0 0.0
        %2338 = vmatpush1.msra.mxu0 0.0
        %2339 = vmatprep.subr.mxu0 0.0
        %2340 = vmatpush1.msra.mxu0 0.0
        %2341 = vmatprep.subr.mxu0 0.0
        %2342 = vmatpush1.msra.mxu0 0.0
        %2343 = vmatprep.subr.mxu0 0.0
        %2344 = vmatpush1.msra.mxu0 0.0
        %2345 = vmatprep.subr.mxu0 0.0
        %2346 = vmatpush1.msra.mxu0 0.0
        %2347 = vmatprep.subr.mxu0 0.0
        %2348 = vmatpush1.msra.mxu0 0.0
        %2349 = vmatprep.subr.mxu0 0.0
        %2350 = vmatpush1.msra.mxu0 0.0
        %2351 = vmatprep.subr.mxu0 0.0
        %2352 = vmatpush1.msra.mxu0 0.0
        %2353 = vmatprep.subr.mxu0 0.0
        %2354 = vmatpush1.msra.mxu0 0.0
        %2355 = vmatprep.subr.mxu0 0.0
        %2356 = vmatpush1.msra.mxu0 0.0
        %2357 = vmatprep.mubr.f32.mxu0 0.0
        %2358 = vmatmul.mubr.f32.gmra.mrb[0].mxu0 %v2282
        %v2359 = vpop.f32.mrb[0].mxu0
        %v2360 = vadd.f32 %v2264, %v2359
        %v2361 = vpop.f32.mrb[0].mxu0
        %2362 = vmatprep.mubr.f32.mxu0 0.0
        %2363 = vmatmul.mubr.f32.gmra.mrb[0].mxu0 %v2285
        %v2364 = vpop.f32.mrb[0].mxu0
        %v2365 = vadd.f32 %v2269, %v2364
        %v2366 = vpop.f32.mrb[0].mxu0
        %2367 = vmatprep.mubr.f32.mxu0 0.0
        %2368 = vmatmul.mubr.f32.gmra.mrb[0].mxu0 %v2288
        %v2369 = vpop.f32.mrb[0].mxu0
        %v2370 = vadd.f32 %v2274, %v2369
        %v2371 = vpop.f32.mrb[0].mxu0
        %2372 = vmatprep.mubr.f32.mxu0 0.0
        %2373 = vmatmul.mubr.f32.gmra.mrb[0].mxu0 %v2291
        %v2374 = vpop.f32.mrb[0].mxu0
        %v2375 = vadd.f32 %v2279, %v2374
        %v2376 = vpop.f32.mrb[0].mxu0
        %2377 = vdwg.mxu0
        %v2378 = vld [vmem:[%s23] sm:$0xff]
        %v2379 = vld [vmem:[%s23 + $0x8] sm:$0xff]
        %v2380 = vld [vmem:[%s23 + $0x10] sm:$0xff]
        %v2381 = vld [vmem:[%s23 + $0x18] sm:$0xff]
        %v2383 = vsel %vm2043, %v2378, 0
        %v2386 = vsel %vm2043, %v2379, 0
        %v2389 = vsel %vm2043, %v2380, 0
        %v2392 = vsel %vm2043, %v2381, 0
        %2394 = vmatprep.subr.mxu0 %v1678
        %2395 = vmatpush1.msra.mxu0 %v1676
        %2396 = vmatprep.subr.mxu0 %v1684
        %2397 = vmatpush1.msra.mxu0 %v1682
        %2398 = vmatprep.subr.mxu0 0.0
        %2399 = vmatpush1.msra.mxu0 0.0
        %2400 = vmatprep.subr.mxu0 0.0
        %2401 = vmatpush1.msra.mxu0 0.0
        %2402 = vmatprep.subr.mxu0 0.0
        %2403 = vmatpush1.msra.mxu0 0.0
        %2404 = vmatprep.subr.mxu0 0.0
        %2405 = vmatpush1.msra.mxu0 0.0
        %2406 = vmatprep.subr.mxu0 0.0
        %2407 = vmatpush1.msra.mxu0 0.0
        %2408 = vmatprep.subr.mxu0 0.0
        %2409 = vmatpush1.msra.mxu0 0.0
        %2410 = vmatprep.subr.mxu0 0.0
        %2411 = vmatpush1.msra.mxu0 0.0
        %2412 = vmatprep.subr.mxu0 0.0
        %2413 = vmatpush1.msra.mxu0 0.0
        %2414 = vmatprep.subr.mxu0 0.0
        %2415 = vmatpush1.msra.mxu0 0.0
        %2416 = vmatprep.subr.mxu0 0.0
        %2417 = vmatpush1.msra.mxu0 0.0
        %2418 = vmatprep.subr.mxu0 0.0
        %2419 = vmatpush1.msra.mxu0 0.0
        %2420 = vmatprep.subr.mxu0 0.0
        %2421 = vmatpush1.msra.mxu0 0.0
        %2422 = vmatprep.subr.mxu0 0.0
        %2423 = vmatpush1.msra.mxu0 0.0
        %2424 = vmatprep.subr.mxu0 0.0
        %2425 = vmatpush1.msra.mxu0 0.0
        %2426 = vmatprep.subr.mxu0 0.0
        %2427 = vmatpush1.msra.mxu0 0.0
        %2428 = vmatprep.subr.mxu0 0.0
        %2429 = vmatpush1.msra.mxu0 0.0
        %2430 = vmatprep.subr.mxu0 0.0
        %2431 = vmatpush1.msra.mxu0 0.0
        %2432 = vmatprep.subr.mxu0 0.0
        %2433 = vmatpush1.msra.mxu0 0.0
        %2434 = vmatprep.subr.mxu0 0.0
        %2435 = vmatpush1.msra.mxu0 0.0
        %2436 = vmatprep.subr.mxu0 0.0
        %2437 = vmatpush1.msra.mxu0 0.0
        %2438 = vmatprep.subr.mxu0 0.0
        %2439 = vmatpush1.msra.mxu0 0.0
        %2440 = vmatprep.subr.mxu0 0.0
        %2441 = vmatpush1.msra.mxu0 0.0
        %2442 = vmatprep.subr.mxu0 0.0
        %2443 = vmatpush1.msra.mxu0 0.0
        %2444 = vmatprep.subr.mxu0 0.0
        %2445 = vmatpush1.msra.mxu0 0.0
        %2446 = vmatprep.subr.mxu0 0.0
        %2447 = vmatpush1.msra.mxu0 0.0
        %2448 = vmatprep.subr.mxu0 0.0
        %2449 = vmatpush1.msra.mxu0 0.0
        %2450 = vmatprep.subr.mxu0 0.0
        %2451 = vmatpush1.msra.mxu0 0.0
        %2452 = vmatprep.subr.mxu0 0.0
        %2453 = vmatpush1.msra.mxu0 0.0
        %2454 = vmatprep.subr.mxu0 0.0
        %2455 = vmatpush1.msra.mxu0 0.0
        %2456 = vmatprep.subr.mxu0 0.0
        %2457 = vmatpush1.msra.mxu0 0.0
        %2458 = vmatprep.mubr.f32.mxu0 0.0
        %2459 = vmatmul.mubr.f32.gmra.mrb[0].mxu0 %v2383
        %v2460 = vpop.f32.mrb[0].mxu0
        %v2461 = vadd.f32 0.0, %v2460
        %v2462 = vpop.f32.mrb[0].mxu0
        %v2463 = vadd.f32 0.0, %v2462
        %2464 = vmatprep.mubr.f32.mxu0 0.0
        %2465 = vmatmul.mubr.f32.gmra.mrb[0].mxu0 %v2386
        %v2466 = vpop.f32.mrb[0].mxu0
        %v2467 = vadd.f32 0.0, %v2466
        %v2468 = vpop.f32.mrb[0].mxu0
        %v2469 = vadd.f32 0.0, %v2468
        %2470 = vmatprep.mubr.f32.mxu0 0.0
        %2471 = vmatmul.mubr.f32.gmra.mrb[0].mxu0 %v2389
        %v2472 = vpop.f32.mrb[0].mxu0
        %v2473 = vadd.f32 0.0, %v2472
        %v2474 = vpop.f32.mrb[0].mxu0
        %v2475 = vadd.f32 0.0, %v2474
        %2476 = vmatprep.mubr.f32.mxu0 0.0
        %2477 = vmatmul.mubr.f32.gmra.mrb[0].mxu0 %v2392
        %v2478 = vpop.f32.mrb[0].mxu0
        %v2479 = vadd.f32 0.0, %v2478
        %v2480 = vpop.f32.mrb[0].mxu0
        %v2481 = vadd.f32 0.0, %v2480
        %2482 = vdwg.mxu0
        %2483 = vmatprep.subr.mxu0 %v1755
        %2484 = vmatpush1.msra.mxu0 %v1753
        %2485 = vmatprep.subr.mxu0 %v1761
        %2486 = vmatpush1.msra.mxu0 %v1759
        %2487 = vmatprep.subr.mxu0 0.0
        %2488 = vmatpush1.msra.mxu0 0.0
        %2489 = vmatprep.subr.mxu0 0.0
        %2490 = vmatpush1.msra.mxu0 0.0
        %2491 = vmatprep.subr.mxu0 0.0
        %2492 = vmatpush1.msra.mxu0 0.0
        %2493 = vmatprep.subr.mxu0 0.0
        %2494 = vmatpush1.msra.mxu0 0.0
        %2495 = vmatprep.subr.mxu0 0.0
        %2496 = vmatpush1.msra.mxu0 0.0
        %2497 = vmatprep.subr.mxu0 0.0
        %2498 = vmatpush1.msra.mxu0 0.0
        %2499 = vmatprep.subr.mxu0 0.0
        %2500 = vmatpush1.msra.mxu0 0.0
        %2501 = vmatprep.subr.mxu0 0.0
        %2502 = vmatpush1.msra.mxu0 0.0
        %2503 = vmatprep.subr.mxu0 0.0
        %2504 = vmatpush1.msra.mxu0 0.0
        %2505 = vmatprep.subr.mxu0 0.0
        %2506 = vmatpush1.msra.mxu0 0.0
        %2507 = vmatprep.subr.mxu0 0.0
        %2508 = vmatpush1.msra.mxu0 0.0
        %2509 = vmatprep.subr.mxu0 0.0
        %2510 = vmatpush1.msra.mxu0 0.0
        %2511 = vmatprep.subr.mxu0 0.0
        %2512 = vmatpush1.msra.mxu0 0.0
        %2513 = vmatprep.subr.mxu0 0.0
        %2514 = vmatpush1.msra.mxu0 0.0
        %2515 = vmatprep.subr.mxu0 0.0
        %2516 = vmatpush1.msra.mxu0 0.0
        %2517 = vmatprep.subr.mxu0 0.0
        %2518 = vmatpush1.msra.mxu0 0.0
        %2519 = vmatprep.subr.mxu0 0.0
        %2520 = vmatpush1.msra.mxu0 0.0
        %2521 = vmatprep.subr.mxu0 0.0
        %2522 = vmatpush1.msra.mxu0 0.0
        %2523 = vmatprep.subr.mxu0 0.0
        %2524 = vmatpush1.msra.mxu0 0.0
        %2525 = vmatprep.subr.mxu0 0.0
        %2526 = vmatpush1.msra.mxu0 0.0
        %2527 = vmatprep.subr.mxu0 0.0
        %2528 = vmatpush1.msra.mxu0 0.0
        %2529 = vmatprep.subr.mxu0 0.0
        %2530 = vmatpush1.msra.mxu0 0.0
        %2531 = vmatprep.subr.mxu0 0.0
        %2532 = vmatpush1.msra.mxu0 0.0
        %2533 = vmatprep.subr.mxu0 0.0
        %2534 = vmatpush1.msra.mxu0 0.0
        %2535 = vmatprep.subr.mxu0 0.0
        %2536 = vmatpush1.msra.mxu0 0.0
        %2537 = vmatprep.subr.mxu0 0.0
        %2538 = vmatpush1.msra.mxu0 0.0
        %2539 = vmatprep.subr.mxu0 0.0
        %2540 = vmatpush1.msra.mxu0 0.0
        %2541 = vmatprep.subr.mxu0 0.0
        %2542 = vmatpush1.msra.mxu0 0.0
        %2543 = vmatprep.subr.mxu0 0.0
        %2544 = vmatpush1.msra.mxu0 0.0
        %2545 = vmatprep.subr.mxu0 0.0
        %2546 = vmatpush1.msra.mxu0 0.0
        %2547 = vmatprep.mubr.f32.mxu0 0.0
        %2548 = vmatmul.mubr.f32.gmra.mrb[0].mxu0 %v2383
        %v2549 = vpop.f32.mrb[0].mxu0
        %v2550 = vadd.f32 0.0, %v2549
        %v2551 = vpop.f32.mrb[0].mxu0
        %v2552 = vadd.f32 0.0, %v2551
        %2553 = vmatprep.mubr.f32.mxu0 0.0
        %2554 = vmatmul.mubr.f32.gmra.mrb[0].mxu0 %v2386
        %v2555 = vpop.f32.mrb[0].mxu0
        %v2556 = vadd.f32 0.0, %v2555
        %v2557 = vpop.f32.mrb[0].mxu0
        %v2558 = vadd.f32 0.0, %v2557
        %2559 = vmatprep.mubr.f32.mxu0 0.0
        %2560 = vmatmul.mubr.f32.gmra.mrb[0].mxu0 %v2389
        %v2561 = vpop.f32.mrb[0].mxu0
        %v2562 = vadd.f32 0.0, %v2561
        %v2563 = vpop.f32.mrb[0].mxu0
        %v2564 = vadd.f32 0.0, %v2563
        %2565 = vmatprep.mubr.f32.mxu0 0.0
        %2566 = vmatmul.mubr.f32.gmra.mrb[0].mxu0 %v2392
        %v2567 = vpop.f32.mrb[0].mxu0
        %v2568 = vadd.f32 0.0, %v2567
        %v2569 = vpop.f32.mrb[0].mxu0
        %v2570 = vadd.f32 0.0, %v2569
        %2571 = vdwg.mxu0
        %2572 = vmatprep.subr.mxu0 %v1832
        %2573 = vmatpush1.msra.mxu0 %v1830
        %2574 = vmatprep.subr.mxu0 %v1838
        %2575 = vmatpush1.msra.mxu0 %v1836
        %2576 = vmatprep.subr.mxu0 0.0
        %2577 = vmatpush1.msra.mxu0 0.0
        %2578 = vmatprep.subr.mxu0 0.0
        %2579 = vmatpush1.msra.mxu0 0.0
        %2580 = vmatprep.subr.mxu0 0.0
        %2581 = vmatpush1.msra.mxu0 0.0
        %2582 = vmatprep.subr.mxu0 0.0
        %2583 = vmatpush1.msra.mxu0 0.0
        %2584 = vmatprep.subr.mxu0 0.0
        %2585 = vmatpush1.msra.mxu0 0.0
        %2586 = vmatprep.subr.mxu0 0.0
        %2587 = vmatpush1.msra.mxu0 0.0
        %2588 = vmatprep.subr.mxu0 0.0
        %2589 = vmatpush1.msra.mxu0 0.0
        %2590 = vmatprep.subr.mxu0 0.0
        %2591 = vmatpush1.msra.mxu0 0.0
        %2592 = vmatprep.subr.mxu0 0.0
        %2593 = vmatpush1.msra.mxu0 0.0
        %2594 = vmatprep.subr.mxu0 0.0
        %2595 = vmatpush1.msra.mxu0 0.0
        %2596 = vmatprep.subr.mxu0 0.0
        %2597 = vmatpush1.msra.mxu0 0.0
        %2598 = vmatprep.subr.mxu0 0.0
        %2599 = vmatpush1.msra.mxu0 0.0
        %2600 = vmatprep.subr.mxu0 0.0
        %2601 = vmatpush1.msra.mxu0 0.0
        %2602 = vmatprep.subr.mxu0 0.0
        %2603 = vmatpush1.msra.mxu0 0.0
        %2604 = vmatprep.subr.mxu0 0.0
        %2605 = vmatpush1.msra.mxu0 0.0
        %2606 = vmatprep.subr.mxu0 0.0
        %2607 = vmatpush1.msra.mxu0 0.0
        %2608 = vmatprep.subr.mxu0 0.0
        %2609 = vmatpush1.msra.mxu0 0.0
        %2610 = vmatprep.subr.mxu0 0.0
        %2611 = vmatpush1.msra.mxu0 0.0
        %2612 = vmatprep.subr.mxu0 0.0
        %2613 = vmatpush1.msra.mxu0 0.0
        %2614 = vmatprep.subr.mxu0 0.0
        %2615 = vmatpush1.msra.mxu0 0.0
        %2616 = vmatprep.subr.mxu0 0.0
        %2617 = vmatpush1.msra.mxu0 0.0
        %2618 = vmatprep.subr.mxu0 0.0
        %2619 = vmatpush1.msra.mxu0 0.0
        %2620 = vmatprep.subr.mxu0 0.0
        %2621 = vmatpush1.msra.mxu0 0.0
        %2622 = vmatprep.subr.mxu0 0.0
        %2623 = vmatpush1.msra.mxu0 0.0
        %2624 = vmatprep.subr.mxu0 0.0
        %2625 = vmatpush1.msra.mxu0 0.0
        %2626 = vmatprep.subr.mxu0 0.0
        %2627 = vmatpush1.msra.mxu0 0.0
        %2628 = vmatprep.subr.mxu0 0.0
        %2629 = vmatpush1.msra.mxu0 0.0
        %2630 = vmatprep.subr.mxu0 0.0
        %2631 = vmatpush1.msra.mxu0 0.0
        %2632 = vmatprep.subr.mxu0 0.0
        %2633 = vmatpush1.msra.mxu0 0.0
        %2634 = vmatprep.subr.mxu0 0.0
        %2635 = vmatpush1.msra.mxu0 0.0
        %2636 = vmatprep.mubr.f32.mxu0 0.0
        %2637 = vmatmul.mubr.f32.gmra.mrb[0].mxu0 %v2383
        %v2638 = vpop.f32.mrb[0].mxu0
        %v2639 = vadd.f32 0.0, %v2638
        %v2640 = vpop.f32.mrb[0].mxu0
        %v2641 = vadd.f32 0.0, %v2640
        %2642 = vmatprep.mubr.f32.mxu0 0.0
        %2643 = vmatmul.mubr.f32.gmra.mrb[0].mxu0 %v2386
        %v2644 = vpop.f32.mrb[0].mxu0
        %v2645 = vadd.f32 0.0, %v2644
        %v2646 = vpop.f32.mrb[0].mxu0
        %v2647 = vadd.f32 0.0, %v2646
        %2648 = vmatprep.mubr.f32.mxu0 0.0
        %2649 = vmatmul.mubr.f32.gmra.mrb[0].mxu0 %v2389
        %v2650 = vpop.f32.mrb[0].mxu0
        %v2651 = vadd.f32 0.0, %v2650
        %v2652 = vpop.f32.mrb[0].mxu0
        %v2653 = vadd.f32 0.0, %v2652
        %2654 = vmatprep.mubr.f32.mxu0 0.0
        %2655 = vmatmul.mubr.f32.gmra.mrb[0].mxu0 %v2392
        %v2656 = vpop.f32.mrb[0].mxu0
        %v2657 = vadd.f32 0.0, %v2656
        %v2658 = vpop.f32.mrb[0].mxu0
        %v2659 = vadd.f32 0.0, %v2658
        %2660 = vdwg.mxu0
        %2661 = vmatprep.subr.mxu0 %v1909
        %2662 = vmatpush1.msra.mxu0 %v1907
        %2663 = vmatprep.subr.mxu0 %v1915
        %2664 = vmatpush1.msra.mxu0 %v1913
        %2665 = vmatprep.subr.mxu0 0.0
        %2666 = vmatpush1.msra.mxu0 0.0
        %2667 = vmatprep.subr.mxu0 0.0
        %2668 = vmatpush1.msra.mxu0 0.0
        %2669 = vmatprep.subr.mxu0 0.0
        %2670 = vmatpush1.msra.mxu0 0.0
        %2671 = vmatprep.subr.mxu0 0.0
        %2672 = vmatpush1.msra.mxu0 0.0
        %2673 = vmatprep.subr.mxu0 0.0
        %2674 = vmatpush1.msra.mxu0 0.0
        %2675 = vmatprep.subr.mxu0 0.0
        %2676 = vmatpush1.msra.mxu0 0.0
        %2677 = vmatprep.subr.mxu0 0.0
        %2678 = vmatpush1.msra.mxu0 0.0
        %2679 = vmatprep.subr.mxu0 0.0
        %2680 = vmatpush1.msra.mxu0 0.0
        %2681 = vmatprep.subr.mxu0 0.0
        %2682 = vmatpush1.msra.mxu0 0.0
        %2683 = vmatprep.subr.mxu0 0.0
        %2684 = vmatpush1.msra.mxu0 0.0
        %2685 = vmatprep.subr.mxu0 0.0
        %2686 = vmatpush1.msra.mxu0 0.0
        %2687 = vmatprep.subr.mxu0 0.0
        %2688 = vmatpush1.msra.mxu0 0.0
        %2689 = vmatprep.subr.mxu0 0.0
        %2690 = vmatpush1.msra.mxu0 0.0
        %2691 = vmatprep.subr.mxu0 0.0
        %2692 = vmatpush1.msra.mxu0 0.0
        %2693 = vmatprep.subr.mxu0 0.0
        %2694 = vmatpush1.msra.mxu0 0.0
        %2695 = vmatprep.subr.mxu0 0.0
        %2696 = vmatpush1.msra.mxu0 0.0
        %2697 = vmatprep.subr.mxu0 0.0
        %2698 = vmatpush1.msra.mxu0 0.0
        %2699 = vmatprep.subr.mxu0 0.0
        %2700 = vmatpush1.msra.mxu0 0.0
        %2701 = vmatprep.subr.mxu0 0.0
        %2702 = vmatpush1.msra.mxu0 0.0
        %2703 = vmatprep.subr.mxu0 0.0
        %2704 = vmatpush1.msra.mxu0 0.0
        %2705 = vmatprep.subr.mxu0 0.0
        %2706 = vmatpush1.msra.mxu0 0.0
        %2707 = vmatprep.subr.mxu0 0.0
        %2708 = vmatpush1.msra.mxu0 0.0
        %2709 = vmatprep.subr.mxu0 0.0
        %2710 = vmatpush1.msra.mxu0 0.0
        %2711 = vmatprep.subr.mxu0 0.0
        %2712 = vmatpush1.msra.mxu0 0.0
        %2713 = vmatprep.subr.mxu0 0.0
        %2714 = vmatpush1.msra.mxu0 0.0
        %2715 = vmatprep.subr.mxu0 0.0
        %2716 = vmatpush1.msra.mxu0 0.0
        %2717 = vmatprep.subr.mxu0 0.0
        %2718 = vmatpush1.msra.mxu0 0.0
        %2719 = vmatprep.subr.mxu0 0.0
        %2720 = vmatpush1.msra.mxu0 0.0
        %2721 = vmatprep.subr.mxu0 0.0
        %2722 = vmatpush1.msra.mxu0 0.0
        %2723 = vmatprep.subr.mxu0 0.0
        %2724 = vmatpush1.msra.mxu0 0.0
        %2725 = vmatprep.mubr.f32.mxu0 0.0
        %2726 = vmatmul.mubr.f32.gmra.mrb[0].mxu0 %v2383
        %v2727 = vpop.f32.mrb[0].mxu0
        %v2728 = vadd.f32 0.0, %v2727
        %v2729 = vpop.f32.mrb[0].mxu0
        %v2730 = vadd.f32 0.0, %v2729
        %2731 = vmatprep.mubr.f32.mxu0 0.0
        %2732 = vmatmul.mubr.f32.gmra.mrb[0].mxu0 %v2386
        %v2733 = vpop.f32.mrb[0].mxu0
        %v2734 = vadd.f32 0.0, %v2733
        %v2735 = vpop.f32.mrb[0].mxu0
        %v2736 = vadd.f32 0.0, %v2735
        %2737 = vmatprep.mubr.f32.mxu0 0.0
        %2738 = vmatmul.mubr.f32.gmra.mrb[0].mxu0 %v2389
        %v2739 = vpop.f32.mrb[0].mxu0
        %v2740 = vadd.f32 0.0, %v2739
        %v2741 = vpop.f32.mrb[0].mxu0
        %v2742 = vadd.f32 0.0, %v2741
        %2743 = vmatprep.mubr.f32.mxu0 0.0
        %2744 = vmatmul.mubr.f32.gmra.mrb[0].mxu0 %v2392
        %v2745 = vpop.f32.mrb[0].mxu0
        %v2746 = vadd.f32 0.0, %v2745
        %v2747 = vpop.f32.mrb[0].mxu0
        %v2748 = vadd.f32 0.0, %v2747
        %2749 = vdwg.mxu0
        %v2750 = vadd.f32 %v2461, %v2360
        %v2751 = vadd.f32 %v2467, %v2365
        %v2752 = vadd.f32 %v2473, %v2370
        %v2753 = vadd.f32 %v2479, %v2375
        %v2754 = vmax.f32 %v2750, 0.0
        %v2755 = vmax.f32 %v2751, 0.0
        %v2756 = vmax.f32 %v2752, 0.0
        %v2757 = vmax.f32 %v2753, 0.0
        %v2758 = vadd.f32 %v2463, %v2360
        %v2759 = vadd.f32 %v2469, %v2365
        %v2760 = vadd.f32 %v2475, %v2370
        %v2761 = vadd.f32 %v2481, %v2375
        %v2762 = vmax.f32 %v2758, 0.0
        %v2763 = vmax.f32 %v2759, 0.0
        %v2764 = vmax.f32 %v2760, 0.0
        %v2765 = vmax.f32 %v2761, 0.0
        %v2766 = vadd.f32 %v2550, %v2360
        %v2767 = vadd.f32 %v2556, %v2365
        %v2768 = vadd.f32 %v2562, %v2370
        %v2769 = vadd.f32 %v2568, %v2375
        %v2770 = vmax.f32 %v2766, 0.0
        %v2771 = vmax.f32 %v2767, 0.0
        %v2772 = vmax.f32 %v2768, 0.0
        %v2773 = vmax.f32 %v2769, 0.0
        %v2774 = vadd.f32 %v2552, %v2360
        %v2775 = vadd.f32 %v2558, %v2365
        %v2776 = vadd.f32 %v2564, %v2370
        %v2777 = vadd.f32 %v2570, %v2375
        %v2778 = vmax.f32 %v2774, 0.0
        %v2779 = vmax.f32 %v2775, 0.0
        %v2780 = vmax.f32 %v2776, 0.0
        %v2781 = vmax.f32 %v2777, 0.0
        %v2782 = vadd.f32 %v2639, %v2360
        %v2783 = vadd.f32 %v2645, %v2365
        %v2784 = vadd.f32 %v2651, %v2370
        %v2785 = vadd.f32 %v2657, %v2375
        %v2786 = vmax.f32 %v2782, 0.0
        %v2787 = vmax.f32 %v2783, 0.0
        %v2788 = vmax.f32 %v2784, 0.0
        %v2789 = vmax.f32 %v2785, 0.0
        %v2790 = vadd.f32 %v2641, %v2360
        %v2791 = vadd.f32 %v2647, %v2365
        %v2792 = vadd.f32 %v2653, %v2370
        %v2793 = vadd.f32 %v2659, %v2375
        %v2794 = vmax.f32 %v2790, 0.0
        %v2795 = vmax.f32 %v2791, 0.0
        %v2796 = vmax.f32 %v2792, 0.0
        %v2797 = vmax.f32 %v2793, 0.0
        %v2798 = vadd.f32 %v2728, %v2360
        %v2799 = vadd.f32 %v2734, %v2365
        %v2800 = vadd.f32 %v2740, %v2370
        %v2801 = vadd.f32 %v2746, %v2375
        %v2802 = vmax.f32 %v2798, 0.0
        %v2803 = vmax.f32 %v2799, 0.0
        %v2804 = vmax.f32 %v2800, 0.0
        %v2805 = vmax.f32 %v2801, 0.0
        %v2806 = vadd.f32 %v2730, %v2360
        %v2807 = vadd.f32 %v2736, %v2365
        %v2808 = vadd.f32 %v2742, %v2370
        %v2809 = vadd.f32 %v2748, %v2375
        %v2810 = vmax.f32 %v2806, 0.0
        %v2811 = vmax.f32 %v2807, 0.0
        %v2812 = vmax.f32 %v2808, 0.0
        %v2813 = vmax.f32 %v2809, 0.0
        %v2814 = vld [vmem:[%s29] sm:$0xff]
        %v2815 = vld [vmem:[%s29 + $0x8] sm:$0xff]
        %v2816 = vld [vmem:[%s31] sm:$0xff]
        %v2817 = vld [vmem:[%s31 + $0x8] sm:$0xff]
        %2819 = vset.pattern.permute.xlu0 0
        %2820 = vperm.xlu0 %2819, %v2816
        %v2821 = vpop.permute.xlu0 %2820
        %2824 = vset.pattern.permute.xlu0 0
        %2825 = vperm.xlu0 %2824, %v2817
        %v2826 = vpop.permute.xlu0 %2825
        %v2829 = vsel %vm1602, %v2814, 0
        %v2832 = vsel %vm1602, %v2815, 0
        %2834 = vmatprep.subr.mxu0 %v2762
        %2835 = vmatpush1.msra.mxu0 %v2754
        %2836 = vmatprep.subr.mxu0 %v2763
        %2837 = vmatpush1.msra.mxu0 %v2755
        %2838 = vmatprep.subr.mxu0 %v2764
        %2839 = vmatpush1.msra.mxu0 %v2756
        %2840 = vmatprep.subr.mxu0 %v2765
        %2841 = vmatpush1.msra.mxu0 %v2757
        %2842 = vmatprep.subr.mxu0 0.0
        %2843 = vmatpush1.msra.mxu0 0.0
        %2844 = vmatprep.subr.mxu0 0.0
        %2845 = vmatpush1.msra.mxu0 0.0
        %2846 = vmatprep.subr.mxu0 0.0
        %2847 = vmatpush1.msra.mxu0 0.0
        %2848 = vmatprep.subr.mxu0 0.0
        %2849 = vmatpush1.msra.mxu0 0.0
        %2850 = vmatprep.subr.mxu0 0.0
        %2851 = vmatpush1.msra.mxu0 0.0
        %2852 = vmatprep.subr.mxu0 0.0
        %2853 = vmatpush1.msra.mxu0 0.0
        %2854 = vmatprep.subr.mxu0 0.0
        %2855 = vmatpush1.msra.mxu0 0.0
        %2856 = vmatprep.subr.mxu0 0.0
        %2857 = vmatpush1.msra.mxu0 0.0
        %2858 = vmatprep.subr.mxu0 0.0
        %2859 = vmatpush1.msra.mxu0 0.0
        %2860 = vmatprep.subr.mxu0 0.0
        %2861 = vmatpush1.msra.mxu0 0.0
        %2862 = vmatprep.subr.mxu0 0.0
        %2863 = vmatpush1.msra.mxu0 0.0
        %2864 = vmatprep.subr.mxu0 0.0
        %2865 = vmatpush1.msra.mxu0 0.0
        %2866 = vmatprep.subr.mxu0 0.0
        %2867 = vmatpush1.msra.mxu0 0.0
        %2868 = vmatprep.subr.mxu0 0.0
        %2869 = vmatpush1.msra.mxu0 0.0
        %2870 = vmatprep.subr.mxu0 0.0
        %2871 = vmatpush1.msra.mxu0 0.0
        %2872 = vmatprep.subr.mxu0 0.0
        %2873 = vmatpush1.msra.mxu0 0.0
        %2874 = vmatprep.subr.mxu0 0.0
        %2875 = vmatpush1.msra.mxu0 0.0
        %2876 = vmatprep.subr.mxu0 0.0
        %2877 = vmatpush1.msra.mxu0 0.0
        %2878 = vmatprep.subr.mxu0 0.0
        %2879 = vmatpush1.msra.mxu0 0.0
        %2880 = vmatprep.subr.mxu0 0.0
        %2881 = vmatpush1.msra.mxu0 0.0
        %2882 = vmatprep.subr.mxu0 0.0
        %2883 = vmatpush1.msra.mxu0 0.0
        %2884 = vmatprep.subr.mxu0 0.0
        %2885 = vmatpush1.msra.mxu0 0.0
        %2886 = vmatprep.subr.mxu0 0.0
        %2887 = vmatpush1.msra.mxu0 0.0
        %2888 = vmatprep.subr.mxu0 0.0
        %2889 = vmatpush1.msra.mxu0 0.0
        %2890 = vmatprep.subr.mxu0 0.0
        %2891 = vmatpush1.msra.mxu0 0.0
        %2892 = vmatprep.subr.mxu0 0.0
        %2893 = vmatpush1.msra.mxu0 0.0
        %2894 = vmatprep.subr.mxu0 0.0
        %2895 = vmatpush1.msra.mxu0 0.0
        %2896 = vmatprep.subr.mxu0 0.0
        %2897 = vmatpush1.msra.mxu0 0.0
        %2898 = vmatprep.mubr.f32.mxu0 0.0
        %2899 = vmatmul.mubr.f32.gmra.mrb[0].mxu0 %v2829
        %v2900 = vpop.f32.mrb[0].mxu0
        %v2901 = vadd.f32 %v2821, %v2900
        %v2902 = vpop.f32.mrb[0].mxu0
        %v2903 = vadd.f32 %v2821, %v2902
        %2904 = vmatprep.mubr.f32.mxu0 0.0
        %2905 = vmatmul.mubr.f32.gmra.mrb[0].mxu0 %v2832
        %v2906 = vpop.f32.mrb[0].mxu0
        %v2907 = vadd.f32 %v2826, %v2906
        %v2908 = vpop.f32.mrb[0].mxu0
        %v2909 = vadd.f32 %v2826, %v2908
        %2910 = vdwg.mxu0
        %2911 = vmatprep.subr.mxu0 %v2778
        %2912 = vmatpush1.msra.mxu0 %v2770
        %2913 = vmatprep.subr.mxu0 %v2779
        %2914 = vmatpush1.msra.mxu0 %v2771
        %2915 = vmatprep.subr.mxu0 %v2780
        %2916 = vmatpush1.msra.mxu0 %v2772
        %2917 = vmatprep.subr.mxu0 %v2781
        %2918 = vmatpush1.msra.mxu0 %v2773
        %2919 = vmatprep.subr.mxu0 0.0
        %2920 = vmatpush1.msra.mxu0 0.0
        %2921 = vmatprep.subr.mxu0 0.0
        %2922 = vmatpush1.msra.mxu0 0.0
        %2923 = vmatprep.subr.mxu0 0.0
        %2924 = vmatpush1.msra.mxu0 0.0
        %2925 = vmatprep.subr.mxu0 0.0
        %2926 = vmatpush1.msra.mxu0 0.0
        %2927 = vmatprep.subr.mxu0 0.0
        %2928 = vmatpush1.msra.mxu0 0.0
        %2929 = vmatprep.subr.mxu0 0.0
        %2930 = vmatpush1.msra.mxu0 0.0
        %2931 = vmatprep.subr.mxu0 0.0
        %2932 = vmatpush1.msra.mxu0 0.0
        %2933 = vmatprep.subr.mxu0 0.0
        %2934 = vmatpush1.msra.mxu0 0.0
        %2935 = vmatprep.subr.mxu0 0.0
        %2936 = vmatpush1.msra.mxu0 0.0
        %2937 = vmatprep.subr.mxu0 0.0
        %2938 = vmatpush1.msra.mxu0 0.0
        %2939 = vmatprep.subr.mxu0 0.0
        %2940 = vmatpush1.msra.mxu0 0.0
        %2941 = vmatprep.subr.mxu0 0.0
        %2942 = vmatpush1.msra.mxu0 0.0
        %2943 = vmatprep.subr.mxu0 0.0
        %2944 = vmatpush1.msra.mxu0 0.0
        %2945 = vmatprep.subr.mxu0 0.0
        %2946 = vmatpush1.msra.mxu0 0.0
        %2947 = vmatprep.subr.mxu0 0.0
        %2948 = vmatpush1.msra.mxu0 0.0
        %2949 = vmatprep.subr.mxu0 0.0
        %2950 = vmatpush1.msra.mxu0 0.0
        %2951 = vmatprep.subr.mxu0 0.0
        %2952 = vmatpush1.msra.mxu0 0.0
        %2953 = vmatprep.subr.mxu0 0.0
        %2954 = vmatpush1.msra.mxu0 0.0
        %2955 = vmatprep.subr.mxu0 0.0
        %2956 = vmatpush1.msra.mxu0 0.0
        %2957 = vmatprep.subr.mxu0 0.0
        %2958 = vmatpush1.msra.mxu0 0.0
        %2959 = vmatprep.subr.mxu0 0.0
        %2960 = vmatpush1.msra.mxu0 0.0
        %2961 = vmatprep.subr.mxu0 0.0
        %2962 = vmatpush1.msra.mxu0 0.0
        %2963 = vmatprep.subr.mxu0 0.0
        %2964 = vmatpush1.msra.mxu0 0.0
        %2965 = vmatprep.subr.mxu0 0.0
        %2966 = vmatpush1.msra.mxu0 0.0
        %2967 = vmatprep.subr.mxu0 0.0
        %2968 = vmatpush1.msra.mxu0 0.0
        %2969 = vmatprep.subr.mxu0 0.0
        %2970 = vmatpush1.msra.mxu0 0.0
        %2971 = vmatprep.subr.mxu0 0.0
        %2972 = vmatpush1.msra.mxu0 0.0
        %2973 = vmatprep.subr.mxu0 0.0
        %2974 = vmatpush1.msra.mxu0 0.0
        %2975 = vmatprep.mubr.f32.mxu0 0.0
        %2976 = vmatmul.mubr.f32.gmra.mrb[0].mxu0 %v2829
        %v2977 = vpop.f32.mrb[0].mxu0
        %v2978 = vadd.f32 %v2821, %v2977
        %v2979 = vpop.f32.mrb[0].mxu0
        %v2980 = vadd.f32 %v2821, %v2979
        %2981 = vmatprep.mubr.f32.mxu0 0.0
        %2982 = vmatmul.mubr.f32.gmra.mrb[0].mxu0 %v2832
        %v2983 = vpop.f32.mrb[0].mxu0
        %v2984 = vadd.f32 %v2826, %v2983
        %v2985 = vpop.f32.mrb[0].mxu0
        %v2986 = vadd.f32 %v2826, %v2985
        %2987 = vdwg.mxu0
        %2988 = vmatprep.subr.mxu0 %v2794
        %2989 = vmatpush1.msra.mxu0 %v2786
        %2990 = vmatprep.subr.mxu0 %v2795
        %2991 = vmatpush1.msra.mxu0 %v2787
        %2992 = vmatprep.subr.mxu0 %v2796
        %2993 = vmatpush1.msra.mxu0 %v2788
        %2994 = vmatprep.subr.mxu0 %v2797
        %2995 = vmatpush1.msra.mxu0 %v2789
        %2996 = vmatprep.subr.mxu0 0.0
        %2997 = vmatpush1.msra.mxu0 0.0
        %2998 = vmatprep.subr.mxu0 0.0
        %2999 = vmatpush1.msra.mxu0 0.0
        %3000 = vmatprep.subr.mxu0 0.0
        %3001 = vmatpush1.msra.mxu0 0.0
        %3002 = vmatprep.subr.mxu0 0.0
        %3003 = vmatpush1.msra.mxu0 0.0
        %3004 = vmatprep.subr.mxu0 0.0
        %3005 = vmatpush1.msra.mxu0 0.0
        %3006 = vmatprep.subr.mxu0 0.0
        %3007 = vmatpush1.msra.mxu0 0.0
        %3008 = vmatprep.subr.mxu0 0.0
        %3009 = vmatpush1.msra.mxu0 0.0
        %3010 = vmatprep.subr.mxu0 0.0
        %3011 = vmatpush1.msra.mxu0 0.0
        %3012 = vmatprep.subr.mxu0 0.0
        %3013 = vmatpush1.msra.mxu0 0.0
        %3014 = vmatprep.subr.mxu0 0.0
        %3015 = vmatpush1.msra.mxu0 0.0
        %3016 = vmatprep.subr.mxu0 0.0
        %3017 = vmatpush1.msra.mxu0 0.0
        %3018 = vmatprep.subr.mxu0 0.0
        %3019 = vmatpush1.msra.mxu0 0.0
        %3020 = vmatprep.subr.mxu0 0.0
        %3021 = vmatpush1.msra.mxu0 0.0
        %3022 = vmatprep.subr.mxu0 0.0
        %3023 = vmatpush1.msra.mxu0 0.0
        %3024 = vmatprep.subr.mxu0 0.0
        %3025 = vmatpush1.msra.mxu0 0.0
        %3026 = vmatprep.subr.mxu0 0.0
        %3027 = vmatpush1.msra.mxu0 0.0
        %3028 = vmatprep.subr.mxu0 0.0
        %3029 = vmatpush1.msra.mxu0 0.0
        %3030 = vmatprep.subr.mxu0 0.0
        %3031 = vmatpush1.msra.mxu0 0.0
        %3032 = vmatprep.subr.mxu0 0.0
        %3033 = vmatpush1.msra.mxu0 0.0
        %3034 = vmatprep.subr.mxu0 0.0
        %3035 = vmatpush1.msra.mxu0 0.0
        %3036 = vmatprep.subr.mxu0 0.0
        %3037 = vmatpush1.msra.mxu0 0.0
        %3038 = vmatprep.subr.mxu0 0.0
        %3039 = vmatpush1.msra.mxu0 0.0
        %3040 = vmatprep.subr.mxu0 0.0
        %3041 = vmatpush1.msra.mxu0 0.0
        %3042 = vmatprep.subr.mxu0 0.0
        %3043 = vmatpush1.msra.mxu0 0.0
        %3044 = vmatprep.subr.mxu0 0.0
        %3045 = vmatpush1.msra.mxu0 0.0
        %3046 = vmatprep.subr.mxu0 0.0
        %3047 = vmatpush1.msra.mxu0 0.0
        %3048 = vmatprep.subr.mxu0 0.0
        %3049 = vmatpush1.msra.mxu0 0.0
        %3050 = vmatprep.subr.mxu0 0.0
        %3051 = vmatpush1.msra.mxu0 0.0
        %3052 = vmatprep.mubr.f32.mxu0 0.0
        %3053 = vmatmul.mubr.f32.gmra.mrb[0].mxu0 %v2829
        %v3054 = vpop.f32.mrb[0].mxu0
        %v3055 = vadd.f32 %v2821, %v3054
        %v3056 = vpop.f32.mrb[0].mxu0
        %v3057 = vadd.f32 %v2821, %v3056
        %3058 = vmatprep.mubr.f32.mxu0 0.0
        %3059 = vmatmul.mubr.f32.gmra.mrb[0].mxu0 %v2832
        %v3060 = vpop.f32.mrb[0].mxu0
        %v3061 = vadd.f32 %v2826, %v3060
        %v3062 = vpop.f32.mrb[0].mxu0
        %v3063 = vadd.f32 %v2826, %v3062
        %3064 = vdwg.mxu0
        %3065 = vmatprep.subr.mxu0 %v2810
        %3066 = vmatpush1.msra.mxu0 %v2802
        %3067 = vmatprep.subr.mxu0 %v2811
        %3068 = vmatpush1.msra.mxu0 %v2803
        %3069 = vmatprep.subr.mxu0 %v2812
        %3070 = vmatpush1.msra.mxu0 %v2804
        %3071 = vmatprep.subr.mxu0 %v2813
        %3072 = vmatpush1.msra.mxu0 %v2805
        %3073 = vmatprep.subr.mxu0 0.0
        %3074 = vmatpush1.msra.mxu0 0.0
        %3075 = vmatprep.subr.mxu0 0.0
        %3076 = vmatpush1.msra.mxu0 0.0
        %3077 = vmatprep.subr.mxu0 0.0
        %3078 = vmatpush1.msra.mxu0 0.0
        %3079 = vmatprep.subr.mxu0 0.0
        %3080 = vmatpush1.msra.mxu0 0.0
        %3081 = vmatprep.subr.mxu0 0.0
        %3082 = vmatpush1.msra.mxu0 0.0
        %3083 = vmatprep.subr.mxu0 0.0
        %3084 = vmatpush1.msra.mxu0 0.0
        %3085 = vmatprep.subr.mxu0 0.0
        %3086 = vmatpush1.msra.mxu0 0.0
        %3087 = vmatprep.subr.mxu0 0.0
        %3088 = vmatpush1.msra.mxu0 0.0
        %3089 = vmatprep.subr.mxu0 0.0
        %3090 = vmatpush1.msra.mxu0 0.0
        %3091 = vmatprep.subr.mxu0 0.0
        %3092 = vmatpush1.msra.mxu0 0.0
        %3093 = vmatprep.subr.mxu0 0.0
        %3094 = vmatpush1.msra.mxu0 0.0
        %3095 = vmatprep.subr.mxu0 0.0
        %3096 = vmatpush1.msra.mxu0 0.0
        %3097 = vmatprep.subr.mxu0 0.0
        %3098 = vmatpush1.msra.mxu0 0.0
        %3099 = vmatprep.subr.mxu0 0.0
        %3100 = vmatpush1.msra.mxu0 0.0
        %3101 = vmatprep.subr.mxu0 0.0
        %3102 = vmatpush1.msra.mxu0 0.0
        %3103 = vmatprep.subr.mxu0 0.0
        %3104 = vmatpush1.msra.mxu0 0.0
        %3105 = vmatprep.subr.mxu0 0.0
        %3106 = vmatpush1.msra.mxu0 0.0
        %3107 = vmatprep.subr.mxu0 0.0
        %3108 = vmatpush1.msra.mxu0 0.0
        %3109 = vmatprep.subr.mxu0 0.0
        %3110 = vmatpush1.msra.mxu0 0.0
        %3111 = vmatprep.subr.mxu0 0.0
        %3112 = vmatpush1.msra.mxu0 0.0
        %3113 = vmatprep.subr.mxu0 0.0
        %3114 = vmatpush1.msra.mxu0 0.0
        %3115 = vmatprep.subr.mxu0 0.0
        %3116 = vmatpush1.msra.mxu0 0.0
        %3117 = vmatprep.subr.mxu0 0.0
        %3118 = vmatpush1.msra.mxu0 0.0
        %3119 = vmatprep.subr.mxu0 0.0
        %3120 = vmatpush1.msra.mxu0 0.0
        %3121 = vmatprep.subr.mxu0 0.0
        %3122 = vmatpush1.msra.mxu0 0.0
        %3123 = vmatprep.subr.mxu0 0.0
        %3124 = vmatpush1.msra.mxu0 0.0
        %3125 = vmatprep.subr.mxu0 0.0
        %3126 = vmatpush1.msra.mxu0 0.0
        %3127 = vmatprep.subr.mxu0 0.0
        %3128 = vmatpush1.msra.mxu0 0.0
        %3129 = vmatprep.mubr.f32.mxu0 0.0
        %3130 = vmatmul.mubr.f32.gmra.mrb[0].mxu0 %v2829
        %v3131 = vpop.f32.mrb[0].mxu0
        %v3132 = vadd.f32 %v2821, %v3131
        %v3133 = vpop.f32.mrb[0].mxu0
        %v3134 = vadd.f32 %v2821, %v3133
        %3135 = vmatprep.mubr.f32.mxu0 0.0
        %3136 = vmatmul.mubr.f32.gmra.mrb[0].mxu0 %v2832
        %v3137 = vpop.f32.mrb[0].mxu0
        %v3138 = vadd.f32 %v2826, %v3137
        %v3139 = vpop.f32.mrb[0].mxu0
        %v3140 = vadd.f32 %v2826, %v3139
        %3141 = vdwg.mxu0
        %v3142 = vadd.f32 %v2901, %v2903
        %v3143 = vadd.f32 %v2907, %v2909
        %v3144 = vadd.f32 %v3142, %v2978
        %v3145 = vadd.f32 %v3143, %v2984
        %v3146 = vadd.f32 %v3144, %v2980
        %v3147 = vadd.f32 %v3145, %v2986
        %v3148 = vadd.f32 %v3146, %v3055
        %v3149 = vadd.f32 %v3147, %v3061
        %v3150 = vadd.f32 %v3148, %v3057
        %v3151 = vadd.f32 %v3149, %v3063
        %v3152 = vadd.f32 %v3150, %v3132
        %v3153 = vadd.f32 %v3151, %v3138
        %v3154 = vadd.f32 %v3152, %v3134
        %v3155 = vadd.f32 %v3153, %v3140
        %v3156 = vmul.f32 %v3154, 0.125
        %v3157 = vmul.f32 %v3155, 0.125
        %v3158 = vld [vmem:[%s33] sm:$0xff]
        %v3159 = vld [vmem:[%s33 + $0x8] sm:$0xff]
        %v3160 = vld [vmem:[%s33 + $0x10] sm:$0xff]
        %v3161 = vld [vmem:[%s33 + $0x18] sm:$0xff]
        %v3162 = vld [vmem:[%s35] sm:$0xff]
        %v3163 = vld [vmem:[%s35 + $0x8] sm:$0xff]
        %v3164 = vld [vmem:[%s35 + $0x10] sm:$0xff]
        %v3165 = vld [vmem:[%s35 + $0x18] sm:$0xff]
        %3167 = vset.pattern.permute.xlu0 0
        %3168 = vperm.xlu0 %3167, %v3162
        %v3169 = vpop.permute.xlu0 %3168
        %3172 = vset.pattern.permute.xlu0 0
        %3173 = vperm.xlu0 %3172, %v3163
        %v3174 = vpop.permute.xlu0 %3173
        %3177 = vset.pattern.permute.xlu0 0
        %3178 = vperm.xlu0 %3177, %v3164
        %v3179 = vpop.permute.xlu0 %3178
        %3182 = vset.pattern.permute.xlu0 0
        %3183 = vperm.xlu0 %3182, %v3165
        %v3184 = vpop.permute.xlu0 %3183
        %v3187 = vsel %vm2043, %v3158, 0
        %v3190 = vsel %vm2043, %v3159, 0
        %v3193 = vsel %vm2043, %v3160, 0
        %v3196 = vsel %vm2043, %v3161, 0
        %3198 = vmatprep.subr.mxu0 0.0
        %3199 = vmatpush1.msra.mxu0 %v3156
        %3200 = vmatprep.subr.mxu0 0.0
        %3201 = vmatpush1.msra.mxu0 %v3157
        %3202 = vmatprep.subr.mxu0 0.0
        %3203 = vmatpush1.msra.mxu0 0.0
        %3204 = vmatprep.subr.mxu0 0.0
        %3205 = vmatpush1.msra.mxu0 0.0
        %3206 = vmatprep.subr.mxu0 0.0
        %3207 = vmatpush1.msra.mxu0 0.0
        %3208 = vmatprep.subr.mxu0 0.0
        %3209 = vmatpush1.msra.mxu0 0.0
        %3210 = vmatprep.subr.mxu0 0.0
        %3211 = vmatpush1.msra.mxu0 0.0
        %3212 = vmatprep.subr.mxu0 0.0
        %3213 = vmatpush1.msra.mxu0 0.0
        %3214 = vmatprep.subr.mxu0 0.0
        %3215 = vmatpush1.msra.mxu0 0.0
        %3216 = vmatprep.subr.mxu0 0.0
        %3217 = vmatpush1.msra.mxu0 0.0
        %3218 = vmatprep.subr.mxu0 0.0
        %3219 = vmatpush1.msra.mxu0 0.0
        %3220 = vmatprep.subr.mxu0 0.0
        %3221 = vmatpush1.msra.mxu0 0.0
        %3222 = vmatprep.subr.mxu0 0.0
        %3223 = vmatpush1.msra.mxu0 0.0
        %3224 = vmatprep.subr.mxu0 0.0
        %3225 = vmatpush1.msra.mxu0 0.0
        %3226 = vmatprep.subr.mxu0 0.0
        %3227 = vmatpush1.msra.mxu0 0.0
        %3228 = vmatprep.subr.mxu0 0.0
        %3229 = vmatpush1.msra.mxu0 0.0
        %3230 = vmatprep.subr.mxu0 0.0
        %3231 = vmatpush1.msra.mxu0 0.0
        %3232 = vmatprep.subr.mxu0 0.0
        %3233 = vmatpush1.msra.mxu0 0.0
        %3234 = vmatprep.subr.mxu0 0.0
        %3235 = vmatpush1.msra.mxu0 0.0
        %3236 = vmatprep.subr.mxu0 0.0
        %3237 = vmatpush1.msra.mxu0 0.0
        %3238 = vmatprep.subr.mxu0 0.0
        %3239 = vmatpush1.msra.mxu0 0.0
        %3240 = vmatprep.subr.mxu0 0.0
        %3241 = vmatpush1.msra.mxu0 0.0
        %3242 = vmatprep.subr.mxu0 0.0
        %3243 = vmatpush1.msra.mxu0 0.0
        %3244 = vmatprep.subr.mxu0 0.0
        %3245 = vmatpush1.msra.mxu0 0.0
        %3246 = vmatprep.subr.mxu0 0.0
        %3247 = vmatpush1.msra.mxu0 0.0
        %3248 = vmatprep.subr.mxu0 0.0
        %3249 = vmatpush1.msra.mxu0 0.0
        %3250 = vmatprep.subr.mxu0 0.0
        %3251 = vmatpush1.msra.mxu0 0.0
        %3252 = vmatprep.subr.mxu0 0.0
        %3253 = vmatpush1.msra.mxu0 0.0
        %3254 = vmatprep.subr.mxu0 0.0
        %3255 = vmatpush1.msra.mxu0 0.0
        %3256 = vmatprep.subr.mxu0 0.0
        %3257 = vmatpush1.msra.mxu0 0.0
        %3258 = vmatprep.subr.mxu0 0.0
        %3259 = vmatpush1.msra.mxu0 0.0
        %3260 = vmatprep.subr.mxu0 0.0
        %3261 = vmatpush1.msra.mxu0 0.0
        %3262 = vmatprep.mubr.f32.mxu0 0.0
        %3263 = vmatmul.mubr.f32.gmra.mrb[0].mxu0 %v3187
        %v3264 = vpop.f32.mrb[0].mxu0
        %v3265 = vadd.f32 %v3169, %v3264
        %v3266 = vpop.f32.mrb[0].mxu0
        %3267 = vmatprep.mubr.f32.mxu0 0.0
        %3268 = vmatmul.mubr.f32.gmra.mrb[0].mxu0 %v3190
        %v3269 = vpop.f32.mrb[0].mxu0
        %v3270 = vadd.f32 %v3174, %v3269
        %v3271 = vpop.f32.mrb[0].mxu0
        %3272 = vmatprep.mubr.f32.mxu0 0.0
        %3273 = vmatmul.mubr.f32.gmra.mrb[0].mxu0 %v3193
        %v3274 = vpop.f32.mrb[0].mxu0
        %v3275 = vadd.f32 %v3179, %v3274
        %v3276 = vpop.f32.mrb[0].mxu0
        %3277 = vmatprep.mubr.f32.mxu0 0.0
        %3278 = vmatmul.mubr.f32.gmra.mrb[0].mxu0 %v3196
        %v3279 = vpop.f32.mrb[0].mxu0
        %v3280 = vadd.f32 %v3184, %v3279
        %v3281 = vpop.f32.mrb[0].mxu0
        %3282 = vdwg.mxu0
        %v3283 = vmax.f32 %v3265, 0.0
        %v3284 = vmax.f32 %v3270, 0.0
        %v3285 = vmax.f32 %v3275, 0.0
        %v3286 = vmax.f32 %v3280, 0.0
        %v3287 = vld [vmem:[%s37] sm:$0xff]
        %v3288 = vld [vmem:[%s39] sm:$0xff]
        %3290 = vset.pattern.permute.xlu0 0
        %3291 = vperm.xlu0 %3290, %v3288
        %v3292 = vpop.permute.xlu0 %3291
        %v3295 = vsel %vm1602, %v3287, 0
        %3297 = vmatprep.subr.mxu0 0.0
        %3298 = vmatpush1.msra.mxu0 %v3283
        %3299 = vmatprep.subr.mxu0 0.0
        %3300 = vmatpush1.msra.mxu0 %v3284
        %3301 = vmatprep.subr.mxu0 0.0
        %3302 = vmatpush1.msra.mxu0 %v3285
        %3303 = vmatprep.subr.mxu0 0.0
        %3304 = vmatpush1.msra.mxu0 %v3286
        %3305 = vmatprep.subr.mxu0 0.0
        %3306 = vmatpush1.msra.mxu0 0.0
        %3307 = vmatprep.subr.mxu0 0.0
        %3308 = vmatpush1.msra.mxu0 0.0
        %3309 = vmatprep.subr.mxu0 0.0
        %3310 = vmatpush1.msra.mxu0 0.0
        %3311 = vmatprep.subr.mxu0 0.0
        %3312 = vmatpush1.msra.mxu0 0.0
        %3313 = vmatprep.subr.mxu0 0.0
        %3314 = vmatpush1.msra.mxu0 0.0
        %3315 = vmatprep.subr.mxu0 0.0
        %3316 = vmatpush1.msra.mxu0 0.0
        %3317 = vmatprep.subr.mxu0 0.0
        %3318 = vmatpush1.msra.mxu0 0.0
        %3319 = vmatprep.subr.mxu0 0.0
        %3320 = vmatpush1.msra.mxu0 0.0
        %3321 = vmatprep.subr.mxu0 0.0
        %3322 = vmatpush1.msra.mxu0 0.0
        %3323 = vmatprep.subr.mxu0 0.0
        %3324 = vmatpush1.msra.mxu0 0.0
        %3325 = vmatprep.subr.mxu0 0.0
        %3326 = vmatpush1.msra.mxu0 0.0
        %3327 = vmatprep.subr.mxu0 0.0
        %3328 = vmatpush1.msra.mxu0 0.0
        %3329 = vmatprep.subr.mxu0 0.0
        %3330 = vmatpush1.msra.mxu0 0.0
        %3331 = vmatprep.subr.mxu0 0.0
        %3332 = vmatpush1.msra.mxu0 0.0
        %3333 = vmatprep.subr.mxu0 0.0
        %3334 = vmatpush1.msra.mxu0 0.0
        %3335 = vmatprep.subr.mxu0 0.0
        %3336 = vmatpush1.msra.mxu0 0.0
        %3337 = vmatprep.subr.mxu0 0.0
        %3338 = vmatpush1.msra.mxu0 0.0
        %3339 = vmatprep.subr.mxu0 0.0
        %3340 = vmatpush1.msra.mxu0 0.0
        %3341 = vmatprep.subr.mxu0 0.0
        %3342 = vmatpush1.msra.mxu0 0.0
        %3343 = vmatprep.subr.mxu0 0.0
        %3344 = vmatpush1.msra.mxu0 0.0
        %3345 = vmatprep.subr.mxu0 0.0
        %3346 = vmatpush1.msra.mxu0 0.0
        %3347 = vmatprep.subr.mxu0 0.0
        %3348 = vmatpush1.msra.mxu0 0.0
        %3349 = vmatprep.subr.mxu0 0.0
        %3350 = vmatpush1.msra.mxu0 0.0
        %3351 = vmatprep.subr.mxu0 0.0
        %3352 = vmatpush1.msra.mxu0 0.0
        %3353 = vmatprep.subr.mxu0 0.0
        %3354 = vmatpush1.msra.mxu0 0.0
        %3355 = vmatprep.subr.mxu0 0.0
        %3356 = vmatpush1.msra.mxu0 0.0
        %3357 = vmatprep.subr.mxu0 0.0
        %3358 = vmatpush1.msra.mxu0 0.0
        %3359 = vmatprep.subr.mxu0 0.0
        %3360 = vmatpush1.msra.mxu0 0.0
        %3361 = vmatprep.mubr.f32.mxu0 0.0
        %3362 = vmatmul.mubr.f32.gmra.mrb[0].mxu0 %v3295
        %v3363 = vpop.f32.mrb[0].mxu0
        %v3364 = vadd.f32 %v3292, %v3363
        %v3365 = vpop.f32.mrb[0].mxu0
        %3366 = vdwg.mxu0
        %v3367 = vld [vmem:[%s43] sm:$0xff]
        %v3368 = vld [vmem:[%s43 + $0x8] sm:$0xff]
        %v3369 = vld [vmem:[%s43 + $0x10] sm:$0xff]
        %v3370 = vld [vmem:[%s43 + $0x18] sm:$0xff]
        %v3371 = vld [vmem:[%s45] sm:$0xff]
        %v3372 = vld [vmem:[%s45 + $0x8] sm:$0xff]
        %v3373 = vld [vmem:[%s45 + $0x10] sm:$0xff]
        %v3374 = vld [vmem:[%s45 + $0x18] sm:$0xff]
        %3376 = vset.pattern.permute.xlu0 0
        %3377 = vperm.xlu0 %3376, %v3371
        %v3378 = vpop.permute.xlu0 %3377
        %3381 = vset.pattern.permute.xlu0 0
        %3382 = vperm.xlu0 %3381, %v3372
        %v3383 = vpop.permute.xlu0 %3382
        %3386 = vset.pattern.permute.xlu0 0
        %3387 = vperm.xlu0 %3386, %v3373
        %v3388 = vpop.permute.xlu0 %3387
        %3391 = vset.pattern.permute.xlu0 0
        %3392 = vperm.xlu0 %3391, %v3374
        %v3393 = vpop.permute.xlu0 %3392
        %v3396 = vsel %vm1187, %v3367, 0
        %v3399 = vsel %vm1187, %v3368, 0
        %v3402 = vsel %vm1187, %v3369, 0
        %v3405 = vsel %vm1187, %v3370, 0
        %3407 = vmatprep.subr.mxu0 0.0
        %3408 = vmatpush1.msra.mxu0 %v3364
        %3409 = vmatprep.subr.mxu0 0.0
        %3410 = vmatpush1.msra.mxu0 0.0
        %3411 = vmatprep.subr.mxu0 0.0
        %3412 = vmatpush1.msra.mxu0 0.0
        %3413 = vmatprep.subr.mxu0 0.0
        %3414 = vmatpush1.msra.mxu0 0.0
        %3415 = vmatprep.subr.mxu0 0.0
        %3416 = vmatpush1.msra.mxu0 0.0
        %3417 = vmatprep.subr.mxu0 0.0
        %3418 = vmatpush1.msra.mxu0 0.0
        %3419 = vmatprep.subr.mxu0 0.0
        %3420 = vmatpush1.msra.mxu0 0.0
        %3421 = vmatprep.subr.mxu0 0.0
        %3422 = vmatpush1.msra.mxu0 0.0
        %3423 = vmatprep.subr.mxu0 0.0
        %3424 = vmatpush1.msra.mxu0 0.0
        %3425 = vmatprep.subr.mxu0 0.0
        %3426 = vmatpush1.msra.mxu0 0.0
        %3427 = vmatprep.subr.mxu0 0.0
        %3428 = vmatpush1.msra.mxu0 0.0
        %3429 = vmatprep.subr.mxu0 0.0
        %3430 = vmatpush1.msra.mxu0 0.0
        %3431 = vmatprep.subr.mxu0 0.0
        %3432 = vmatpush1.msra.mxu0 0.0
        %3433 = vmatprep.subr.mxu0 0.0
        %3434 = vmatpush1.msra.mxu0 0.0
        %3435 = vmatprep.subr.mxu0 0.0
        %3436 = vmatpush1.msra.mxu0 0.0
        %3437 = vmatprep.subr.mxu0 0.0
        %3438 = vmatpush1.msra.mxu0 0.0
        %3439 = vmatprep.subr.mxu0 0.0
        %3440 = vmatpush1.msra.mxu0 0.0
        %3441 = vmatprep.subr.mxu0 0.0
        %3442 = vmatpush1.msra.mxu0 0.0
        %3443 = vmatprep.subr.mxu0 0.0
        %3444 = vmatpush1.msra.mxu0 0.0
        %3445 = vmatprep.subr.mxu0 0.0
        %3446 = vmatpush1.msra.mxu0 0.0
        %3447 = vmatprep.subr.mxu0 0.0
        %3448 = vmatpush1.msra.mxu0 0.0
        %3449 = vmatprep.subr.mxu0 0.0
        %3450 = vmatpush1.msra.mxu0 0.0
        %3451 = vmatprep.subr.mxu0 0.0
        %3452 = vmatpush1.msra.mxu0 0.0
        %3453 = vmatprep.subr.mxu0 0.0
        %3454 = vmatpush1.msra.mxu0 0.0
        %3455 = vmatprep.subr.mxu0 0.0
        %3456 = vmatpush1.msra.mxu0 0.0
        %3457 = vmatprep.subr.mxu0 0.0
        %3458 = vmatpush1.msra.mxu0 0.0
        %3459 = vmatprep.subr.mxu0 0.0
        %3460 = vmatpush1.msra.mxu0 0.0
        %3461 = vmatprep.subr.mxu0 0.0
        %3462 = vmatpush1.msra.mxu0 0.0
        %3463 = vmatprep.subr.mxu0 0.0
        %3464 = vmatpush1.msra.mxu0 0.0
        %3465 = vmatprep.subr.mxu0 0.0
        %3466 = vmatpush1.msra.mxu0 0.0
        %3467 = vmatprep.subr.mxu0 0.0
        %3468 = vmatpush1.msra.mxu0 0.0
        %3469 = vmatprep.subr.mxu0 0.0
        %3470 = vmatpush1.msra.mxu0 0.0
        %3471 = vmatprep.mubr.f32.mxu0 0.0
        %3472 = vmatmul.mubr.f32.gmra.mrb[0].mxu0 %v3396
        %v3473 = vpop.f32.mrb[0].mxu0
        %v3474 = vadd.f32 %v3378, %v3473
        %v3475 = vpop.f32.mrb[0].mxu0
        %3476 = vmatprep.mubr.f32.mxu0 0.0
        %3477 = vmatmul.mubr.f32.gmra.mrb[0].mxu0 %v3399
        %v3478 = vpop.f32.mrb[0].mxu0
        %v3479 = vadd.f32 %v3383, %v3478
        %v3480 = vpop.f32.mrb[0].mxu0
        %3481 = vmatprep.mubr.f32.mxu0 0.0
        %3482 = vmatmul.mubr.f32.gmra.mrb[0].mxu0 %v3402
        %v3483 = vpop.f32.mrb[0].mxu0
        %v3484 = vadd.f32 %v3388, %v3483
        %v3485 = vpop.f32.mrb[0].mxu0
        %3486 = vmatprep.mubr.f32.mxu0 0.0
        %3487 = vmatmul.mubr.f32.gmra.mrb[0].mxu0 %v3405
        %v3488 = vpop.f32.mrb[0].mxu0
        %v3489 = vadd.f32 %v3393, %v3488
        %v3490 = vpop.f32.mrb[0].mxu0
        %3491 = vdwg.mxu0
        %v3492 = vld [vmem:[%s41] sm:$0xff]
        %v3493 = vld [vmem:[%s41 + $0x8] sm:$0xff]
        %v3494 = vld [vmem:[%s41 + $0x10] sm:$0xff]
        %v3495 = vld [vmem:[%s41 + $0x18] sm:$0xff]
        %v3497 = vsel %vm2043, %v3492, 0
        %v3500 = vsel %vm2043, %v3493, 0
        %v3503 = vsel %vm2043, %v3494, 0
        %v3506 = vsel %vm2043, %v3495, 0
        %3508 = vmatprep.subr.mxu0 %v2903
        %3509 = vmatpush1.msra.mxu0 %v2901
        %3510 = vmatprep.subr.mxu0 %v2909
        %3511 = vmatpush1.msra.mxu0 %v2907
        %3512 = vmatprep.subr.mxu0 0.0
        %3513 = vmatpush1.msra.mxu0 0.0
        %3514 = vmatprep.subr.mxu0 0.0
        %3515 = vmatpush1.msra.mxu0 0.0
        %3516 = vmatprep.subr.mxu0 0.0
        %3517 = vmatpush1.msra.mxu0 0.0
        %3518 = vmatprep.subr.mxu0 0.0
        %3519 = vmatpush1.msra.mxu0 0.0
        %3520 = vmatprep.subr.mxu0 0.0
        %3521 = vmatpush1.msra.mxu0 0.0
        %3522 = vmatprep.subr.mxu0 0.0
        %3523 = vmatpush1.msra.mxu0 0.0
        %3524 = vmatprep.subr.mxu0 0.0
        %3525 = vmatpush1.msra.mxu0 0.0
        %3526 = vmatprep.subr.mxu0 0.0
        %3527 = vmatpush1.msra.mxu0 0.0
        %3528 = vmatprep.subr.mxu0 0.0
        %3529 = vmatpush1.msra.mxu0 0.0
        %3530 = vmatprep.subr.mxu0 0.0
        %3531 = vmatpush1.msra.mxu0 0.0
        %3532 = vmatprep.subr.mxu0 0.0
        %3533 = vmatpush1.msra.mxu0 0.0
        %3534 = vmatprep.subr.mxu0 0.0
        %3535 = vmatpush1.msra.mxu0 0.0
        %3536 = vmatprep.subr.mxu0 0.0
        %3537 = vmatpush1.msra.mxu0 0.0
        %3538 = vmatprep.subr.mxu0 0.0
        %3539 = vmatpush1.msra.mxu0 0.0
        %3540 = vmatprep.subr.mxu0 0.0
        %3541 = vmatpush1.msra.mxu0 0.0
        %3542 = vmatprep.subr.mxu0 0.0
        %3543 = vmatpush1.msra.mxu0 0.0
        %3544 = vmatprep.subr.mxu0 0.0
        %3545 = vmatpush1.msra.mxu0 0.0
        %3546 = vmatprep.subr.mxu0 0.0
        %3547 = vmatpush1.msra.mxu0 0.0
        %3548 = vmatprep.subr.mxu0 0.0
        %3549 = vmatpush1.msra.mxu0 0.0
        %3550 = vmatprep.subr.mxu0 0.0
        %3551 = vmatpush1.msra.mxu0 0.0
        %3552 = vmatprep.subr.mxu0 0.0
        %3553 = vmatpush1.msra.mxu0 0.0
        %3554 = vmatprep.subr.mxu0 0.0
        %3555 = vmatpush1.msra.mxu0 0.0
        %3556 = vmatprep.subr.mxu0 0.0
        %3557 = vmatpush1.msra.mxu0 0.0
        %3558 = vmatprep.subr.mxu0 0.0
        %3559 = vmatpush1.msra.mxu0 0.0
        %3560 = vmatprep.subr.mxu0 0.0
        %3561 = vmatpush1.msra.mxu0 0.0
        %3562 = vmatprep.subr.mxu0 0.0
        %3563 = vmatpush1.msra.mxu0 0.0
        %3564 = vmatprep.subr.mxu0 0.0
        %3565 = vmatpush1.msra.mxu0 0.0
        %3566 = vmatprep.subr.mxu0 0.0
        %3567 = vmatpush1.msra.mxu0 0.0
        %3568 = vmatprep.subr.mxu0 0.0
        %3569 = vmatpush1.msra.mxu0 0.0
        %3570 = vmatprep.subr.mxu0 0.0
        %3571 = vmatpush1.msra.mxu0 0.0
        %3572 = vmatprep.mubr.f32.mxu0 0.0
        %3573 = vmatmul.mubr.f32.gmra.mrb[0].mxu0 %v3497
        %v3574 = vpop.f32.mrb[0].mxu0
        %v3575 = vadd.f32 0.0, %v3574
        %v3576 = vpop.f32.mrb[0].mxu0
        %v3577 = vadd.f32 0.0, %v3576
        %3578 = vmatprep.mubr.f32.mxu0 0.0
        %3579 = vmatmul.mubr.f32.gmra.mrb[0].mxu0 %v3500
        %v3580 = vpop.f32.mrb[0].mxu0
        %v3581 = vadd.f32 0.0, %v3580
        %v3582 = vpop.f32.mrb[0].mxu0
        %v3583 = vadd.f32 0.0, %v3582
        %3584 = vmatprep.mubr.f32.mxu0 0.0
        %3585 = vmatmul.mubr.f32.gmra.mrb[0].mxu0 %v3503
        %v3586 = vpop.f32.mrb[0].mxu0
        %v3587 = vadd.f32 0.0, %v3586
        %v3588 = vpop.f32.mrb[0].mxu0
        %v3589 = vadd.f32 0.0, %v3588
        %3590 = vmatprep.mubr.f32.mxu0 0.0
        %3591 = vmatmul.mubr.f32.gmra.mrb[0].mxu0 %v3506
        %v3592 = vpop.f32.mrb[0].mxu0
        %v3593 = vadd.f32 0.0, %v3592
        %v3594 = vpop.f32.mrb[0].mxu0
        %v3595 = vadd.f32 0.0, %v3594
        %3596 = vdwg.mxu0
        %3597 = vmatprep.subr.mxu0 %v2980
        %3598 = vmatpush1.msra.mxu0 %v2978
        %3599 = vmatprep.subr.mxu0 %v2986
        %3600 = vmatpush1.msra.mxu0 %v2984
        %3601 = vmatprep.subr.mxu0 0.0
        %3602 = vmatpush1.msra.mxu0 0.0
        %3603 = vmatprep.subr.mxu0 0.0
        %3604 = vmatpush1.msra.mxu0 0.0
        %3605 = vmatprep.subr.mxu0 0.0
        %3606 = vmatpush1.msra.mxu0 0.0
        %3607 = vmatprep.subr.mxu0 0.0
        %3608 = vmatpush1.msra.mxu0 0.0
        %3609 = vmatprep.subr.mxu0 0.0
        %3610 = vmatpush1.msra.mxu0 0.0
        %3611 = vmatprep.subr.mxu0 0.0
        %3612 = vmatpush1.msra.mxu0 0.0
        %3613 = vmatprep.subr.mxu0 0.0
        %3614 = vmatpush1.msra.mxu0 0.0
        %3615 = vmatprep.subr.mxu0 0.0
        %3616 = vmatpush1.msra.mxu0 0.0
        %3617 = vmatprep.subr.mxu0 0.0
        %3618 = vmatpush1.msra.mxu0 0.0
        %3619 = vmatprep.subr.mxu0 0.0
        %3620 = vmatpush1.msra.mxu0 0.0
        %3621 = vmatprep.subr.mxu0 0.0
        %3622 = vmatpush1.msra.mxu0 0.0
        %3623 = vmatprep.subr.mxu0 0.0
        %3624 = vmatpush1.msra.mxu0 0.0
        %3625 = vmatprep.subr.mxu0 0.0
        %3626 = vmatpush1.msra.mxu0 0.0
        %3627 = vmatprep.subr.mxu0 0.0
        %3628 = vmatpush1.msra.mxu0 0.0
        %3629 = vmatprep.subr.mxu0 0.0
        %3630 = vmatpush1.msra.mxu0 0.0
        %3631 = vmatprep.subr.mxu0 0.0
        %3632 = vmatpush1.msra.mxu0 0.0
        %3633 = vmatprep.subr.mxu0 0.0
        %3634 = vmatpush1.msra.mxu0 0.0
        %3635 = vmatprep.subr.mxu0 0.0
        %3636 = vmatpush1.msra.mxu0 0.0
        %3637 = vmatprep.subr.mxu0 0.0
        %3638 = vmatpush1.msra.mxu0 0.0
        %3639 = vmatprep.subr.mxu0 0.0
        %3640 = vmatpush1.msra.mxu0 0.0
        %3641 = vmatprep.subr.mxu0 0.0
        %3642 = vmatpush1.msra.mxu0 0.0
        %3643 = vmatprep.subr.mxu0 0.0
        %3644 = vmatpush1.msra.mxu0 0.0
        %3645 = vmatprep.subr.mxu0 0.0
        %3646 = vmatpush1.msra.mxu0 0.0
        %3647 = vmatprep.subr.mxu0 0.0
        %3648 = vmatpush1.msra.mxu0 0.0
        %3649 = vmatprep.subr.mxu0 0.0
        %3650 = vmatpush1.msra.mxu0 0.0
        %3651 = vmatprep.subr.mxu0 0.0
        %3652 = vmatpush1.msra.mxu0 0.0
        %3653 = vmatprep.subr.mxu0 0.0
        %3654 = vmatpush1.msra.mxu0 0.0
        %3655 = vmatprep.subr.mxu0 0.0
        %3656 = vmatpush1.msra.mxu0 0.0
        %3657 = vmatprep.subr.mxu0 0.0
        %3658 = vmatpush1.msra.mxu0 0.0
        %3659 = vmatprep.subr.mxu0 0.0
        %3660 = vmatpush1.msra.mxu0 0.0
        %3661 = vmatprep.mubr.f32.mxu0 0.0
        %3662 = vmatmul.mubr.f32.gmra.mrb[0].mxu0 %v3497
        %v3663 = vpop.f32.mrb[0].mxu0
        %v3664 = vadd.f32 0.0, %v3663
        %v3665 = vpop.f32.mrb[0].mxu0
        %v3666 = vadd.f32 0.0, %v3665
        %3667 = vmatprep.mubr.f32.mxu0 0.0
        %3668 = vmatmul.mubr.f32.gmra.mrb[0].mxu0 %v3500
        %v3669 = vpop.f32.mrb[0].mxu0
        %v3670 = vadd.f32 0.0, %v3669
        %v3671 = vpop.f32.mrb[0].mxu0
        %v3672 = vadd.f32 0.0, %v3671
        %3673 = vmatprep.mubr.f32.mxu0 0.0
        %3674 = vmatmul.mubr.f32.gmra.mrb[0].mxu0 %v3503
        %v3675 = vpop.f32.mrb[0].mxu0
        %v3676 = vadd.f32 0.0, %v3675
        %v3677 = vpop.f32.mrb[0].mxu0
        %v3678 = vadd.f32 0.0, %v3677
        %3679 = vmatprep.mubr.f32.mxu0 0.0
        %3680 = vmatmul.mubr.f32.gmra.mrb[0].mxu0 %v3506
        %v3681 = vpop.f32.mrb[0].mxu0
        %v3682 = vadd.f32 0.0, %v3681
        %v3683 = vpop.f32.mrb[0].mxu0
        %v3684 = vadd.f32 0.0, %v3683
        %3685 = vdwg.mxu0
        %3686 = vmatprep.subr.mxu0 %v3057
        %3687 = vmatpush1.msra.mxu0 %v3055
        %3688 = vmatprep.subr.mxu0 %v3063
        %3689 = vmatpush1.msra.mxu0 %v3061
        %3690 = vmatprep.subr.mxu0 0.0
        %3691 = vmatpush1.msra.mxu0 0.0
        %3692 = vmatprep.subr.mxu0 0.0
        %3693 = vmatpush1.msra.mxu0 0.0
        %3694 = vmatprep.subr.mxu0 0.0
        %3695 = vmatpush1.msra.mxu0 0.0
        %3696 = vmatprep.subr.mxu0 0.0
        %3697 = vmatpush1.msra.mxu0 0.0
        %3698 = vmatprep.subr.mxu0 0.0
        %3699 = vmatpush1.msra.mxu0 0.0
        %3700 = vmatprep.subr.mxu0 0.0
        %3701 = vmatpush1.msra.mxu0 0.0
        %3702 = vmatprep.subr.mxu0 0.0
        %3703 = vmatpush1.msra.mxu0 0.0
        %3704 = vmatprep.subr.mxu0 0.0
        %3705 = vmatpush1.msra.mxu0 0.0
        %3706 = vmatprep.subr.mxu0 0.0
        %3707 = vmatpush1.msra.mxu0 0.0
        %3708 = vmatprep.subr.mxu0 0.0
        %3709 = vmatpush1.msra.mxu0 0.0
        %3710 = vmatprep.subr.mxu0 0.0
        %3711 = vmatpush1.msra.mxu0 0.0
        %3712 = vmatprep.subr.mxu0 0.0
        %3713 = vmatpush1.msra.mxu0 0.0
        %3714 = vmatprep.subr.mxu0 0.0
        %3715 = vmatpush1.msra.mxu0 0.0
        %3716 = vmatprep.subr.mxu0 0.0
        %3717 = vmatpush1.msra.mxu0 0.0
        %3718 = vmatprep.subr.mxu0 0.0
        %3719 = vmatpush1.msra.mxu0 0.0
        %3720 = vmatprep.subr.mxu0 0.0
        %3721 = vmatpush1.msra.mxu0 0.0
        %3722 = vmatprep.subr.mxu0 0.0
        %3723 = vmatpush1.msra.mxu0 0.0
        %3724 = vmatprep.subr.mxu0 0.0
        %3725 = vmatpush1.msra.mxu0 0.0
        %3726 = vmatprep.subr.mxu0 0.0
        %3727 = vmatpush1.msra.mxu0 0.0
        %3728 = vmatprep.subr.mxu0 0.0
        %3729 = vmatpush1.msra.mxu0 0.0
        %3730 = vmatprep.subr.mxu0 0.0
        %3731 = vmatpush1.msra.mxu0 0.0
        %3732 = vmatprep.subr.mxu0 0.0
        %3733 = vmatpush1.msra.mxu0 0.0
        %3734 = vmatprep.subr.mxu0 0.0
        %3735 = vmatpush1.msra.mxu0 0.0
        %3736 = vmatprep.subr.mxu0 0.0
        %3737 = vmatpush1.msra.mxu0 0.0
        %3738 = vmatprep.subr.mxu0 0.0
        %3739 = vmatpush1.msra.mxu0 0.0
        %3740 = vmatprep.subr.mxu0 0.0
        %3741 = vmatpush1.msra.mxu0 0.0
        %3742 = vmatprep.subr.mxu0 0.0
        %3743 = vmatpush1.msra.mxu0 0.0
        %3744 = vmatprep.subr.mxu0 0.0
        %3745 = vmatpush1.msra.mxu0 0.0
        %3746 = vmatprep.subr.mxu0 0.0
        %3747 = vmatpush1.msra.mxu0 0.0
        %3748 = vmatprep.subr.mxu0 0.0
        %3749 = vmatpush1.msra.mxu0 0.0
        %3750 = vmatprep.mubr.f32.mxu0 0.0
        %3751 = vmatmul.mubr.f32.gmra.mrb[0].mxu0 %v3497
        %v3752 = vpop.f32.mrb[0].mxu0
        %v3753 = vadd.f32 0.0, %v3752
        %v3754 = vpop.f32.mrb[0].mxu0
        %v3755 = vadd.f32 0.0, %v3754
        %3756 = vmatprep.mubr.f32.mxu0 0.0
        %3757 = vmatmul.mubr.f32.gmra.mrb[0].mxu0 %v3500
        %v3758 = vpop.f32.mrb[0].mxu0
        %v3759 = vadd.f32 0.0, %v3758
        %v3760 = vpop.f32.mrb[0].mxu0
        %v3761 = vadd.f32 0.0, %v3760
        %3762 = vmatprep.mubr.f32.mxu0 0.0
        %3763 = vmatmul.mubr.f32.gmra.mrb[0].mxu0 %v3503
        %v3764 = vpop.f32.mrb[0].mxu0
        %v3765 = vadd.f32 0.0, %v3764
        %v3766 = vpop.f32.mrb[0].mxu0
        %v3767 = vadd.f32 0.0, %v3766
        %3768 = vmatprep.mubr.f32.mxu0 0.0
        %3769 = vmatmul.mubr.f32.gmra.mrb[0].mxu0 %v3506
        %v3770 = vpop.f32.mrb[0].mxu0
        %v3771 = vadd.f32 0.0, %v3770
        %v3772 = vpop.f32.mrb[0].mxu0
        %v3773 = vadd.f32 0.0, %v3772
        %3774 = vdwg.mxu0
        %3775 = vmatprep.subr.mxu0 %v3134
        %3776 = vmatpush1.msra.mxu0 %v3132
        %3777 = vmatprep.subr.mxu0 %v3140
        %3778 = vmatpush1.msra.mxu0 %v3138
        %3779 = vmatprep.subr.mxu0 0.0
        %3780 = vmatpush1.msra.mxu0 0.0
        %3781 = vmatprep.subr.mxu0 0.0
        %3782 = vmatpush1.msra.mxu0 0.0
        %3783 = vmatprep.subr.mxu0 0.0
        %3784 = vmatpush1.msra.mxu0 0.0
        %3785 = vmatprep.subr.mxu0 0.0
        %3786 = vmatpush1.msra.mxu0 0.0
        %3787 = vmatprep.subr.mxu0 0.0
        %3788 = vmatpush1.msra.mxu0 0.0
        %3789 = vmatprep.subr.mxu0 0.0
        %3790 = vmatpush1.msra.mxu0 0.0
        %3791 = vmatprep.subr.mxu0 0.0
        %3792 = vmatpush1.msra.mxu0 0.0
        %3793 = vmatprep.subr.mxu0 0.0
        %3794 = vmatpush1.msra.mxu0 0.0
        %3795 = vmatprep.subr.mxu0 0.0
        %3796 = vmatpush1.msra.mxu0 0.0
        %3797 = vmatprep.subr.mxu0 0.0
        %3798 = vmatpush1.msra.mxu0 0.0
        %3799 = vmatprep.subr.mxu0 0.0
        %3800 = vmatpush1.msra.mxu0 0.0
        %3801 = vmatprep.subr.mxu0 0.0
        %3802 = vmatpush1.msra.mxu0 0.0
        %3803 = vmatprep.subr.mxu0 0.0
        %3804 = vmatpush1.msra.mxu0 0.0
        %3805 = vmatprep.subr.mxu0 0.0
        %3806 = vmatpush1.msra.mxu0 0.0
        %3807 = vmatprep.subr.mxu0 0.0
        %3808 = vmatpush1.msra.mxu0 0.0
        %3809 = vmatprep.subr.mxu0 0.0
        %3810 = vmatpush1.msra.mxu0 0.0
        %3811 = vmatprep.subr.mxu0 0.0
        %3812 = vmatpush1.msra.mxu0 0.0
        %3813 = vmatprep.subr.mxu0 0.0
        %3814 = vmatpush1.msra.mxu0 0.0
        %3815 = vmatprep.subr.mxu0 0.0
        %3816 = vmatpush1.msra.mxu0 0.0
        %3817 = vmatprep.subr.mxu0 0.0
        %3818 = vmatpush1.msra.mxu0 0.0
        %3819 = vmatprep.subr.mxu0 0.0
        %3820 = vmatpush1.msra.mxu0 0.0
        %3821 = vmatprep.subr.mxu0 0.0
        %3822 = vmatpush1.msra.mxu0 0.0
        %3823 = vmatprep.subr.mxu0 0.0
        %3824 = vmatpush1.msra.mxu0 0.0
        %3825 = vmatprep.subr.mxu0 0.0
        %3826 = vmatpush1.msra.mxu0 0.0
        %3827 = vmatprep.subr.mxu0 0.0
        %3828 = vmatpush1.msra.mxu0 0.0
        %3829 = vmatprep.subr.mxu0 0.0
        %3830 = vmatpush1.msra.mxu0 0.0
        %3831 = vmatprep.subr.mxu0 0.0
        %3832 = vmatpush1.msra.mxu0 0.0
        %3833 = vmatprep.subr.mxu0 0.0
        %3834 = vmatpush1.msra.mxu0 0.0
        %3835 = vmatprep.subr.mxu0 0.0
        %3836 = vmatpush1.msra.mxu0 0.0
        %3837 = vmatprep.subr.mxu0 0.0
        %3838 = vmatpush1.msra.mxu0 0.0
        %3839 = vmatprep.mubr.f32.mxu0 0.0
        %3840 = vmatmul.mubr.f32.gmra.mrb[0].mxu0 %v3497
        %v3841 = vpop.f32.mrb[0].mxu0
        %v3842 = vadd.f32 0.0, %v3841
        %v3843 = vpop.f32.mrb[0].mxu0
        %v3844 = vadd.f32 0.0, %v3843
        %3845 = vmatprep.mubr.f32.mxu0 0.0
        %3846 = vmatmul.mubr.f32.gmra.mrb[0].mxu0 %v3500
        %v3847 = vpop.f32.mrb[0].mxu0
        %v3848 = vadd.f32 0.0, %v3847
        %v3849 = vpop.f32.mrb[0].mxu0
        %v3850 = vadd.f32 0.0, %v3849
        %3851 = vmatprep.mubr.f32.mxu0 0.0
        %3852 = vmatmul.mubr.f32.gmra.mrb[0].mxu0 %v3503
        %v3853 = vpop.f32.mrb[0].mxu0
        %v3854 = vadd.f32 0.0, %v3853
        %v3855 = vpop.f32.mrb[0].mxu0
        %v3856 = vadd.f32 0.0, %v3855
        %3857 = vmatprep.mubr.f32.mxu0 0.0
        %3858 = vmatmul.mubr.f32.gmra.mrb[0].mxu0 %v3506
        %v3859 = vpop.f32.mrb[0].mxu0
        %v3860 = vadd.f32 0.0, %v3859
        %v3861 = vpop.f32.mrb[0].mxu0
        %v3862 = vadd.f32 0.0, %v3861
        %3863 = vdwg.mxu0
        %v3864 = vadd.f32 %v3575, %v3474
        %v3865 = vadd.f32 %v3581, %v3479
        %v3866 = vadd.f32 %v3587, %v3484
        %v3867 = vadd.f32 %v3593, %v3489
        %v3868 = vmax.f32 %v3864, 0.0
        %v3869 = vmax.f32 %v3865, 0.0
        %v3870 = vmax.f32 %v3866, 0.0
        %v3871 = vmax.f32 %v3867, 0.0
        %v3872 = vadd.f32 %v3577, %v3474
        %v3873 = vadd.f32 %v3583, %v3479
        %v3874 = vadd.f32 %v3589, %v3484
        %v3875 = vadd.f32 %v3595, %v3489
        %v3876 = vmax.f32 %v3872, 0.0
        %v3877 = vmax.f32 %v3873, 0.0
        %v3878 = vmax.f32 %v3874, 0.0
        %v3879 = vmax.f32 %v3875, 0.0
        %v3880 = vadd.f32 %v3664, %v3474
        %v3881 = vadd.f32 %v3670, %v3479
        %v3882 = vadd.f32 %v3676, %v3484
        %v3883 = vadd.f32 %v3682, %v3489
        %v3884 = vmax.f32 %v3880, 0.0
        %v3885 = vmax.f32 %v3881, 0.0
        %v3886 = vmax.f32 %v3882, 0.0
        %v3887 = vmax.f32 %v3883, 0.0
        %v3888 = vadd.f32 %v3666, %v3474
        %v3889 = vadd.f32 %v3672, %v3479
        %v3890 = vadd.f32 %v3678, %v3484
        %v3891 = vadd.f32 %v3684, %v3489
        %v3892 = vmax.f32 %v3888, 0.0
        %v3893 = vmax.f32 %v3889, 0.0
        %v3894 = vmax.f32 %v3890, 0.0
        %v3895 = vmax.f32 %v3891, 0.0
        %v3896 = vadd.f32 %v3753, %v3474
        %v3897 = vadd.f32 %v3759, %v3479
        %v3898 = vadd.f32 %v3765, %v3484
        %v3899 = vadd.f32 %v3771, %v3489
        %v3900 = vmax.f32 %v3896, 0.0
        %v3901 = vmax.f32 %v3897, 0.0
        %v3902 = vmax.f32 %v3898, 0.0
        %v3903 = vmax.f32 %v3899, 0.0
        %v3904 = vadd.f32 %v3755, %v3474
        %v3905 = vadd.f32 %v3761, %v3479
        %v3906 = vadd.f32 %v3767, %v3484
        %v3907 = vadd.f32 %v3773, %v3489
        %v3908 = vmax.f32 %v3904, 0.0
        %v3909 = vmax.f32 %v3905, 0.0
        %v3910 = vmax.f32 %v3906, 0.0
        %v3911 = vmax.f32 %v3907, 0.0
        %v3912 = vadd.f32 %v3842, %v3474
        %v3913 = vadd.f32 %v3848, %v3479
        %v3914 = vadd.f32 %v3854, %v3484
        %v3915 = vadd.f32 %v3860, %v3489
        %v3916 = vmax.f32 %v3912, 0.0
        %v3917 = vmax.f32 %v3913, 0.0
        %v3918 = vmax.f32 %v3914, 0.0
        %v3919 = vmax.f32 %v3915, 0.0
        %v3920 = vadd.f32 %v3844, %v3474
        %v3921 = vadd.f32 %v3850, %v3479
        %v3922 = vadd.f32 %v3856, %v3484
        %v3923 = vadd.f32 %v3862, %v3489
        %v3924 = vmax.f32 %v3920, 0.0
        %v3925 = vmax.f32 %v3921, 0.0
        %v3926 = vmax.f32 %v3922, 0.0
        %v3927 = vmax.f32 %v3923, 0.0
        %v3928 = vld [vmem:[%s47] sm:$0xff]
        %v3929 = vld [vmem:[%s47 + $0x8] sm:$0xff]
        %v3930 = vld [vmem:[%s49] sm:$0xff]
        %v3931 = vld [vmem:[%s49 + $0x8] sm:$0xff]
        %3933 = vset.pattern.permute.xlu0 0
        %3934 = vperm.xlu0 %3933, %v3930
        %v3935 = vpop.permute.xlu0 %3934
        %3938 = vset.pattern.permute.xlu0 0
        %3939 = vperm.xlu0 %3938, %v3931
        %v3940 = vpop.permute.xlu0 %3939
        %v3943 = vsel %vm1602, %v3928, 0
        %v3946 = vsel %vm1602, %v3929, 0
        %3948 = vmatprep.subr.mxu0 %v3876
        %3949 = vmatpush1.msra.mxu0 %v3868
        %3950 = vmatprep.subr.mxu0 %v3877
        %3951 = vmatpush1.msra.mxu0 %v3869
        %3952 = vmatprep.subr.mxu0 %v3878
        %3953 = vmatpush1.msra.mxu0 %v3870
        %3954 = vmatprep.subr.mxu0 %v3879
        %3955 = vmatpush1.msra.mxu0 %v3871
        %3956 = vmatprep.subr.mxu0 0.0
        %3957 = vmatpush1.msra.mxu0 0.0
        %3958 = vmatprep.subr.mxu0 0.0
        %3959 = vmatpush1.msra.mxu0 0.0
        %3960 = vmatprep.subr.mxu0 0.0
        %3961 = vmatpush1.msra.mxu0 0.0
        %3962 = vmatprep.subr.mxu0 0.0
        %3963 = vmatpush1.msra.mxu0 0.0
        %3964 = vmatprep.subr.mxu0 0.0
        %3965 = vmatpush1.msra.mxu0 0.0
        %3966 = vmatprep.subr.mxu0 0.0
        %3967 = vmatpush1.msra.mxu0 0.0
        %3968 = vmatprep.subr.mxu0 0.0
        %3969 = vmatpush1.msra.mxu0 0.0
        %3970 = vmatprep.subr.mxu0 0.0
        %3971 = vmatpush1.msra.mxu0 0.0
        %3972 = vmatprep.subr.mxu0 0.0
        %3973 = vmatpush1.msra.mxu0 0.0
        %3974 = vmatprep.subr.mxu0 0.0
        %3975 = vmatpush1.msra.mxu0 0.0
        %3976 = vmatprep.subr.mxu0 0.0
        %3977 = vmatpush1.msra.mxu0 0.0
        %3978 = vmatprep.subr.mxu0 0.0
        %3979 = vmatpush1.msra.mxu0 0.0
        %3980 = vmatprep.subr.mxu0 0.0
        %3981 = vmatpush1.msra.mxu0 0.0
        %3982 = vmatprep.subr.mxu0 0.0
        %3983 = vmatpush1.msra.mxu0 0.0
        %3984 = vmatprep.subr.mxu0 0.0
        %3985 = vmatpush1.msra.mxu0 0.0
        %3986 = vmatprep.subr.mxu0 0.0
        %3987 = vmatpush1.msra.mxu0 0.0
        %3988 = vmatprep.subr.mxu0 0.0
        %3989 = vmatpush1.msra.mxu0 0.0
        %3990 = vmatprep.subr.mxu0 0.0
        %3991 = vmatpush1.msra.mxu0 0.0
        %3992 = vmatprep.subr.mxu0 0.0
        %3993 = vmatpush1.msra.mxu0 0.0
        %3994 = vmatprep.subr.mxu0 0.0
        %3995 = vmatpush1.msra.mxu0 0.0
        %3996 = vmatprep.subr.mxu0 0.0
        %3997 = vmatpush1.msra.mxu0 0.0
        %3998 = vmatprep.subr.mxu0 0.0
        %3999 = vmatpush1.msra.mxu0 0.0
        %4000 = vmatprep.subr.mxu0 0.0
        %4001 = vmatpush1.msra.mxu0 0.0
        %4002 = vmatprep.subr.mxu0 0.0
        %4003 = vmatpush1.msra.mxu0 0.0
        %4004 = vmatprep.subr.mxu0 0.0
        %4005 = vmatpush1.msra.mxu0 0.0
        %4006 = vmatprep.subr.mxu0 0.0
        %4007 = vmatpush1.msra.mxu0 0.0
        %4008 = vmatprep.subr.mxu0 0.0
        %4009 = vmatpush1.msra.mxu0 0.0
        %4010 = vmatprep.subr.mxu0 0.0
        %4011 = vmatpush1.msra.mxu0 0.0
        %4012 = vmatprep.mubr.f32.mxu0 0.0
        %4013 = vmatmul.mubr.f32.gmra.mrb[0].mxu0 %v3943
        %v4014 = vpop.f32.mrb[0].mxu0
        %v4015 = vadd.f32 %v3935, %v4014
        %v4016 = vpop.f32.mrb[0].mxu0
        %v4017 = vadd.f32 %v3935, %v4016
        %4018 = vmatprep.mubr.f32.mxu0 0.0
        %4019 = vmatmul.mubr.f32.gmra.mrb[0].mxu0 %v3946
        %v4020 = vpop.f32.mrb[0].mxu0
        %v4021 = vadd.f32 %v3940, %v4020
        %v4022 = vpop.f32.mrb[0].mxu0
        %v4023 = vadd.f32 %v3940, %v4022
        %4024 = vdwg.mxu0
        %4025 = vmatprep.subr.mxu0 %v3892
        %4026 = vmatpush1.msra.mxu0 %v3884
        %4027 = vmatprep.subr.mxu0 %v3893
        %4028 = vmatpush1.msra.mxu0 %v3885
        %4029 = vmatprep.subr.mxu0 %v3894
        %4030 = vmatpush1.msra.mxu0 %v3886
        %4031 = vmatprep.subr.mxu0 %v3895
        %4032 = vmatpush1.msra.mxu0 %v3887
        %4033 = vmatprep.subr.mxu0 0.0
        %4034 = vmatpush1.msra.mxu0 0.0
        %4035 = vmatprep.subr.mxu0 0.0
        %4036 = vmatpush1.msra.mxu0 0.0
        %4037 = vmatprep.subr.mxu0 0.0
        %4038 = vmatpush1.msra.mxu0 0.0
        %4039 = vmatprep.subr.mxu0 0.0
        %4040 = vmatpush1.msra.mxu0 0.0
        %4041 = vmatprep.subr.mxu0 0.0
        %4042 = vmatpush1.msra.mxu0 0.0
        %4043 = vmatprep.subr.mxu0 0.0
        %4044 = vmatpush1.msra.mxu0 0.0
        %4045 = vmatprep.subr.mxu0 0.0
        %4046 = vmatpush1.msra.mxu0 0.0
        %4047 = vmatprep.subr.mxu0 0.0
        %4048 = vmatpush1.msra.mxu0 0.0
        %4049 = vmatprep.subr.mxu0 0.0
        %4050 = vmatpush1.msra.mxu0 0.0
        %4051 = vmatprep.subr.mxu0 0.0
        %4052 = vmatpush1.msra.mxu0 0.0
        %4053 = vmatprep.subr.mxu0 0.0
        %4054 = vmatpush1.msra.mxu0 0.0
        %4055 = vmatprep.subr.mxu0 0.0
        %4056 = vmatpush1.msra.mxu0 0.0
        %4057 = vmatprep.subr.mxu0 0.0
        %4058 = vmatpush1.msra.mxu0 0.0
        %4059 = vmatprep.subr.mxu0 0.0
        %4060 = vmatpush1.msra.mxu0 0.0
        %4061 = vmatprep.subr.mxu0 0.0
        %4062 = vmatpush1.msra.mxu0 0.0
        %4063 = vmatprep.subr.mxu0 0.0
        %4064 = vmatpush1.msra.mxu0 0.0
        %4065 = vmatprep.subr.mxu0 0.0
        %4066 = vmatpush1.msra.mxu0 0.0
        %4067 = vmatprep.subr.mxu0 0.0
        %4068 = vmatpush1.msra.mxu0 0.0
        %4069 = vmatprep.subr.mxu0 0.0
        %4070 = vmatpush1.msra.mxu0 0.0
        %4071 = vmatprep.subr.mxu0 0.0
        %4072 = vmatpush1.msra.mxu0 0.0
        %4073 = vmatprep.subr.mxu0 0.0
        %4074 = vmatpush1.msra.mxu0 0.0
        %4075 = vmatprep.subr.mxu0 0.0
        %4076 = vmatpush1.msra.mxu0 0.0
        %4077 = vmatprep.subr.mxu0 0.0
        %4078 = vmatpush1.msra.mxu0 0.0
        %4079 = vmatprep.subr.mxu0 0.0
        %4080 = vmatpush1.msra.mxu0 0.0
        %4081 = vmatprep.subr.mxu0 0.0
        %4082 = vmatpush1.msra.mxu0 0.0
        %4083 = vmatprep.subr.mxu0 0.0
        %4084 = vmatpush1.msra.mxu0 0.0
        %4085 = vmatprep.subr.mxu0 0.0
        %4086 = vmatpush1.msra.mxu0 0.0
        %4087 = vmatprep.subr.mxu0 0.0
        %4088 = vmatpush1.msra.mxu0 0.0
        %4089 = vmatprep.mubr.f32.mxu0 0.0
        %4090 = vmatmul.mubr.f32.gmra.mrb[0].mxu0 %v3943
        %v4091 = vpop.f32.mrb[0].mxu0
        %v4092 = vadd.f32 %v3935, %v4091
        %v4093 = vpop.f32.mrb[0].mxu0
        %v4094 = vadd.f32 %v3935, %v4093
        %4095 = vmatprep.mubr.f32.mxu0 0.0
        %4096 = vmatmul.mubr.f32.gmra.mrb[0].mxu0 %v3946
        %v4097 = vpop.f32.mrb[0].mxu0
        %v4098 = vadd.f32 %v3940, %v4097
        %v4099 = vpop.f32.mrb[0].mxu0
        %v4100 = vadd.f32 %v3940, %v4099
        %4101 = vdwg.mxu0
        %4102 = vmatprep.subr.mxu0 %v3908
        %4103 = vmatpush1.msra.mxu0 %v3900
        %4104 = vmatprep.subr.mxu0 %v3909
        %4105 = vmatpush1.msra.mxu0 %v3901
        %4106 = vmatprep.subr.mxu0 %v3910
        %4107 = vmatpush1.msra.mxu0 %v3902
        %4108 = vmatprep.subr.mxu0 %v3911
        %4109 = vmatpush1.msra.mxu0 %v3903
        %4110 = vmatprep.subr.mxu0 0.0
        %4111 = vmatpush1.msra.mxu0 0.0
        %4112 = vmatprep.subr.mxu0 0.0
        %4113 = vmatpush1.msra.mxu0 0.0
        %4114 = vmatprep.subr.mxu0 0.0
        %4115 = vmatpush1.msra.mxu0 0.0
        %4116 = vmatprep.subr.mxu0 0.0
        %4117 = vmatpush1.msra.mxu0 0.0
        %4118 = vmatprep.subr.mxu0 0.0
        %4119 = vmatpush1.msra.mxu0 0.0
        %4120 = vmatprep.subr.mxu0 0.0
        %4121 = vmatpush1.msra.mxu0 0.0
        %4122 = vmatprep.subr.mxu0 0.0
        %4123 = vmatpush1.msra.mxu0 0.0
        %4124 = vmatprep.subr.mxu0 0.0
        %4125 = vmatpush1.msra.mxu0 0.0
        %4126 = vmatprep.subr.mxu0 0.0
        %4127 = vmatpush1.msra.mxu0 0.0
        %4128 = vmatprep.subr.mxu0 0.0
        %4129 = vmatpush1.msra.mxu0 0.0
        %4130 = vmatprep.subr.mxu0 0.0
        %4131 = vmatpush1.msra.mxu0 0.0
        %4132 = vmatprep.subr.mxu0 0.0
        %4133 = vmatpush1.msra.mxu0 0.0
        %4134 = vmatprep.subr.mxu0 0.0
        %4135 = vmatpush1.msra.mxu0 0.0
        %4136 = vmatprep.subr.mxu0 0.0
        %4137 = vmatpush1.msra.mxu0 0.0
        %4138 = vmatprep.subr.mxu0 0.0
        %4139 = vmatpush1.msra.mxu0 0.0
        %4140 = vmatprep.subr.mxu0 0.0
        %4141 = vmatpush1.msra.mxu0 0.0
        %4142 = vmatprep.subr.mxu0 0.0
        %4143 = vmatpush1.msra.mxu0 0.0
        %4144 = vmatprep.subr.mxu0 0.0
        %4145 = vmatpush1.msra.mxu0 0.0
        %4146 = vmatprep.subr.mxu0 0.0
        %4147 = vmatpush1.msra.mxu0 0.0
        %4148 = vmatprep.subr.mxu0 0.0
        %4149 = vmatpush1.msra.mxu0 0.0
        %4150 = vmatprep.subr.mxu0 0.0
        %4151 = vmatpush1.msra.mxu0 0.0
        %4152 = vmatprep.subr.mxu0 0.0
        %4153 = vmatpush1.msra.mxu0 0.0
        %4154 = vmatprep.subr.mxu0 0.0
        %4155 = vmatpush1.msra.mxu0 0.0
        %4156 = vmatprep.subr.mxu0 0.0
        %4157 = vmatpush1.msra.mxu0 0.0
        %4158 = vmatprep.subr.mxu0 0.0
        %4159 = vmatpush1.msra.mxu0 0.0
        %4160 = vmatprep.subr.mxu0 0.0
        %4161 = vmatpush1.msra.mxu0 0.0
        %4162 = vmatprep.subr.mxu0 0.0
        %4163 = vmatpush1.msra.mxu0 0.0
        %4164 = vmatprep.subr.mxu0 0.0
        %4165 = vmatpush1.msra.mxu0 0.0
        %4166 = vmatprep.mubr.f32.mxu0 0.0
        %4167 = vmatmul.mubr.f32.gmra.mrb[0].mxu0 %v3943
        %v4168 = vpop.f32.mrb[0].mxu0
        %v4169 = vadd.f32 %v3935, %v4168
        %v4170 = vpop.f32.mrb[0].mxu0
        %v4171 = vadd.f32 %v3935, %v4170
        %4172 = vmatprep.mubr.f32.mxu0 0.0
        %4173 = vmatmul.mubr.f32.gmra.mrb[0].mxu0 %v3946
        %v4174 = vpop.f32.mrb[0].mxu0
        %v4175 = vadd.f32 %v3940, %v4174
        %v4176 = vpop.f32.mrb[0].mxu0
        %v4177 = vadd.f32 %v3940, %v4176
        %4178 = vdwg.mxu0
        %4179 = vmatprep.subr.mxu0 %v3924
        %4180 = vmatpush1.msra.mxu0 %v3916
        %4181 = vmatprep.subr.mxu0 %v3925
        %4182 = vmatpush1.msra.mxu0 %v3917
        %4183 = vmatprep.subr.mxu0 %v3926
        %4184 = vmatpush1.msra.mxu0 %v3918
        %4185 = vmatprep.subr.mxu0 %v3927
        %4186 = vmatpush1.msra.mxu0 %v3919
        %4187 = vmatprep.subr.mxu0 0.0
        %4188 = vmatpush1.msra.mxu0 0.0
        %4189 = vmatprep.subr.mxu0 0.0
        %4190 = vmatpush1.msra.mxu0 0.0
        %4191 = vmatprep.subr.mxu0 0.0
        %4192 = vmatpush1.msra.mxu0 0.0
        %4193 = vmatprep.subr.mxu0 0.0
        %4194 = vmatpush1.msra.mxu0 0.0
        %4195 = vmatprep.subr.mxu0 0.0
        %4196 = vmatpush1.msra.mxu0 0.0
        %4197 = vmatprep.subr.mxu0 0.0
        %4198 = vmatpush1.msra.mxu0 0.0
        %4199 = vmatprep.subr.mxu0 0.0
        %4200 = vmatpush1.msra.mxu0 0.0
        %4201 = vmatprep.subr.mxu0 0.0
        %4202 = vmatpush1.msra.mxu0 0.0
        %4203 = vmatprep.subr.mxu0 0.0
        %4204 = vmatpush1.msra.mxu0 0.0
        %4205 = vmatprep.subr.mxu0 0.0
        %4206 = vmatpush1.msra.mxu0 0.0
        %4207 = vmatprep.subr.mxu0 0.0
        %4208 = vmatpush1.msra.mxu0 0.0
        %4209 = vmatprep.subr.mxu0 0.0
        %4210 = vmatpush1.msra.mxu0 0.0
        %4211 = vmatprep.subr.mxu0 0.0
        %4212 = vmatpush1.msra.mxu0 0.0
        %4213 = vmatprep.subr.mxu0 0.0
        %4214 = vmatpush1.msra.mxu0 0.0
        %4215 = vmatprep.subr.mxu0 0.0
        %4216 = vmatpush1.msra.mxu0 0.0
        %4217 = vmatprep.subr.mxu0 0.0
        %4218 = vmatpush1.msra.mxu0 0.0
        %4219 = vmatprep.subr.mxu0 0.0
        %4220 = vmatpush1.msra.mxu0 0.0
        %4221 = vmatprep.subr.mxu0 0.0
        %4222 = vmatpush1.msra.mxu0 0.0
        %4223 = vmatprep.subr.mxu0 0.0
        %4224 = vmatpush1.msra.mxu0 0.0
        %4225 = vmatprep.subr.mxu0 0.0
        %4226 = vmatpush1.msra.mxu0 0.0
        %4227 = vmatprep.subr.mxu0 0.0
        %4228 = vmatpush1.msra.mxu0 0.0
        %4229 = vmatprep.subr.mxu0 0.0
        %4230 = vmatpush1.msra.mxu0 0.0
        %4231 = vmatprep.subr.mxu0 0.0
        %4232 = vmatpush1.msra.mxu0 0.0
        %4233 = vmatprep.subr.mxu0 0.0
        %4234 = vmatpush1.msra.mxu0 0.0
        %4235 = vmatprep.subr.mxu0 0.0
        %4236 = vmatpush1.msra.mxu0 0.0
        %4237 = vmatprep.subr.mxu0 0.0
        %4238 = vmatpush1.msra.mxu0 0.0
        %4239 = vmatprep.subr.mxu0 0.0
        %4240 = vmatpush1.msra.mxu0 0.0
        %4241 = vmatprep.subr.mxu0 0.0
        %4242 = vmatpush1.msra.mxu0 0.0
        %4243 = vmatprep.mubr.f32.mxu0 0.0
        %4244 = vmatmul.mubr.f32.gmra.mrb[0].mxu0 %v3943
        %v4245 = vpop.f32.mrb[0].mxu0
        %v4246 = vadd.f32 %v3935, %v4245
        %v4247 = vpop.f32.mrb[0].mxu0
        %v4248 = vadd.f32 %v3935, %v4247
        %4249 = vmatprep.mubr.f32.mxu0 0.0
        %4250 = vmatmul.mubr.f32.gmra.mrb[0].mxu0 %v3946
        %v4251 = vpop.f32.mrb[0].mxu0
        %v4252 = vadd.f32 %v3940, %v4251
        %v4253 = vpop.f32.mrb[0].mxu0
        %v4254 = vadd.f32 %v3940, %v4253
        %4255 = vdwg.mxu0
        %v4256 = vadd.f32 %v4015, %v4017
        %v4257 = vadd.f32 %v4021, %v4023
        %v4258 = vadd.f32 %v4256, %v4092
        %v4259 = vadd.f32 %v4257, %v4098
        %v4260 = vadd.f32 %v4258, %v4094
        %v4261 = vadd.f32 %v4259, %v4100
        %v4262 = vadd.f32 %v4260, %v4169
        %v4263 = vadd.f32 %v4261, %v4175
        %v4264 = vadd.f32 %v4262, %v4171
        %v4265 = vadd.f32 %v4263, %v4177
        %v4266 = vadd.f32 %v4264, %v4246
        %v4267 = vadd.f32 %v4265, %v4252
        %v4268 = vadd.f32 %v4266, %v4248
        %v4269 = vadd.f32 %v4267, %v4254
        %v4270 = vmul.f32 %v4268, 0.125
        %v4271 = vmul.f32 %v4269, 0.125
        %v4272 = vld [vmem:[%s51] sm:$0xff]
        %v4273 = vld [vmem:[%s51 + $0x8] sm:$0xff]
        %v4274 = vld [vmem:[%s51 + $0x10] sm:$0xff]
        %v4275 = vld [vmem:[%s51 + $0x18] sm:$0xff]
        %v4276 = vld [vmem:[%s53] sm:$0xff]
        %v4277 = vld [vmem:[%s53 + $0x8] sm:$0xff]
        %v4278 = vld [vmem:[%s53 + $0x10] sm:$0xff]
        %v4279 = vld [vmem:[%s53 + $0x18] sm:$0xff]
        %4281 = vset.pattern.permute.xlu0 0
        %4282 = vperm.xlu0 %4281, %v4276
        %v4283 = vpop.permute.xlu0 %4282
        %4286 = vset.pattern.permute.xlu0 0
        %4287 = vperm.xlu0 %4286, %v4277
        %v4288 = vpop.permute.xlu0 %4287
        %4291 = vset.pattern.permute.xlu0 0
        %4292 = vperm.xlu0 %4291, %v4278
        %v4293 = vpop.permute.xlu0 %4292
        %4296 = vset.pattern.permute.xlu0 0
        %4297 = vperm.xlu0 %4296, %v4279
        %v4298 = vpop.permute.xlu0 %4297
        %v4301 = vsel %vm2043, %v4272, 0
        %v4304 = vsel %vm2043, %v4273, 0
        %v4307 = vsel %vm2043, %v4274, 0
        %v4310 = vsel %vm2043, %v4275, 0
        %4312 = vmatprep.subr.mxu0 0.0
        %4313 = vmatpush1.msra.mxu0 %v4270
        %4314 = vmatprep.subr.mxu0 0.0
        %4315 = vmatpush1.msra.mxu0 %v4271
        %4316 = vmatprep.subr.mxu0 0.0
        %4317 = vmatpush1.msra.mxu0 0.0
        %4318 = vmatprep.subr.mxu0 0.0
        %4319 = vmatpush1.msra.mxu0 0.0
        %4320 = vmatprep.subr.mxu0 0.0
        %4321 = vmatpush1.msra.mxu0 0.0
        %4322 = vmatprep.subr.mxu0 0.0
        %4323 = vmatpush1.msra.mxu0 0.0
        %4324 = vmatprep.subr.mxu0 0.0
        %4325 = vmatpush1.msra.mxu0 0.0
        %4326 = vmatprep.subr.mxu0 0.0
        %4327 = vmatpush1.msra.mxu0 0.0
        %4328 = vmatprep.subr.mxu0 0.0
        %4329 = vmatpush1.msra.mxu0 0.0
        %4330 = vmatprep.subr.mxu0 0.0
        %4331 = vmatpush1.msra.mxu0 0.0
        %4332 = vmatprep.subr.mxu0 0.0
        %4333 = vmatpush1.msra.mxu0 0.0
        %4334 = vmatprep.subr.mxu0 0.0
        %4335 = vmatpush1.msra.mxu0 0.0
        %4336 = vmatprep.subr.mxu0 0.0
        %4337 = vmatpush1.msra.mxu0 0.0
        %4338 = vmatprep.subr.mxu0 0.0
        %4339 = vmatpush1.msra.mxu0 0.0
        %4340 = vmatprep.subr.mxu0 0.0
        %4341 = vmatpush1.msra.mxu0 0.0
        %4342 = vmatprep.subr.mxu0 0.0
        %4343 = vmatpush1.msra.mxu0 0.0
        %4344 = vmatprep.subr.mxu0 0.0
        %4345 = vmatpush1.msra.mxu0 0.0
        %4346 = vmatprep.subr.mxu0 0.0
        %4347 = vmatpush1.msra.mxu0 0.0
        %4348 = vmatprep.subr.mxu0 0.0
        %4349 = vmatpush1.msra.mxu0 0.0
        %4350 = vmatprep.subr.mxu0 0.0
        %4351 = vmatpush1.msra.mxu0 0.0
        %4352 = vmatprep.subr.mxu0 0.0
        %4353 = vmatpush1.msra.mxu0 0.0
        %4354 = vmatprep.subr.mxu0 0.0
        %4355 = vmatpush1.msra.mxu0 0.0
        %4356 = vmatprep.subr.mxu0 0.0
        %4357 = vmatpush1.msra.mxu0 0.0
        %4358 = vmatprep.subr.mxu0 0.0
        %4359 = vmatpush1.msra.mxu0 0.0
        %4360 = vmatprep.subr.mxu0 0.0
        %4361 = vmatpush1.msra.mxu0 0.0
        %4362 = vmatprep.subr.mxu0 0.0
        %4363 = vmatpush1.msra.mxu0 0.0
        %4364 = vmatprep.subr.mxu0 0.0
        %4365 = vmatpush1.msra.mxu0 0.0
        %4366 = vmatprep.subr.mxu0 0.0
        %4367 = vmatpush1.msra.mxu0 0.0
        %4368 = vmatprep.subr.mxu0 0.0
        %4369 = vmatpush1.msra.mxu0 0.0
        %4370 = vmatprep.subr.mxu0 0.0
        %4371 = vmatpush1.msra.mxu0 0.0
        %4372 = vmatprep.subr.mxu0 0.0
        %4373 = vmatpush1.msra.mxu0 0.0
        %4374 = vmatprep.subr.mxu0 0.0
        %4375 = vmatpush1.msra.mxu0 0.0
        %4376 = vmatprep.mubr.f32.mxu0 0.0
        %4377 = vmatmul.mubr.f32.gmra.mrb[0].mxu0 %v4301
        %v4378 = vpop.f32.mrb[0].mxu0
        %v4379 = vadd.f32 %v4283, %v4378
        %v4380 = vpop.f32.mrb[0].mxu0
        %4381 = vmatprep.mubr.f32.mxu0 0.0
        %4382 = vmatmul.mubr.f32.gmra.mrb[0].mxu0 %v4304
        %v4383 = vpop.f32.mrb[0].mxu0
        %v4384 = vadd.f32 %v4288, %v4383
        %v4385 = vpop.f32.mrb[0].mxu0
        %4386 = vmatprep.mubr.f32.mxu0 0.0
        %4387 = vmatmul.mubr.f32.gmra.mrb[0].mxu0 %v4307
        %v4388 = vpop.f32.mrb[0].mxu0
        %v4389 = vadd.f32 %v4293, %v4388
        %v4390 = vpop.f32.mrb[0].mxu0
        %4391 = vmatprep.mubr.f32.mxu0 0.0
        %4392 = vmatmul.mubr.f32.gmra.mrb[0].mxu0 %v4310
        %v4393 = vpop.f32.mrb[0].mxu0
        %v4394 = vadd.f32 %v4298, %v4393
        %v4395 = vpop.f32.mrb[0].mxu0
        %4396 = vdwg.mxu0
        %v4397 = vmax.f32 %v4379, 0.0
        %v4398 = vmax.f32 %v4384, 0.0
        %v4399 = vmax.f32 %v4389, 0.0
        %v4400 = vmax.f32 %v4394, 0.0
        %v4401 = vld [vmem:[%s55] sm:$0xff]
        %v4402 = vld [vmem:[%s55 + $0x8] sm:$0xf]
        %v4403 = vld [vmem:[%s57] sm:$0xff]
        %v4404 = vld [vmem:[%s57 + $0x8] sm:$0xf]
        %4406 = vset.pattern.permute.xlu0 0
        %4407 = vperm.xlu0 %4406, %v4403
        %v4408 = vpop.permute.xlu0 %4407
        %4411 = vset.pattern.permute.xlu0 0
        %4412 = vperm.xlu0 %4411, %v4404
        %v4413 = vpop.permute.xlu0 %4412
        %v4416 = vsel %vm1602, %v4401, 0
        %v4419 = vsel %vm1602, %v4402, 0
        %4421 = vmatprep.subr.mxu0 0.0
        %4422 = vmatpush1.msra.mxu0 %v4397
        %4423 = vmatprep.subr.mxu0 0.0
        %4424 = vmatpush1.msra.mxu0 %v4398
        %4425 = vmatprep.subr.mxu0 0.0
        %4426 = vmatpush1.msra.mxu0 %v4399
        %4427 = vmatprep.subr.mxu0 0.0
        %4428 = vmatpush1.msra.mxu0 %v4400
        %4429 = vmatprep.subr.mxu0 0.0
        %4430 = vmatpush1.msra.mxu0 0.0
        %4431 = vmatprep.subr.mxu0 0.0
        %4432 = vmatpush1.msra.mxu0 0.0
        %4433 = vmatprep.subr.mxu0 0.0
        %4434 = vmatpush1.msra.mxu0 0.0
        %4435 = vmatprep.subr.mxu0 0.0
        %4436 = vmatpush1.msra.mxu0 0.0
        %4437 = vmatprep.subr.mxu0 0.0
        %4438 = vmatpush1.msra.mxu0 0.0
        %4439 = vmatprep.subr.mxu0 0.0
        %4440 = vmatpush1.msra.mxu0 0.0
        %4441 = vmatprep.subr.mxu0 0.0
        %4442 = vmatpush1.msra.mxu0 0.0
        %4443 = vmatprep.subr.mxu0 0.0
        %4444 = vmatpush1.msra.mxu0 0.0
        %4445 = vmatprep.subr.mxu0 0.0
        %4446 = vmatpush1.msra.mxu0 0.0
        %4447 = vmatprep.subr.mxu0 0.0
        %4448 = vmatpush1.msra.mxu0 0.0
        %4449 = vmatprep.subr.mxu0 0.0
        %4450 = vmatpush1.msra.mxu0 0.0
        %4451 = vmatprep.subr.mxu0 0.0
        %4452 = vmatpush1.msra.mxu0 0.0
        %4453 = vmatprep.subr.mxu0 0.0
        %4454 = vmatpush1.msra.mxu0 0.0
        %4455 = vmatprep.subr.mxu0 0.0
        %4456 = vmatpush1.msra.mxu0 0.0
        %4457 = vmatprep.subr.mxu0 0.0
        %4458 = vmatpush1.msra.mxu0 0.0
        %4459 = vmatprep.subr.mxu0 0.0
        %4460 = vmatpush1.msra.mxu0 0.0
        %4461 = vmatprep.subr.mxu0 0.0
        %4462 = vmatpush1.msra.mxu0 0.0
        %4463 = vmatprep.subr.mxu0 0.0
        %4464 = vmatpush1.msra.mxu0 0.0
        %4465 = vmatprep.subr.mxu0 0.0
        %4466 = vmatpush1.msra.mxu0 0.0
        %4467 = vmatprep.subr.mxu0 0.0
        %4468 = vmatpush1.msra.mxu0 0.0
        %4469 = vmatprep.subr.mxu0 0.0
        %4470 = vmatpush1.msra.mxu0 0.0
        %4471 = vmatprep.subr.mxu0 0.0
        %4472 = vmatpush1.msra.mxu0 0.0
        %4473 = vmatprep.subr.mxu0 0.0
        %4474 = vmatpush1.msra.mxu0 0.0
        %4475 = vmatprep.subr.mxu0 0.0
        %4476 = vmatpush1.msra.mxu0 0.0
        %4477 = vmatprep.subr.mxu0 0.0
        %4478 = vmatpush1.msra.mxu0 0.0
        %4479 = vmatprep.subr.mxu0 0.0
        %4480 = vmatpush1.msra.mxu0 0.0
        %4481 = vmatprep.subr.mxu0 0.0
        %4482 = vmatpush1.msra.mxu0 0.0
        %4483 = vmatprep.subr.mxu0 0.0
        %4484 = vmatpush1.msra.mxu0 0.0
        %4485 = vmatprep.mubr.f32.mxu0 0.0
        %4486 = vmatmul.mubr.f32.gmra.mrb[0].mxu0 %v4416
        %v4487 = vpop.f32.mrb[0].mxu0
        %v4488 = vadd.f32 %v4408, %v4487
        %v4489 = vpop.f32.mrb[0].mxu0
        %4490 = vmatprep.mubr.f32.mxu0 0.0
        %4491 = vmatmul.mubr.f32.gmra.mrb[0].mxu0 %v4419
        %v4492 = vpop.f32.mrb[0].mxu0
        %v4493 = vadd.f32 %v4413, %v4492
        %v4494 = vpop.f32.mrb[0].mxu0
        %4495 = vdwg.mxu0
        %v4496 = vmul.f32 %v4488, %v4488
        %v4498 = vrot.slane %v4496, 1
        %v4500 = vadd.f32 %v4496, %v4498
        %v4501 = vrot.slane %v4496, 2
        %v4503 = vadd.f32 %v4500, %v4501
        %v4504 = vrot.slane %v4496, 3
        %v4506 = vadd.f32 %v4503, %v4504
        %v4507 = vrsqrt.pop %v4506
        %v4508 = vmul.f32 %v4506, %v4507
        %vm4509 = vcmp.eq.f32.partialorder %v4506, inf
        %v4510 = vsel %vm4509, %v4506, %v4508
        %vm4511 = vcmp.eq.f32.partialorder %v4506, 0.0
        %v4512 = vand.u32 %v4506, 2147483648
        %v4513 = vsel %vm4511, %v4512, %v4510
        %v4514 = vadd.f32 %v4513, 1e-08
        %v4515 = vrcp.pop %v4514
        %v4516 = vmul.f32 1.0, %v4515
        %v4517 = vmul.f32 %v4488, %v4516
        %v4519 = vrot.slane %v4516, 7
        %v4521 = vmul.f32 %v4488, %v4519
        %v4522 = vrot.slane %v4516, 6
        %v4524 = vmul.f32 %v4488, %v4522
        %v4525 = vrot.slane %v4516, 5
        %v4527 = vmul.f32 %v4488, %v4525
        %v4528 = vmul.f32 %v4524, %v4524
        %v4529 = vmul.f32 %v4527, %v4527
        %v4531 = vrot.slane %v4529, 1
        %v4533 = vadd.f32 %v4528, %v4531
        %v4534 = vmul.f32 %v4533, 2.0
        %v4535 = vsub.f32 1.0, %v4534
        %v4537 = vrot.slane %v4524, 1
        %v4539 = vmul.f32 %v4521, %v4537
        %v4541 = vrot.slane %v4517, 5
        %v4543 = vmul.f32 %v4527, %v4541
        %v4545 = vrot.slane %v4543, 2
        %v4547 = vsub.f32 %v4539, %v4545
        %v4548 = vmul.f32 %v4547, 2.0
        %v4550 = vrot.slane %v4527, 2
        %v4552 = vmul.f32 %v4521, %v4550
        %v4553 = vrot.slane %v4517, 6
        %v4555 = vmul.f32 %v4524, %v4553
        %v4557 = vrot.slane %v4555, 1
        %v4559 = vadd.f32 %v4552, %v4557
        %v4560 = vmul.f32 %v4559, 2.0
        %v4561 = vadd.f32 %v4539, %v4545
        %v4562 = vmul.f32 %v4561, 2.0
        %v4563 = vmul.f32 %v4521, %v4521
        %v4564 = vrot.slane %v4529, 2
        %v4566 = vadd.f32 %v4563, %v4564
        %v4567 = vmul.f32 %v4566, 2.0
        %v4568 = vsub.f32 1.0, %v4567
        %v4569 = vrot.slane %v4527, 1
        %v4571 = vmul.f32 %v4524, %v4569
        %v4572 = vrot.slane %v4517, 7
        %v4574 = vmul.f32 %v4521, %v4572
        %v4576 = vrot.slane %v4574, 7
        %v4578 = vsub.f32 %v4571, %v4576
        %v4579 = vmul.f32 %v4578, 2.0
        %v4580 = vsub.f32 %v4552, %v4557
        %v4581 = vmul.f32 %v4580, 2.0
        %v4582 = vadd.f32 %v4571, %v4576
        %v4583 = vmul.f32 %v4582, 2.0
        %v4585 = vrot.slane %v4528, 1
        %v4587 = vadd.f32 %v4563, %v4585
        %v4588 = vmul.f32 %v4587, 2.0
        %v4589 = vsub.f32 1.0, %v4588
        %v4590 = vld [vmem:[%s63] sm:$0xff]
        %v4591 = vld [vmem:[%s63 + $0x8] sm:$0xff]
        %v4592 = vld [vmem:[%s63 + $0x10] sm:$0xff]
        %v4593 = vld [vmem:[%s63 + $0x18] sm:$0xff]
        %v4594 = vld [vmem:[%s63 + $0x20] sm:$0xff]
        %v4595 = vld [vmem:[%s63 + $0x28] sm:$0xff]
        %v4596 = vld [vmem:[%s63 + $0x30] sm:$0xff]
        %v4597 = vld [vmem:[%s63 + $0x38] sm:$0xff]
        %4599 = vset.pattern.permute.xlu0 0
        %4600 = vperm.xlu0 %4599, %v4590
        %v4601 = vpop.permute.xlu0 %4600
        %4604 = vset.pattern.permute.xlu0 0
        %4605 = vperm.xlu0 %4604, %v4591
        %v4606 = vpop.permute.xlu0 %4605
        %4609 = vset.pattern.permute.xlu0 0
        %4610 = vperm.xlu0 %4609, %v4592
        %v4611 = vpop.permute.xlu0 %4610
        %4614 = vset.pattern.permute.xlu0 0
        %4615 = vperm.xlu0 %4614, %v4593
        %v4616 = vpop.permute.xlu0 %4615
        %4619 = vset.pattern.permute.xlu0 0
        %4620 = vperm.xlu0 %4619, %v4594
        %v4621 = vpop.permute.xlu0 %4620
        %4624 = vset.pattern.permute.xlu0 0
        %4625 = vperm.xlu0 %4624, %v4595
        %v4626 = vpop.permute.xlu0 %4625
        %4629 = vset.pattern.permute.xlu0 0
        %4630 = vperm.xlu0 %4629, %v4596
        %v4631 = vpop.permute.xlu0 %4630
        %4634 = vset.pattern.permute.xlu0 0
        %4635 = vperm.xlu0 %4634, %v4597
        %v4636 = vpop.permute.xlu0 %4635
        %v4638 = vlaneseq
        %v4639 = vshrl.u32 %v4638, 7
        %v4640 = vsub.s32 2, %v4639
        %v4641 = vrot.slane %v4535, %v4640
        %v4642 = vmul.f32 %v4601, %v4641
        %v4643 = vmul.f32 %v4606, %v4641
        %v4644 = vmul.f32 %v4611, %v4641
        %v4645 = vmul.f32 %v4616, %v4641
        %v4646 = vmul.f32 %v4621, %v4641
        %v4647 = vmul.f32 %v4626, %v4641
        %v4648 = vmul.f32 %v4631, %v4641
        %v4649 = vmul.f32 %v4636, %v4641
        %4650 = vset.pattern.permute.xlu0 1
        %4651 = vperm.xlu0 %4650, %v4590
        %v4652 = vpop.permute.xlu0 %4651
        %4654 = vset.pattern.permute.xlu0 1
        %4655 = vperm.xlu0 %4654, %v4591
        %v4656 = vpop.permute.xlu0 %4655
        %4658 = vset.pattern.permute.xlu0 1
        %4659 = vperm.xlu0 %4658, %v4592
        %v4660 = vpop.permute.xlu0 %4659
        %4662 = vset.pattern.permute.xlu0 1
        %4663 = vperm.xlu0 %4662, %v4593
        %v4664 = vpop.permute.xlu0 %4663
        %4666 = vset.pattern.permute.xlu0 1
        %4667 = vperm.xlu0 %4666, %v4594
        %v4668 = vpop.permute.xlu0 %4667
        %4670 = vset.pattern.permute.xlu0 1
        %4671 = vperm.xlu0 %4670, %v4595
        %v4672 = vpop.permute.xlu0 %4671
        %4674 = vset.pattern.permute.xlu0 1
        %4675 = vperm.xlu0 %4674, %v4596
        %v4676 = vpop.permute.xlu0 %4675
        %4678 = vset.pattern.permute.xlu0 1
        %4679 = vperm.xlu0 %4678, %v4597
        %v4680 = vpop.permute.xlu0 %4679
        %v4682 = vlaneseq
        %v4683 = vshrl.u32 %v4682, 7
        %v4684 = vsub.s32 1, %v4683
        %v4685 = vrot.slane %v4562, %v4684
        %v4686 = vmul.f32 %v4652, %v4685
        %v4687 = vmul.f32 %v4656, %v4685
        %v4688 = vmul.f32 %v4660, %v4685
        %v4689 = vmul.f32 %v4664, %v4685
        %v4690 = vmul.f32 %v4668, %v4685
        %v4691 = vmul.f32 %v4672, %v4685
        %v4692 = vmul.f32 %v4676, %v4685
        %v4693 = vmul.f32 %v4680, %v4685
        %v4694 = vadd.f32 %v4642, %v4686
        %v4695 = vadd.f32 %v4643, %v4687
        %v4696 = vadd.f32 %v4644, %v4688
        %v4697 = vadd.f32 %v4645, %v4689
        %v4698 = vadd.f32 %v4646, %v4690
        %v4699 = vadd.f32 %v4647, %v4691
        %v4700 = vadd.f32 %v4648, %v4692
        %v4701 = vadd.f32 %v4649, %v4693
        %4702 = vset.pattern.permute.xlu0 2
        %4703 = vperm.xlu0 %4702, %v4590
        %v4704 = vpop.permute.xlu0 %4703
        %4706 = vset.pattern.permute.xlu0 2
        %4707 = vperm.xlu0 %4706, %v4591
        %v4708 = vpop.permute.xlu0 %4707
        %4710 = vset.pattern.permute.xlu0 2
        %4711 = vperm.xlu0 %4710, %v4592
        %v4712 = vpop.permute.xlu0 %4711
        %4714 = vset.pattern.permute.xlu0 2
        %4715 = vperm.xlu0 %4714, %v4593
        %v4716 = vpop.permute.xlu0 %4715
        %4718 = vset.pattern.permute.xlu0 2
        %4719 = vperm.xlu0 %4718, %v4594
        %v4720 = vpop.permute.xlu0 %4719
        %4722 = vset.pattern.permute.xlu0 2
        %4723 = vperm.xlu0 %4722, %v4595
        %v4724 = vpop.permute.xlu0 %4723
        %4726 = vset.pattern.permute.xlu0 2
        %4727 = vperm.xlu0 %4726, %v4596
        %v4728 = vpop.permute.xlu0 %4727
        %4730 = vset.pattern.permute.xlu0 2
        %4731 = vperm.xlu0 %4730, %v4597
        %v4732 = vpop.permute.xlu0 %4731
        %v4734 = vlaneseq
        %v4735 = vshrl.u32 %v4734, 7
        %v4736 = vsub.s32 1, %v4735
        %v4737 = vrot.slane %v4581, %v4736
        %v4738 = vmul.f32 %v4704, %v4737
        %v4739 = vmul.f32 %v4708, %v4737
        %v4740 = vmul.f32 %v4712, %v4737
        %v4741 = vmul.f32 %v4716, %v4737
        %v4742 = vmul.f32 %v4720, %v4737
        %v4743 = vmul.f32 %v4724, %v4737
        %v4744 = vmul.f32 %v4728, %v4737
        %v4745 = vmul.f32 %v4732, %v4737
        %v4746 = vadd.f32 %v4694, %v4738
        %v4747 = vadd.f32 %v4695, %v4739
        %v4748 = vadd.f32 %v4696, %v4740
        %v4749 = vadd.f32 %v4697, %v4741
        %v4750 = vadd.f32 %v4698, %v4742
        %v4751 = vadd.f32 %v4699, %v4743
        %v4752 = vadd.f32 %v4700, %v4744
        %v4753 = vadd.f32 %v4701, %v4745
        %v4754 = vlaneseq
        %v4755 = vshrl.u32 %v4754, 7
        %v4756 = vsub.s32 1, %v4755
        %v4757 = vrot.slane %v4548, %v4756
        %v4758 = vmul.f32 %v4601, %v4757
        %v4759 = vmul.f32 %v4606, %v4757
        %v4760 = vmul.f32 %v4611, %v4757
        %v4761 = vmul.f32 %v4616, %v4757
        %v4762 = vmul.f32 %v4621, %v4757
        %v4763 = vmul.f32 %v4626, %v4757
        %v4764 = vmul.f32 %v4631, %v4757
        %v4765 = vmul.f32 %v4636, %v4757
        %v4766 = vlaneseq
        %v4767 = vshrl.u32 %v4766, 7
        %v4768 = vsub.s32 1, %v4767
        %v4769 = vrot.slane %v4568, %v4768
        %v4770 = vmul.f32 %v4652, %v4769
        %v4771 = vmul.f32 %v4656, %v4769
        %v4772 = vmul.f32 %v4660, %v4769
        %v4773 = vmul.f32 %v4664, %v4769
        %v4774 = vmul.f32 %v4668, %v4769
        %v4775 = vmul.f32 %v4672, %v4769
        %v4776 = vmul.f32 %v4676, %v4769
        %v4777 = vmul.f32 %v4680, %v4769
        %v4778 = vadd.f32 %v4758, %v4770
        %v4779 = vadd.f32 %v4759, %v4771
        %v4780 = vadd.f32 %v4760, %v4772
        %v4781 = vadd.f32 %v4761, %v4773
        %v4782 = vadd.f32 %v4762, %v4774
        %v4783 = vadd.f32 %v4763, %v4775
        %v4784 = vadd.f32 %v4764, %v4776
        %v4785 = vadd.f32 %v4765, %v4777
        %v4786 = vlaneseq
        %v4787 = vshrl.u32 %v4786, 7
        %v4788 = vsub.s32 2, %v4787
        %v4789 = vrot.slane %v4583, %v4788
        %v4790 = vmul.f32 %v4704, %v4789
        %v4791 = vmul.f32 %v4708, %v4789
        %v4792 = vmul.f32 %v4712, %v4789
        %v4793 = vmul.f32 %v4716, %v4789
        %v4794 = vmul.f32 %v4720, %v4789
        %v4795 = vmul.f32 %v4724, %v4789
        %v4796 = vmul.f32 %v4728, %v4789
        %v4797 = vmul.f32 %v4732, %v4789
        %v4798 = vadd.f32 %v4778, %v4790
        %v4799 = vadd.f32 %v4779, %v4791
        %v4800 = vadd.f32 %v4780, %v4792
        %v4801 = vadd.f32 %v4781, %v4793
        %v4802 = vadd.f32 %v4782, %v4794
        %v4803 = vadd.f32 %v4783, %v4795
        %v4804 = vadd.f32 %v4784, %v4796
        %v4805 = vadd.f32 %v4785, %v4797
        %v4806 = vlaneseq
        %v4807 = vshrl.u32 %v4806, 7
        %v4808 = vsub.s32 1, %v4807
        %v4809 = vrot.slane %v4560, %v4808
        %v4810 = vmul.f32 %v4601, %v4809
        %v4811 = vmul.f32 %v4606, %v4809
        %v4812 = vmul.f32 %v4611, %v4809
        %v4813 = vmul.f32 %v4616, %v4809
        %v4814 = vmul.f32 %v4621, %v4809
        %v4815 = vmul.f32 %v4626, %v4809
        %v4816 = vmul.f32 %v4631, %v4809
        %v4817 = vmul.f32 %v4636, %v4809
        %v4818 = vlaneseq
        %v4819 = vshrl.u32 %v4818, 7
        %v4820 = vsub.s32 2, %v4819
        %v4821 = vrot.slane %v4579, %v4820
        %v4822 = vmul.f32 %v4652, %v4821
        %v4823 = vmul.f32 %v4656, %v4821
        %v4824 = vmul.f32 %v4660, %v4821
        %v4825 = vmul.f32 %v4664, %v4821
        %v4826 = vmul.f32 %v4668, %v4821
        %v4827 = vmul.f32 %v4672, %v4821
        %v4828 = vmul.f32 %v4676, %v4821
        %v4829 = vmul.f32 %v4680, %v4821
        %v4830 = vadd.f32 %v4810, %v4822
        %v4831 = vadd.f32 %v4811, %v4823
        %v4832 = vadd.f32 %v4812, %v4824
        %v4833 = vadd.f32 %v4813, %v4825
        %v4834 = vadd.f32 %v4814, %v4826
        %v4835 = vadd.f32 %v4815, %v4827
        %v4836 = vadd.f32 %v4816, %v4828
        %v4837 = vadd.f32 %v4817, %v4829
        %v4838 = vlaneseq
        %v4839 = vshrl.u32 %v4838, 7
        %v4840 = vsub.s32 1, %v4839
        %v4841 = vrot.slane %v4589, %v4840
        %v4842 = vmul.f32 %v4704, %v4841
        %v4843 = vmul.f32 %v4708, %v4841
        %v4844 = vmul.f32 %v4712, %v4841
        %v4845 = vmul.f32 %v4716, %v4841
        %v4846 = vmul.f32 %v4720, %v4841
        %v4847 = vmul.f32 %v4724, %v4841
        %v4848 = vmul.f32 %v4728, %v4841
        %v4849 = vmul.f32 %v4732, %v4841
        %v4850 = vadd.f32 %v4830, %v4842
        %v4851 = vadd.f32 %v4831, %v4843
        %v4852 = vadd.f32 %v4832, %v4844
        %v4853 = vadd.f32 %v4833, %v4845
        %v4854 = vadd.f32 %v4834, %v4846
        %v4855 = vadd.f32 %v4835, %v4847
        %v4856 = vadd.f32 %v4836, %v4848
        %v4857 = vadd.f32 %v4837, %v4849
        %v4858 = vld [vmem:[%s59] sm:$0xff]
        %v4859 = vld [vmem:[%s59 + $0x8] sm:$0xff]
        %v4860 = vld [vmem:[%s59 + $0x10] sm:$0xff]
        %v4861 = vld [vmem:[%s59 + $0x18] sm:$0xff]
        %v4862 = vld [vmem:[%s59 + $0x20] sm:$0xff]
        %v4863 = vld [vmem:[%s59 + $0x28] sm:$0xff]
        %v4864 = vld [vmem:[%s59 + $0x30] sm:$0xff]
        %v4865 = vld [vmem:[%s59 + $0x38] sm:$0xff]
        %v4867 = vsel %vm2043, %v4858, 0
        %v4870 = vsel %vm2043, %v4859, 0
        %v4873 = vsel %vm2043, %v4860, 0
        %v4876 = vsel %vm2043, %v4861, 0
        %v4879 = vsel %vm2043, %v4862, 0
        %v4882 = vsel %vm2043, %v4863, 0
        %v4885 = vsel %vm2043, %v4864, 0
        %v4888 = vsel %vm2043, %v4865, 0
        %4890 = vmatprep.subr.mxu0 %v4017
        %4891 = vmatpush1.msra.mxu0 %v4015
        %4892 = vmatprep.subr.mxu0 %v4023
        %4893 = vmatpush1.msra.mxu0 %v4021
        %4894 = vmatprep.subr.mxu0 0.0
        %4895 = vmatpush1.msra.mxu0 0.0
        %4896 = vmatprep.subr.mxu0 0.0
        %4897 = vmatpush1.msra.mxu0 0.0
        %4898 = vmatprep.subr.mxu0 0.0
        %4899 = vmatpush1.msra.mxu0 0.0
        %4900 = vmatprep.subr.mxu0 0.0
        %4901 = vmatpush1.msra.mxu0 0.0
        %4902 = vmatprep.subr.mxu0 0.0
        %4903 = vmatpush1.msra.mxu0 0.0
        %4904 = vmatprep.subr.mxu0 0.0
        %4905 = vmatpush1.msra.mxu0 0.0
        %4906 = vmatprep.subr.mxu0 0.0
        %4907 = vmatpush1.msra.mxu0 0.0
        %4908 = vmatprep.subr.mxu0 0.0
        %4909 = vmatpush1.msra.mxu0 0.0
        %4910 = vmatprep.subr.mxu0 0.0
        %4911 = vmatpush1.msra.mxu0 0.0
        %4912 = vmatprep.subr.mxu0 0.0
        %4913 = vmatpush1.msra.mxu0 0.0
        %4914 = vmatprep.subr.mxu0 0.0
        %4915 = vmatpush1.msra.mxu0 0.0
        %4916 = vmatprep.subr.mxu0 0.0
        %4917 = vmatpush1.msra.mxu0 0.0
        %4918 = vmatprep.subr.mxu0 0.0
        %4919 = vmatpush1.msra.mxu0 0.0
        %4920 = vmatprep.subr.mxu0 0.0
        %4921 = vmatpush1.msra.mxu0 0.0
        %4922 = vmatprep.subr.mxu0 0.0
        %4923 = vmatpush1.msra.mxu0 0.0
        %4924 = vmatprep.subr.mxu0 0.0
        %4925 = vmatpush1.msra.mxu0 0.0
        %4926 = vmatprep.subr.mxu0 0.0
        %4927 = vmatpush1.msra.mxu0 0.0
        %4928 = vmatprep.subr.mxu0 0.0
        %4929 = vmatpush1.msra.mxu0 0.0
        %4930 = vmatprep.subr.mxu0 0.0
        %4931 = vmatpush1.msra.mxu0 0.0
        %4932 = vmatprep.subr.mxu0 0.0
        %4933 = vmatpush1.msra.mxu0 0.0
        %4934 = vmatprep.subr.mxu0 0.0
        %4935 = vmatpush1.msra.mxu0 0.0
        %4936 = vmatprep.subr.mxu0 0.0
        %4937 = vmatpush1.msra.mxu0 0.0
        %4938 = vmatprep.subr.mxu0 0.0
        %4939 = vmatpush1.msra.mxu0 0.0
        %4940 = vmatprep.subr.mxu0 0.0
        %4941 = vmatpush1.msra.mxu0 0.0
        %4942 = vmatprep.subr.mxu0 0.0
        %4943 = vmatpush1.msra.mxu0 0.0
        %4944 = vmatprep.subr.mxu0 0.0
        %4945 = vmatpush1.msra.mxu0 0.0
        %4946 = vmatprep.subr.mxu0 0.0
        %4947 = vmatpush1.msra.mxu0 0.0
        %4948 = vmatprep.subr.mxu0 0.0
        %4949 = vmatpush1.msra.mxu0 0.0
        %4950 = vmatprep.subr.mxu0 0.0
        %4951 = vmatpush1.msra.mxu0 0.0
        %4952 = vmatprep.subr.mxu0 0.0
        %4953 = vmatpush1.msra.mxu0 0.0
        %4954 = vmatprep.mubr.f32.mxu0 0.0
        %4955 = vmatmul.mubr.f32.gmra.mrb[0].mxu0 %v4867
        %v4956 = vpop.f32.mrb[0].mxu0
        %v4957 = vadd.f32 0.0, %v4956
        %v4958 = vpop.f32.mrb[0].mxu0
        %v4959 = vadd.f32 0.0, %v4958
        %4960 = vmatprep.mubr.f32.mxu0 0.0
        %4961 = vmatmul.mubr.f32.gmra.mrb[0].mxu0 %v4870
        %v4962 = vpop.f32.mrb[0].mxu0
        %v4963 = vadd.f32 0.0, %v4962
        %v4964 = vpop.f32.mrb[0].mxu0
        %v4965 = vadd.f32 0.0, %v4964
        %4966 = vmatprep.mubr.f32.mxu0 0.0
        %4967 = vmatmul.mubr.f32.gmra.mrb[0].mxu0 %v4873
        %v4968 = vpop.f32.mrb[0].mxu0
        %v4969 = vadd.f32 0.0, %v4968
        %v4970 = vpop.f32.mrb[0].mxu0
        %v4971 = vadd.f32 0.0, %v4970
        %4972 = vmatprep.mubr.f32.mxu0 0.0
        %4973 = vmatmul.mubr.f32.gmra.mrb[0].mxu0 %v4876
        %v4974 = vpop.f32.mrb[0].mxu0
        %v4975 = vadd.f32 0.0, %v4974
        %v4976 = vpop.f32.mrb[0].mxu0
        %v4977 = vadd.f32 0.0, %v4976
        %4978 = vmatprep.mubr.f32.mxu0 0.0
        %4979 = vmatmul.mubr.f32.gmra.mrb[0].mxu0 %v4879
        %v4980 = vpop.f32.mrb[0].mxu0
        %v4981 = vadd.f32 0.0, %v4980
        %v4982 = vpop.f32.mrb[0].mxu0
        %v4983 = vadd.f32 0.0, %v4982
        %4984 = vmatprep.mubr.f32.mxu0 0.0
        %4985 = vmatmul.mubr.f32.gmra.mrb[0].mxu0 %v4882
        %v4986 = vpop.f32.mrb[0].mxu0
        %v4987 = vadd.f32 0.0, %v4986
        %v4988 = vpop.f32.mrb[0].mxu0
        %v4989 = vadd.f32 0.0, %v4988
        %4990 = vmatprep.mubr.f32.mxu0 0.0
        %4991 = vmatmul.mubr.f32.gmra.mrb[0].mxu0 %v4885
        %v4992 = vpop.f32.mrb[0].mxu0
        %v4993 = vadd.f32 0.0, %v4992
        %v4994 = vpop.f32.mrb[0].mxu0
        %v4995 = vadd.f32 0.0, %v4994
        %4996 = vmatprep.mubr.f32.mxu0 0.0
        %4997 = vmatmul.mubr.f32.gmra.mrb[0].mxu0 %v4888
        %v4998 = vpop.f32.mrb[0].mxu0
        %v4999 = vadd.f32 0.0, %v4998
        %v5000 = vpop.f32.mrb[0].mxu0
        %v5001 = vadd.f32 0.0, %v5000
        %5002 = vdwg.mxu0
        %5003 = vmatprep.subr.mxu0 %v4094
        %5004 = vmatpush1.msra.mxu0 %v4092
        %5005 = vmatprep.subr.mxu0 %v4100
        %5006 = vmatpush1.msra.mxu0 %v4098
        %5007 = vmatprep.subr.mxu0 0.0
        %5008 = vmatpush1.msra.mxu0 0.0
        %5009 = vmatprep.subr.mxu0 0.0
        %5010 = vmatpush1.msra.mxu0 0.0
        %5011 = vmatprep.subr.mxu0 0.0
        %5012 = vmatpush1.msra.mxu0 0.0
        %5013 = vmatprep.subr.mxu0 0.0
        %5014 = vmatpush1.msra.mxu0 0.0
        %5015 = vmatprep.subr.mxu0 0.0
        %5016 = vmatpush1.msra.mxu0 0.0
        %5017 = vmatprep.subr.mxu0 0.0
        %5018 = vmatpush1.msra.mxu0 0.0
        %5019 = vmatprep.subr.mxu0 0.0
        %5020 = vmatpush1.msra.mxu0 0.0
        %5021 = vmatprep.subr.mxu0 0.0
        %5022 = vmatpush1.msra.mxu0 0.0
        %5023 = vmatprep.subr.mxu0 0.0
        %5024 = vmatpush1.msra.mxu0 0.0
        %5025 = vmatprep.subr.mxu0 0.0
        %5026 = vmatpush1.msra.mxu0 0.0
        %5027 = vmatprep.subr.mxu0 0.0
        %5028 = vmatpush1.msra.mxu0 0.0
        %5029 = vmatprep.subr.mxu0 0.0
        %5030 = vmatpush1.msra.mxu0 0.0
        %5031 = vmatprep.subr.mxu0 0.0
        %5032 = vmatpush1.msra.mxu0 0.0
        %5033 = vmatprep.subr.mxu0 0.0
        %5034 = vmatpush1.msra.mxu0 0.0
        %5035 = vmatprep.subr.mxu0 0.0
        %5036 = vmatpush1.msra.mxu0 0.0
        %5037 = vmatprep.subr.mxu0 0.0
        %5038 = vmatpush1.msra.mxu0 0.0
        %5039 = vmatprep.subr.mxu0 0.0
        %5040 = vmatpush1.msra.mxu0 0.0
        %5041 = vmatprep.subr.mxu0 0.0
        %5042 = vmatpush1.msra.mxu0 0.0
        %5043 = vmatprep.subr.mxu0 0.0
        %5044 = vmatpush1.msra.mxu0 0.0
        %5045 = vmatprep.subr.mxu0 0.0
        %5046 = vmatpush1.msra.mxu0 0.0
        %5047 = vmatprep.subr.mxu0 0.0
        %5048 = vmatpush1.msra.mxu0 0.0
        %5049 = vmatprep.subr.mxu0 0.0
        %5050 = vmatpush1.msra.mxu0 0.0
        %5051 = vmatprep.subr.mxu0 0.0
        %5052 = vmatpush1.msra.mxu0 0.0
        %5053 = vmatprep.subr.mxu0 0.0
        %5054 = vmatpush1.msra.mxu0 0.0
        %5055 = vmatprep.subr.mxu0 0.0
        %5056 = vmatpush1.msra.mxu0 0.0
        %5057 = vmatprep.subr.mxu0 0.0
        %5058 = vmatpush1.msra.mxu0 0.0
        %5059 = vmatprep.subr.mxu0 0.0
        %5060 = vmatpush1.msra.mxu0 0.0
        %5061 = vmatprep.subr.mxu0 0.0
        %5062 = vmatpush1.msra.mxu0 0.0
        %5063 = vmatprep.subr.mxu0 0.0
        %5064 = vmatpush1.msra.mxu0 0.0
        %5065 = vmatprep.subr.mxu0 0.0
        %5066 = vmatpush1.msra.mxu0 0.0
        %5067 = vmatprep.mubr.f32.mxu0 0.0
        %5068 = vmatmul.mubr.f32.gmra.mrb[0].mxu0 %v4867
        %v5069 = vpop.f32.mrb[0].mxu0
        %v5070 = vadd.f32 0.0, %v5069
        %v5071 = vpop.f32.mrb[0].mxu0
        %v5072 = vadd.f32 0.0, %v5071
        %5073 = vmatprep.mubr.f32.mxu0 0.0
        %5074 = vmatmul.mubr.f32.gmra.mrb[0].mxu0 %v4870
        %v5075 = vpop.f32.mrb[0].mxu0
        %v5076 = vadd.f32 0.0, %v5075
        %v5077 = vpop.f32.mrb[0].mxu0
        %v5078 = vadd.f32 0.0, %v5077
        %5079 = vmatprep.mubr.f32.mxu0 0.0
        %5080 = vmatmul.mubr.f32.gmra.mrb[0].mxu0 %v4873
        %v5081 = vpop.f32.mrb[0].mxu0
        %v5082 = vadd.f32 0.0, %v5081
        %v5083 = vpop.f32.mrb[0].mxu0
        %v5084 = vadd.f32 0.0, %v5083
        %5085 = vmatprep.mubr.f32.mxu0 0.0
        %5086 = vmatmul.mubr.f32.gmra.mrb[0].mxu0 %v4876
        %v5087 = vpop.f32.mrb[0].mxu0
        %v5088 = vadd.f32 0.0, %v5087
        %v5089 = vpop.f32.mrb[0].mxu0
        %v5090 = vadd.f32 0.0, %v5089
        %5091 = vmatprep.mubr.f32.mxu0 0.0
        %5092 = vmatmul.mubr.f32.gmra.mrb[0].mxu0 %v4879
        %v5093 = vpop.f32.mrb[0].mxu0
        %v5094 = vadd.f32 0.0, %v5093
        %v5095 = vpop.f32.mrb[0].mxu0
        %v5096 = vadd.f32 0.0, %v5095
        %5097 = vmatprep.mubr.f32.mxu0 0.0
        %5098 = vmatmul.mubr.f32.gmra.mrb[0].mxu0 %v4882
        %v5099 = vpop.f32.mrb[0].mxu0
        %v5100 = vadd.f32 0.0, %v5099
        %v5101 = vpop.f32.mrb[0].mxu0
        %v5102 = vadd.f32 0.0, %v5101
        %5103 = vmatprep.mubr.f32.mxu0 0.0
        %5104 = vmatmul.mubr.f32.gmra.mrb[0].mxu0 %v4885
        %v5105 = vpop.f32.mrb[0].mxu0
        %v5106 = vadd.f32 0.0, %v5105
        %v5107 = vpop.f32.mrb[0].mxu0
        %v5108 = vadd.f32 0.0, %v5107
        %5109 = vmatprep.mubr.f32.mxu0 0.0
        %5110 = vmatmul.mubr.f32.gmra.mrb[0].mxu0 %v4888
        %v5111 = vpop.f32.mrb[0].mxu0
        %v5112 = vadd.f32 0.0, %v5111
        %v5113 = vpop.f32.mrb[0].mxu0
        %v5114 = vadd.f32 0.0, %v5113
        %5115 = vdwg.mxu0
        %5116 = vmatprep.subr.mxu0 %v4171
        %5117 = vmatpush1.msra.mxu0 %v4169
        %5118 = vmatprep.subr.mxu0 %v4177
        %5119 = vmatpush1.msra.mxu0 %v4175
        %5120 = vmatprep.subr.mxu0 0.0
        %5121 = vmatpush1.msra.mxu0 0.0
        %5122 = vmatprep.subr.mxu0 0.0
        %5123 = vmatpush1.msra.mxu0 0.0
        %5124 = vmatprep.subr.mxu0 0.0
        %5125 = vmatpush1.msra.mxu0 0.0
        %5126 = vmatprep.subr.mxu0 0.0
        %5127 = vmatpush1.msra.mxu0 0.0
        %5128 = vmatprep.subr.mxu0 0.0
        %5129 = vmatpush1.msra.mxu0 0.0
        %5130 = vmatprep.subr.mxu0 0.0
        %5131 = vmatpush1.msra.mxu0 0.0
        %5132 = vmatprep.subr.mxu0 0.0
        %5133 = vmatpush1.msra.mxu0 0.0
        %5134 = vmatprep.subr.mxu0 0.0
        %5135 = vmatpush1.msra.mxu0 0.0
        %5136 = vmatprep.subr.mxu0 0.0
        %5137 = vmatpush1.msra.mxu0 0.0
        %5138 = vmatprep.subr.mxu0 0.0
        %5139 = vmatpush1.msra.mxu0 0.0
        %5140 = vmatprep.subr.mxu0 0.0
        %5141 = vmatpush1.msra.mxu0 0.0
        %5142 = vmatprep.subr.mxu0 0.0
        %5143 = vmatpush1.msra.mxu0 0.0
        %5144 = vmatprep.subr.mxu0 0.0
        %5145 = vmatpush1.msra.mxu0 0.0
        %5146 = vmatprep.subr.mxu0 0.0
        %5147 = vmatpush1.msra.mxu0 0.0
        %5148 = vmatprep.subr.mxu0 0.0
        %5149 = vmatpush1.msra.mxu0 0.0
        %5150 = vmatprep.subr.mxu0 0.0
        %5151 = vmatpush1.msra.mxu0 0.0
        %5152 = vmatprep.subr.mxu0 0.0
        %5153 = vmatpush1.msra.mxu0 0.0
        %5154 = vmatprep.subr.mxu0 0.0
        %5155 = vmatpush1.msra.mxu0 0.0
        %5156 = vmatprep.subr.mxu0 0.0
        %5157 = vmatpush1.msra.mxu0 0.0
        %5158 = vmatprep.subr.mxu0 0.0
        %5159 = vmatpush1.msra.mxu0 0.0
        %5160 = vmatprep.subr.mxu0 0.0
        %5161 = vmatpush1.msra.mxu0 0.0
        %5162 = vmatprep.subr.mxu0 0.0
        %5163 = vmatpush1.msra.mxu0 0.0
        %5164 = vmatprep.subr.mxu0 0.0
        %5165 = vmatpush1.msra.mxu0 0.0
        %5166 = vmatprep.subr.mxu0 0.0
        %5167 = vmatpush1.msra.mxu0 0.0
        %5168 = vmatprep.subr.mxu0 0.0
        %5169 = vmatpush1.msra.mxu0 0.0
        %5170 = vmatprep.subr.mxu0 0.0
        %5171 = vmatpush1.msra.mxu0 0.0
        %5172 = vmatprep.subr.mxu0 0.0
        %5173 = vmatpush1.msra.mxu0 0.0
        %5174 = vmatprep.subr.mxu0 0.0
        %5175 = vmatpush1.msra.mxu0 0.0
        %5176 = vmatprep.subr.mxu0 0.0
        %5177 = vmatpush1.msra.mxu0 0.0
        %5178 = vmatprep.subr.mxu0 0.0
        %5179 = vmatpush1.msra.mxu0 0.0
        %5180 = vmatprep.mubr.f32.mxu0 0.0
        %5181 = vmatmul.mubr.f32.gmra.mrb[0].mxu0 %v4867
        %v5182 = vpop.f32.mrb[0].mxu0
        %v5183 = vadd.f32 0.0, %v5182
        %v5184 = vpop.f32.mrb[0].mxu0
        %v5185 = vadd.f32 0.0, %v5184
        %5186 = vmatprep.mubr.f32.mxu0 0.0
        %5187 = vmatmul.mubr.f32.gmra.mrb[0].mxu0 %v4870
        %v5188 = vpop.f32.mrb[0].mxu0
        %v5189 = vadd.f32 0.0, %v5188
        %v5190 = vpop.f32.mrb[0].mxu0
        %v5191 = vadd.f32 0.0, %v5190
        %5192 = vmatprep.mubr.f32.mxu0 0.0
        %5193 = vmatmul.mubr.f32.gmra.mrb[0].mxu0 %v4873
        %v5194 = vpop.f32.mrb[0].mxu0
        %v5195 = vadd.f32 0.0, %v5194
        %v5196 = vpop.f32.mrb[0].mxu0
        %v5197 = vadd.f32 0.0, %v5196
        %5198 = vmatprep.mubr.f32.mxu0 0.0
        %5199 = vmatmul.mubr.f32.gmra.mrb[0].mxu0 %v4876
        %v5200 = vpop.f32.mrb[0].mxu0
        %v5201 = vadd.f32 0.0, %v5200
        %v5202 = vpop.f32.mrb[0].mxu0
        %v5203 = vadd.f32 0.0, %v5202
        %5204 = vmatprep.mubr.f32.mxu0 0.0
        %5205 = vmatmul.mubr.f32.gmra.mrb[0].mxu0 %v4879
        %v5206 = vpop.f32.mrb[0].mxu0
        %v5207 = vadd.f32 0.0, %v5206
        %v5208 = vpop.f32.mrb[0].mxu0
        %v5209 = vadd.f32 0.0, %v5208
        %5210 = vmatprep.mubr.f32.mxu0 0.0
        %5211 = vmatmul.mubr.f32.gmra.mrb[0].mxu0 %v4882
        %v5212 = vpop.f32.mrb[0].mxu0
        %v5213 = vadd.f32 0.0, %v5212
        %v5214 = vpop.f32.mrb[0].mxu0
        %v5215 = vadd.f32 0.0, %v5214
        %5216 = vmatprep.mubr.f32.mxu0 0.0
        %5217 = vmatmul.mubr.f32.gmra.mrb[0].mxu0 %v4885
        %v5218 = vpop.f32.mrb[0].mxu0
        %v5219 = vadd.f32 0.0, %v5218
        %v5220 = vpop.f32.mrb[0].mxu0
        %v5221 = vadd.f32 0.0, %v5220
        %5222 = vmatprep.mubr.f32.mxu0 0.0
        %5223 = vmatmul.mubr.f32.gmra.mrb[0].mxu0 %v4888
        %v5224 = vpop.f32.mrb[0].mxu0
        %v5225 = vadd.f32 0.0, %v5224
        %v5226 = vpop.f32.mrb[0].mxu0
        %v5227 = vadd.f32 0.0, %v5226
        %5228 = vdwg.mxu0
        %5229 = vmatprep.subr.mxu0 %v4248
        %5230 = vmatpush1.msra.mxu0 %v4246
        %5231 = vmatprep.subr.mxu0 %v4254
        %5232 = vmatpush1.msra.mxu0 %v4252
        %5233 = vmatprep.subr.mxu0 0.0
        %5234 = vmatpush1.msra.mxu0 0.0
        %5235 = vmatprep.subr.mxu0 0.0
        %5236 = vmatpush1.msra.mxu0 0.0
        %5237 = vmatprep.subr.mxu0 0.0
        %5238 = vmatpush1.msra.mxu0 0.0
        %5239 = vmatprep.subr.mxu0 0.0
        %5240 = vmatpush1.msra.mxu0 0.0
        %5241 = vmatprep.subr.mxu0 0.0
        %5242 = vmatpush1.msra.mxu0 0.0
        %5243 = vmatprep.subr.mxu0 0.0
        %5244 = vmatpush1.msra.mxu0 0.0
        %5245 = vmatprep.subr.mxu0 0.0
        %5246 = vmatpush1.msra.mxu0 0.0
        %5247 = vmatprep.subr.mxu0 0.0
        %5248 = vmatpush1.msra.mxu0 0.0
        %5249 = vmatprep.subr.mxu0 0.0
        %5250 = vmatpush1.msra.mxu0 0.0
        %5251 = vmatprep.subr.mxu0 0.0
        %5252 = vmatpush1.msra.mxu0 0.0
        %5253 = vmatprep.subr.mxu0 0.0
        %5254 = vmatpush1.msra.mxu0 0.0
        %5255 = vmatprep.subr.mxu0 0.0
        %5256 = vmatpush1.msra.mxu0 0.0
        %5257 = vmatprep.subr.mxu0 0.0
        %5258 = vmatpush1.msra.mxu0 0.0
        %5259 = vmatprep.subr.mxu0 0.0
        %5260 = vmatpush1.msra.mxu0 0.0
        %5261 = vmatprep.subr.mxu0 0.0
        %5262 = vmatpush1.msra.mxu0 0.0
        %5263 = vmatprep.subr.mxu0 0.0
        %5264 = vmatpush1.msra.mxu0 0.0
        %5265 = vmatprep.subr.mxu0 0.0
        %5266 = vmatpush1.msra.mxu0 0.0
        %5267 = vmatprep.subr.mxu0 0.0
        %5268 = vmatpush1.msra.mxu0 0.0
        %5269 = vmatprep.subr.mxu0 0.0
        %5270 = vmatpush1.msra.mxu0 0.0
        %5271 = vmatprep.subr.mxu0 0.0
        %5272 = vmatpush1.msra.mxu0 0.0
        %5273 = vmatprep.subr.mxu0 0.0
        %5274 = vmatpush1.msra.mxu0 0.0
        %5275 = vmatprep.subr.mxu0 0.0
        %5276 = vmatpush1.msra.mxu0 0.0
        %5277 = vmatprep.subr.mxu0 0.0
        %5278 = vmatpush1.msra.mxu0 0.0
        %5279 = vmatprep.subr.mxu0 0.0
        %5280 = vmatpush1.msra.mxu0 0.0
        %5281 = vmatprep.subr.mxu0 0.0
        %5282 = vmatpush1.msra.mxu0 0.0
        %5283 = vmatprep.subr.mxu0 0.0
        %5284 = vmatpush1.msra.mxu0 0.0
        %5285 = vmatprep.subr.mxu0 0.0
        %5286 = vmatpush1.msra.mxu0 0.0
        %5287 = vmatprep.subr.mxu0 0.0
        %5288 = vmatpush1.msra.mxu0 0.0
        %5289 = vmatprep.subr.mxu0 0.0
        %5290 = vmatpush1.msra.mxu0 0.0
        %5291 = vmatprep.subr.mxu0 0.0
        %5292 = vmatpush1.msra.mxu0 0.0
        %5293 = vmatprep.mubr.f32.mxu0 0.0
        %5294 = vmatmul.mubr.f32.gmra.mrb[0].mxu0 %v4867
        %v5295 = vpop.f32.mrb[0].mxu0
        %v5296 = vadd.f32 0.0, %v5295
        %v5297 = vpop.f32.mrb[0].mxu0
        %v5298 = vadd.f32 0.0, %v5297
        %5299 = vmatprep.mubr.f32.mxu0 0.0
        %5300 = vmatmul.mubr.f32.gmra.mrb[0].mxu0 %v4870
        %v5301 = vpop.f32.mrb[0].mxu0
        %v5302 = vadd.f32 0.0, %v5301
        %v5303 = vpop.f32.mrb[0].mxu0
        %v5304 = vadd.f32 0.0, %v5303
        %5305 = vmatprep.mubr.f32.mxu0 0.0
        %5306 = vmatmul.mubr.f32.gmra.mrb[0].mxu0 %v4873
        %v5307 = vpop.f32.mrb[0].mxu0
        %v5308 = vadd.f32 0.0, %v5307
        %v5309 = vpop.f32.mrb[0].mxu0
        %v5310 = vadd.f32 0.0, %v5309
        %5311 = vmatprep.mubr.f32.mxu0 0.0
        %5312 = vmatmul.mubr.f32.gmra.mrb[0].mxu0 %v4876
        %v5313 = vpop.f32.mrb[0].mxu0
        %v5314 = vadd.f32 0.0, %v5313
        %v5315 = vpop.f32.mrb[0].mxu0
        %v5316 = vadd.f32 0.0, %v5315
        %5317 = vmatprep.mubr.f32.mxu0 0.0
        %5318 = vmatmul.mubr.f32.gmra.mrb[0].mxu0 %v4879
        %v5319 = vpop.f32.mrb[0].mxu0
        %v5320 = vadd.f32 0.0, %v5319
        %v5321 = vpop.f32.mrb[0].mxu0
        %v5322 = vadd.f32 0.0, %v5321
        %5323 = vmatprep.mubr.f32.mxu0 0.0
        %5324 = vmatmul.mubr.f32.gmra.mrb[0].mxu0 %v4882
        %v5325 = vpop.f32.mrb[0].mxu0
        %v5326 = vadd.f32 0.0, %v5325
        %v5327 = vpop.f32.mrb[0].mxu0
        %v5328 = vadd.f32 0.0, %v5327
        %5329 = vmatprep.mubr.f32.mxu0 0.0
        %5330 = vmatmul.mubr.f32.gmra.mrb[0].mxu0 %v4885
        %v5331 = vpop.f32.mrb[0].mxu0
        %v5332 = vadd.f32 0.0, %v5331
        %v5333 = vpop.f32.mrb[0].mxu0
        %v5334 = vadd.f32 0.0, %v5333
        %5335 = vmatprep.mubr.f32.mxu0 0.0
        %5336 = vmatmul.mubr.f32.gmra.mrb[0].mxu0 %v4888
        %v5337 = vpop.f32.mrb[0].mxu0
        %v5338 = vadd.f32 0.0, %v5337
        %v5339 = vpop.f32.mrb[0].mxu0
        %v5340 = vadd.f32 0.0, %v5339
        %5341 = vdwg.mxu0
        %v5342 = vld [vmem:[%s61] sm:$0xff]
        %v5343 = vld [vmem:[%s61 + $0x8] sm:$0xff]
        %v5344 = vld [vmem:[%s61 + $0x10] sm:$0xff]
        %v5345 = vld [vmem:[%s61 + $0x18] sm:$0xff]
        %v5346 = vld [vmem:[%s61 + $0x20] sm:$0xff]
        %v5347 = vld [vmem:[%s61 + $0x28] sm:$0xff]
        %v5348 = vld [vmem:[%s61 + $0x30] sm:$0xff]
        %v5349 = vld [vmem:[%s61 + $0x38] sm:$0xff]
        %v5350 = vld [vmem:[%s65] sm:$0xff]
        %v5351 = vld [vmem:[%s65 + $0x8] sm:$0xff]
        %v5352 = vld [vmem:[%s65 + $0x10] sm:$0xff]
        %v5353 = vld [vmem:[%s65 + $0x18] sm:$0xff]
        %v5354 = vld [vmem:[%s65 + $0x20] sm:$0xff]
        %v5355 = vld [vmem:[%s65 + $0x28] sm:$0xff]
        %v5356 = vld [vmem:[%s65 + $0x30] sm:$0xff]
        %v5357 = vld [vmem:[%s65 + $0x38] sm:$0xff]
        %5359 = vset.pattern.permute.xlu0 0
        %5360 = vperm.xlu0 %5359, %v5350
        %v5361 = vpop.permute.xlu0 %5360
        %5364 = vset.pattern.permute.xlu0 0
        %5365 = vperm.xlu0 %5364, %v5351
        %v5366 = vpop.permute.xlu0 %5365
        %5369 = vset.pattern.permute.xlu0 0
        %5370 = vperm.xlu0 %5369, %v5352
        %v5371 = vpop.permute.xlu0 %5370
        %5374 = vset.pattern.permute.xlu0 0
        %5375 = vperm.xlu0 %5374, %v5353
        %v5376 = vpop.permute.xlu0 %5375
        %5379 = vset.pattern.permute.xlu0 0
        %5380 = vperm.xlu0 %5379, %v5354
        %v5381 = vpop.permute.xlu0 %5380
        %5384 = vset.pattern.permute.xlu0 0
        %5385 = vperm.xlu0 %5384, %v5355
        %v5386 = vpop.permute.xlu0 %5385
        %5389 = vset.pattern.permute.xlu0 0
        %5390 = vperm.xlu0 %5389, %v5356
        %v5391 = vpop.permute.xlu0 %5390
        %5394 = vset.pattern.permute.xlu0 0
        %5395 = vperm.xlu0 %5394, %v5357
        %v5396 = vpop.permute.xlu0 %5395
        %vm5400 = vcmask 1043456
        %v5401 = vrot.slane %v4488, 4
        %v5402 = vrot.slane %v4493, 4
        %v5403 = vsel %vm5400, %v5401, %v5402
        %v5406 = vsel %vm1187, %v5342, 0
        %v5409 = vsel %vm1187, %v5343, 0
        %v5412 = vsel %vm1187, %v5344, 0
        %v5415 = vsel %vm1187, %v5345, 0
        %v5418 = vsel %vm1187, %v5346, 0
        %v5421 = vsel %vm1187, %v5347, 0
        %v5424 = vsel %vm1187, %v5348, 0
        %v5427 = vsel %vm1187, %v5349, 0
        %5429 = vmatprep.subr.mxu0 0.0
        %5430 = vmatpush1.msra.mxu0 %v5403
        %5431 = vmatprep.subr.mxu0 0.0
        %5432 = vmatpush1.msra.mxu0 0.0
        %5433 = vmatprep.subr.mxu0 0.0
        %5434 = vmatpush1.msra.mxu0 0.0
        %5435 = vmatprep.subr.mxu0 0.0
        %5436 = vmatpush1.msra.mxu0 0.0
        %5437 = vmatprep.subr.mxu0 0.0
        %5438 = vmatpush1.msra.mxu0 0.0
        %5439 = vmatprep.subr.mxu0 0.0
        %5440 = vmatpush1.msra.mxu0 0.0
        %5441 = vmatprep.subr.mxu0 0.0
        %5442 = vmatpush1.msra.mxu0 0.0
        %5443 = vmatprep.subr.mxu0 0.0
        %5444 = vmatpush1.msra.mxu0 0.0
        %5445 = vmatprep.subr.mxu0 0.0
        %5446 = vmatpush1.msra.mxu0 0.0
        %5447 = vmatprep.subr.mxu0 0.0
        %5448 = vmatpush1.msra.mxu0 0.0
        %5449 = vmatprep.subr.mxu0 0.0
        %5450 = vmatpush1.msra.mxu0 0.0
        %5451 = vmatprep.subr.mxu0 0.0
        %5452 = vmatpush1.msra.mxu0 0.0
        %5453 = vmatprep.subr.mxu0 0.0
        %5454 = vmatpush1.msra.mxu0 0.0
        %5455 = vmatprep.subr.mxu0 0.0
        %5456 = vmatpush1.msra.mxu0 0.0
        %5457 = vmatprep.subr.mxu0 0.0
        %5458 = vmatpush1.msra.mxu0 0.0
        %5459 = vmatprep.subr.mxu0 0.0
        %5460 = vmatpush1.msra.mxu0 0.0
        %5461 = vmatprep.subr.mxu0 0.0
        %5462 = vmatpush1.msra.mxu0 0.0
        %5463 = vmatprep.subr.mxu0 0.0
        %5464 = vmatpush1.msra.mxu0 0.0
        %5465 = vmatprep.subr.mxu0 0.0
        %5466 = vmatpush1.msra.mxu0 0.0
        %5467 = vmatprep.subr.mxu0 0.0
        %5468 = vmatpush1.msra.mxu0 0.0
        %5469 = vmatprep.subr.mxu0 0.0
        %5470 = vmatpush1.msra.mxu0 0.0
        %5471 = vmatprep.subr.mxu0 0.0
        %5472 = vmatpush1.msra.mxu0 0.0
        %5473 = vmatprep.subr.mxu0 0.0
        %5474 = vmatpush1.msra.mxu0 0.0
        %5475 = vmatprep.subr.mxu0 0.0
        %5476 = vmatpush1.msra.mxu0 0.0
        %5477 = vmatprep.subr.mxu0 0.0
        %5478 = vmatpush1.msra.mxu0 0.0
        %5479 = vmatprep.subr.mxu0 0.0
        %5480 = vmatpush1.msra.mxu0 0.0
        %5481 = vmatprep.subr.mxu0 0.0
        %5482 = vmatpush1.msra.mxu0 0.0
        %5483 = vmatprep.subr.mxu0 0.0
        %5484 = vmatpush1.msra.mxu0 0.0
        %5485 = vmatprep.subr.mxu0 0.0
        %5486 = vmatpush1.msra.mxu0 0.0
        %5487 = vmatprep.subr.mxu0 0.0
        %5488 = vmatpush1.msra.mxu0 0.0
        %5489 = vmatprep.subr.mxu0 0.0
        %5490 = vmatpush1.msra.mxu0 0.0
        %5491 = vmatprep.subr.mxu0 0.0
        %5492 = vmatpush1.msra.mxu0 0.0
        %5493 = vmatprep.mubr.f32.mxu0 0.0
        %5494 = vmatmul.mubr.f32.gmra.mrb[0].mxu0 %v5406
        %v5495 = vpop.f32.mrb[0].mxu0
        %v5496 = vadd.f32 %v5361, %v5495
        %v5497 = vpop.f32.mrb[0].mxu0
        %5498 = vmatprep.mubr.f32.mxu0 0.0
        %5499 = vmatmul.mubr.f32.gmra.mrb[0].mxu0 %v5409
        %v5500 = vpop.f32.mrb[0].mxu0
        %v5501 = vadd.f32 %v5366, %v5500
        %v5502 = vpop.f32.mrb[0].mxu0
        %5503 = vmatprep.mubr.f32.mxu0 0.0
        %5504 = vmatmul.mubr.f32.gmra.mrb[0].mxu0 %v5412
        %v5505 = vpop.f32.mrb[0].mxu0
        %v5506 = vadd.f32 %v5371, %v5505
        %v5507 = vpop.f32.mrb[0].mxu0
        %5508 = vmatprep.mubr.f32.mxu0 0.0
        %5509 = vmatmul.mubr.f32.gmra.mrb[0].mxu0 %v5415
        %v5510 = vpop.f32.mrb[0].mxu0
        %v5511 = vadd.f32 %v5376, %v5510
        %v5512 = vpop.f32.mrb[0].mxu0
        %5513 = vmatprep.mubr.f32.mxu0 0.0
        %5514 = vmatmul.mubr.f32.gmra.mrb[0].mxu0 %v5418
        %v5515 = vpop.f32.mrb[0].mxu0
        %v5516 = vadd.f32 %v5381, %v5515
        %v5517 = vpop.f32.mrb[0].mxu0
        %5518 = vmatprep.mubr.f32.mxu0 0.0
        %5519 = vmatmul.mubr.f32.gmra.mrb[0].mxu0 %v5421
        %v5520 = vpop.f32.mrb[0].mxu0
        %v5521 = vadd.f32 %v5386, %v5520
        %v5522 = vpop.f32.mrb[0].mxu0
        %5523 = vmatprep.mubr.f32.mxu0 0.0
        %5524 = vmatmul.mubr.f32.gmra.mrb[0].mxu0 %v5424
        %v5525 = vpop.f32.mrb[0].mxu0
        %v5526 = vadd.f32 %v5391, %v5525
        %v5527 = vpop.f32.mrb[0].mxu0
        %5528 = vmatprep.mubr.f32.mxu0 0.0
        %5529 = vmatmul.mubr.f32.gmra.mrb[0].mxu0 %v5427
        %v5530 = vpop.f32.mrb[0].mxu0
        %v5531 = vadd.f32 %v5396, %v5530
        %v5532 = vpop.f32.mrb[0].mxu0
        %5533 = vdwg.mxu0
        %v5534 = vld [vmem:[%s1054] sm:$0x1]
        %v5535 = vld [vmem:[%s1054 + $0x1] sm:$0x1]
        %v5536 = vld [vmem:[%s1054 + $0x2] sm:$0x1]
        %v5537 = vadd.f32 %v4957, %v5496
        %v5538 = vadd.f32 %v4963, %v5501
        %v5539 = vadd.f32 %v4969, %v5506
        %v5540 = vadd.f32 %v4975, %v5511
        %v5541 = vadd.f32 %v4981, %v5516
        %v5542 = vadd.f32 %v4987, %v5521
        %v5543 = vadd.f32 %v4993, %v5526
        %v5544 = vadd.f32 %v4999, %v5531
        %v5545 = vlaneseq
        %v5546 = vshrl.u32 %v5545, 7
        %v5547 = vsub.s32 0, %v5546
        %v5548 = vrot.slane %v5534, %v5547
        %v5549 = vmul.f32 %v5548, %v4746
        %v5550 = vmul.f32 %v5548, %v4747
        %v5551 = vmul.f32 %v5548, %v4748
        %v5552 = vmul.f32 %v5548, %v4749
        %v5553 = vmul.f32 %v5548, %v4750
        %v5554 = vmul.f32 %v5548, %v4751
        %v5555 = vmul.f32 %v5548, %v4752
        %v5556 = vmul.f32 %v5548, %v4753
        %v5557 = vadd.f32 %v5537, %v5549
        %v5558 = vadd.f32 %v5538, %v5550
        %v5559 = vadd.f32 %v5539, %v5551
        %v5560 = vadd.f32 %v5540, %v5552
        %v5561 = vadd.f32 %v5541, %v5553
        %v5562 = vadd.f32 %v5542, %v5554
        %v5563 = vadd.f32 %v5543, %v5555
        %v5564 = vadd.f32 %v5544, %v5556
        %v5565 = vlaneseq
        %v5566 = vshrl.u32 %v5565, 7
        %v5567 = vsub.s32 0, %v5566
        %v5568 = vrot.slane %v5535, %v5567
        %v5569 = vmul.f32 %v5568, %v4798
        %v5570 = vmul.f32 %v5568, %v4799
        %v5571 = vmul.f32 %v5568, %v4800
        %v5572 = vmul.f32 %v5568, %v4801
        %v5573 = vmul.f32 %v5568, %v4802
        %v5574 = vmul.f32 %v5568, %v4803
        %v5575 = vmul.f32 %v5568, %v4804
        %v5576 = vmul.f32 %v5568, %v4805
        %v5577 = vadd.f32 %v5557, %v5569
        %v5578 = vadd.f32 %v5558, %v5570
        %v5579 = vadd.f32 %v5559, %v5571
        %v5580 = vadd.f32 %v5560, %v5572
        %v5581 = vadd.f32 %v5561, %v5573
        %v5582 = vadd.f32 %v5562, %v5574
        %v5583 = vadd.f32 %v5563, %v5575
        %v5584 = vadd.f32 %v5564, %v5576
        %v5585 = vlaneseq
        %v5586 = vshrl.u32 %v5585, 7
        %v5587 = vsub.s32 0, %v5586
        %v5588 = vrot.slane %v5536, %v5587
        %v5589 = vmul.f32 %v5588, %v4850
        %v5590 = vmul.f32 %v5588, %v4851
        %v5591 = vmul.f32 %v5588, %v4852
        %v5592 = vmul.f32 %v5588, %v4853
        %v5593 = vmul.f32 %v5588, %v4854
        %v5594 = vmul.f32 %v5588, %v4855
        %v5595 = vmul.f32 %v5588, %v4856
        %v5596 = vmul.f32 %v5588, %v4857
        %v5597 = vadd.f32 %v5577, %v5589
        %v5598 = vadd.f32 %v5578, %v5590
        %v5599 = vadd.f32 %v5579, %v5591
        %v5600 = vadd.f32 %v5580, %v5592
        %v5601 = vadd.f32 %v5581, %v5593
        %v5602 = vadd.f32 %v5582, %v5594
        %v5603 = vadd.f32 %v5583, %v5595
        %v5604 = vadd.f32 %v5584, %v5596
        %v5605 = vmax.f32 %v5597, 0.0
        %v5606 = vmax.f32 %v5598, 0.0
        %v5607 = vmax.f32 %v5599, 0.0
        %v5608 = vmax.f32 %v5600, 0.0
        %v5609 = vmax.f32 %v5601, 0.0
        %v5610 = vmax.f32 %v5602, 0.0
        %v5611 = vmax.f32 %v5603, 0.0
        %v5612 = vmax.f32 %v5604, 0.0
        %v5613 = vld [vmem:[%s1054 + $0x8] sm:$0x1]
        %v5614 = vld [vmem:[%s1054 + $0x9] sm:$0x1]
        %v5615 = vld [vmem:[%s1054 + $0xa] sm:$0x1]
        %v5616 = vadd.f32 %v4959, %v5496
        %v5617 = vadd.f32 %v4965, %v5501
        %v5618 = vadd.f32 %v4971, %v5506
        %v5619 = vadd.f32 %v4977, %v5511
        %v5620 = vadd.f32 %v4983, %v5516
        %v5621 = vadd.f32 %v4989, %v5521
        %v5622 = vadd.f32 %v4995, %v5526
        %v5623 = vadd.f32 %v5001, %v5531
        %v5624 = vlaneseq
        %v5625 = vshrl.u32 %v5624, 7
        %v5626 = vsub.s32 0, %v5625
        %v5627 = vrot.slane %v5613, %v5626
        %v5628 = vmul.f32 %v5627, %v4746
        %v5629 = vmul.f32 %v5627, %v4747
        %v5630 = vmul.f32 %v5627, %v4748
        %v5631 = vmul.f32 %v5627, %v4749
        %v5632 = vmul.f32 %v5627, %v4750
        %v5633 = vmul.f32 %v5627, %v4751
        %v5634 = vmul.f32 %v5627, %v4752
        %v5635 = vmul.f32 %v5627, %v4753
        %v5636 = vadd.f32 %v5616, %v5628
        %v5637 = vadd.f32 %v5617, %v5629
        %v5638 = vadd.f32 %v5618, %v5630
        %v5639 = vadd.f32 %v5619, %v5631
        %v5640 = vadd.f32 %v5620, %v5632
        %v5641 = vadd.f32 %v5621, %v5633
        %v5642 = vadd.f32 %v5622, %v5634
        %v5643 = vadd.f32 %v5623, %v5635
        %v5644 = vlaneseq
        %v5645 = vshrl.u32 %v5644, 7
        %v5646 = vsub.s32 0, %v5645
        %v5647 = vrot.slane %v5614, %v5646
        %v5648 = vmul.f32 %v5647, %v4798
        %v5649 = vmul.f32 %v5647, %v4799
        %v5650 = vmul.f32 %v5647, %v4800
        %v5651 = vmul.f32 %v5647, %v4801
        %v5652 = vmul.f32 %v5647, %v4802
        %v5653 = vmul.f32 %v5647, %v4803
        %v5654 = vmul.f32 %v5647, %v4804
        %v5655 = vmul.f32 %v5647, %v4805
        %v5656 = vadd.f32 %v5636, %v5648
        %v5657 = vadd.f32 %v5637, %v5649
        %v5658 = vadd.f32 %v5638, %v5650
        %v5659 = vadd.f32 %v5639, %v5651
        %v5660 = vadd.f32 %v5640, %v5652
        %v5661 = vadd.f32 %v5641, %v5653
        %v5662 = vadd.f32 %v5642, %v5654
        %v5663 = vadd.f32 %v5643, %v5655
        %v5664 = vlaneseq
        %v5665 = vshrl.u32 %v5664, 7
        %v5666 = vsub.s32 0, %v5665
        %v5667 = vrot.slane %v5615, %v5666
        %v5668 = vmul.f32 %v5667, %v4850
        %v5669 = vmul.f32 %v5667, %v4851
        %v5670 = vmul.f32 %v5667, %v4852
        %v5671 = vmul.f32 %v5667, %v4853
        %v5672 = vmul.f32 %v5667, %v4854
        %v5673 = vmul.f32 %v5667, %v4855
        %v5674 = vmul.f32 %v5667, %v4856
        %v5675 = vmul.f32 %v5667, %v4857
        %v5676 = vadd.f32 %v5656, %v5668
        %v5677 = vadd.f32 %v5657, %v5669
        %v5678 = vadd.f32 %v5658, %v5670
        %v5679 = vadd.f32 %v5659, %v5671
        %v5680 = vadd.f32 %v5660, %v5672
        %v5681 = vadd.f32 %v5661, %v5673
        %v5682 = vadd.f32 %v5662, %v5674
        %v5683 = vadd.f32 %v5663, %v5675
        %v5684 = vmax.f32 %v5676, 0.0
        %v5685 = vmax.f32 %v5677, 0.0
        %v5686 = vmax.f32 %v5678, 0.0
        %v5687 = vmax.f32 %v5679, 0.0
        %v5688 = vmax.f32 %v5680, 0.0
        %v5689 = vmax.f32 %v5681, 0.0
        %v5690 = vmax.f32 %v5682, 0.0
        %v5691 = vmax.f32 %v5683, 0.0
        %v5692 = vld [vmem:[%s1054 + $0x10] sm:$0x1]
        %v5693 = vld [vmem:[%s1054 + $0x11] sm:$0x1]
        %v5694 = vld [vmem:[%s1054 + $0x12] sm:$0x1]
        %v5695 = vadd.f32 %v5070, %v5496
        %v5696 = vadd.f32 %v5076, %v5501
        %v5697 = vadd.f32 %v5082, %v5506
        %v5698 = vadd.f32 %v5088, %v5511
        %v5699 = vadd.f32 %v5094, %v5516
        %v5700 = vadd.f32 %v5100, %v5521
        %v5701 = vadd.f32 %v5106, %v5526
        %v5702 = vadd.f32 %v5112, %v5531
        %v5703 = vlaneseq
        %v5704 = vshrl.u32 %v5703, 7
        %v5705 = vsub.s32 0, %v5704
        %v5706 = vrot.slane %v5692, %v5705
        %v5707 = vmul.f32 %v5706, %v4746
        %v5708 = vmul.f32 %v5706, %v4747
        %v5709 = vmul.f32 %v5706, %v4748
        %v5710 = vmul.f32 %v5706, %v4749
        %v5711 = vmul.f32 %v5706, %v4750
        %v5712 = vmul.f32 %v5706, %v4751
        %v5713 = vmul.f32 %v5706, %v4752
        %v5714 = vmul.f32 %v5706, %v4753
        %v5715 = vadd.f32 %v5695, %v5707
        %v5716 = vadd.f32 %v5696, %v5708
        %v5717 = vadd.f32 %v5697, %v5709
        %v5718 = vadd.f32 %v5698, %v5710
        %v5719 = vadd.f32 %v5699, %v5711
        %v5720 = vadd.f32 %v5700, %v5712
        %v5721 = vadd.f32 %v5701, %v5713
        %v5722 = vadd.f32 %v5702, %v5714
        %v5723 = vlaneseq
        %v5724 = vshrl.u32 %v5723, 7
        %v5725 = vsub.s32 0, %v5724
        %v5726 = vrot.slane %v5693, %v5725
        %v5727 = vmul.f32 %v5726, %v4798
        %v5728 = vmul.f32 %v5726, %v4799
        %v5729 = vmul.f32 %v5726, %v4800
        %v5730 = vmul.f32 %v5726, %v4801
        %v5731 = vmul.f32 %v5726, %v4802
        %v5732 = vmul.f32 %v5726, %v4803
        %v5733 = vmul.f32 %v5726, %v4804
        %v5734 = vmul.f32 %v5726, %v4805
        %v5735 = vadd.f32 %v5715, %v5727
        %v5736 = vadd.f32 %v5716, %v5728
        %v5737 = vadd.f32 %v5717, %v5729
        %v5738 = vadd.f32 %v5718, %v5730
        %v5739 = vadd.f32 %v5719, %v5731
        %v5740 = vadd.f32 %v5720, %v5732
        %v5741 = vadd.f32 %v5721, %v5733
        %v5742 = vadd.f32 %v5722, %v5734
        %v5743 = vlaneseq
        %v5744 = vshrl.u32 %v5743, 7
        %v5745 = vsub.s32 0, %v5744
        %v5746 = vrot.slane %v5694, %v5745
        %v5747 = vmul.f32 %v5746, %v4850
        %v5748 = vmul.f32 %v5746, %v4851
        %v5749 = vmul.f32 %v5746, %v4852
        %v5750 = vmul.f32 %v5746, %v4853
        %v5751 = vmul.f32 %v5746, %v4854
        %v5752 = vmul.f32 %v5746, %v4855
        %v5753 = vmul.f32 %v5746, %v4856
        %v5754 = vmul.f32 %v5746, %v4857
        %v5755 = vadd.f32 %v5735, %v5747
        %v5756 = vadd.f32 %v5736, %v5748
        %v5757 = vadd.f32 %v5737, %v5749
        %v5758 = vadd.f32 %v5738, %v5750
        %v5759 = vadd.f32 %v5739, %v5751
        %v5760 = vadd.f32 %v5740, %v5752
        %v5761 = vadd.f32 %v5741, %v5753
        %v5762 = vadd.f32 %v5742, %v5754
        %v5763 = vmax.f32 %v5755, 0.0
        %v5764 = vmax.f32 %v5756, 0.0
        %v5765 = vmax.f32 %v5757, 0.0
        %v5766 = vmax.f32 %v5758, 0.0
        %v5767 = vmax.f32 %v5759, 0.0
        %v5768 = vmax.f32 %v5760, 0.0
        %v5769 = vmax.f32 %v5761, 0.0
        %v5770 = vmax.f32 %v5762, 0.0
        %v5771 = vld [vmem:[%s1054 + $0x18] sm:$0x1]
        %v5772 = vld [vmem:[%s1054 + $0x19] sm:$0x1]
        %v5773 = vld [vmem:[%s1054 + $0x1a] sm:$0x1]
        %v5774 = vadd.f32 %v5072, %v5496
        %v5775 = vadd.f32 %v5078, %v5501
        %v5776 = vadd.f32 %v5084, %v5506
        %v5777 = vadd.f32 %v5090, %v5511
        %v5778 = vadd.f32 %v5096, %v5516
        %v5779 = vadd.f32 %v5102, %v5521
        %v5780 = vadd.f32 %v5108, %v5526
        %v5781 = vadd.f32 %v5114, %v5531
        %v5782 = vlaneseq
        %v5783 = vshrl.u32 %v5782, 7
        %v5784 = vsub.s32 0, %v5783
        %v5785 = vrot.slane %v5771, %v5784
        %v5786 = vmul.f32 %v5785, %v4746
        %v5787 = vmul.f32 %v5785, %v4747
        %v5788 = vmul.f32 %v5785, %v4748
        %v5789 = vmul.f32 %v5785, %v4749
        %v5790 = vmul.f32 %v5785, %v4750
        %v5791 = vmul.f32 %v5785, %v4751
        %v5792 = vmul.f32 %v5785, %v4752
        %v5793 = vmul.f32 %v5785, %v4753
        %v5794 = vadd.f32 %v5774, %v5786
        %v5795 = vadd.f32 %v5775, %v5787
        %v5796 = vadd.f32 %v5776, %v5788
        %v5797 = vadd.f32 %v5777, %v5789
        %v5798 = vadd.f32 %v5778, %v5790
        %v5799 = vadd.f32 %v5779, %v5791
        %v5800 = vadd.f32 %v5780, %v5792
        %v5801 = vadd.f32 %v5781, %v5793
        %v5802 = vlaneseq
        %v5803 = vshrl.u32 %v5802, 7
        %v5804 = vsub.s32 0, %v5803
        %v5805 = vrot.slane %v5772, %v5804
        %v5806 = vmul.f32 %v5805, %v4798
        %v5807 = vmul.f32 %v5805, %v4799
        %v5808 = vmul.f32 %v5805, %v4800
        %v5809 = vmul.f32 %v5805, %v4801
        %v5810 = vmul.f32 %v5805, %v4802
        %v5811 = vmul.f32 %v5805, %v4803
        %v5812 = vmul.f32 %v5805, %v4804
        %v5813 = vmul.f32 %v5805, %v4805
        %v5814 = vadd.f32 %v5794, %v5806
        %v5815 = vadd.f32 %v5795, %v5807
        %v5816 = vadd.f32 %v5796, %v5808
        %v5817 = vadd.f32 %v5797, %v5809
        %v5818 = vadd.f32 %v5798, %v5810
        %v5819 = vadd.f32 %v5799, %v5811
        %v5820 = vadd.f32 %v5800, %v5812
        %v5821 = vadd.f32 %v5801, %v5813
        %v5822 = vlaneseq
        %v5823 = vshrl.u32 %v5822, 7
        %v5824 = vsub.s32 0, %v5823
        %v5825 = vrot.slane %v5773, %v5824
        %v5826 = vmul.f32 %v5825, %v4850
        %v5827 = vmul.f32 %v5825, %v4851
        %v5828 = vmul.f32 %v5825, %v4852
        %v5829 = vmul.f32 %v5825, %v4853
        %v5830 = vmul.f32 %v5825, %v4854
        %v5831 = vmul.f32 %v5825, %v4855
        %v5832 = vmul.f32 %v5825, %v4856
        %v5833 = vmul.f32 %v5825, %v4857
        %v5834 = vadd.f32 %v5814, %v5826
        %v5835 = vadd.f32 %v5815, %v5827
        %v5836 = vadd.f32 %v5816, %v5828
        %v5837 = vadd.f32 %v5817, %v5829
        %v5838 = vadd.f32 %v5818, %v5830
        %v5839 = vadd.f32 %v5819, %v5831
        %v5840 = vadd.f32 %v5820, %v5832
        %v5841 = vadd.f32 %v5821, %v5833
        %v5842 = vmax.f32 %v5834, 0.0
        %v5843 = vmax.f32 %v5835, 0.0
        %v5844 = vmax.f32 %v5836, 0.0
        %v5845 = vmax.f32 %v5837, 0.0
        %v5846 = vmax.f32 %v5838, 0.0
        %v5847 = vmax.f32 %v5839, 0.0
        %v5848 = vmax.f32 %v5840, 0.0
        %v5849 = vmax.f32 %v5841, 0.0
        %v5850 = vld [vmem:[%s1054 + $0x20] sm:$0x1]
        %v5851 = vld [vmem:[%s1054 + $0x21] sm:$0x1]
        %v5852 = vld [vmem:[%s1054 + $0x22] sm:$0x1]
        %v5853 = vadd.f32 %v5183, %v5496
        %v5854 = vadd.f32 %v5189, %v5501
        %v5855 = vadd.f32 %v5195, %v5506
        %v5856 = vadd.f32 %v5201, %v5511
        %v5857 = vadd.f32 %v5207, %v5516
        %v5858 = vadd.f32 %v5213, %v5521
        %v5859 = vadd.f32 %v5219, %v5526
        %v5860 = vadd.f32 %v5225, %v5531
        %v5861 = vlaneseq
        %v5862 = vshrl.u32 %v5861, 7
        %v5863 = vsub.s32 0, %v5862
        %v5864 = vrot.slane %v5850, %v5863
        %v5865 = vmul.f32 %v5864, %v4746
        %v5866 = vmul.f32 %v5864, %v4747
        %v5867 = vmul.f32 %v5864, %v4748
        %v5868 = vmul.f32 %v5864, %v4749
        %v5869 = vmul.f32 %v5864, %v4750
        %v5870 = vmul.f32 %v5864, %v4751
        %v5871 = vmul.f32 %v5864, %v4752
        %v5872 = vmul.f32 %v5864, %v4753
        %v5873 = vadd.f32 %v5853, %v5865
        %v5874 = vadd.f32 %v5854, %v5866
        %v5875 = vadd.f32 %v5855, %v5867
        %v5876 = vadd.f32 %v5856, %v5868
        %v5877 = vadd.f32 %v5857, %v5869
        %v5878 = vadd.f32 %v5858, %v5870
        %v5879 = vadd.f32 %v5859, %v5871
        %v5880 = vadd.f32 %v5860, %v5872
        %v5881 = vlaneseq
        %v5882 = vshrl.u32 %v5881, 7
        %v5883 = vsub.s32 0, %v5882
        %v5884 = vrot.slane %v5851, %v5883
        %v5885 = vmul.f32 %v5884, %v4798
        %v5886 = vmul.f32 %v5884, %v4799
        %v5887 = vmul.f32 %v5884, %v4800
        %v5888 = vmul.f32 %v5884, %v4801
        %v5889 = vmul.f32 %v5884, %v4802
        %v5890 = vmul.f32 %v5884, %v4803
        %v5891 = vmul.f32 %v5884, %v4804
        %v5892 = vmul.f32 %v5884, %v4805
        %v5893 = vadd.f32 %v5873, %v5885
        %v5894 = vadd.f32 %v5874, %v5886
        %v5895 = vadd.f32 %v5875, %v5887
        %v5896 = vadd.f32 %v5876, %v5888
        %v5897 = vadd.f32 %v5877, %v5889
        %v5898 = vadd.f32 %v5878, %v5890
        %v5899 = vadd.f32 %v5879, %v5891
        %v5900 = vadd.f32 %v5880, %v5892
        %v5901 = vlaneseq
        %v5902 = vshrl.u32 %v5901, 7
        %v5903 = vsub.s32 0, %v5902
        %v5904 = vrot.slane %v5852, %v5903
        %v5905 = vmul.f32 %v5904, %v4850
        %v5906 = vmul.f32 %v5904, %v4851
        %v5907 = vmul.f32 %v5904, %v4852
        %v5908 = vmul.f32 %v5904, %v4853
        %v5909 = vmul.f32 %v5904, %v4854
        %v5910 = vmul.f32 %v5904, %v4855
        %v5911 = vmul.f32 %v5904, %v4856
        %v5912 = vmul.f32 %v5904, %v4857
        %v5913 = vadd.f32 %v5893, %v5905
        %v5914 = vadd.f32 %v5894, %v5906
        %v5915 = vadd.f32 %v5895, %v5907
        %v5916 = vadd.f32 %v5896, %v5908
        %v5917 = vadd.f32 %v5897, %v5909
        %v5918 = vadd.f32 %v5898, %v5910
        %v5919 = vadd.f32 %v5899, %v5911
        %v5920 = vadd.f32 %v5900, %v5912
        %v5921 = vmax.f32 %v5913, 0.0
        %v5922 = vmax.f32 %v5914, 0.0
        %v5923 = vmax.f32 %v5915, 0.0
        %v5924 = vmax.f32 %v5916, 0.0
        %v5925 = vmax.f32 %v5917, 0.0
        %v5926 = vmax.f32 %v5918, 0.0
        %v5927 = vmax.f32 %v5919, 0.0
        %v5928 = vmax.f32 %v5920, 0.0
        %v5929 = vld [vmem:[%s1054 + $0x28] sm:$0x1]
        %v5930 = vld [vmem:[%s1054 + $0x29] sm:$0x1]
        %v5931 = vld [vmem:[%s1054 + $0x2a] sm:$0x1]
        %v5932 = vadd.f32 %v5185, %v5496
        %v5933 = vadd.f32 %v5191, %v5501
        %v5934 = vadd.f32 %v5197, %v5506
        %v5935 = vadd.f32 %v5203, %v5511
        %v5936 = vadd.f32 %v5209, %v5516
        %v5937 = vadd.f32 %v5215, %v5521
        %v5938 = vadd.f32 %v5221, %v5526
        %v5939 = vadd.f32 %v5227, %v5531
        %v5940 = vlaneseq
        %v5941 = vshrl.u32 %v5940, 7
        %v5942 = vsub.s32 0, %v5941
        %v5943 = vrot.slane %v5929, %v5942
        %v5944 = vmul.f32 %v5943, %v4746
        %v5945 = vmul.f32 %v5943, %v4747
        %v5946 = vmul.f32 %v5943, %v4748
        %v5947 = vmul.f32 %v5943, %v4749
        %v5948 = vmul.f32 %v5943, %v4750
        %v5949 = vmul.f32 %v5943, %v4751
        %v5950 = vmul.f32 %v5943, %v4752
        %v5951 = vmul.f32 %v5943, %v4753
        %v5952 = vadd.f32 %v5932, %v5944
        %v5953 = vadd.f32 %v5933, %v5945
        %v5954 = vadd.f32 %v5934, %v5946
        %v5955 = vadd.f32 %v5935, %v5947
        %v5956 = vadd.f32 %v5936, %v5948
        %v5957 = vadd.f32 %v5937, %v5949
        %v5958 = vadd.f32 %v5938, %v5950
        %v5959 = vadd.f32 %v5939, %v5951
        %v5960 = vlaneseq
        %v5961 = vshrl.u32 %v5960, 7
        %v5962 = vsub.s32 0, %v5961
        %v5963 = vrot.slane %v5930, %v5962
        %v5964 = vmul.f32 %v5963, %v4798
        %v5965 = vmul.f32 %v5963, %v4799
        %v5966 = vmul.f32 %v5963, %v4800
        %v5967 = vmul.f32 %v5963, %v4801
        %v5968 = vmul.f32 %v5963, %v4802
        %v5969 = vmul.f32 %v5963, %v4803
        %v5970 = vmul.f32 %v5963, %v4804
        %v5971 = vmul.f32 %v5963, %v4805
        %v5972 = vadd.f32 %v5952, %v5964
        %v5973 = vadd.f32 %v5953, %v5965
        %v5974 = vadd.f32 %v5954, %v5966
        %v5975 = vadd.f32 %v5955, %v5967
        %v5976 = vadd.f32 %v5956, %v5968
        %v5977 = vadd.f32 %v5957, %v5969
        %v5978 = vadd.f32 %v5958, %v5970
        %v5979 = vadd.f32 %v5959, %v5971
        %v5980 = vlaneseq
        %v5981 = vshrl.u32 %v5980, 7
        %v5982 = vsub.s32 0, %v5981
        %v5983 = vrot.slane %v5931, %v5982
        %v5984 = vmul.f32 %v5983, %v4850
        %v5985 = vmul.f32 %v5983, %v4851
        %v5986 = vmul.f32 %v5983, %v4852
        %v5987 = vmul.f32 %v5983, %v4853
        %v5988 = vmul.f32 %v5983, %v4854
        %v5989 = vmul.f32 %v5983, %v4855
        %v5990 = vmul.f32 %v5983, %v4856
        %v5991 = vmul.f32 %v5983, %v4857
        %v5992 = vadd.f32 %v5972, %v5984
        %v5993 = vadd.f32 %v5973, %v5985
        %v5994 = vadd.f32 %v5974, %v5986
        %v5995 = vadd.f32 %v5975, %v5987
        %v5996 = vadd.f32 %v5976, %v5988
        %v5997 = vadd.f32 %v5977, %v5989
        %v5998 = vadd.f32 %v5978, %v5990
        %v5999 = vadd.f32 %v5979, %v5991
        %v6000 = vmax.f32 %v5992, 0.0
        %v6001 = vmax.f32 %v5993, 0.0
        %v6002 = vmax.f32 %v5994, 0.0
        %v6003 = vmax.f32 %v5995, 0.0
        %v6004 = vmax.f32 %v5996, 0.0
        %v6005 = vmax.f32 %v5997, 0.0
        %v6006 = vmax.f32 %v5998, 0.0
        %v6007 = vmax.f32 %v5999, 0.0
        %v6008 = vld [vmem:[%s1054 + $0x30] sm:$0x1]
        %v6009 = vld [vmem:[%s1054 + $0x31] sm:$0x1]
        %v6010 = vld [vmem:[%s1054 + $0x32] sm:$0x1]
        %v6011 = vadd.f32 %v5296, %v5496
        %v6012 = vadd.f32 %v5302, %v5501
        %v6013 = vadd.f32 %v5308, %v5506
        %v6014 = vadd.f32 %v5314, %v5511
        %v6015 = vadd.f32 %v5320, %v5516
        %v6016 = vadd.f32 %v5326, %v5521
        %v6017 = vadd.f32 %v5332, %v5526
        %v6018 = vadd.f32 %v5338, %v5531
        %v6019 = vlaneseq
        %v6020 = vshrl.u32 %v6019, 7
        %v6021 = vsub.s32 0, %v6020
        %v6022 = vrot.slane %v6008, %v6021
        %v6023 = vmul.f32 %v6022, %v4746
        %v6024 = vmul.f32 %v6022, %v4747
        %v6025 = vmul.f32 %v6022, %v4748
        %v6026 = vmul.f32 %v6022, %v4749
        %v6027 = vmul.f32 %v6022, %v4750
        %v6028 = vmul.f32 %v6022, %v4751
        %v6029 = vmul.f32 %v6022, %v4752
        %v6030 = vmul.f32 %v6022, %v4753
        %v6031 = vadd.f32 %v6011, %v6023
        %v6032 = vadd.f32 %v6012, %v6024
        %v6033 = vadd.f32 %v6013, %v6025
        %v6034 = vadd.f32 %v6014, %v6026
        %v6035 = vadd.f32 %v6015, %v6027
        %v6036 = vadd.f32 %v6016, %v6028
        %v6037 = vadd.f32 %v6017, %v6029
        %v6038 = vadd.f32 %v6018, %v6030
        %v6039 = vlaneseq
        %v6040 = vshrl.u32 %v6039, 7
        %v6041 = vsub.s32 0, %v6040
        %v6042 = vrot.slane %v6009, %v6041
        %v6043 = vmul.f32 %v6042, %v4798
        %v6044 = vmul.f32 %v6042, %v4799
        %v6045 = vmul.f32 %v6042, %v4800
        %v6046 = vmul.f32 %v6042, %v4801
        %v6047 = vmul.f32 %v6042, %v4802
        %v6048 = vmul.f32 %v6042, %v4803
        %v6049 = vmul.f32 %v6042, %v4804
        %v6050 = vmul.f32 %v6042, %v4805
        %v6051 = vadd.f32 %v6031, %v6043
        %v6052 = vadd.f32 %v6032, %v6044
        %v6053 = vadd.f32 %v6033, %v6045
        %v6054 = vadd.f32 %v6034, %v6046
        %v6055 = vadd.f32 %v6035, %v6047
        %v6056 = vadd.f32 %v6036, %v6048
        %v6057 = vadd.f32 %v6037, %v6049
        %v6058 = vadd.f32 %v6038, %v6050
        %v6059 = vlaneseq
        %v6060 = vshrl.u32 %v6059, 7
        %v6061 = vsub.s32 0, %v6060
        %v6062 = vrot.slane %v6010, %v6061
        %v6063 = vmul.f32 %v6062, %v4850
        %v6064 = vmul.f32 %v6062, %v4851
        %v6065 = vmul.f32 %v6062, %v4852
        %v6066 = vmul.f32 %v6062, %v4853
        %v6067 = vmul.f32 %v6062, %v4854
        %v6068 = vmul.f32 %v6062, %v4855
        %v6069 = vmul.f32 %v6062, %v4856
        %v6070 = vmul.f32 %v6062, %v4857
        %v6071 = vadd.f32 %v6051, %v6063
        %v6072 = vadd.f32 %v6052, %v6064
        %v6073 = vadd.f32 %v6053, %v6065
        %v6074 = vadd.f32 %v6054, %v6066
        %v6075 = vadd.f32 %v6055, %v6067
        %v6076 = vadd.f32 %v6056, %v6068
        %v6077 = vadd.f32 %v6057, %v6069
        %v6078 = vadd.f32 %v6058, %v6070
        %v6079 = vmax.f32 %v6071, 0.0
        %v6080 = vmax.f32 %v6072, 0.0
        %v6081 = vmax.f32 %v6073, 0.0
        %v6082 = vmax.f32 %v6074, 0.0
        %v6083 = vmax.f32 %v6075, 0.0
        %v6084 = vmax.f32 %v6076, 0.0
        %v6085 = vmax.f32 %v6077, 0.0
        %v6086 = vmax.f32 %v6078, 0.0
        %v6087 = vld [vmem:[%s1054 + $0x38] sm:$0x1]
        %v6088 = vld [vmem:[%s1054 + $0x39] sm:$0x1]
        %v6089 = vld [vmem:[%s1054 + $0x3a] sm:$0x1]
        %v6090 = vadd.f32 %v5298, %v5496
        %v6091 = vadd.f32 %v5304, %v5501
        %v6092 = vadd.f32 %v5310, %v5506
        %v6093 = vadd.f32 %v5316, %v5511
        %v6094 = vadd.f32 %v5322, %v5516
        %v6095 = vadd.f32 %v5328, %v5521
        %v6096 = vadd.f32 %v5334, %v5526
        %v6097 = vadd.f32 %v5340, %v5531
        %v6098 = vlaneseq
        %v6099 = vshrl.u32 %v6098, 7
        %v6100 = vsub.s32 0, %v6099
        %v6101 = vrot.slane %v6087, %v6100
        %v6102 = vmul.f32 %v6101, %v4746
        %v6103 = vmul.f32 %v6101, %v4747
        %v6104 = vmul.f32 %v6101, %v4748
        %v6105 = vmul.f32 %v6101, %v4749
        %v6106 = vmul.f32 %v6101, %v4750
        %v6107 = vmul.f32 %v6101, %v4751
        %v6108 = vmul.f32 %v6101, %v4752
        %v6109 = vmul.f32 %v6101, %v4753
        %v6110 = vadd.f32 %v6090, %v6102
        %v6111 = vadd.f32 %v6091, %v6103
        %v6112 = vadd.f32 %v6092, %v6104
        %v6113 = vadd.f32 %v6093, %v6105
        %v6114 = vadd.f32 %v6094, %v6106
        %v6115 = vadd.f32 %v6095, %v6107
        %v6116 = vadd.f32 %v6096, %v6108
        %v6117 = vadd.f32 %v6097, %v6109
        %v6118 = vlaneseq
        %v6119 = vshrl.u32 %v6118, 7
        %v6120 = vsub.s32 0, %v6119
        %v6121 = vrot.slane %v6088, %v6120
        %v6122 = vmul.f32 %v6121, %v4798
        %v6123 = vmul.f32 %v6121, %v4799
        %v6124 = vmul.f32 %v6121, %v4800
        %v6125 = vmul.f32 %v6121, %v4801
        %v6126 = vmul.f32 %v6121, %v4802
        %v6127 = vmul.f32 %v6121, %v4803
        %v6128 = vmul.f32 %v6121, %v4804
        %v6129 = vmul.f32 %v6121, %v4805
        %v6130 = vadd.f32 %v6110, %v6122
        %v6131 = vadd.f32 %v6111, %v6123
        %v6132 = vadd.f32 %v6112, %v6124
        %v6133 = vadd.f32 %v6113, %v6125
        %v6134 = vadd.f32 %v6114, %v6126
        %v6135 = vadd.f32 %v6115, %v6127
        %v6136 = vadd.f32 %v6116, %v6128
        %v6137 = vadd.f32 %v6117, %v6129
        %v6138 = vlaneseq
        %v6139 = vshrl.u32 %v6138, 7
        %v6140 = vsub.s32 0, %v6139
        %v6141 = vrot.slane %v6089, %v6140
        %v6142 = vmul.f32 %v6141, %v4850
        %v6143 = vmul.f32 %v6141, %v4851
        %v6144 = vmul.f32 %v6141, %v4852
        %v6145 = vmul.f32 %v6141, %v4853
        %v6146 = vmul.f32 %v6141, %v4854
        %v6147 = vmul.f32 %v6141, %v4855
        %v6148 = vmul.f32 %v6141, %v4856
        %v6149 = vmul.f32 %v6141, %v4857
        %v6150 = vadd.f32 %v6130, %v6142
        %v6151 = vadd.f32 %v6131, %v6143
        %v6152 = vadd.f32 %v6132, %v6144
        %v6153 = vadd.f32 %v6133, %v6145
        %v6154 = vadd.f32 %v6134, %v6146
        %v6155 = vadd.f32 %v6135, %v6147
        %v6156 = vadd.f32 %v6136, %v6148
        %v6157 = vadd.f32 %v6137, %v6149
        %v6158 = vmax.f32 %v6150, 0.0
        %v6159 = vmax.f32 %v6151, 0.0
        %v6160 = vmax.f32 %v6152, 0.0
        %v6161 = vmax.f32 %v6153, 0.0
        %v6162 = vmax.f32 %v6154, 0.0
        %v6163 = vmax.f32 %v6155, 0.0
        %v6164 = vmax.f32 %v6156, 0.0
        %v6165 = vmax.f32 %v6157, 0.0
        %v6166 = vld [vmem:[%s67] sm:$0xff]
        %v6167 = vld [vmem:[%s67 + $0x8] sm:$0xff]
        %v6168 = vld [vmem:[%s67 + $0x10] sm:$0xff]
        %v6169 = vld [vmem:[%s67 + $0x18] sm:$0xff]
        %v6170 = vld [vmem:[#allocation2] sm:$0x1]
        %v6172 = vlaneseq
        %v6173 = vshrl.u32 %v6172, 7
        %v6174 = vsub.s32 0, %v6173
        %v6175 = vrot.slane %v6170, %v6174
        %6176 = vset.pattern.permute.xlu0 0
        %6177 = vperm.xlu0 %6176, %v6175
        %v6178 = vpop.permute.xlu0 %6177
        %6180 = vmatprep.subr.mxu0 0.0
        %6181 = vmatpush1.msra.mxu0 %v5605
        %6182 = vmatprep.subr.mxu0 0.0
        %6183 = vmatpush1.msra.mxu0 %v5606
        %6184 = vmatprep.subr.mxu0 0.0
        %6185 = vmatpush1.msra.mxu0 %v5607
        %6186 = vmatprep.subr.mxu0 0.0
        %6187 = vmatpush1.msra.mxu0 %v5608
        %6188 = vmatprep.subr.mxu0 0.0
        %6189 = vmatpush1.msra.mxu0 %v5609
        %6190 = vmatprep.subr.mxu0 0.0
        %6191 = vmatpush1.msra.mxu0 %v5610
        %6192 = vmatprep.subr.mxu0 0.0
        %6193 = vmatpush1.msra.mxu0 %v5611
        %6194 = vmatprep.subr.mxu0 0.0
        %6195 = vmatpush1.msra.mxu0 %v5612
        %6196 = vmatprep.subr.mxu0 0.0
        %6197 = vmatpush1.msra.mxu0 %v5684
        %6198 = vmatprep.subr.mxu0 0.0
        %6199 = vmatpush1.msra.mxu0 %v5685
        %6200 = vmatprep.subr.mxu0 0.0
        %6201 = vmatpush1.msra.mxu0 %v5686
        %6202 = vmatprep.subr.mxu0 0.0
        %6203 = vmatpush1.msra.mxu0 %v5687
        %6204 = vmatprep.subr.mxu0 0.0
        %6205 = vmatpush1.msra.mxu0 %v5688
        %6206 = vmatprep.subr.mxu0 0.0
        %6207 = vmatpush1.msra.mxu0 %v5689
        %6208 = vmatprep.subr.mxu0 0.0
        %6209 = vmatpush1.msra.mxu0 %v5690
        %6210 = vmatprep.subr.mxu0 0.0
        %6211 = vmatpush1.msra.mxu0 %v5691
        %6212 = vmatprep.subr.mxu0 0.0
        %6213 = vmatpush1.msra.mxu0 %v5763
        %6214 = vmatprep.subr.mxu0 0.0
        %6215 = vmatpush1.msra.mxu0 %v5764
        %6216 = vmatprep.subr.mxu0 0.0
        %6217 = vmatpush1.msra.mxu0 %v5765
        %6218 = vmatprep.subr.mxu0 0.0
        %6219 = vmatpush1.msra.mxu0 %v5766
        %6220 = vmatprep.subr.mxu0 0.0
        %6221 = vmatpush1.msra.mxu0 %v5767
        %6222 = vmatprep.subr.mxu0 0.0
        %6223 = vmatpush1.msra.mxu0 %v5768
        %6224 = vmatprep.subr.mxu0 0.0
        %6225 = vmatpush1.msra.mxu0 %v5769
        %6226 = vmatprep.subr.mxu0 0.0
        %6227 = vmatpush1.msra.mxu0 %v5770
        %6228 = vmatprep.subr.mxu0 0.0
        %6229 = vmatpush1.msra.mxu0 %v5842
        %6230 = vmatprep.subr.mxu0 0.0
        %6231 = vmatpush1.msra.mxu0 %v5843
        %6232 = vmatprep.subr.mxu0 0.0
        %6233 = vmatpush1.msra.mxu0 %v5844
        %6234 = vmatprep.subr.mxu0 0.0
        %6235 = vmatpush1.msra.mxu0 %v5845
        %6236 = vmatprep.subr.mxu0 0.0
        %6237 = vmatpush1.msra.mxu0 %v5846
        %6238 = vmatprep.subr.mxu0 0.0
        %6239 = vmatpush1.msra.mxu0 %v5847
        %6240 = vmatprep.subr.mxu0 0.0
        %6241 = vmatpush1.msra.mxu0 %v5848
        %6242 = vmatprep.subr.mxu0 0.0
        %6243 = vmatpush1.msra.mxu0 %v5849
        %6244 = vmatprep.mubr.f32.mxu0 %v6167
        %6245 = vmatmul.mubr.f32.gmra.mrb[0].mxu0 %v6166
        %v6246 = vpop.f32.mrb[0].mxu0
        %v6247 = vadd.f32 %v6178, %v6246
        %v6248 = vpop.f32.mrb[0].mxu0
        %6249 = vdwg.mxu0
        %6250 = vmatprep.subr.mxu0 0.0
        %6251 = vmatpush1.msra.mxu0 %v5921
        %6252 = vmatprep.subr.mxu0 0.0
        %6253 = vmatpush1.msra.mxu0 %v5922
        %6254 = vmatprep.subr.mxu0 0.0
        %6255 = vmatpush1.msra.mxu0 %v5923
        %6256 = vmatprep.subr.mxu0 0.0
        %6257 = vmatpush1.msra.mxu0 %v5924
        %6258 = vmatprep.subr.mxu0 0.0
        %6259 = vmatpush1.msra.mxu0 %v5925
        %6260 = vmatprep.subr.mxu0 0.0
        %6261 = vmatpush1.msra.mxu0 %v5926
        %6262 = vmatprep.subr.mxu0 0.0
        %6263 = vmatpush1.msra.mxu0 %v5927
        %6264 = vmatprep.subr.mxu0 0.0
        %6265 = vmatpush1.msra.mxu0 %v5928
        %6266 = vmatprep.subr.mxu0 0.0
        %6267 = vmatpush1.msra.mxu0 %v6000
        %6268 = vmatprep.subr.mxu0 0.0
        %6269 = vmatpush1.msra.mxu0 %v6001
        %6270 = vmatprep.subr.mxu0 0.0
        %6271 = vmatpush1.msra.mxu0 %v6002
        %6272 = vmatprep.subr.mxu0 0.0
        %6273 = vmatpush1.msra.mxu0 %v6003
        %6274 = vmatprep.subr.mxu0 0.0
        %6275 = vmatpush1.msra.mxu0 %v6004
        %6276 = vmatprep.subr.mxu0 0.0
        %6277 = vmatpush1.msra.mxu0 %v6005
        %6278 = vmatprep.subr.mxu0 0.0
        %6279 = vmatpush1.msra.mxu0 %v6006
        %6280 = vmatprep.subr.mxu0 0.0
        %6281 = vmatpush1.msra.mxu0 %v6007
        %6282 = vmatprep.subr.mxu0 0.0
        %6283 = vmatpush1.msra.mxu0 %v6079
        %6284 = vmatprep.subr.mxu0 0.0
        %6285 = vmatpush1.msra.mxu0 %v6080
        %6286 = vmatprep.subr.mxu0 0.0
        %6287 = vmatpush1.msra.mxu0 %v6081
        %6288 = vmatprep.subr.mxu0 0.0
        %6289 = vmatpush1.msra.mxu0 %v6082
        %6290 = vmatprep.subr.mxu0 0.0
        %6291 = vmatpush1.msra.mxu0 %v6083
        %6292 = vmatprep.subr.mxu0 0.0
        %6293 = vmatpush1.msra.mxu0 %v6084
        %6294 = vmatprep.subr.mxu0 0.0
        %6295 = vmatpush1.msra.mxu0 %v6085
        %6296 = vmatprep.subr.mxu0 0.0
        %6297 = vmatpush1.msra.mxu0 %v6086
        %6298 = vmatprep.subr.mxu0 0.0
        %6299 = vmatpush1.msra.mxu0 %v6158
        %6300 = vmatprep.subr.mxu0 0.0
        %6301 = vmatpush1.msra.mxu0 %v6159
        %6302 = vmatprep.subr.mxu0 0.0
        %6303 = vmatpush1.msra.mxu0 %v6160
        %6304 = vmatprep.subr.mxu0 0.0
        %6305 = vmatpush1.msra.mxu0 %v6161
        %6306 = vmatprep.subr.mxu0 0.0
        %6307 = vmatpush1.msra.mxu0 %v6162
        %6308 = vmatprep.subr.mxu0 0.0
        %6309 = vmatpush1.msra.mxu0 %v6163
        %6310 = vmatprep.subr.mxu0 0.0
        %6311 = vmatpush1.msra.mxu0 %v6164
        %6312 = vmatprep.subr.mxu0 0.0
        %6313 = vmatpush1.msra.mxu0 %v6165
        %6314 = vmatprep.mubr.f32.mxu0 %v6169
        %6315 = vmatmul.mubr.f32.gmra.mrb[0].mxu0 %v6168
        %v6316 = vpop.f32.mrb[0].mxu0
        %v6317 = vadd.f32 %v6247, %v6316
        %v6318 = vpop.f32.mrb[0].mxu0
        %6319 = vdwg.mxu0
        %v6320 = vrot.slane %v6317, 4
        %v6321 = vmax.f32 %v6317, %v6320
        %v6322 = vrot.slane %v6321, 2
        %v6323 = vmax.f32 %v6321, %v6322
        %v6324 = vrot.slane %v6323, 1
        %v6325 = vmax.f32 %v6323, %v6324
        %v6326 = vsub.f32 %v6317, %v6325
        %v6327 = vmul.f32 %v6326, 1.442695
        %v6328 = vpow.pop %v6327
        %v6329 = vrot.slane %v6328, 4
        %v6330 = vadd.f32 %v6328, %v6329
        %v6331 = vrot.slane %v6330, 2
        %v6332 = vadd.f32 %v6330, %v6331
        %v6333 = vrot.slane %v6332, 1
        %v6334 = vadd.f32 %v6332, %v6333
        %v6335 = vrcp.pop %v6334
        %v6336 = vmul.f32 1.0, %v6335
        %v6337 = vmul.f32 %v6328, %v6336
        %6338 = vst [vmem:[%s1149] sm:$0xff] %v6337
        %p6339 = scmp.lt.s32.totalorder %s84, 1
        %s6340 = scalar_select %p6339, %s84, 1
        %s6341 = smul.addr %s6340, 8
        %s6342 = scalar_lea.vmem %s71, %s6341
        // Predicated region
        $region199: #{gnn_fixed_k_forward.1} parent=193 // pred_check
          %p6343 = pneg %p847
        $region200: #{gnn_fixed_k_forward.1} parent=193 // pred_check_branch
          %6345 = sbr.rel (%p6343) target = $region202
        $region201: #{gnn_fixed_k_forward.1} parent=193 // pred_region
          _
        $region202: #{gnn_fixed_k_forward.1} parent=193 // pred_fallthru
          _
      $region194: #{gnn_fixed_k_forward.1} parent=5 // pred_fallthru
        _
      %p6346 = scmp.le.s32.totalorder 2, %s79
      // Predicated region
      $region203: #{gnn_fixed_k_forward.1} parent=5 // pred_check
        %p6347 = pneg %p6346
      $region204: #{gnn_fixed_k_forward.1} parent=5 // pred_check_branch
        %6349 = sbr.rel (%p6347) target = $region206
      $region205: #{gnn_fixed_k_forward.1} parent=5 // pred_region
        %s6350 = ssub.s32 %s79, 2
        // Predicated region
        $region207: #{gnn_fixed_k_forward.1} parent=205 // pred_check
          %p6351 = pneg %p853
        $region208: #{gnn_fixed_k_forward.1} parent=205 // pred_check_branch
          %6353 = sbr.rel (%p6351) target = $region210
        $region209: #{gnn_fixed_k_forward.1} parent=205 // pred_region
          %p6354 = scmp.lt.s32.totalorder %s85, 1
          %s6355 = scalar_select %p6354, %s85, 1
          %s6356 = smul.addr %s6355, 8
          %s6357 = scalar_lea.vmem %s71, %s6356
        $region210: #{gnn_fixed_k_forward.1} parent=205 // pred_fallthru
          _
      $region206: #{gnn_fixed_k_forward.1} parent=5 // pred_fallthru
        _
    $region6: #{gnn_fixed_k_forward.1} parent=1 // loop_footer
      %s83 = sadd.s32 1, %s79
    $region7: #{gnn_fixed_k_forward.1} parent=1 // loop_footer_branch
      %78 = sbr.rel target = $region3
    $region8: #{gnn_fixed_k_forward.1} parent=1 // loop_exit
      _

</llo_original>
